<compile_context>
chip_gen: v7x
topology: tpu7x:2x2x1
jax: 0.10.0
libtpu: 0.0.40
codegen_flags: <defaults>
</compile_context>

<pallas_src>
import functools

import jax
import jax.numpy as jnp
from jax.experimental import pallas as pl
from jax.experimental.pallas import tpu as pltpu

# ----------------------------- model hyper-params (small) -------------------
PATCH = 8           # backbone downsample factor (stand-in for resnet stride 32)
C_BACK = 64         # backbone output channels (stand-in for 2048)
HIDDEN = 32         # hidden_dim
NHEAD = 4
FFN_DIM = 64
NUM_QUERIES = 8
NUM_CLASSES = 4     # -> class head outputs NUM_CLASSES + 1
HEAD_OUT = NUM_CLASSES + 1 + 4   # merged class + box head output width


# ----------------------------- fused whole-model kernel ---------------------
def mini_detr_kernel(patches_ref, pos_ref, query_ref, wslab_ref, vslab_ref,
                     out_ref, *, widx, vidx, num_heads, num_classes):
    f32, bf16 = jnp.float32, jnp.bfloat16
    tb, s, _ = patches_ref.shape          # batch tile, tokens per image
    d = pos_ref.shape[-1]                 # hidden dim
    nq = query_ref.shape[0]               # number of object queries
    hd = d // num_heads

    # The bias / LayerNorm slab is tiny (~3 vregs); load it once and slice
    # the value.  The (bigger) weight slab is sliced as a ref per use.
    vs = vslab_ref[...]                                        # f32 [NV, 128]

    def V(name):                           # [1, width] f32 row vector
        r, _, c = vidx[name]
        return vs[r:r + 1, :c]

    def W(name):                           # [rows, cols] bf16 weight block
        r, n, c = widx[name]
        return wslab_ref[r:r + n, 0:c]

    def mm(x, w):                          # bf16 MXU matmul, f32 accumulate
        return jnp.dot(x.astype(bf16), w, preferred_element_type=f32)

    def layer_norm(y, gname, bname, eps=1e-5):
        mu = jnp.mean(y, axis=-1, keepdims=True)
        var = jnp.mean(jnp.square(y - mu), axis=-1, keepdims=True)
        return (y - mu) * jax.lax.rsqrt(var + eps) * V(gname) + V(bname)

    def softmax_last(sc):
        sc = sc - jnp.max(sc, axis=-1, keepdims=True)
        e = jnp.exp(sc)
        # approx reciprocal -> EUP slot instead of the VPU divide path
        return e * pl.reciprocal(jnp.sum(e, axis=-1, keepdims=True), approx=True)

    def ffn(x, prefix):
        h = jnp.maximum(mm(x, W(prefix + "_w1")) + V(prefix + "_b1"), 0.0)
        return mm(h, W(prefix + "_w2")) + V(prefix + "_b2")

    def attention(xq2d, xkv2d, nb, lq, lk, prefix, same):
        """Multi-head attention on VMEM-resident values.

        xq2d: [nb*lq, d], xkv2d: [nb*lk, d].  One fused QKV projection matmul
        (or Q + fused KV for cross-attention) and one fused output projection;
        heads are extracted by static lane slices.  The score/PV step runs
        per-batch via a batched einsum over the folded batch tile.
        """
        wqkv = W(prefix + "_wqkv")                     # [d, 3d] bf16
        bqkv = V(prefix + "_bqkv")                     # [1, 3d] f32
        if same:
            qkv = mm(xq2d, wqkv) + bqkv                # [nb*lq, 3d]
            q2d, k2d, v2d = qkv[:, :d], qkv[:, d:2 * d], qkv[:, 2 * d:]
        else:
            q2d = mm(xq2d, wqkv[:, :d]) + bqkv[:, :d]
            kv = mm(xkv2d, wqkv[:, d:]) + bqkv[:, d:]  # [nb*lk, 2d]
            k2d, v2d = kv[:, :d], kv[:, d:]

        scale = 1.0 / float(hd) ** 0.5
        outs = []
        for h in range(num_heads):                     # static unroll, H small
            qh = q2d[:, h * hd:(h + 1) * hd]
            kh = k2d[:, h * hd:(h + 1) * hd]
            vh = v2d[:, h * hd:(h + 1) * hd]
            if nb == 1:
                sc = jnp.dot(qh.astype(bf16), kh.astype(bf16).T,
                             preferred_element_type=f32) * scale
                p = softmax_last(sc)
                oh = jnp.dot(p.astype(bf16), vh.astype(bf16),
                             preferred_element_type=f32)
            else:
                sc = jnp.einsum('bqd,bkd->bqk',
                                qh.reshape(nb, lq, hd).astype(bf16),
                                kh.reshape(nb, lk, hd).astype(bf16),
                                preferred_element_type=f32) * scale
                p = softmax_last(sc)
                oh = jnp.einsum('bqk,bkd->bqd', p.astype(bf16),
                                vh.reshape(nb, lk, hd).astype(bf16),
                                preferred_element_type=f32).reshape(nb * lq, hd)
            outs.append(oh)
        o = jnp.concatenate(outs, axis=-1)             # [nb*lq, d]
        return mm(o, W(prefix + "_wo")) + V(prefix + "_bo")

    # ---- backbone stand-in (patchify matmul + ReLU) + input_proj + pos -----
    tokens = patches_ref[...].reshape(tb * s, -1)                  # bf16 [M, PIN]
    feats = jnp.maximum(mm(tokens, W("backbone_w")) + V("backbone_b"), 0.0)
    src = mm(feats, W("proj_w")) + V("proj_b") + pos_ref[...]      # [tb*s, d] f32

    # ---- encoder layer (post-norm); token-wise ops on the folded batch -----
    a = attention(src, src, tb, s, s, "enc_sa", same=True)
    x = layer_norm(a + src, "enc_ln1_g", "enc_ln1_b")
    memory = layer_norm(ffn(x, "enc_ffn") + x, "enc_ln2_g", "enc_ln2_b")

    # ---- decoder layer (post-norm) ------------------------------------------
    # tgt = query_embed is identical for every batch element, so the decoder
    # self-attention block is computed once and broadcast before cross-attn.
    tgt = query_ref[...]                                           # [nq, d] f32
    a = attention(tgt, tgt, 1, nq, nq, "dec_sa", same=True)
    xq = layer_norm(a + tgt, "dec_ln1_g", "dec_ln1_b")             # [nq, d]
    xqt = jnp.concatenate([xq] * tb, axis=0)                       # [tb*nq, d]
    a2 = attention(xqt, memory, tb, nq, s, "dec_ca", same=False)
    x = layer_norm(a2 + xqt, "dec_ln2_g", "dec_ln2_b")
    hs = layer_norm(ffn(x, "dec_ffn") + x, "dec_ln3_g", "dec_ln3_b")   # [tb*nq, d]

    # ---- merged class + box heads: one matmul, sigmoid on box lanes only ----
    y = mm(hs, W("heads_w")) + V("heads_b")                        # [tb*nq, 9]
    col = jax.lax.broadcasted_iota(jnp.int32, y.shape, 1)
    y = jnp.where(col >= num_classes + 1, jax.nn.sigmoid(y), y)
    # TODO(synk): output last dim is 9 -> masked vst; lane-dense packing of the
    # output only matters if queries/heads are scaled toward real DETR sizes.
    out_ref[...] = y.reshape(tb, nq, -1).astype(out_ref.dtype)


# ----------------------------- wrapper helpers -------------------------------
def _pick_tb(batch, seq, target_rows=128):
    """Pick the batch tile so TB*S ~ target_rows (128 matches v5e's 4x128 MXU;
    v6e/v7x tolerate up to ~256) while keeping the grid at least 2 wide so
    v7x's two TensorCores each get a slice of the batch."""
    tb = max(1, min(batch, target_rows // max(seq, 1)))
    if batch >= 2:
        tb = max(1, min(tb, batch // 2))
    while batch % tb:
        tb -= 1
    return tb


def _pack_rows(named_arrays, pad_cols, dtype):
    """Stack 2-D arrays along rows, lane-padding each to pad_cols columns.
    Returns (slab, index) with index[name] = (row_offset, rows, cols)."""
    index, rows, off = {}, [], 0
    for name, a in named_arrays:
        r, c = a.shape
        index[name] = (off, r, c)
        rows.append(jnp.pad(a.astype(dtype), ((0, 0), (0, pad_cols - c))))
        off += r
    return jnp.concatenate(rows, axis=0), index


def position_embedding_sine(H, W, num_pos_feats, temperature=10000.0):
    # DETR PositionEmbeddingSine (normalize=False default), channels-last.
    y_embed = jnp.arange(1, H + 1, dtype=jnp.float32)[:, None] * jnp.ones((1, W), jnp.float32)
    x_embed = jnp.ones((H, 1), jnp.float32) * jnp.arange(1, W + 1, dtype=jnp.float32)[None, :]
    idx = jnp.arange(num_pos_feats)
    dim_t = temperature ** (2.0 * (idx // 2).astype(jnp.float32) / num_pos_feats)
    pos_x = x_embed[:, :, None] / dim_t
    pos_y = y_embed[:, :, None] / dim_t
    pos_x = jnp.stack([jnp.sin(pos_x[:, :, 0::2]), jnp.cos(pos_x[:, :, 1::2])],
                      axis=3).reshape(H, W, num_pos_feats)
    pos_y = jnp.stack([jnp.sin(pos_y[:, :, 0::2]), jnp.cos(pos_y[:, :, 1::2])],
                      axis=3).reshape(H, W, num_pos_feats)
    return jnp.concatenate([pos_y, pos_x], axis=-1)          # [H, W, 2*npf]


def init_params(key):
    keys = iter(jax.random.split(key, 64))

    def w(shape, scale=0.1):
        return scale * jax.random.normal(next(keys), shape, dtype=jnp.float32)

    def zeros(shape):
        return jnp.zeros(shape, jnp.float32)

    def ones(shape):
        return jnp.ones(shape, jnp.float32)

    def attn(d):
        return dict(wq=w((d, d)), bq=zeros((1, d)),
                    wk=w((d, d)), bk=zeros((1, d)),
                    wv=w((d, d)), bv=zeros((1, d)),
                    wo=w((d, d)), bo=zeros((1, d)))

    d = HIDDEN
    return dict(
        backbone_w=w((PATCH * PATCH * 3, C_BACK)), backbone_b=zeros((1, C_BACK)),
        proj_w=w((C_BACK, d)), proj_b=zeros((1, d)),
        query_embed=w((NUM_QUERIES, d), scale=1.0),
        enc=dict(self_attn=attn(d),
                 ln1_g=ones((1, d)), ln1_b=zeros((1, d)),
                 ffn_w1=w((d, FFN_DIM)), ffn_b1=zeros((1, FFN_DIM)),
                 ffn_w2=w((FFN_DIM, d)), ffn_b2=zeros((1, d)),
                 ln2_g=ones((1, d)), ln2_b=zeros((1, d))),
        dec=dict(self_attn=attn(d), cross_attn=attn(d),
                 ln1_g=ones((1, d)), ln1_b=zeros((1, d)),
                 ln2_g=ones((1, d)), ln2_b=zeros((1, d)),
                 ffn_w1=w((d, FFN_DIM)), ffn_b1=zeros((1, FFN_DIM)),
                 ffn_w2=w((FFN_DIM, d)), ffn_b2=zeros((1, d)),
                 ln3_g=ones((1, d)), ln3_b=zeros((1, d))),
        cls_w=w((d, NUM_CLASSES + 1)), cls_b=zeros((1, NUM_CLASSES + 1)),
        box_w=w((d, 4)), box_b=zeros((1, 4)),
    )


@jax.jit
def mini_detr_forward(params, x_nchw):
    B = x_nchw.shape[0]
    x = jnp.transpose(x_nchw, (0, 2, 3, 1))                  # NCHW -> NHWC
    H0, W0, Cin = x.shape[1], x.shape[2], x.shape[3]
    Hf, Wf = H0 // PATCH, W0 // PATCH
    S = Hf * Wf
    PIN = PATCH * PATCH * Cin
    TB = _pick_tb(B, S)

    # TODO(synk): pretrained ResNet-50 backbone cannot be reproduced in-script;
    # replaced by a deterministic stride-PATCH patchify matmul + ReLU producing
    # a C_BACK-channel feature map (stand-in for the 2048-channel C5 output).
    # TODO(synk): the 6-D patchify reshape/transpose stays in XLA; folding it
    # into the kernel via per-row-slab accumulation only matters at real DETR
    # image/channel sizes.
    patches = x.reshape(B, Hf, PATCH, Wf, PATCH, Cin).transpose(0, 1, 3, 2, 4, 5)
    patches = patches.reshape(B, S, PIN).astype(jnp.bfloat16)   # bf16 halves DMA

    pos = position_embedding_sine(Hf, Wf, HIDDEN // 2).reshape(S, HIDDEN)
    pos_tiled = jnp.tile(pos, (TB, 1))                        # [TB*S, D] f32

    # ---- consolidate every parameter into two packed slabs -------------------
    def qkv_pack(a):
        return (jnp.concatenate([a["wq"], a["wk"], a["wv"]], axis=1),
                jnp.concatenate([a["bq"], a["bk"], a["bv"]], axis=1))

    enc, dec = params["enc"], params["dec"]
    enc_wqkv, enc_bqkv = qkv_pack(enc["self_attn"])
    dsa_wqkv, dsa_bqkv = qkv_pack(dec["self_attn"])
    dca_wqkv, dca_bqkv = qkv_pack(dec["cross_attn"])

    w_slab, widx = _pack_rows([
        ("backbone_w", params["backbone_w"]),
        ("proj_w", params["proj_w"]),
        ("enc_sa_wqkv", enc_wqkv),
        ("enc_sa_wo", enc["self_attn"]["wo"]),
        ("enc_ffn_w1", enc["ffn_w1"]),
        ("enc_ffn_w2", enc["ffn_w2"]),
        ("dec_sa_wqkv", dsa_wqkv),
        ("dec_sa_wo", dec["self_attn"]["wo"]),
        ("dec_ca_wqkv", dca_wqkv),
        ("dec_ca_wo", dec["cross_attn"]["wo"]),
        ("dec_ffn_w1", dec["ffn_w1"]),
        ("dec_ffn_w2", dec["ffn_w2"]),
        ("heads_w", jnp.concatenate([params["cls_w"], params["box_w"]], axis=1)),
    ], pad_cols=128, dtype=jnp.bfloat16)

    v_slab, vidx = _pack_rows([
        ("backbone_b", params["backbone_b"]),
        ("proj_b", params["proj_b"]),
        ("enc_sa_bqkv", enc_bqkv),
        ("enc_sa_bo", enc["self_attn"]["bo"]),
        ("enc_ln1_g", enc["ln1_g"]), ("enc_ln1_b", enc["ln1_b"]),
        ("enc_ffn_b1", enc["ffn_b1"]), ("enc_ffn_b2", enc["ffn_b2"]),
        ("enc_ln2_g", enc["ln2_g"]), ("enc_ln2_b", enc["ln2_b"]),
        ("dec_sa_bqkv", dsa_bqkv),
        ("dec_sa_bo", dec["self_attn"]["bo"]),
        ("dec_ln1_g", dec["ln1_g"]), ("dec_ln1_b", dec["ln1_b"]),
        ("dec_ca_bqkv", dca_bqkv),
        ("dec_ca_bo", dec["cross_attn"]["bo"]),
        ("dec_ln2_g", dec["ln2_g"]), ("dec_ln2_b", dec["ln2_b"]),
        ("dec_ffn_b1", dec["ffn_b1"]), ("dec_ffn_b2", dec["ffn_b2"]),
        ("dec_ln3_g", dec["ln3_g"]), ("dec_ln3_b", dec["ln3_b"]),
        ("heads_b", jnp.concatenate([params["cls_b"], params["box_b"]], axis=1)),
    ], pad_cols=128, dtype=jnp.float32)

    # Constant index_map -> slabs are DMA'd once and stay resident in VMEM.
    # Total footprint < 1 MiB, far below any generation's VMEM limit.
    out = pl.pallas_call(
        functools.partial(mini_detr_kernel, widx=widx, vidx=vidx,
                          num_heads=NHEAD, num_classes=NUM_CLASSES),
        grid=(B // TB,),
        in_specs=[
            pl.BlockSpec((TB, S, PIN), lambda b: (b, 0, 0)),
            pl.BlockSpec(pos_tiled.shape, lambda b: (0, 0)),
            pl.BlockSpec(params["query_embed"].shape, lambda b: (0, 0)),
            pl.BlockSpec(w_slab.shape, lambda b: (0, 0)),
            pl.BlockSpec(v_slab.shape, lambda b: (0, 0)),
        ],
        out_specs=pl.BlockSpec((TB, NUM_QUERIES, HEAD_OUT), lambda b: (b, 0, 0)),
        out_shape=jax.ShapeDtypeStruct((B, NUM_QUERIES, HEAD_OUT), jnp.float32),
        compiler_params=pltpu.CompilerParams(
            dimension_semantics=("parallel",)),   # v7x: one batch slice per TC
    )(patches, pos_tiled, params["query_embed"], w_slab, v_slab)

    logits = out[:, :, :NUM_CLASSES + 1]
    boxes = out[:, :, NUM_CLASSES + 1:]
    # batch-major layout means the reference's .transpose(0, 1) is already done.
    return {"pred_logits": logits, "pred_boxes": boxes}


if __name__ == "__main__":
    key = jax.random.PRNGKey(0)
    k_param, k_x = jax.random.split(key)
    params = init_params(k_param)
    # B=8 so batch folding kicks in: TB=4 (64 MXU rows per matmul) with a
    # 2-wide grid (one slice per v7x TensorCore).
    x = jax.random.normal(k_x, (8, 3, 32, 32), dtype=jnp.float32)   # NCHW like PyTorch
    out = mini_detr_forward(params, x)
    jax.block_until_ready(out)
    assert out["pred_logits"].shape == (8, NUM_QUERIES, NUM_CLASSES + 1)
    assert out["pred_boxes"].shape == (8, NUM_QUERIES, 4)
    assert bool(jnp.all((out["pred_boxes"] >= 0.0) & (out["pred_boxes"] <= 1.0)))
    print("KERNEL_OK")
</pallas_src>

<mosaic_0001>
module attributes {stable_mosaic.version = 11 : i64} {
  func.func @mini_detr_kernel(%arg0: i32, %arg1: memref<4x16x192xbf16, #tpu.memory_space<vmem>>, %arg2: memref<64x32xf32, #tpu.memory_space<vmem>>, %arg3: memref<8x32xf32, #tpu.memory_space<vmem>>, %arg4: memref<672x128xbf16, #tpu.memory_space<vmem>>, %arg5: memref<23x128xf32, #tpu.memory_space<vmem>>, %arg6: memref<4x8x9xf32, #tpu.memory_space<vmem>>) attributes {dimension_semantics = [#tpu.dimension_semantics<parallel>], iteration_bounds = array<i64: 2>, scalar_prefetch = 0 : i64, scratch_operands = 0 : i64, tpu.core_type = #tpu.core_type<tc>, window_params = [{transform_indices = @transform_0, window_bounds = array<i64: 4, 16, 192>}, {pipeline_mode = #tpu.pipeline_mode<synchronous>, transform_indices = @transform_1, window_bounds = array<i64: 64, 32>}, {pipeline_mode = #tpu.pipeline_mode<synchronous>, transform_indices = @transform_2, window_bounds = array<i64: 8, 32>}, {pipeline_mode = #tpu.pipeline_mode<synchronous>, transform_indices = @transform_3, window_bounds = array<i64: 672, 128>}, {pipeline_mode = #tpu.pipeline_mode<synchronous>, transform_indices = @transform_4, window_bounds = array<i64: 23, 128>}, {transform_indices = @transform_5, window_bounds = array<i64: 4, 8, 9>}]} {
    %c0 = arith.constant 0 : index
    %c0_0 = arith.constant 0 : index
    %0 = vector.load %arg5[%c0, %c0_0] : memref<23x128xf32, #tpu.memory_space<vmem>>, vector<23x128xf32>
    %c0_1 = arith.constant 0 : index
    %c0_2 = arith.constant 0 : index
    %c0_3 = arith.constant 0 : index
    %1 = vector.load %arg1[%c0_1, %c0_2, %c0_3] : memref<4x16x192xbf16, #tpu.memory_space<vmem>>, vector<4x16x192xbf16>
    %2 = vector.shape_cast %1 : vector<4x16x192xbf16> to vector<64x192xbf16>
    %c0_4 = arith.constant 0 : index
    %c0_5 = arith.constant 0 : index
    %3 = vector.load %arg4[%c0_4, %c0_5] : memref<672x128xbf16, #tpu.memory_space<vmem>>, vector<192x64xbf16>
    %cst = arith.constant dense<0.000000e+00> : vector<64x64xf32>
    %4 = tpu.matmul %2, %3, %cst {dimension_numbers = #tpu.dot_dimension_numbers<[1], [0], [0], [1], [0, 0, 1, 1], [], []>} : vector<64x192xbf16>, vector<192x64xbf16>, vector<64x64xf32> -> vector<64x64xf32>
    %5 = vector.extract_strided_slice %0 {offsets = [0, 0], sizes = [1, 64], strides = [1, 1]} : vector<23x128xf32> to vector<1x64xf32>
    %6 = vector.broadcast %5 : vector<1x64xf32> to vector<64x64xf32>
    %7 = arith.addf %4, %6 : vector<64x64xf32>
    %cst_6 = arith.constant 0.000000e+00 : f32
    %8 = vector.broadcast %cst_6 : f32 to vector<64x64xf32>
    %9 = arith.maximumf %7, %8 : vector<64x64xf32>
    %c192 = arith.constant 192 : index
    %c0_7 = arith.constant 0 : index
    %10 = vector.load %arg4[%c192, %c0_7] : memref<672x128xbf16, #tpu.memory_space<vmem>>, vector<64x32xbf16>
    %11 = arith.truncf %9 : vector<64x64xf32> to vector<64x64xbf16>
    %cst_8 = arith.constant dense<0.000000e+00> : vector<64x32xf32>
    %12 = tpu.matmul %11, %10, %cst_8 {dimension_numbers = #tpu.dot_dimension_numbers<[1], [0], [0], [1], [0, 0, 1, 1], [], []>} : vector<64x64xbf16>, vector<64x32xbf16>, vector<64x32xf32> -> vector<64x32xf32>
    %13 = vector.extract_strided_slice %0 {offsets = [1, 0], sizes = [1, 32], strides = [1, 1]} : vector<23x128xf32> to vector<1x32xf32>
    %14 = vector.broadcast %13 : vector<1x32xf32> to vector<64x32xf32>
    %15 = arith.addf %12, %14 : vector<64x32xf32>
    %c0_9 = arith.constant 0 : index
    %c0_10 = arith.constant 0 : index
    %16 = vector.load %arg2[%c0_9, %c0_10] : memref<64x32xf32, #tpu.memory_space<vmem>>, vector<64x32xf32>
    %17 = arith.addf %15, %16 : vector<64x32xf32>
    %c256 = arith.constant 256 : index
    %c0_11 = arith.constant 0 : index
    %18 = vector.load %arg4[%c256, %c0_11] : memref<672x128xbf16, #tpu.memory_space<vmem>>, vector<32x96xbf16>
    %19 = vector.extract_strided_slice %0 {offsets = [2, 0], sizes = [1, 96], strides = [1, 1]} : vector<23x128xf32> to vector<1x96xf32>
    %20 = arith.truncf %17 : vector<64x32xf32> to vector<64x32xbf16>
    %cst_12 = arith.constant dense<0.000000e+00> : vector<64x96xf32>
    %21 = tpu.matmul %20, %18, %cst_12 {dimension_numbers = #tpu.dot_dimension_numbers<[1], [0], [0], [1], [0, 0, 1, 1], [], []>} : vector<64x32xbf16>, vector<32x96xbf16>, vector<64x96xf32> -> vector<64x96xf32>
    %22 = vector.broadcast %19 : vector<1x96xf32> to vector<64x96xf32>
    %23 = arith.addf %21, %22 : vector<64x96xf32>
    %24 = vector.extract_strided_slice %23 {offsets = [0, 0], sizes = [64, 32], strides = [1, 1]} : vector<64x96xf32> to vector<64x32xf32>
    %25 = vector.extract_strided_slice %23 {offsets = [0, 32], sizes = [64, 32], strides = [1, 1]} : vector<64x96xf32> to vector<64x32xf32>
    %26 = vector.extract_strided_slice %23 {offsets = [0, 64], sizes = [64, 32], strides = [1, 1]} : vector<64x96xf32> to vector<64x32xf32>
    %27 = vector.extract_strided_slice %24 {offsets = [0, 0], sizes = [64, 8], strides = [1, 1]} : vector<64x32xf32> to vector<64x8xf32>
    %28 = vector.extract_strided_slice %25 {offsets = [0, 0], sizes = [64, 8], strides = [1, 1]} : vector<64x32xf32> to vector<64x8xf32>
    %29 = vector.extract_strided_slice %26 {offsets = [0, 0], sizes = [64, 8], strides = [1, 1]} : vector<64x32xf32> to vector<64x8xf32>
    %30 = vector.shape_cast %27 : vector<64x8xf32> to vector<4x16x8xf32>
    %31 = arith.truncf %30 : vector<4x16x8xf32> to vector<4x16x8xbf16>
    %32 = vector.shape_cast %28 : vector<64x8xf32> to vector<4x16x8xf32>
    %33 = arith.truncf %32 : vector<4x16x8xf32> to vector<4x16x8xbf16>
    "tpu.trace_start"() <{level = 10 : i32, message = "bqd,bkd->bqk"}> : () -> ()
    %cst_13 = arith.constant dense<0.000000e+00> : vector<4x16x16xf32>
    %34 = tpu.matmul %31, %33, %cst_13 {dimension_numbers = #tpu.dot_dimension_numbers<[2], [2], [1], [1], [0, 0, 0, 1, 1, 1], [0], [0]>} : vector<4x16x8xbf16>, vector<4x16x8xbf16>, vector<4x16x16xf32> -> vector<4x16x16xf32>
    "tpu.trace_stop"() : () -> ()
    %cst_14 = arith.constant 0.353553385 : f32
    %35 = vector.broadcast %cst_14 : f32 to vector<4x16x16xf32>
    %36 = arith.mulf %34, %35 : vector<4x16x16xf32>
    %cst_15 = arith.constant dense<0xFF800000> : vector<4x16xf32>
    %37 = vector.multi_reduction <maximumf>, %36, %cst_15 [2] : vector<4x16x16xf32> to vector<4x16xf32>
    %38 = vector.shape_cast %37 : vector<4x16xf32> to vector<4x16x1xf32>
    %39 = vector.broadcast %38 : vector<4x16x1xf32> to vector<4x16x16xf32>
    %40 = arith.subf %36, %39 : vector<4x16x16xf32>
    %41 = math.exp %40 : vector<4x16x16xf32>
    %cst_16 = arith.constant dense<0.000000e+00> : vector<4x16xf32>
    %42 = vector.multi_reduction <add>, %41, %cst_16 [2] : vector<4x16x16xf32> to vector<4x16xf32>
    %43 = vector.shape_cast %42 : vector<4x16xf32> to vector<4x16x1xf32>
    %44 = tpu.reciprocal %43 {approx = true} : vector<4x16x1xf32> -> vector<4x16x1xf32>
    %45 = vector.broadcast %44 : vector<4x16x1xf32> to vector<4x16x16xf32>
    %46 = arith.mulf %41, %45 : vector<4x16x16xf32>
    %47 = arith.truncf %46 : vector<4x16x16xf32> to vector<4x16x16xbf16>
    %48 = vector.shape_cast %29 : vector<64x8xf32> to vector<4x16x8xf32>
    %49 = arith.truncf %48 : vector<4x16x8xf32> to vector<4x16x8xbf16>
    "tpu.trace_start"() <{level = 10 : i32, message = "bqk,bkd->bqd"}> : () -> ()
    %cst_17 = arith.constant dense<0.000000e+00> : vector<4x16x8xf32>
    %50 = tpu.matmul %47, %49, %cst_17 {dimension_numbers = #tpu.dot_dimension_numbers<[2], [1], [1], [2], [0, 0, 0, 1, 1, 2], [0], [0]>} : vector<4x16x16xbf16>, vector<4x16x8xbf16>, vector<4x16x8xf32> -> vector<4x16x8xf32>
    "tpu.trace_stop"() : () -> ()
    %51 = vector.shape_cast %50 : vector<4x16x8xf32> to vector<64x8xf32>
    %52 = vector.extract_strided_slice %24 {offsets = [0, 8], sizes = [64, 8], strides = [1, 1]} : vector<64x32xf32> to vector<64x8xf32>
    %53 = vector.extract_strided_slice %25 {offsets = [0, 8], sizes = [64, 8], strides = [1, 1]} : vector<64x32xf32> to vector<64x8xf32>
    %54 = vector.extract_strided_slice %26 {offsets = [0, 8], sizes = [64, 8], strides = [1, 1]} : vector<64x32xf32> to vector<64x8xf32>
    %55 = vector.shape_cast %52 : vector<64x8xf32> to vector<4x16x8xf32>
    %56 = arith.truncf %55 : vector<4x16x8xf32> to vector<4x16x8xbf16>
    %57 = vector.shape_cast %53 : vector<64x8xf32> to vector<4x16x8xf32>
    %58 = arith.truncf %57 : vector<4x16x8xf32> to vector<4x16x8xbf16>
    "tpu.trace_start"() <{level = 10 : i32, message = "bqd,bkd->bqk"}> : () -> ()
    %cst_18 = arith.constant dense<0.000000e+00> : vector<4x16x16xf32>
    %59 = tpu.matmul %56, %58, %cst_18 {dimension_numbers = #tpu.dot_dimension_numbers<[2], [2], [1], [1], [0, 0, 0, 1, 1, 1], [0], [0]>} : vector<4x16x8xbf16>, vector<4x16x8xbf16>, vector<4x16x16xf32> -> vector<4x16x16xf32>
    "tpu.trace_stop"() : () -> ()
    %cst_19 = arith.constant 0.353553385 : f32
    %60 = vector.broadcast %cst_19 : f32 to vector<4x16x16xf32>
    %61 = arith.mulf %59, %60 : vector<4x16x16xf32>
    %cst_20 = arith.constant dense<0xFF800000> : vector<4x16xf32>
    %62 = vector.multi_reduction <maximumf>, %61, %cst_20 [2] : vector<4x16x16xf32> to vector<4x16xf32>
    %63 = vector.shape_cast %62 : vector<4x16xf32> to vector<4x16x1xf32>
    %64 = vector.broadcast %63 : vector<4x16x1xf32> to vector<4x16x16xf32>
    %65 = arith.subf %61, %64 : vector<4x16x16xf32>
    %66 = math.exp %65 : vector<4x16x16xf32>
    %cst_21 = arith.constant dense<0.000000e+00> : vector<4x16xf32>
    %67 = vector.multi_reduction <add>, %66, %cst_21 [2] : vector<4x16x16xf32> to vector<4x16xf32>
    %68 = vector.shape_cast %67 : vector<4x16xf32> to vector<4x16x1xf32>
    %69 = tpu.reciprocal %68 {approx = true} : vector<4x16x1xf32> -> vector<4x16x1xf32>
    %70 = vector.broadcast %69 : vector<4x16x1xf32> to vector<4x16x16xf32>
    %71 = arith.mulf %66, %70 : vector<4x16x16xf32>
    %72 = arith.truncf %71 : vector<4x16x16xf32> to vector<4x16x16xbf16>
    %73 = vector.shape_cast %54 : vector<64x8xf32> to vector<4x16x8xf32>
    %74 = arith.truncf %73 : vector<4x16x8xf32> to vector<4x16x8xbf16>
    "tpu.trace_start"() <{level = 10 : i32, message = "bqk,bkd->bqd"}> : () -> ()
    %cst_22 = arith.constant dense<0.000000e+00> : vector<4x16x8xf32>
    %75 = tpu.matmul %72, %74, %cst_22 {dimension_numbers = #tpu.dot_dimension_numbers<[2], [1], [1], [2], [0, 0, 0, 1, 1, 2], [0], [0]>} : vector<4x16x16xbf16>, vector<4x16x8xbf16>, vector<4x16x8xf32> -> vector<4x16x8xf32>
    "tpu.trace_stop"() : () -> ()
    %76 = vector.shape_cast %75 : vector<4x16x8xf32> to vector<64x8xf32>
    %77 = vector.extract_strided_slice %24 {offsets = [0, 16], sizes = [64, 8], strides = [1, 1]} : vector<64x32xf32> to vector<64x8xf32>
    %78 = vector.extract_strided_slice %25 {offsets = [0, 16], sizes = [64, 8], strides = [1, 1]} : vector<64x32xf32> to vector<64x8xf32>
    %79 = vector.extract_strided_slice %26 {offsets = [0, 16], sizes = [64, 8], strides = [1, 1]} : vector<64x32xf32> to vector<64x8xf32>
    %80 = vector.shape_cast %77 : vector<64x8xf32> to vector<4x16x8xf32>
    %81 = arith.truncf %80 : vector<4x16x8xf32> to vector<4x16x8xbf16>
    %82 = vector.shape_cast %78 : vector<64x8xf32> to vector<4x16x8xf32>
    %83 = arith.truncf %82 : vector<4x16x8xf32> to vector<4x16x8xbf16>
    "tpu.trace_start"() <{level = 10 : i32, message = "bqd,bkd->bqk"}> : () -> ()
    %cst_23 = arith.constant dense<0.000000e+00> : vector<4x16x16xf32>
    %84 = tpu.matmul %81, %83, %cst_23 {dimension_numbers = #tpu.dot_dimension_numbers<[2], [2], [1], [1], [0, 0, 0, 1, 1, 1], [0], [0]>} : vector<4x16x8xbf16>, vector<4x16x8xbf16>, vector<4x16x16xf32> -> vector<4x16x16xf32>
    "tpu.trace_stop"() : () -> ()
    %cst_24 = arith.constant 0.353553385 : f32
    %85 = vector.broadcast %cst_24 : f32 to vector<4x16x16xf32>
    %86 = arith.mulf %84, %85 : vector<4x16x16xf32>
    %cst_25 = arith.constant dense<0xFF800000> : vector<4x16xf32>
    %87 = vector.multi_reduction <maximumf>, %86, %cst_25 [2] : vector<4x16x16xf32> to vector<4x16xf32>
    %88 = vector.shape_cast %87 : vector<4x16xf32> to vector<4x16x1xf32>
    %89 = vector.broadcast %88 : vector<4x16x1xf32> to vector<4x16x16xf32>
    %90 = arith.subf %86, %89 : vector<4x16x16xf32>
    %91 = math.exp %90 : vector<4x16x16xf32>
    %cst_26 = arith.constant dense<0.000000e+00> : vector<4x16xf32>
    %92 = vector.multi_reduction <add>, %91, %cst_26 [2] : vector<4x16x16xf32> to vector<4x16xf32>
    %93 = vector.shape_cast %92 : vector<4x16xf32> to vector<4x16x1xf32>
    %94 = tpu.reciprocal %93 {approx = true} : vector<4x16x1xf32> -> vector<4x16x1xf32>
    %95 = vector.broadcast %94 : vector<4x16x1xf32> to vector<4x16x16xf32>
    %96 = arith.mulf %91, %95 : vector<4x16x16xf32>
    %97 = arith.truncf %96 : vector<4x16x16xf32> to vector<4x16x16xbf16>
    %98 = vector.shape_cast %79 : vector<64x8xf32> to vector<4x16x8xf32>
    %99 = arith.truncf %98 : vector<4x16x8xf32> to vector<4x16x8xbf16>
    "tpu.trace_start"() <{level = 10 : i32, message = "bqk,bkd->bqd"}> : () -> ()
    %cst_27 = arith.constant dense<0.000000e+00> : vector<4x16x8xf32>
    %100 = tpu.matmul %97, %99, %cst_27 {dimension_numbers = #tpu.dot_dimension_numbers<[2], [1], [1], [2], [0, 0, 0, 1, 1, 2], [0], [0]>} : vector<4x16x16xbf16>, vector<4x16x8xbf16>, vector<4x16x8xf32> -> vector<4x16x8xf32>
    "tpu.trace_stop"() : () -> ()
    %101 = vector.shape_cast %100 : vector<4x16x8xf32> to vector<64x8xf32>
    %102 = vector.extract_strided_slice %24 {offsets = [0, 24], sizes = [64, 8], strides = [1, 1]} : vector<64x32xf32> to vector<64x8xf32>
    %103 = vector.extract_strided_slice %25 {offsets = [0, 24], sizes = [64, 8], strides = [1, 1]} : vector<64x32xf32> to vector<64x8xf32>
    %104 = vector.extract_strided_slice %26 {offsets = [0, 24], sizes = [64, 8], strides = [1, 1]} : vector<64x32xf32> to vector<64x8xf32>
    %105 = vector.shape_cast %102 : vector<64x8xf32> to vector<4x16x8xf32>
    %106 = arith.truncf %105 : vector<4x16x8xf32> to vector<4x16x8xbf16>
    %107 = vector.shape_cast %103 : vector<64x8xf32> to vector<4x16x8xf32>
    %108 = arith.truncf %107 : vector<4x16x8xf32> to vector<4x16x8xbf16>
    "tpu.trace_start"() <{level = 10 : i32, message = "bqd,bkd->bqk"}> : () -> ()
    %cst_28 = arith.constant dense<0.000000e+00> : vector<4x16x16xf32>
    %109 = tpu.matmul %106, %108, %cst_28 {dimension_numbers = #tpu.dot_dimension_numbers<[2], [2], [1], [1], [0, 0, 0, 1, 1, 1], [0], [0]>} : vector<4x16x8xbf16>, vector<4x16x8xbf16>, vector<4x16x16xf32> -> vector<4x16x16xf32>
    "tpu.trace_stop"() : () -> ()
    %cst_29 = arith.constant 0.353553385 : f32
    %110 = vector.broadcast %cst_29 : f32 to vector<4x16x16xf32>
    %111 = arith.mulf %109, %110 : vector<4x16x16xf32>
    %cst_30 = arith.constant dense<0xFF800000> : vector<4x16xf32>
    %112 = vector.multi_reduction <maximumf>, %111, %cst_30 [2] : vector<4x16x16xf32> to vector<4x16xf32>
    %113 = vector.shape_cast %112 : vector<4x16xf32> to vector<4x16x1xf32>
    %114 = vector.broadcast %113 : vector<4x16x1xf32> to vector<4x16x16xf32>
    %115 = arith.subf %111, %114 : vector<4x16x16xf32>
    %116 = math.exp %115 : vector<4x16x16xf32>
    %cst_31 = arith.constant dense<0.000000e+00> : vector<4x16xf32>
    %117 = vector.multi_reduction <add>, %116, %cst_31 [2] : vector<4x16x16xf32> to vector<4x16xf32>
    %118 = vector.shape_cast %117 : vector<4x16xf32> to vector<4x16x1xf32>
    %119 = tpu.reciprocal %118 {approx = true} : vector<4x16x1xf32> -> vector<4x16x1xf32>
    %120 = vector.broadcast %119 : vector<4x16x1xf32> to vector<4x16x16xf32>
    %121 = arith.mulf %116, %120 : vector<4x16x16xf32>
    %122 = arith.truncf %121 : vector<4x16x16xf32> to vector<4x16x16xbf16>
    %123 = vector.shape_cast %104 : vector<64x8xf32> to vector<4x16x8xf32>
    %124 = arith.truncf %123 : vector<4x16x8xf32> to vector<4x16x8xbf16>
    "tpu.trace_start"() <{level = 10 : i32, message = "bqk,bkd->bqd"}> : () -> ()
    %cst_32 = arith.constant dense<0.000000e+00> : vector<4x16x8xf32>
    %125 = tpu.matmul %122, %124, %cst_32 {dimension_numbers = #tpu.dot_dimension_numbers<[2], [1], [1], [2], [0, 0, 0, 1, 1, 2], [0], [0]>} : vector<4x16x16xbf16>, vector<4x16x8xbf16>, vector<4x16x8xf32> -> vector<4x16x8xf32>
    "tpu.trace_stop"() : () -> ()
    %126 = vector.shape_cast %125 : vector<4x16x8xf32> to vector<64x8xf32>
    %127 = tpu.concatenate %51, %76, %101, %126 in 1 : vector<64x8xf32>, vector<64x8xf32>, vector<64x8xf32>, vector<64x8xf32> -> vector<64x32xf32>
    %c288 = arith.constant 288 : index
    %c0_33 = arith.constant 0 : index
    %128 = vector.load %arg4[%c288, %c0_33] : memref<672x128xbf16, #tpu.memory_space<vmem>>, vector<32x32xbf16>
    %129 = arith.truncf %127 : vector<64x32xf32> to vector<64x32xbf16>
    %cst_34 = arith.constant dense<0.000000e+00> : vector<64x32xf32>
    %130 = tpu.matmul %129, %128, %cst_34 {dimension_numbers = #tpu.dot_dimension_numbers<[1], [0], [0], [1], [0, 0, 1, 1], [], []>} : vector<64x32xbf16>, vector<32x32xbf16>, vector<64x32xf32> -> vector<64x32xf32>
    %131 = vector.extract_strided_slice %0 {offsets = [3, 0], sizes = [1, 32], strides = [1, 1]} : vector<23x128xf32> to vector<1x32xf32>
    %132 = vector.broadcast %131 : vector<1x32xf32> to vector<64x32xf32>
    %133 = arith.addf %130, %132 : vector<64x32xf32>
    %134 = arith.addf %133, %17 : vector<64x32xf32>
    %cst_35 = arith.constant dense<0.000000e+00> : vector<64xf32>
    %135 = vector.multi_reduction <add>, %134, %cst_35 [1] : vector<64x32xf32> to vector<64xf32>
    %136 = vector.shape_cast %135 : vector<64xf32> to vector<64x1xf32>
    %cst_36 = arith.constant 3.200000e+01 : f32
    %137 = vector.broadcast %cst_36 : f32 to vector<64x1xf32>
    %138 = arith.divf %136, %137 : vector<64x1xf32>
    %139 = vector.broadcast %138 : vector<64x1xf32> to vector<64x32xf32>
    %140 = arith.subf %134, %139 : vector<64x32xf32>
    %141 = arith.mulf %140, %140 : vector<64x32xf32>
    %cst_37 = arith.constant dense<0.000000e+00> : vector<64xf32>
    %142 = vector.multi_reduction <add>, %141, %cst_37 [1] : vector<64x32xf32> to vector<64xf32>
    %143 = vector.shape_cast %142 : vector<64xf32> to vector<64x1xf32>
    %cst_38 = arith.constant 3.200000e+01 : f32
    %144 = vector.broadcast %cst_38 : f32 to vector<64x1xf32>
    %145 = arith.divf %143, %144 : vector<64x1xf32>
    %146 = vector.broadcast %138 : vector<64x1xf32> to vector<64x32xf32>
    %147 = arith.subf %134, %146 : vector<64x32xf32>
    %cst_39 = arith.constant 9.99999974E-6 : f32
    %148 = vector.broadcast %cst_39 : f32 to vector<64x1xf32>
    %149 = arith.addf %145, %148 : vector<64x1xf32>
    %150 = math.rsqrt %149 : vector<64x1xf32>
    %151 = vector.broadcast %150 : vector<64x1xf32> to vector<64x32xf32>
    %152 = arith.mulf %147, %151 : vector<64x32xf32>
    %153 = vector.extract_strided_slice %0 {offsets = [4, 0], sizes = [1, 32], strides = [1, 1]} : vector<23x128xf32> to vector<1x32xf32>
    %154 = vector.broadcast %153 : vector<1x32xf32> to vector<64x32xf32>
    %155 = arith.mulf %152, %154 : vector<64x32xf32>
    %156 = vector.extract_strided_slice %0 {offsets = [5, 0], sizes = [1, 32], strides = [1, 1]} : vector<23x128xf32> to vector<1x32xf32>
    %157 = vector.broadcast %156 : vector<1x32xf32> to vector<64x32xf32>
    %158 = arith.addf %155, %157 : vector<64x32xf32>
    %c320 = arith.constant 320 : index
    %c0_40 = arith.constant 0 : index
    %159 = vector.load %arg4[%c320, %c0_40] : memref<672x128xbf16, #tpu.memory_space<vmem>>, vector<32x64xbf16>
    %160 = arith.truncf %158 : vector<64x32xf32> to vector<64x32xbf16>
    %cst_41 = arith.constant dense<0.000000e+00> : vector<64x64xf32>
    %161 = tpu.matmul %160, %159, %cst_41 {dimension_numbers = #tpu.dot_dimension_numbers<[1], [0], [0], [1], [0, 0, 1, 1], [], []>} : vector<64x32xbf16>, vector<32x64xbf16>, vector<64x64xf32> -> vector<64x64xf32>
    %162 = vector.extract_strided_slice %0 {offsets = [6, 0], sizes = [1, 64], strides = [1, 1]} : vector<23x128xf32> to vector<1x64xf32>
    %163 = vector.broadcast %162 : vector<1x64xf32> to vector<64x64xf32>
    %164 = arith.addf %161, %163 : vector<64x64xf32>
    %cst_42 = arith.constant 0.000000e+00 : f32
    %165 = vector.broadcast %cst_42 : f32 to vector<64x64xf32>
    %166 = arith.maximumf %164, %165 : vector<64x64xf32>
    %c352 = arith.constant 352 : index
    %c0_43 = arith.constant 0 : index
    %167 = vector.load %arg4[%c352, %c0_43] : memref<672x128xbf16, #tpu.memory_space<vmem>>, vector<64x32xbf16>
    %168 = arith.truncf %166 : vector<64x64xf32> to vector<64x64xbf16>
    %cst_44 = arith.constant dense<0.000000e+00> : vector<64x32xf32>
    %169 = tpu.matmul %168, %167, %cst_44 {dimension_numbers = #tpu.dot_dimension_numbers<[1], [0], [0], [1], [0, 0, 1, 1], [], []>} : vector<64x64xbf16>, vector<64x32xbf16>, vector<64x32xf32> -> vector<64x32xf32>
    %170 = vector.extract_strided_slice %0 {offsets = [7, 0], sizes = [1, 32], strides = [1, 1]} : vector<23x128xf32> to vector<1x32xf32>
    %171 = vector.broadcast %170 : vector<1x32xf32> to vector<64x32xf32>
    %172 = arith.addf %169, %171 : vector<64x32xf32>
    %173 = arith.addf %172, %158 : vector<64x32xf32>
    %cst_45 = arith.constant dense<0.000000e+00> : vector<64xf32>
    %174 = vector.multi_reduction <add>, %173, %cst_45 [1] : vector<64x32xf32> to vector<64xf32>
    %175 = vector.shape_cast %174 : vector<64xf32> to vector<64x1xf32>
    %cst_46 = arith.constant 3.200000e+01 : f32
    %176 = vector.broadcast %cst_46 : f32 to vector<64x1xf32>
    %177 = arith.divf %175, %176 : vector<64x1xf32>
    %178 = vector.broadcast %177 : vector<64x1xf32> to vector<64x32xf32>
    %179 = arith.subf %173, %178 : vector<64x32xf32>
    %180 = arith.mulf %179, %179 : vector<64x32xf32>
    %cst_47 = arith.constant dense<0.000000e+00> : vector<64xf32>
    %181 = vector.multi_reduction <add>, %180, %cst_47 [1] : vector<64x32xf32> to vector<64xf32>
    %182 = vector.shape_cast %181 : vector<64xf32> to vector<64x1xf32>
    %cst_48 = arith.constant 3.200000e+01 : f32
    %183 = vector.broadcast %cst_48 : f32 to vector<64x1xf32>
    %184 = arith.divf %182, %183 : vector<64x1xf32>
    %185 = vector.broadcast %177 : vector<64x1xf32> to vector<64x32xf32>
    %186 = arith.subf %173, %185 : vector<64x32xf32>
    %cst_49 = arith.constant 9.99999974E-6 : f32
    %187 = vector.broadcast %cst_49 : f32 to vector<64x1xf32>
    %188 = arith.addf %184, %187 : vector<64x1xf32>
    %189 = math.rsqrt %188 : vector<64x1xf32>
    %190 = vector.broadcast %189 : vector<64x1xf32> to vector<64x32xf32>
    %191 = arith.mulf %186, %190 : vector<64x32xf32>
    %192 = vector.extract_strided_slice %0 {offsets = [8, 0], sizes = [1, 32], strides = [1, 1]} : vector<23x128xf32> to vector<1x32xf32>
    %193 = vector.broadcast %192 : vector<1x32xf32> to vector<64x32xf32>
    %194 = arith.mulf %191, %193 : vector<64x32xf32>
    %195 = vector.extract_strided_slice %0 {offsets = [9, 0], sizes = [1, 32], strides = [1, 1]} : vector<23x128xf32> to vector<1x32xf32>
    %196 = vector.broadcast %195 : vector<1x32xf32> to vector<64x32xf32>
    %197 = arith.addf %194, %196 : vector<64x32xf32>
    %c0_50 = arith.constant 0 : index
    %c0_51 = arith.constant 0 : index
    %198 = vector.load %arg3[%c0_50, %c0_51] : memref<8x32xf32, #tpu.memory_space<vmem>>, vector<8x32xf32>
    %c416 = arith.constant 416 : index
    %c0_52 = arith.constant 0 : index
    %199 = vector.load %arg4[%c416, %c0_52] : memref<672x128xbf16, #tpu.memory_space<vmem>>, vector<32x96xbf16>
    %200 = vector.extract_strided_slice %0 {offsets = [10, 0], sizes = [1, 96], strides = [1, 1]} : vector<23x128xf32> to vector<1x96xf32>
    %201 = arith.truncf %198 : vector<8x32xf32> to vector<8x32xbf16>
    %cst_53 = arith.constant dense<0.000000e+00> : vector<8x96xf32>
    %202 = tpu.matmul %201, %199, %cst_53 {dimension_numbers = #tpu.dot_dimension_numbers<[1], [0], [0], [1], [0, 0, 1, 1], [], []>} : vector<8x32xbf16>, vector<32x96xbf16>, vector<8x96xf32> -> vector<8x96xf32>
    %203 = vector.broadcast %200 : vector<1x96xf32> to vector<8x96xf32>
    %204 = arith.addf %202, %203 : vector<8x96xf32>
    %205 = vector.extract_strided_slice %204 {offsets = [0, 0], sizes = [8, 32], strides = [1, 1]} : vector<8x96xf32> to vector<8x32xf32>
    %206 = vector.extract_strided_slice %204 {offsets = [0, 32], sizes = [8, 32], strides = [1, 1]} : vector<8x96xf32> to vector<8x32xf32>
    %207 = vector.extract_strided_slice %204 {offsets = [0, 64], sizes = [8, 32], strides = [1, 1]} : vector<8x96xf32> to vector<8x32xf32>
    %208 = vector.extract_strided_slice %205 {offsets = [0, 0], sizes = [8, 8], strides = [1, 1]} : vector<8x32xf32> to vector<8x8xf32>
    %209 = vector.extract_strided_slice %206 {offsets = [0, 0], sizes = [8, 8], strides = [1, 1]} : vector<8x32xf32> to vector<8x8xf32>
    %210 = vector.extract_strided_slice %207 {offsets = [0, 0], sizes = [8, 8], strides = [1, 1]} : vector<8x32xf32> to vector<8x8xf32>
    %211 = arith.truncf %208 : vector<8x8xf32> to vector<8x8xbf16>
    %212 = arith.truncf %209 : vector<8x8xf32> to vector<8x8xbf16>
    %213 = tpu.transpose %212, [1, 0] : vector<8x8xbf16> -> vector<8x8xbf16>
    %cst_54 = arith.constant dense<0.000000e+00> : vector<8x8xf32>
    %214 = tpu.matmul %211, %213, %cst_54 {dimension_numbers = #tpu.dot_dimension_numbers<[1], [0], [0], [1], [0, 0, 1, 1], [], []>} : vector<8x8xbf16>, vector<8x8xbf16>, vector<8x8xf32> -> vector<8x8xf32>
    %cst_55 = arith.constant 0.353553385 : f32
    %215 = vector.broadcast %cst_55 : f32 to vector<8x8xf32>
    %216 = arith.mulf %214, %215 : vector<8x8xf32>
    %cst_56 = arith.constant dense<0xFF800000> : vector<8xf32>
    %217 = vector.multi_reduction <maximumf>, %216, %cst_56 [1] : vector<8x8xf32> to vector<8xf32>
    %218 = vector.shape_cast %217 : vector<8xf32> to vector<8x1xf32>
    %219 = vector.broadcast %218 : vector<8x1xf32> to vector<8x8xf32>
    %220 = arith.subf %216, %219 : vector<8x8xf32>
    %221 = math.exp %220 : vector<8x8xf32>
    %cst_57 = arith.constant dense<0.000000e+00> : vector<8xf32>
    %222 = vector.multi_reduction <add>, %221, %cst_57 [1] : vector<8x8xf32> to vector<8xf32>
    %223 = vector.shape_cast %222 : vector<8xf32> to vector<8x1xf32>
    %224 = tpu.reciprocal %223 {approx = true} : vector<8x1xf32> -> vector<8x1xf32>
    %225 = vector.broadcast %224 : vector<8x1xf32> to vector<8x8xf32>
    %226 = arith.mulf %221, %225 : vector<8x8xf32>
    %227 = arith.truncf %226 : vector<8x8xf32> to vector<8x8xbf16>
    %228 = arith.truncf %210 : vector<8x8xf32> to vector<8x8xbf16>
    %cst_58 = arith.constant dense<0.000000e+00> : vector<8x8xf32>
    %229 = tpu.matmul %227, %228, %cst_58 {dimension_numbers = #tpu.dot_dimension_numbers<[1], [0], [0], [1], [0, 0, 1, 1], [], []>} : vector<8x8xbf16>, vector<8x8xbf16>, vector<8x8xf32> -> vector<8x8xf32>
    %230 = vector.extract_strided_slice %205 {offsets = [0, 8], sizes = [8, 8], strides = [1, 1]} : vector<8x32xf32> to vector<8x8xf32>
    %231 = vector.extract_strided_slice %206 {offsets = [0, 8], sizes = [8, 8], strides = [1, 1]} : vector<8x32xf32> to vector<8x8xf32>
    %232 = vector.extract_strided_slice %207 {offsets = [0, 8], sizes = [8, 8], strides = [1, 1]} : vector<8x32xf32> to vector<8x8xf32>
    %233 = arith.truncf %230 : vector<8x8xf32> to vector<8x8xbf16>
    %234 = arith.truncf %231 : vector<8x8xf32> to vector<8x8xbf16>
    %235 = tpu.transpose %234, [1, 0] : vector<8x8xbf16> -> vector<8x8xbf16>
    %cst_59 = arith.constant dense<0.000000e+00> : vector<8x8xf32>
    %236 = tpu.matmul %233, %235, %cst_59 {dimension_numbers = #tpu.dot_dimension_numbers<[1], [0], [0], [1], [0, 0, 1, 1], [], []>} : vector<8x8xbf16>, vector<8x8xbf16>, vector<8x8xf32> -> vector<8x8xf32>
    %cst_60 = arith.constant 0.353553385 : f32
    %237 = vector.broadcast %cst_60 : f32 to vector<8x8xf32>
    %238 = arith.mulf %236, %237 : vector<8x8xf32>
    %cst_61 = arith.constant dense<0xFF800000> : vector<8xf32>
    %239 = vector.multi_reduction <maximumf>, %238, %cst_61 [1] : vector<8x8xf32> to vector<8xf32>
    %240 = vector.shape_cast %239 : vector<8xf32> to vector<8x1xf32>
    %241 = vector.broadcast %240 : vector<8x1xf32> to vector<8x8xf32>
    %242 = arith.subf %238, %241 : vector<8x8xf32>
    %243 = math.exp %242 : vector<8x8xf32>
    %cst_62 = arith.constant dense<0.000000e+00> : vector<8xf32>
    %244 = vector.multi_reduction <add>, %243, %cst_62 [1] : vector<8x8xf32> to vector<8xf32>
    %245 = vector.shape_cast %244 : vector<8xf32> to vector<8x1xf32>
    %246 = tpu.reciprocal %245 {approx = true} : vector<8x1xf32> -> vector<8x1xf32>
    %247 = vector.broadcast %246 : vector<8x1xf32> to vector<8x8xf32>
    %248 = arith.mulf %243, %247 : vector<8x8xf32>
    %249 = arith.truncf %248 : vector<8x8xf32> to vector<8x8xbf16>
    %250 = arith.truncf %232 : vector<8x8xf32> to vector<8x8xbf16>
    %cst_63 = arith.constant dense<0.000000e+00> : vector<8x8xf32>
    %251 = tpu.matmul %249, %250, %cst_63 {dimension_numbers = #tpu.dot_dimension_numbers<[1], [0], [0], [1], [0, 0, 1, 1], [], []>} : vector<8x8xbf16>, vector<8x8xbf16>, vector<8x8xf32> -> vector<8x8xf32>
    %252 = vector.extract_strided_slice %205 {offsets = [0, 16], sizes = [8, 8], strides = [1, 1]} : vector<8x32xf32> to vector<8x8xf32>
    %253 = vector.extract_strided_slice %206 {offsets = [0, 16], sizes = [8, 8], strides = [1, 1]} : vector<8x32xf32> to vector<8x8xf32>
    %254 = vector.extract_strided_slice %207 {offsets = [0, 16], sizes = [8, 8], strides = [1, 1]} : vector<8x32xf32> to vector<8x8xf32>
    %255 = arith.truncf %252 : vector<8x8xf32> to vector<8x8xbf16>
    %256 = arith.truncf %253 : vector<8x8xf32> to vector<8x8xbf16>
    %257 = tpu.transpose %256, [1, 0] : vector<8x8xbf16> -> vector<8x8xbf16>
    %cst_64 = arith.constant dense<0.000000e+00> : vector<8x8xf32>
    %258 = tpu.matmul %255, %257, %cst_64 {dimension_numbers = #tpu.dot_dimension_numbers<[1], [0], [0], [1], [0, 0, 1, 1], [], []>} : vector<8x8xbf16>, vector<8x8xbf16>, vector<8x8xf32> -> vector<8x8xf32>
    %cst_65 = arith.constant 0.353553385 : f32
    %259 = vector.broadcast %cst_65 : f32 to vector<8x8xf32>
    %260 = arith.mulf %258, %259 : vector<8x8xf32>
    %cst_66 = arith.constant dense<0xFF800000> : vector<8xf32>
    %261 = vector.multi_reduction <maximumf>, %260, %cst_66 [1] : vector<8x8xf32> to vector<8xf32>
    %262 = vector.shape_cast %261 : vector<8xf32> to vector<8x1xf32>
    %263 = vector.broadcast %262 : vector<8x1xf32> to vector<8x8xf32>
    %264 = arith.subf %260, %263 : vector<8x8xf32>
    %265 = math.exp %264 : vector<8x8xf32>
    %cst_67 = arith.constant dense<0.000000e+00> : vector<8xf32>
    %266 = vector.multi_reduction <add>, %265, %cst_67 [1] : vector<8x8xf32> to vector<8xf32>
    %267 = vector.shape_cast %266 : vector<8xf32> to vector<8x1xf32>
    %268 = tpu.reciprocal %267 {approx = true} : vector<8x1xf32> -> vector<8x1xf32>
    %269 = vector.broadcast %268 : vector<8x1xf32> to vector<8x8xf32>
    %270 = arith.mulf %265, %269 : vector<8x8xf32>
    %271 = arith.truncf %270 : vector<8x8xf32> to vector<8x8xbf16>
    %272 = arith.truncf %254 : vector<8x8xf32> to vector<8x8xbf16>
    %cst_68 = arith.constant dense<0.000000e+00> : vector<8x8xf32>
    %273 = tpu.matmul %271, %272, %cst_68 {dimension_numbers = #tpu.dot_dimension_numbers<[1], [0], [0], [1], [0, 0, 1, 1], [], []>} : vector<8x8xbf16>, vector<8x8xbf16>, vector<8x8xf32> -> vector<8x8xf32>
    %274 = vector.extract_strided_slice %205 {offsets = [0, 24], sizes = [8, 8], strides = [1, 1]} : vector<8x32xf32> to vector<8x8xf32>
    %275 = vector.extract_strided_slice %206 {offsets = [0, 24], sizes = [8, 8], strides = [1, 1]} : vector<8x32xf32> to vector<8x8xf32>
    %276 = vector.extract_strided_slice %207 {offsets = [0, 24], sizes = [8, 8], strides = [1, 1]} : vector<8x32xf32> to vector<8x8xf32>
    %277 = arith.truncf %274 : vector<8x8xf32> to vector<8x8xbf16>
    %278 = arith.truncf %275 : vector<8x8xf32> to vector<8x8xbf16>
    %279 = tpu.transpose %278, [1, 0] : vector<8x8xbf16> -> vector<8x8xbf16>
    %cst_69 = arith.constant dense<0.000000e+00> : vector<8x8xf32>
    %280 = tpu.matmul %277, %279, %cst_69 {dimension_numbers = #tpu.dot_dimension_numbers<[1], [0], [0], [1], [0, 0, 1, 1], [], []>} : vector<8x8xbf16>, vector<8x8xbf16>, vector<8x8xf32> -> vector<8x8xf32>
    %cst_70 = arith.constant 0.353553385 : f32
    %281 = vector.broadcast %cst_70 : f32 to vector<8x8xf32>
    %282 = arith.mulf %280, %281 : vector<8x8xf32>
    %cst_71 = arith.constant dense<0xFF800000> : vector<8xf32>
    %283 = vector.multi_reduction <maximumf>, %282, %cst_71 [1] : vector<8x8xf32> to vector<8xf32>
    %284 = vector.shape_cast %283 : vector<8xf32> to vector<8x1xf32>
    %285 = vector.broadcast %284 : vector<8x1xf32> to vector<8x8xf32>
    %286 = arith.subf %282, %285 : vector<8x8xf32>
    %287 = math.exp %286 : vector<8x8xf32>
    %cst_72 = arith.constant dense<0.000000e+00> : vector<8xf32>
    %288 = vector.multi_reduction <add>, %287, %cst_72 [1] : vector<8x8xf32> to vector<8xf32>
    %289 = vector.shape_cast %288 : vector<8xf32> to vector<8x1xf32>
    %290 = tpu.reciprocal %289 {approx = true} : vector<8x1xf32> -> vector<8x1xf32>
    %291 = vector.broadcast %290 : vector<8x1xf32> to vector<8x8xf32>
    %292 = arith.mulf %287, %291 : vector<8x8xf32>
    %293 = arith.truncf %292 : vector<8x8xf32> to vector<8x8xbf16>
    %294 = arith.truncf %276 : vector<8x8xf32> to vector<8x8xbf16>
    %cst_73 = arith.constant dense<0.000000e+00> : vector<8x8xf32>
    %295 = tpu.matmul %293, %294, %cst_73 {dimension_numbers = #tpu.dot_dimension_numbers<[1], [0], [0], [1], [0, 0, 1, 1], [], []>} : vector<8x8xbf16>, vector<8x8xbf16>, vector<8x8xf32> -> vector<8x8xf32>
    %296 = tpu.concatenate %229, %251, %273, %295 in 1 : vector<8x8xf32>, vector<8x8xf32>, vector<8x8xf32>, vector<8x8xf32> -> vector<8x32xf32>
    %c448 = arith.constant 448 : index
    %c0_74 = arith.constant 0 : index
    %297 = vector.load %arg4[%c448, %c0_74] : memref<672x128xbf16, #tpu.memory_space<vmem>>, vector<32x32xbf16>
    %298 = arith.truncf %296 : vector<8x32xf32> to vector<8x32xbf16>
    %cst_75 = arith.constant dense<0.000000e+00> : vector<8x32xf32>
    %299 = tpu.matmul %298, %297, %cst_75 {dimension_numbers = #tpu.dot_dimension_numbers<[1], [0], [0], [1], [0, 0, 1, 1], [], []>} : vector<8x32xbf16>, vector<32x32xbf16>, vector<8x32xf32> -> vector<8x32xf32>
    %300 = vector.extract_strided_slice %0 {offsets = [11, 0], sizes = [1, 32], strides = [1, 1]} : vector<23x128xf32> to vector<1x32xf32>
    %301 = vector.broadcast %300 : vector<1x32xf32> to vector<8x32xf32>
    %302 = arith.addf %299, %301 : vector<8x32xf32>
    %303 = arith.addf %302, %198 : vector<8x32xf32>
    %cst_76 = arith.constant dense<0.000000e+00> : vector<8xf32>
    %304 = vector.multi_reduction <add>, %303, %cst_76 [1] : vector<8x32xf32> to vector<8xf32>
    %305 = vector.shape_cast %304 : vector<8xf32> to vector<8x1xf32>
    %cst_77 = arith.constant 3.200000e+01 : f32
    %306 = vector.broadcast %cst_77 : f32 to vector<8x1xf32>
    %307 = arith.divf %305, %306 : vector<8x1xf32>
    %308 = vector.broadcast %307 : vector<8x1xf32> to vector<8x32xf32>
    %309 = arith.subf %303, %308 : vector<8x32xf32>
    %310 = arith.mulf %309, %309 : vector<8x32xf32>
    %cst_78 = arith.constant dense<0.000000e+00> : vector<8xf32>
    %311 = vector.multi_reduction <add>, %310, %cst_78 [1] : vector<8x32xf32> to vector<8xf32>
    %312 = vector.shape_cast %311 : vector<8xf32> to vector<8x1xf32>
    %cst_79 = arith.constant 3.200000e+01 : f32
    %313 = vector.broadcast %cst_79 : f32 to vector<8x1xf32>
    %314 = arith.divf %312, %313 : vector<8x1xf32>
    %315 = vector.broadcast %307 : vector<8x1xf32> to vector<8x32xf32>
    %316 = arith.subf %303, %315 : vector<8x32xf32>
    %cst_80 = arith.constant 9.99999974E-6 : f32
    %317 = vector.broadcast %cst_80 : f32 to vector<8x1xf32>
    %318 = arith.addf %314, %317 : vector<8x1xf32>
    %319 = math.rsqrt %318 : vector<8x1xf32>
    %320 = vector.broadcast %319 : vector<8x1xf32> to vector<8x32xf32>
    %321 = arith.mulf %316, %320 : vector<8x32xf32>
    %322 = vector.extract_strided_slice %0 {offsets = [12, 0], sizes = [1, 32], strides = [1, 1]} : vector<23x128xf32> to vector<1x32xf32>
    %323 = vector.broadcast %322 : vector<1x32xf32> to vector<8x32xf32>
    %324 = arith.mulf %321, %323 : vector<8x32xf32>
    %325 = vector.extract_strided_slice %0 {offsets = [13, 0], sizes = [1, 32], strides = [1, 1]} : vector<23x128xf32> to vector<1x32xf32>
    %326 = vector.broadcast %325 : vector<1x32xf32> to vector<8x32xf32>
    %327 = arith.addf %324, %326 : vector<8x32xf32>
    %328 = tpu.concatenate %327, %327, %327, %327 in 0 : vector<8x32xf32>, vector<8x32xf32>, vector<8x32xf32>, vector<8x32xf32> -> vector<32x32xf32>
    %c480 = arith.constant 480 : index
    %c0_81 = arith.constant 0 : index
    %329 = vector.load %arg4[%c480, %c0_81] : memref<672x128xbf16, #tpu.memory_space<vmem>>, vector<32x96xbf16>
    %330 = vector.extract_strided_slice %0 {offsets = [14, 0], sizes = [1, 96], strides = [1, 1]} : vector<23x128xf32> to vector<1x96xf32>
    %331 = vector.extract_strided_slice %329 {offsets = [0, 0], sizes = [32, 32], strides = [1, 1]} : vector<32x96xbf16> to vector<32x32xbf16>
    %332 = arith.truncf %328 : vector<32x32xf32> to vector<32x32xbf16>
    %cst_82 = arith.constant dense<0.000000e+00> : vector<32x32xf32>
    %333 = tpu.matmul %332, %331, %cst_82 {dimension_numbers = #tpu.dot_dimension_numbers<[1], [0], [0], [1], [0, 0, 1, 1], [], []>} : vector<32x32xbf16>, vector<32x32xbf16>, vector<32x32xf32> -> vector<32x32xf32>
    %334 = vector.extract_strided_slice %330 {offsets = [0, 0], sizes = [1, 32], strides = [1, 1]} : vector<1x96xf32> to vector<1x32xf32>
    %335 = vector.broadcast %334 : vector<1x32xf32> to vector<32x32xf32>
    %336 = arith.addf %333, %335 : vector<32x32xf32>
    %337 = vector.extract_strided_slice %329 {offsets = [0, 32], sizes = [32, 64], strides = [1, 1]} : vector<32x96xbf16> to vector<32x64xbf16>
    %338 = arith.truncf %197 : vector<64x32xf32> to vector<64x32xbf16>
    %cst_83 = arith.constant dense<0.000000e+00> : vector<64x64xf32>
    %339 = tpu.matmul %338, %337, %cst_83 {dimension_numbers = #tpu.dot_dimension_numbers<[1], [0], [0], [1], [0, 0, 1, 1], [], []>} : vector<64x32xbf16>, vector<32x64xbf16>, vector<64x64xf32> -> vector<64x64xf32>
    %340 = vector.extract_strided_slice %330 {offsets = [0, 32], sizes = [1, 64], strides = [1, 1]} : vector<1x96xf32> to vector<1x64xf32>
    %341 = vector.broadcast %340 : vector<1x64xf32> to vector<64x64xf32>
    %342 = arith.addf %339, %341 : vector<64x64xf32>
    %343 = vector.extract_strided_slice %342 {offsets = [0, 0], sizes = [64, 32], strides = [1, 1]} : vector<64x64xf32> to vector<64x32xf32>
    %344 = vector.extract_strided_slice %342 {offsets = [0, 32], sizes = [64, 32], strides = [1, 1]} : vector<64x64xf32> to vector<64x32xf32>
    %345 = vector.extract_strided_slice %336 {offsets = [0, 0], sizes = [32, 8], strides = [1, 1]} : vector<32x32xf32> to vector<32x8xf32>
    %346 = vector.extract_strided_slice %343 {offsets = [0, 0], sizes = [64, 8], strides = [1, 1]} : vector<64x32xf32> to vector<64x8xf32>
    %347 = vector.extract_strided_slice %344 {offsets = [0, 0], sizes = [64, 8], strides = [1, 1]} : vector<64x32xf32> to vector<64x8xf32>
    %348 = vector.shape_cast %345 : vector<32x8xf32> to vector<4x8x8xf32>
    %349 = arith.truncf %348 : vector<4x8x8xf32> to vector<4x8x8xbf16>
    %350 = vector.shape_cast %346 : vector<64x8xf32> to vector<4x16x8xf32>
    %351 = arith.truncf %350 : vector<4x16x8xf32> to vector<4x16x8xbf16>
    "tpu.trace_start"() <{level = 10 : i32, message = "bqd,bkd->bqk"}> : () -> ()
    %cst_84 = arith.constant dense<0.000000e+00> : vector<4x8x16xf32>
    %352 = tpu.matmul %349, %351, %cst_84 {dimension_numbers = #tpu.dot_dimension_numbers<[2], [2], [1], [1], [0, 0, 0, 1, 1, 1], [0], [0]>} : vector<4x8x8xbf16>, vector<4x16x8xbf16>, vector<4x8x16xf32> -> vector<4x8x16xf32>
    "tpu.trace_stop"() : () -> ()
    %cst_85 = arith.constant 0.353553385 : f32
    %353 = vector.broadcast %cst_85 : f32 to vector<4x8x16xf32>
    %354 = arith.mulf %352, %353 : vector<4x8x16xf32>
    %cst_86 = arith.constant dense<0xFF800000> : vector<4x8xf32>
    %355 = vector.multi_reduction <maximumf>, %354, %cst_86 [2] : vector<4x8x16xf32> to vector<4x8xf32>
    %356 = vector.shape_cast %355 : vector<4x8xf32> to vector<4x8x1xf32>
    %357 = vector.broadcast %356 : vector<4x8x1xf32> to vector<4x8x16xf32>
    %358 = arith.subf %354, %357 : vector<4x8x16xf32>
    %359 = math.exp %358 : vector<4x8x16xf32>
    %cst_87 = arith.constant dense<0.000000e+00> : vector<4x8xf32>
    %360 = vector.multi_reduction <add>, %359, %cst_87 [2] : vector<4x8x16xf32> to vector<4x8xf32>
    %361 = vector.shape_cast %360 : vector<4x8xf32> to vector<4x8x1xf32>
    %362 = tpu.reciprocal %361 {approx = true} : vector<4x8x1xf32> -> vector<4x8x1xf32>
    %363 = vector.broadcast %362 : vector<4x8x1xf32> to vector<4x8x16xf32>
    %364 = arith.mulf %359, %363 : vector<4x8x16xf32>
    %365 = arith.truncf %364 : vector<4x8x16xf32> to vector<4x8x16xbf16>
    %366 = vector.shape_cast %347 : vector<64x8xf32> to vector<4x16x8xf32>
    %367 = arith.truncf %366 : vector<4x16x8xf32> to vector<4x16x8xbf16>
    "tpu.trace_start"() <{level = 10 : i32, message = "bqk,bkd->bqd"}> : () -> ()
    %cst_88 = arith.constant dense<0.000000e+00> : vector<4x8x8xf32>
    %368 = tpu.matmul %365, %367, %cst_88 {dimension_numbers = #tpu.dot_dimension_numbers<[2], [1], [1], [2], [0, 0, 0, 1, 1, 2], [0], [0]>} : vector<4x8x16xbf16>, vector<4x16x8xbf16>, vector<4x8x8xf32> -> vector<4x8x8xf32>
    "tpu.trace_stop"() : () -> ()
    %369 = vector.shape_cast %368 : vector<4x8x8xf32> to vector<32x8xf32>
    %370 = vector.extract_strided_slice %336 {offsets = [0, 8], sizes = [32, 8], strides = [1, 1]} : vector<32x32xf32> to vector<32x8xf32>
    %371 = vector.extract_strided_slice %343 {offsets = [0, 8], sizes = [64, 8], strides = [1, 1]} : vector<64x32xf32> to vector<64x8xf32>
    %372 = vector.extract_strided_slice %344 {offsets = [0, 8], sizes = [64, 8], strides = [1, 1]} : vector<64x32xf32> to vector<64x8xf32>
    %373 = vector.shape_cast %370 : vector<32x8xf32> to vector<4x8x8xf32>
    %374 = arith.truncf %373 : vector<4x8x8xf32> to vector<4x8x8xbf16>
    %375 = vector.shape_cast %371 : vector<64x8xf32> to vector<4x16x8xf32>
    %376 = arith.truncf %375 : vector<4x16x8xf32> to vector<4x16x8xbf16>
    "tpu.trace_start"() <{level = 10 : i32, message = "bqd,bkd->bqk"}> : () -> ()
    %cst_89 = arith.constant dense<0.000000e+00> : vector<4x8x16xf32>
    %377 = tpu.matmul %374, %376, %cst_89 {dimension_numbers = #tpu.dot_dimension_numbers<[2], [2], [1], [1], [0, 0, 0, 1, 1, 1], [0], [0]>} : vector<4x8x8xbf16>, vector<4x16x8xbf16>, vector<4x8x16xf32> -> vector<4x8x16xf32>
    "tpu.trace_stop"() : () -> ()
    %cst_90 = arith.constant 0.353553385 : f32
    %378 = vector.broadcast %cst_90 : f32 to vector<4x8x16xf32>
    %379 = arith.mulf %377, %378 : vector<4x8x16xf32>
    %cst_91 = arith.constant dense<0xFF800000> : vector<4x8xf32>
    %380 = vector.multi_reduction <maximumf>, %379, %cst_91 [2] : vector<4x8x16xf32> to vector<4x8xf32>
    %381 = vector.shape_cast %380 : vector<4x8xf32> to vector<4x8x1xf32>
    %382 = vector.broadcast %381 : vector<4x8x1xf32> to vector<4x8x16xf32>
    %383 = arith.subf %379, %382 : vector<4x8x16xf32>
    %384 = math.exp %383 : vector<4x8x16xf32>
    %cst_92 = arith.constant dense<0.000000e+00> : vector<4x8xf32>
    %385 = vector.multi_reduction <add>, %384, %cst_92 [2] : vector<4x8x16xf32> to vector<4x8xf32>
    %386 = vector.shape_cast %385 : vector<4x8xf32> to vector<4x8x1xf32>
    %387 = tpu.reciprocal %386 {approx = true} : vector<4x8x1xf32> -> vector<4x8x1xf32>
    %388 = vector.broadcast %387 : vector<4x8x1xf32> to vector<4x8x16xf32>
    %389 = arith.mulf %384, %388 : vector<4x8x16xf32>
    %390 = arith.truncf %389 : vector<4x8x16xf32> to vector<4x8x16xbf16>
    %391 = vector.shape_cast %372 : vector<64x8xf32> to vector<4x16x8xf32>
    %392 = arith.truncf %391 : vector<4x16x8xf32> to vector<4x16x8xbf16>
    "tpu.trace_start"() <{level = 10 : i32, message = "bqk,bkd->bqd"}> : () -> ()
    %cst_93 = arith.constant dense<0.000000e+00> : vector<4x8x8xf32>
    %393 = tpu.matmul %390, %392, %cst_93 {dimension_numbers = #tpu.dot_dimension_numbers<[2], [1], [1], [2], [0, 0, 0, 1, 1, 2], [0], [0]>} : vector<4x8x16xbf16>, vector<4x16x8xbf16>, vector<4x8x8xf32> -> vector<4x8x8xf32>
    "tpu.trace_stop"() : () -> ()
    %394 = vector.shape_cast %393 : vector<4x8x8xf32> to vector<32x8xf32>
    %395 = vector.extract_strided_slice %336 {offsets = [0, 16], sizes = [32, 8], strides = [1, 1]} : vector<32x32xf32> to vector<32x8xf32>
    %396 = vector.extract_strided_slice %343 {offsets = [0, 16], sizes = [64, 8], strides = [1, 1]} : vector<64x32xf32> to vector<64x8xf32>
    %397 = vector.extract_strided_slice %344 {offsets = [0, 16], sizes = [64, 8], strides = [1, 1]} : vector<64x32xf32> to vector<64x8xf32>
    %398 = vector.shape_cast %395 : vector<32x8xf32> to vector<4x8x8xf32>
    %399 = arith.truncf %398 : vector<4x8x8xf32> to vector<4x8x8xbf16>
    %400 = vector.shape_cast %396 : vector<64x8xf32> to vector<4x16x8xf32>
    %401 = arith.truncf %400 : vector<4x16x8xf32> to vector<4x16x8xbf16>
    "tpu.trace_start"() <{level = 10 : i32, message = "bqd,bkd->bqk"}> : () -> ()
    %cst_94 = arith.constant dense<0.000000e+00> : vector<4x8x16xf32>
    %402 = tpu.matmul %399, %401, %cst_94 {dimension_numbers = #tpu.dot_dimension_numbers<[2], [2], [1], [1], [0, 0, 0, 1, 1, 1], [0], [0]>} : vector<4x8x8xbf16>, vector<4x16x8xbf16>, vector<4x8x16xf32> -> vector<4x8x16xf32>
    "tpu.trace_stop"() : () -> ()
    %cst_95 = arith.constant 0.353553385 : f32
    %403 = vector.broadcast %cst_95 : f32 to vector<4x8x16xf32>
    %404 = arith.mulf %402, %403 : vector<4x8x16xf32>
    %cst_96 = arith.constant dense<0xFF800000> : vector<4x8xf32>
    %405 = vector.multi_reduction <maximumf>, %404, %cst_96 [2] : vector<4x8x16xf32> to vector<4x8xf32>
    %406 = vector.shape_cast %405 : vector<4x8xf32> to vector<4x8x1xf32>
    %407 = vector.broadcast %406 : vector<4x8x1xf32> to vector<4x8x16xf32>
    %408 = arith.subf %404, %407 : vector<4x8x16xf32>
    %409 = math.exp %408 : vector<4x8x16xf32>
    %cst_97 = arith.constant dense<0.000000e+00> : vector<4x8xf32>
    %410 = vector.multi_reduction <add>, %409, %cst_97 [2] : vector<4x8x16xf32> to vector<4x8xf32>
    %411 = vector.shape_cast %410 : vector<4x8xf32> to vector<4x8x1xf32>
    %412 = tpu.reciprocal %411 {approx = true} : vector<4x8x1xf32> -> vector<4x8x1xf32>
    %413 = vector.broadcast %412 : vector<4x8x1xf32> to vector<4x8x16xf32>
    %414 = arith.mulf %409, %413 : vector<4x8x16xf32>
    %415 = arith.truncf %414 : vector<4x8x16xf32> to vector<4x8x16xbf16>
    %416 = vector.shape_cast %397 : vector<64x8xf32> to vector<4x16x8xf32>
    %417 = arith.truncf %416 : vector<4x16x8xf32> to vector<4x16x8xbf16>
    "tpu.trace_start"() <{level = 10 : i32, message = "bqk,bkd->bqd"}> : () -> ()
    %cst_98 = arith.constant dense<0.000000e+00> : vector<4x8x8xf32>
    %418 = tpu.matmul %415, %417, %cst_98 {dimension_numbers = #tpu.dot_dimension_numbers<[2], [1], [1], [2], [0, 0, 0, 1, 1, 2], [0], [0]>} : vector<4x8x16xbf16>, vector<4x16x8xbf16>, vector<4x8x8xf32> -> vector<4x8x8xf32>
    "tpu.trace_stop"() : () -> ()
    %419 = vector.shape_cast %418 : vector<4x8x8xf32> to vector<32x8xf32>
    %420 = vector.extract_strided_slice %336 {offsets = [0, 24], sizes = [32, 8], strides = [1, 1]} : vector<32x32xf32> to vector<32x8xf32>
    %421 = vector.extract_strided_slice %343 {offsets = [0, 24], sizes = [64, 8], strides = [1, 1]} : vector<64x32xf32> to vector<64x8xf32>
    %422 = vector.extract_strided_slice %344 {offsets = [0, 24], sizes = [64, 8], strides = [1, 1]} : vector<64x32xf32> to vector<64x8xf32>
    %423 = vector.shape_cast %420 : vector<32x8xf32> to vector<4x8x8xf32>
    %424 = arith.truncf %423 : vector<4x8x8xf32> to vector<4x8x8xbf16>
    %425 = vector.shape_cast %421 : vector<64x8xf32> to vector<4x16x8xf32>
    %426 = arith.truncf %425 : vector<4x16x8xf32> to vector<4x16x8xbf16>
    "tpu.trace_start"() <{level = 10 : i32, message = "bqd,bkd->bqk"}> : () -> ()
    %cst_99 = arith.constant dense<0.000000e+00> : vector<4x8x16xf32>
    %427 = tpu.matmul %424, %426, %cst_99 {dimension_numbers = #tpu.dot_dimension_numbers<[2], [2], [1], [1], [0, 0, 0, 1, 1, 1], [0], [0]>} : vector<4x8x8xbf16>, vector<4x16x8xbf16>, vector<4x8x16xf32> -> vector<4x8x16xf32>
    "tpu.trace_stop"() : () -> ()
    %cst_100 = arith.constant 0.353553385 : f32
    %428 = vector.broadcast %cst_100 : f32 to vector<4x8x16xf32>
    %429 = arith.mulf %427, %428 : vector<4x8x16xf32>
    %cst_101 = arith.constant dense<0xFF800000> : vector<4x8xf32>
    %430 = vector.multi_reduction <maximumf>, %429, %cst_101 [2] : vector<4x8x16xf32> to vector<4x8xf32>
    %431 = vector.shape_cast %430 : vector<4x8xf32> to vector<4x8x1xf32>
    %432 = vector.broadcast %431 : vector<4x8x1xf32> to vector<4x8x16xf32>
    %433 = arith.subf %429, %432 : vector<4x8x16xf32>
    %434 = math.exp %433 : vector<4x8x16xf32>
    %cst_102 = arith.constant dense<0.000000e+00> : vector<4x8xf32>
    %435 = vector.multi_reduction <add>, %434, %cst_102 [2] : vector<4x8x16xf32> to vector<4x8xf32>
    %436 = vector.shape_cast %435 : vector<4x8xf32> to vector<4x8x1xf32>
    %437 = tpu.reciprocal %436 {approx = true} : vector<4x8x1xf32> -> vector<4x8x1xf32>
    %438 = vector.broadcast %437 : vector<4x8x1xf32> to vector<4x8x16xf32>
    %439 = arith.mulf %434, %438 : vector<4x8x16xf32>
    %440 = arith.truncf %439 : vector<4x8x16xf32> to vector<4x8x16xbf16>
    %441 = vector.shape_cast %422 : vector<64x8xf32> to vector<4x16x8xf32>
    %442 = arith.truncf %441 : vector<4x16x8xf32> to vector<4x16x8xbf16>
    "tpu.trace_start"() <{level = 10 : i32, message = "bqk,bkd->bqd"}> : () -> ()
    %cst_103 = arith.constant dense<0.000000e+00> : vector<4x8x8xf32>
    %443 = tpu.matmul %440, %442, %cst_103 {dimension_numbers = #tpu.dot_dimension_numbers<[2], [1], [1], [2], [0, 0, 0, 1, 1, 2], [0], [0]>} : vector<4x8x16xbf16>, vector<4x16x8xbf16>, vector<4x8x8xf32> -> vector<4x8x8xf32>
    "tpu.trace_stop"() : () -> ()
    %444 = vector.shape_cast %443 : vector<4x8x8xf32> to vector<32x8xf32>
    %445 = tpu.concatenate %369, %394, %419, %444 in 1 : vector<32x8xf32>, vector<32x8xf32>, vector<32x8xf32>, vector<32x8xf32> -> vector<32x32xf32>
    %c512 = arith.constant 512 : index
    %c0_104 = arith.constant 0 : index
    %446 = vector.load %arg4[%c512, %c0_104] : memref<672x128xbf16, #tpu.memory_space<vmem>>, vector<32x32xbf16>
    %447 = arith.truncf %445 : vector<32x32xf32> to vector<32x32xbf16>
    %cst_105 = arith.constant dense<0.000000e+00> : vector<32x32xf32>
    %448 = tpu.matmul %447, %446, %cst_105 {dimension_numbers = #tpu.dot_dimension_numbers<[1], [0], [0], [1], [0, 0, 1, 1], [], []>} : vector<32x32xbf16>, vector<32x32xbf16>, vector<32x32xf32> -> vector<32x32xf32>
    %449 = vector.extract_strided_slice %0 {offsets = [15, 0], sizes = [1, 32], strides = [1, 1]} : vector<23x128xf32> to vector<1x32xf32>
    %450 = vector.broadcast %449 : vector<1x32xf32> to vector<32x32xf32>
    %451 = arith.addf %448, %450 : vector<32x32xf32>
    %452 = arith.addf %451, %328 : vector<32x32xf32>
    %cst_106 = arith.constant dense<0.000000e+00> : vector<32xf32>
    %453 = vector.multi_reduction <add>, %452, %cst_106 [1] : vector<32x32xf32> to vector<32xf32>
    %454 = vector.shape_cast %453 : vector<32xf32> to vector<32x1xf32>
    %cst_107 = arith.constant 3.200000e+01 : f32
    %455 = vector.broadcast %cst_107 : f32 to vector<32x1xf32>
    %456 = arith.divf %454, %455 : vector<32x1xf32>
    %457 = vector.broadcast %456 : vector<32x1xf32> to vector<32x32xf32>
    %458 = arith.subf %452, %457 : vector<32x32xf32>
    %459 = arith.mulf %458, %458 : vector<32x32xf32>
    %cst_108 = arith.constant dense<0.000000e+00> : vector<32xf32>
    %460 = vector.multi_reduction <add>, %459, %cst_108 [1] : vector<32x32xf32> to vector<32xf32>
    %461 = vector.shape_cast %460 : vector<32xf32> to vector<32x1xf32>
    %cst_109 = arith.constant 3.200000e+01 : f32
    %462 = vector.broadcast %cst_109 : f32 to vector<32x1xf32>
    %463 = arith.divf %461, %462 : vector<32x1xf32>
    %464 = vector.broadcast %456 : vector<32x1xf32> to vector<32x32xf32>
    %465 = arith.subf %452, %464 : vector<32x32xf32>
    %cst_110 = arith.constant 9.99999974E-6 : f32
    %466 = vector.broadcast %cst_110 : f32 to vector<32x1xf32>
    %467 = arith.addf %463, %466 : vector<32x1xf32>
    %468 = math.rsqrt %467 : vector<32x1xf32>
    %469 = vector.broadcast %468 : vector<32x1xf32> to vector<32x32xf32>
    %470 = arith.mulf %465, %469 : vector<32x32xf32>
    %471 = vector.extract_strided_slice %0 {offsets = [16, 0], sizes = [1, 32], strides = [1, 1]} : vector<23x128xf32> to vector<1x32xf32>
    %472 = vector.broadcast %471 : vector<1x32xf32> to vector<32x32xf32>
    %473 = arith.mulf %470, %472 : vector<32x32xf32>
    %474 = vector.extract_strided_slice %0 {offsets = [17, 0], sizes = [1, 32], strides = [1, 1]} : vector<23x128xf32> to vector<1x32xf32>
    %475 = vector.broadcast %474 : vector<1x32xf32> to vector<32x32xf32>
    %476 = arith.addf %473, %475 : vector<32x32xf32>
    %c544 = arith.constant 544 : index
    %c0_111 = arith.constant 0 : index
    %477 = vector.load %arg4[%c544, %c0_111] : memref<672x128xbf16, #tpu.memory_space<vmem>>, vector<32x64xbf16>
    %478 = arith.truncf %476 : vector<32x32xf32> to vector<32x32xbf16>
    %cst_112 = arith.constant dense<0.000000e+00> : vector<32x64xf32>
    %479 = tpu.matmul %478, %477, %cst_112 {dimension_numbers = #tpu.dot_dimension_numbers<[1], [0], [0], [1], [0, 0, 1, 1], [], []>} : vector<32x32xbf16>, vector<32x64xbf16>, vector<32x64xf32> -> vector<32x64xf32>
    %480 = vector.extract_strided_slice %0 {offsets = [18, 0], sizes = [1, 64], strides = [1, 1]} : vector<23x128xf32> to vector<1x64xf32>
    %481 = vector.broadcast %480 : vector<1x64xf32> to vector<32x64xf32>
    %482 = arith.addf %479, %481 : vector<32x64xf32>
    %cst_113 = arith.constant 0.000000e+00 : f32
    %483 = vector.broadcast %cst_113 : f32 to vector<32x64xf32>
    %484 = arith.maximumf %482, %483 : vector<32x64xf32>
    %c576 = arith.constant 576 : index
    %c0_114 = arith.constant 0 : index
    %485 = vector.load %arg4[%c576, %c0_114] : memref<672x128xbf16, #tpu.memory_space<vmem>>, vector<64x32xbf16>
    %486 = arith.truncf %484 : vector<32x64xf32> to vector<32x64xbf16>
    %cst_115 = arith.constant dense<0.000000e+00> : vector<32x32xf32>
    %487 = tpu.matmul %486, %485, %cst_115 {dimension_numbers = #tpu.dot_dimension_numbers<[1], [0], [0], [1], [0, 0, 1, 1], [], []>} : vector<32x64xbf16>, vector<64x32xbf16>, vector<32x32xf32> -> vector<32x32xf32>
    %488 = vector.extract_strided_slice %0 {offsets = [19, 0], sizes = [1, 32], strides = [1, 1]} : vector<23x128xf32> to vector<1x32xf32>
    %489 = vector.broadcast %488 : vector<1x32xf32> to vector<32x32xf32>
    %490 = arith.addf %487, %489 : vector<32x32xf32>
    %491 = arith.addf %490, %476 : vector<32x32xf32>
    %cst_116 = arith.constant dense<0.000000e+00> : vector<32xf32>
    %492 = vector.multi_reduction <add>, %491, %cst_116 [1] : vector<32x32xf32> to vector<32xf32>
    %493 = vector.shape_cast %492 : vector<32xf32> to vector<32x1xf32>
    %cst_117 = arith.constant 3.200000e+01 : f32
    %494 = vector.broadcast %cst_117 : f32 to vector<32x1xf32>
    %495 = arith.divf %493, %494 : vector<32x1xf32>
    %496 = vector.broadcast %495 : vector<32x1xf32> to vector<32x32xf32>
    %497 = arith.subf %491, %496 : vector<32x32xf32>
    %498 = arith.mulf %497, %497 : vector<32x32xf32>
    %cst_118 = arith.constant dense<0.000000e+00> : vector<32xf32>
    %499 = vector.multi_reduction <add>, %498, %cst_118 [1] : vector<32x32xf32> to vector<32xf32>
    %500 = vector.shape_cast %499 : vector<32xf32> to vector<32x1xf32>
    %cst_119 = arith.constant 3.200000e+01 : f32
    %501 = vector.broadcast %cst_119 : f32 to vector<32x1xf32>
    %502 = arith.divf %500, %501 : vector<32x1xf32>
    %503 = vector.broadcast %495 : vector<32x1xf32> to vector<32x32xf32>
    %504 = arith.subf %491, %503 : vector<32x32xf32>
    %cst_120 = arith.constant 9.99999974E-6 : f32
    %505 = vector.broadcast %cst_120 : f32 to vector<32x1xf32>
    %506 = arith.addf %502, %505 : vector<32x1xf32>
    %507 = math.rsqrt %506 : vector<32x1xf32>
    %508 = vector.broadcast %507 : vector<32x1xf32> to vector<32x32xf32>
    %509 = arith.mulf %504, %508 : vector<32x32xf32>
    %510 = vector.extract_strided_slice %0 {offsets = [20, 0], sizes = [1, 32], strides = [1, 1]} : vector<23x128xf32> to vector<1x32xf32>
    %511 = vector.broadcast %510 : vector<1x32xf32> to vector<32x32xf32>
    %512 = arith.mulf %509, %511 : vector<32x32xf32>
    %513 = vector.extract_strided_slice %0 {offsets = [21, 0], sizes = [1, 32], strides = [1, 1]} : vector<23x128xf32> to vector<1x32xf32>
    %514 = vector.broadcast %513 : vector<1x32xf32> to vector<32x32xf32>
    %515 = arith.addf %512, %514 : vector<32x32xf32>
    %c640 = arith.constant 640 : index
    %c0_121 = arith.constant 0 : index
    %516 = vector.load %arg4[%c640, %c0_121] : memref<672x128xbf16, #tpu.memory_space<vmem>>, vector<32x9xbf16>
    %517 = arith.truncf %515 : vector<32x32xf32> to vector<32x32xbf16>
    %cst_122 = arith.constant dense<0.000000e+00> : vector<32x9xf32>
    %518 = tpu.matmul %517, %516, %cst_122 {dimension_numbers = #tpu.dot_dimension_numbers<[1], [0], [0], [1], [0, 0, 1, 1], [], []>} : vector<32x32xbf16>, vector<32x9xbf16>, vector<32x9xf32> -> vector<32x9xf32>
    %519 = vector.extract_strided_slice %0 {offsets = [22, 0], sizes = [1, 9], strides = [1, 1]} : vector<23x128xf32> to vector<1x9xf32>
    %520 = vector.broadcast %519 : vector<1x9xf32> to vector<32x9xf32>
    %521 = arith.addf %518, %520 : vector<32x9xf32>
    %522 = tpu.iota {dimensions = array<i32: 1>} : vector<32x9xi32>
    %c5_i32 = arith.constant 5 : i32
    %523 = vector.broadcast %c5_i32 : i32 to vector<32x9xi32>
    %524 = arith.cmpi sge, %522, %523 : vector<32x9xi32>
    %525 = arith.negf %521 : vector<32x9xf32>
    %526 = math.exp %525 : vector<32x9xf32>
    %cst_123 = arith.constant 1.000000e+00 : f32
    %527 = vector.broadcast %cst_123 : f32 to vector<32x9xf32>
    %528 = arith.addf %527, %526 : vector<32x9xf32>
    %529 = arith.divf %527, %528 : vector<32x9xf32>
    %530 = arith.select %524, %529, %521 : vector<32x9xi1>, vector<32x9xf32>
    %531 = vector.shape_cast %530 : vector<32x9xf32> to vector<4x8x9xf32>
    %c0_124 = arith.constant 0 : index
    %c0_125 = arith.constant 0 : index
    %c0_126 = arith.constant 0 : index
    %532 = vector.load %arg6[%c0_124, %c0_125, %c0_126] : memref<4x8x9xf32, #tpu.memory_space<vmem>>, vector<4x8x9xf32>
    tpu.vector_store %arg6[%c0_124, %c0_125, %c0_126], %531 {strides = array<i32>} : memref<4x8x9xf32, #tpu.memory_space<vmem>>, vector<4x8x9xf32>,
    return
  }
  func.func @transform_0(%arg0: i32) -> (i32, i32, i32) {
    %c0_i32 = arith.constant 0 : i32
    %c0_i32_0 = arith.constant 0 : i32
    %c0_i32_1 = arith.constant 0 : i32
    return %arg0, %c0_i32, %c0_i32_0 : i32, i32, i32
  }
  func.func @transform_1(%arg0: i32) -> (i32, i32) {
    %c0_i32 = arith.constant 0 : i32
    %c0_i32_0 = arith.constant 0 : i32
    %c0_i32_1 = arith.constant 0 : i32
    return %c0_i32, %c0_i32_0 : i32, i32
  }
  func.func @transform_2(%arg0: i32) -> (i32, i32) {
    %c0_i32 = arith.constant 0 : i32
    %c0_i32_0 = arith.constant 0 : i32
    %c0_i32_1 = arith.constant 0 : i32
    return %c0_i32, %c0_i32_0 : i32, i32
  }
  func.func @transform_3(%arg0: i32) -> (i32, i32) {
    %c0_i32 = arith.constant 0 : i32
    %c0_i32_0 = arith.constant 0 : i32
    %c0_i32_1 = arith.constant 0 : i32
    return %c0_i32, %c0_i32_0 : i32, i32
  }
  func.func @transform_4(%arg0: i32) -> (i32, i32) {
    %c0_i32 = arith.constant 0 : i32
    %c0_i32_0 = arith.constant 0 : i32
    %c0_i32_1 = arith.constant 0 : i32
    return %c0_i32, %c0_i32_0 : i32, i32
  }
  func.func @transform_5(%arg0: i32) -> (i32, i32, i32) {
    %c0_i32 = arith.constant 0 : i32
    %c0_i32_0 = arith.constant 0 : i32
    %c0_i32_1 = arith.constant 0 : i32
    return %arg0, %c0_i32, %c0_i32_0 : i32, i32, i32
  }
}

</mosaic_0001>

<llo_original>
// kernel: mini_detr_forward.1
$region0: #{mini_detr_forward.1}
  #allocation0 [shape = 'u32[]', space=smem, size = 0x4, offset = 0x4, fixed_abs, tag = 'smem constant byte address 0x4 - core index']
  #allocation1 [shape = 'u32[144,128]{1,0:T(1,128)}', space=vmem, size = 0x12000, scoped, tag = 'internal scratch']
  %s0 = inlined_call_operand.vmem [shape: bf16[8,16,192], index: 0, kind: input, shape index: {}]
  %s1 = inlined_call_operand.vmem [shape: f32[64,32], index: 1, kind: input, shape index: {}]
  %s2 = inlined_call_operand.vmem [shape: f32[8,32], index: 2, kind: input, shape index: {}]
  %s3 = inlined_call_operand.vmem [shape: bf16[672,128], index: 3, kind: input, shape index: {}]
  %s4 = inlined_call_operand.vmem [shape: f32[23,128], index: 4, kind: input, shape index: {}]
  %s5 = inlined_call_operand.vmem [shape: f32[8,8,9], index: 5, kind: output, shape index: {}]
  %s6 = sld [smem:[#allocation0]]
  $region53: #{mini_detr_forward.1} parent=0
    _
  %s8 = ssub.s32 1, %s6
  %s9 = scalar_select 0, %s8, %s6
  loop: start=0, step=1, limit=4
  $region2: #{mini_detr_forward.1} parent=0 // loop_pre_header
    _
  $region3: #{mini_detr_forward.1} parent=0 // loop_header
    %s11 = sphi 0, %s15
    %p12 = scmp.ge.s32.totalorder %s11, 4
    %s21 = sphi 0, %s23
    %s24 = sphi 0, %s21
    %s25 = sphi 0, %s24
    %s41 = sphi 0, %s25
    %s45 = sphi 0, %s45
    %s47 = sphi 0, %s45
    %s48 = sphi 0, %s47
    %s62 = sphi 0, %s48
    %s66 = sphi 0, %s66
    %s68 = sphi 0, %s66
    %s69 = sphi 0, %s68
    %s83 = sphi 0, %s69
    %s87 = sphi 0, %s87
    %s89 = sphi 0, %s87
    %s90 = sphi 0, %s89
    %s104 = sphi 0, %s90
    %s108 = sphi 0, %s108
    %s110 = sphi 0, %s108
    %s111 = sphi 0, %s110
    %s125 = sphi 0, %s111
    %s131 = sphi 0, %s133
    %s134 = sphi 0, %s131
    %s135 = sphi 0, %s134
    %s151 = sphi 0, %s135
  $region4: #{mini_detr_forward.1} parent=0 // loop_header_branch
    %14 = sbr.rel (%p12) target = $region8
  $region5: #{mini_detr_forward.1} parent=0 // loop_body
    %s16 = ssub.s32 %s11, 1
    %s17 = ssub.s32 %s11, 2
    %s18 = sadd.s32 %s11, 1
    %s19 = ssub.s32 %s11, %s18
    %p20 = scmp.eq.s32.totalorder %s19, 0
    %s22 = sadd.s32 %s21, 1
    %s23 = scalar_select %p20, %s21, %s22
    %p26 = pneg %p20
    %p27 = scmp.eq.s32.totalorder %s11, 1
    %p28 = por %p26, %p27
    %p29 = scmp.ne.s32.totalorder %s21, %s24
    %p30 = scmp.eq.s32.totalorder %s11, 0
    %p31 = por %p29, %p30
    %p32 = scmp.ne.s32.totalorder %s21, %s24
    %p33 = scmp.eq.s32.totalorder %s16, 1
    %p34 = por %p32, %p33
    %p35 = scmp.ne.s32.totalorder %s24, %s25
    %p36 = scmp.eq.s32.totalorder %s16, 0
    %p37 = por %p35, %p36
    %p38 = scmp.ne.s32.totalorder %s24, %s25
    %p39 = scmp.eq.s32.totalorder %s17, 1
    %p40 = por %p38, %p39
    %p42 = scmp.ne.s32.totalorder %s25, %s41
    %p43 = scmp.eq.s32.totalorder %s17, 0
    %p44 = por %p42, %p43
    %s46 = sadd.s32 %s45, 1
    %p49 = scmp.eq.s32.totalorder %s11, 1
    %p50 = scmp.ne.s32.totalorder %s45, %s47
    %p51 = scmp.eq.s32.totalorder %s11, 0
    %p52 = por %p50, %p51
    %p53 = scmp.ne.s32.totalorder %s45, %s47
    %p54 = scmp.eq.s32.totalorder %s16, 1
    %p55 = por %p53, %p54
    %p56 = scmp.ne.s32.totalorder %s47, %s48
    %p57 = scmp.eq.s32.totalorder %s16, 0
    %p58 = por %p56, %p57
    %p59 = scmp.ne.s32.totalorder %s47, %s48
    %p60 = scmp.eq.s32.totalorder %s17, 1
    %p61 = por %p59, %p60
    %p63 = scmp.ne.s32.totalorder %s48, %s62
    %p64 = scmp.eq.s32.totalorder %s17, 0
    %p65 = por %p63, %p64
    %s67 = sadd.s32 %s66, 1
    %p70 = scmp.eq.s32.totalorder %s11, 1
    %p71 = scmp.ne.s32.totalorder %s66, %s68
    %p72 = scmp.eq.s32.totalorder %s11, 0
    %p73 = por %p71, %p72
    %p74 = scmp.ne.s32.totalorder %s66, %s68
    %p75 = scmp.eq.s32.totalorder %s16, 1
    %p76 = por %p74, %p75
    %p77 = scmp.ne.s32.totalorder %s68, %s69
    %p78 = scmp.eq.s32.totalorder %s16, 0
    %p79 = por %p77, %p78
    %p80 = scmp.ne.s32.totalorder %s68, %s69
    %p81 = scmp.eq.s32.totalorder %s17, 1
    %p82 = por %p80, %p81
    %p84 = scmp.ne.s32.totalorder %s69, %s83
    %p85 = scmp.eq.s32.totalorder %s17, 0
    %p86 = por %p84, %p85
    %s88 = sadd.s32 %s87, 1
    %p91 = scmp.eq.s32.totalorder %s11, 1
    %p92 = scmp.ne.s32.totalorder %s87, %s89
    %p93 = scmp.eq.s32.totalorder %s11, 0
    %p94 = por %p92, %p93
    %p95 = scmp.ne.s32.totalorder %s87, %s89
    %p96 = scmp.eq.s32.totalorder %s16, 1
    %p97 = por %p95, %p96
    %p98 = scmp.ne.s32.totalorder %s89, %s90
    %p99 = scmp.eq.s32.totalorder %s16, 0
    %p100 = por %p98, %p99
    %p101 = scmp.ne.s32.totalorder %s89, %s90
    %p102 = scmp.eq.s32.totalorder %s17, 1
    %p103 = por %p101, %p102
    %p105 = scmp.ne.s32.totalorder %s90, %s104
    %p106 = scmp.eq.s32.totalorder %s17, 0
    %p107 = por %p105, %p106
    %s109 = sadd.s32 %s108, 1
    %p112 = scmp.eq.s32.totalorder %s11, 1
    %p113 = scmp.ne.s32.totalorder %s108, %s110
    %p114 = scmp.eq.s32.totalorder %s11, 0
    %p115 = por %p113, %p114
    %p116 = scmp.ne.s32.totalorder %s108, %s110
    %p117 = scmp.eq.s32.totalorder %s16, 1
    %p118 = por %p116, %p117
    %p119 = scmp.ne.s32.totalorder %s110, %s111
    %p120 = scmp.eq.s32.totalorder %s16, 0
    %p121 = por %p119, %p120
    %p122 = scmp.ne.s32.totalorder %s110, %s111
    %p123 = scmp.eq.s32.totalorder %s17, 1
    %p124 = por %p122, %p123
    %p126 = scmp.ne.s32.totalorder %s111, %s125
    %p127 = scmp.eq.s32.totalorder %s17, 0
    %p128 = por %p126, %p127
    %s129 = ssub.s32 %s11, %s18
    %p130 = scmp.eq.s32.totalorder %s129, 0
    %s132 = sadd.s32 %s131, 1
    %s133 = scalar_select %p130, %s131, %s132
    %p136 = pneg %p130
    %p137 = scmp.eq.s32.totalorder %s11, 1
    %p138 = por %p136, %p137
    %p139 = scmp.ne.s32.totalorder %s131, %s134
    %p140 = scmp.eq.s32.totalorder %s11, 0
    %p141 = por %p139, %p140
    %p142 = scmp.ne.s32.totalorder %s131, %s134
    %p143 = scmp.eq.s32.totalorder %s16, 1
    %p144 = por %p142, %p143
    %p145 = scmp.ne.s32.totalorder %s134, %s135
    %p146 = scmp.eq.s32.totalorder %s16, 0
    %p147 = por %p145, %p146
    %p148 = scmp.ne.s32.totalorder %s134, %s135
    %p149 = scmp.eq.s32.totalorder %s17, 1
    %p150 = por %p148, %p149
    %p152 = scmp.ne.s32.totalorder %s135, %s151
    %p153 = scmp.eq.s32.totalorder %s17, 0
    %p154 = por %p152, %p153
    %p155 = scmp.le.s32.totalorder 1, %s11
    %p156 = scmp.lt.s32.totalorder %s11, 3
    %p157 = pnand %p155, %p156
    %p158 = pneg %p157
    // Predicated region
    $region9: #{mini_detr_forward.1} parent=5 // pred_check
      _
    $region10: #{mini_detr_forward.1} parent=5 // pred_check_branch
      %160 = sbr.rel (%p157) target = $region12
    $region11: #{mini_detr_forward.1} parent=5 // pred_region
      %s161 = ssub.s32 %s11, 1
      // Predicated region
      $region13: #{mini_detr_forward.1} parent=11 // pred_check
        %p162 = pneg %p58
      $region14: #{mini_detr_forward.1} parent=11 // pred_check_branch
        %164 = sbr.rel (%p162) target = $region16
      $region15: #{mini_detr_forward.1} parent=11 // pred_region
        _
      $region16: #{mini_detr_forward.1} parent=11 // pred_fallthru
        _
      // Predicated region
      $region17: #{mini_detr_forward.1} parent=11 // pred_check
        %p165 = pneg %p79
      $region18: #{mini_detr_forward.1} parent=11 // pred_check_branch
        %167 = sbr.rel (%p165) target = $region20
      $region19: #{mini_detr_forward.1} parent=11 // pred_region
        _
      $region20: #{mini_detr_forward.1} parent=11 // pred_fallthru
        _
      // Predicated region
      $region21: #{mini_detr_forward.1} parent=11 // pred_check
        %p168 = pneg %p100
      $region22: #{mini_detr_forward.1} parent=11 // pred_check_branch
        %170 = sbr.rel (%p168) target = $region24
      $region23: #{mini_detr_forward.1} parent=11 // pred_region
        _
      $region24: #{mini_detr_forward.1} parent=11 // pred_fallthru
        _
      // Predicated region
      $region25: #{mini_detr_forward.1} parent=11 // pred_check
        %p171 = pneg %p121
      $region26: #{mini_detr_forward.1} parent=11 // pred_check_branch
        %173 = sbr.rel (%p171) target = $region28
      $region27: #{mini_detr_forward.1} parent=11 // pred_region
        _
      $region28: #{mini_detr_forward.1} parent=11 // pred_fallthru
        _
    $region12: #{mini_detr_forward.1} parent=5 // pred_fallthru
      _
    %p174 = scmp.lt.s32.totalorder %s11, 2
    // Predicated region
    $region29: #{mini_detr_forward.1} parent=5 // pred_check
      %p175 = pneg %p174
    $region30: #{mini_detr_forward.1} parent=5 // pred_check_branch
      %177 = sbr.rel (%p175) target = $region32
    $region31: #{mini_detr_forward.1} parent=5 // pred_region
      // Predicated region
      $region33: #{mini_detr_forward.1} parent=31 // pred_check
        %p178 = pneg %p31
      $region34: #{mini_detr_forward.1} parent=31 // pred_check_branch
        %180 = sbr.rel (%p178) target = $region36
      $region35: #{mini_detr_forward.1} parent=31 // pred_region
        %s181 = smul.u32 4, %s11
        %p182 = scmp.lt.s32.totalorder %s181, 7
        %s183 = scalar_select %p182, %s181, 7
        %s184 = smul.addr %s183, 4
        %s185 = smul.addr %s184, 4
        %s186 = scalar_lea.vmem %s0, %s185
        %s187 = smul.u32 4, %s11
      $region36: #{mini_detr_forward.1} parent=31 // pred_fallthru
        _
    $region32: #{mini_detr_forward.1} parent=5 // pred_fallthru
      _
    %p188 = scmp.le.s32.totalorder 1, %s11
    %p189 = scmp.lt.s32.totalorder %s11, 3
    %p190 = pnand %p188, %p189
    %p191 = pneg %p190
    // Predicated region
    $region37: #{mini_detr_forward.1} parent=5 // pred_check
      _
    $region38: #{mini_detr_forward.1} parent=5 // pred_check_branch
      %193 = sbr.rel (%p190) target = $region40
    $region39: #{mini_detr_forward.1} parent=5 // pred_region
      %s194 = ssub.s32 %s11, 1
      %s195 = smul.u32 4, %s16
      %p196 = scmp.lt.s32.totalorder %s195, 7
      %s197 = scalar_select %p196, %s195, 7
      %s198 = smul.addr %s197, 4
      %s199 = smul.addr %s198, 4
      %s200 = scalar_lea.vmem %s0, %s199
      %p201 = pneg %p37
      %p202 = pneg %p34
      %p203 = pneg %p58
      %p204 = pneg %p55
      %p205 = pneg %p79
      %p206 = pneg %p76
      %p207 = pneg %p100
      %p208 = pneg %p97
      %p209 = pneg %p121
      %p210 = pneg %p118
      %p211 = pneg %p147
      %p212 = pneg %p144
      %s213 = smul.u32 4, %s16
      %p214 = scmp.lt.s32.totalorder %s213, 7
      %s215 = scalar_select %p214, %s213, 7
      %s216 = smul.addr %s215, 8
      %s217 = scalar_lea.vmem %s5, %s216
      %s218 = smul.u32 4, %s16
      %p219 = scmp.lt.s32.totalorder %s218, 7
      %s220 = scalar_select %p219, %s218, 7
      %s221 = smul.addr %s220, 4
      %s222 = smul.addr %s221, 4
      %s223 = scalar_lea.vmem %s0, %s222
      %s224 = smul.u32 4, %s16
      %s225 = smul.u32 4, %s16
      %p226 = scmp.lt.s32.totalorder %s225, 7
      %s227 = scalar_select %p226, %s225, 7
      %s228 = smul.addr %s227, 8
      %s229 = scalar_lea.vmem %s5, %s228
      %s230 = smul.u32 4, %s16
      %v232 = vld [vmem:[%s4] sm:$0xff]
      %v233 = vld [vmem:[%s4 + $0x8] sm:$0xff]
      %v234 = vld [vmem:[%s4 + $0x10] sm:$0x7f]
      %v235 = vld [vmem:[%s223] sm:$0xff]
      %v236 = vld [vmem:[%s223 + $0x8] sm:$0xff]
      %v237 = vld [vmem:[%s223 + $0x10] sm:$0xff]
      %v238 = vld [vmem:[%s223 + $0x18] sm:$0xff]
      %v239 = vld [vmem:[%s223 + $0x20] sm:$0xff]
      %v240 = vld [vmem:[%s223 + $0x28] sm:$0xff]
      %v241 = vld [vmem:[%s223 + $0x30] sm:$0xff]
      %v242 = vld [vmem:[%s223 + $0x38] sm:$0xff]
      %v243 = vld [vmem:[%s3] sm:$0xf]
      %v244 = vld [vmem:[%s3 + $0x4] sm:$0xf]
      %v245 = vld [vmem:[%s3 + $0x8] sm:$0xf]
      %v246 = vld [vmem:[%s3 + $0xc] sm:$0xf]
      %v247 = vld [vmem:[%s3 + $0x10] sm:$0xf]
      %v248 = vld [vmem:[%s3 + $0x14] sm:$0xf]
      %v249 = vld [vmem:[%s3 + $0x18] sm:$0xf]
      %v250 = vld [vmem:[%s3 + $0x1c] sm:$0xf]
      %v251 = vld [vmem:[%s3 + $0x20] sm:$0xf]
      %v252 = vld [vmem:[%s3 + $0x24] sm:$0xf]
      %v253 = vld [vmem:[%s3 + $0x28] sm:$0xf]
      %v254 = vld [vmem:[%s3 + $0x2c] sm:$0xf]
      %v255 = vld [vmem:[%s3 + $0x30] sm:$0xf]
      %v256 = vld [vmem:[%s3 + $0x34] sm:$0xf]
      %v257 = vld [vmem:[%s3 + $0x38] sm:$0xf]
      %v258 = vld [vmem:[%s3 + $0x3c] sm:$0xf]
      %v259 = vld [vmem:[%s3 + $0x40] sm:$0xf]
      %v260 = vld [vmem:[%s3 + $0x44] sm:$0xf]
      %v261 = vld [vmem:[%s3 + $0x48] sm:$0xf]
      %v262 = vld [vmem:[%s3 + $0x4c] sm:$0xf]
      %v263 = vld [vmem:[%s3 + $0x50] sm:$0xf]
      %v264 = vld [vmem:[%s3 + $0x54] sm:$0xf]
      %v265 = vld [vmem:[%s3 + $0x58] sm:$0xf]
      %v266 = vld [vmem:[%s3 + $0x5c] sm:$0xf]
      %v267 = vlaneseq
      %v268 = vshrl.u32 %v267, 7
      %v269 = vsub.s32 0, %v268
      %v270 = vrot.slane %v232, %v269
      %v279 = vunpack.c.l.b16 %v235
      %v280 = vunpack.c.h.b16 %v235
      %v281 = vunpack.c.l.b16 %v236
      %v282 = vunpack.c.h.b16 %v236
      %v283 = vunpack.c.l.b16 %v237
      %v284 = vunpack.c.h.b16 %v237
      %v285 = vunpack.c.l.b16 %v238
      %v286 = vunpack.c.h.b16 %v238
      %v287 = vunpack.c.l.b16 %v239
      %v288 = vunpack.c.h.b16 %v239
      %v289 = vunpack.c.l.b16 %v240
      %v290 = vunpack.c.h.b16 %v240
      %v291 = vunpack.c.l.b16 %v241
      %v292 = vunpack.c.h.b16 %v241
      %v293 = vunpack.c.l.b16 %v242
      %v294 = vunpack.c.h.b16 %v242
      %v295 = vpack.c.b16 %v281, %v279
      %v296 = vpack.c.b16 %v282, %v280
      %v297 = vpack.c.b16 %v285, %v283
      %v298 = vpack.c.b16 %v286, %v284
      %v299 = vpack.c.b16 %v289, %v287
      %v300 = vpack.c.b16 %v290, %v288
      %v301 = vpack.c.b16 %v293, %v291
      %v302 = vpack.c.b16 %v294, %v292
      %v331 = vunpack.c.l.b16 %v243
      %v332 = vunpack.c.l.b16 %v244
      %v333 = vunpack.c.l.b16 %v245
      %v334 = vunpack.c.l.b16 %v246
      %v335 = vunpack.c.l.b16 %v247
      %v336 = vunpack.c.l.b16 %v248
      %v337 = vunpack.c.l.b16 %v249
      %v338 = vunpack.c.l.b16 %v250
      %v339 = vunpack.c.l.b16 %v251
      %v340 = vunpack.c.l.b16 %v252
      %v341 = vunpack.c.l.b16 %v253
      %v342 = vunpack.c.l.b16 %v254
      %v343 = vunpack.c.l.b16 %v255
      %v344 = vunpack.c.l.b16 %v256
      %v345 = vunpack.c.l.b16 %v257
      %v346 = vunpack.c.l.b16 %v258
      %v347 = vunpack.c.l.b16 %v259
      %v348 = vunpack.c.l.b16 %v260
      %v349 = vunpack.c.l.b16 %v261
      %v350 = vunpack.c.l.b16 %v262
      %v351 = vunpack.c.l.b16 %v263
      %v352 = vunpack.c.l.b16 %v264
      %v353 = vunpack.c.l.b16 %v265
      %v354 = vunpack.c.l.b16 %v266
      %v355 = vpack.c.b16 %v332, %v331
      %v356 = vpack.c.b16 %v334, %v333
      %v357 = vpack.c.b16 %v336, %v335
      %v358 = vpack.c.b16 %v338, %v337
      %v359 = vpack.c.b16 %v340, %v339
      %v360 = vpack.c.b16 %v342, %v341
      %v361 = vpack.c.b16 %v344, %v343
      %v362 = vpack.c.b16 %v346, %v345
      %v363 = vpack.c.b16 %v348, %v347
      %v364 = vpack.c.b16 %v350, %v349
      %v365 = vpack.c.b16 %v352, %v351
      %v366 = vpack.c.b16 %v354, %v353
      %vm379 = vcmask 523264
      %v381 = vsel %vm379, %v296, 0
      %v384 = vsel %vm379, %v298, 0
      %v387 = vsel %vm379, %v300, 0
      %v390 = vsel %vm379, %v302, 0
      %392 = vmatprep.subr.bf16.mxu0 0
      %393 = vmatpush1.bf16.msra.mxu0 %v355
      %394 = vmatprep.subr.bf16.mxu0 0
      %395 = vmatpush1.bf16.msra.mxu0 %v356
      %396 = vmatprep.subr.bf16.mxu0 0
      %397 = vmatpush1.bf16.msra.mxu0 %v357
      %398 = vmatprep.subr.bf16.mxu0 0
      %399 = vmatpush1.bf16.msra.mxu0 %v358
      %400 = vmatprep.subr.bf16.mxu0 0
      %401 = vmatpush1.bf16.msra.mxu0 %v359
      %402 = vmatprep.subr.bf16.mxu0 0
      %403 = vmatpush1.bf16.msra.mxu0 %v360
      %404 = vmatprep.subr.bf16.mxu0 0
      %405 = vmatpush1.bf16.msra.mxu0 %v361
      %406 = vmatprep.subr.bf16.mxu0 0
      %407 = vmatpush1.bf16.msra.mxu0 %v362
      %408 = vmatprep.subr.bf16.mxu0 0
      %409 = vmatpush1.bf16.msra.mxu0 %v363
      %410 = vmatprep.subr.bf16.mxu0 0
      %411 = vmatpush1.bf16.msra.mxu0 %v364
      %412 = vmatprep.subr.bf16.mxu0 0
      %413 = vmatpush1.bf16.msra.mxu0 %v365
      %414 = vmatprep.subr.bf16.mxu0 0
      %415 = vmatpush1.bf16.msra.mxu0 %v366
      %416 = vmatprep.subr.bf16.mxu0 0
      %417 = vmatpush1.bf16.msra.mxu0 0
      %418 = vmatprep.subr.bf16.mxu0 0
      %419 = vmatpush1.bf16.msra.mxu0 0
      %420 = vmatprep.subr.bf16.mxu0 0
      %421 = vmatpush1.bf16.msra.mxu0 0
      %422 = vmatprep.subr.bf16.mxu0 0
      %423 = vmatpush1.bf16.msra.mxu0 0
      %424 = vmatprep.mubr.bf16.mxu0 %v381
      %425 = vmatmul.mubr.bf16.gmra.mrb[0].mxu0 %v295
      %v426 = vpop.f32.mrb[0].mxu0
      %v427 = vadd.f32 %v270, %v426
      %v428 = vpop.f32.mrb[0].mxu0
      %v429 = vpop.f32.mrb[0].mxu0
      %v430 = vadd.f32 %v270, %v429
      %v431 = vpop.f32.mrb[0].mxu0
      %432 = vmatprep.mubr.bf16.mxu0 %v384
      %433 = vmatmul.mubr.bf16.gmra.mrb[0].mxu0 %v297
      %v434 = vpop.f32.mrb[0].mxu0
      %v435 = vadd.f32 %v270, %v434
      %v436 = vpop.f32.mrb[0].mxu0
      %v437 = vpop.f32.mrb[0].mxu0
      %v438 = vadd.f32 %v270, %v437
      %v439 = vpop.f32.mrb[0].mxu0
      %440 = vmatprep.mubr.bf16.mxu0 %v387
      %441 = vmatmul.mubr.bf16.gmra.mrb[0].mxu0 %v299
      %v442 = vpop.f32.mrb[0].mxu0
      %v443 = vadd.f32 %v270, %v442
      %v444 = vpop.f32.mrb[0].mxu0
      %v445 = vpop.f32.mrb[0].mxu0
      %v446 = vadd.f32 %v270, %v445
      %v447 = vpop.f32.mrb[0].mxu0
      %448 = vmatprep.mubr.bf16.mxu0 %v390
      %449 = vmatmul.mubr.bf16.gmra.mrb[0].mxu0 %v301
      %v450 = vpop.f32.mrb[0].mxu0
      %v451 = vadd.f32 %v270, %v450
      %v452 = vpop.f32.mrb[0].mxu0
      %v453 = vpop.f32.mrb[0].mxu0
      %v454 = vadd.f32 %v270, %v453
      %v455 = vpop.f32.mrb[0].mxu0
      %456 = vdwg.mxu0
      %v457 = vmax.f32 %v427, 0.0
      %v458 = vmax.f32 %v430, 0.0
      %v459 = vmax.f32 %v435, 0.0
      %v460 = vmax.f32 %v438, 0.0
      %v461 = vmax.f32 %v443, 0.0
      %v462 = vmax.f32 %v446, 0.0
      %v463 = vmax.f32 %v451, 0.0
      %v464 = vmax.f32 %v454, 0.0
      %v465 = vld [vmem:[%s3 + $0x60] sm:$0xf]
      %v466 = vld [vmem:[%s3 + $0x64] sm:$0xf]
      %v467 = vld [vmem:[%s3 + $0x68] sm:$0xf]
      %v468 = vld [vmem:[%s3 + $0x6c] sm:$0xf]
      %v469 = vld [vmem:[%s3 + $0x70] sm:$0xf]
      %v470 = vld [vmem:[%s3 + $0x74] sm:$0xf]
      %v471 = vld [vmem:[%s3 + $0x78] sm:$0xf]
      %v472 = vld [vmem:[%s3 + $0x7c] sm:$0xf]
      %v473 = vpack.c.bf16 %v458, %v457
      %v474 = vpack.c.bf16 %v460, %v459
      %v475 = vpack.c.bf16 %v462, %v461
      %v476 = vpack.c.bf16 %v464, %v463
      %v477 = vlaneseq
      %v478 = vshrl.u32 %v477, 7
      %v479 = vsub.s32 1, %v478
      %v480 = vrot.slane %v232, %v479
      %v489 = vunpack.c.l.b16 %v465
      %v490 = vunpack.c.l.b16 %v466
      %v491 = vunpack.c.l.b16 %v467
      %v492 = vunpack.c.l.b16 %v468
      %v493 = vunpack.c.l.b16 %v469
      %v494 = vunpack.c.l.b16 %v470
      %v495 = vunpack.c.l.b16 %v471
      %v496 = vunpack.c.l.b16 %v472
      %v497 = vpack.c.b16 %v490, %v489
      %v498 = vpack.c.b16 %v492, %v491
      %v499 = vpack.c.b16 %v494, %v493
      %v500 = vpack.c.b16 %v496, %v495
      %v506 = vsel %vm379, %v473, 0
      %v509 = vsel %vm379, %v474, 0
      %v512 = vsel %vm379, %v475, 0
      %v515 = vsel %vm379, %v476, 0
      %517 = vmatprep.subr.bf16.mxu0 0
      %518 = vmatpush1.bf16.msra.mxu0 %v497
      %519 = vmatprep.subr.bf16.mxu0 0
      %520 = vmatpush1.bf16.msra.mxu0 %v498
      %521 = vmatprep.subr.bf16.mxu0 0
      %522 = vmatpush1.bf16.msra.mxu0 %v499
      %523 = vmatprep.subr.bf16.mxu0 0
      %524 = vmatpush1.bf16.msra.mxu0 %v500
      %525 = vmatprep.subr.bf16.mxu0 0
      %526 = vmatpush1.bf16.msra.mxu0 0
      %527 = vmatprep.subr.bf16.mxu0 0
      %528 = vmatpush1.bf16.msra.mxu0 0
      %529 = vmatprep.subr.bf16.mxu0 0
      %530 = vmatpush1.bf16.msra.mxu0 0
      %531 = vmatprep.subr.bf16.mxu0 0
      %532 = vmatpush1.bf16.msra.mxu0 0
      %533 = vmatprep.subr.bf16.mxu0 0
      %534 = vmatpush1.bf16.msra.mxu0 0
      %535 = vmatprep.subr.bf16.mxu0 0
      %536 = vmatpush1.bf16.msra.mxu0 0
      %537 = vmatprep.subr.bf16.mxu0 0
      %538 = vmatpush1.bf16.msra.mxu0 0
      %539 = vmatprep.subr.bf16.mxu0 0
      %540 = vmatpush1.bf16.msra.mxu0 0
      %541 = vmatprep.subr.bf16.mxu0 0
      %542 = vmatpush1.bf16.msra.mxu0 0
      %543 = vmatprep.subr.bf16.mxu0 0
      %544 = vmatpush1.bf16.msra.mxu0 0
      %545 = vmatprep.subr.bf16.mxu0 0
      %546 = vmatpush1.bf16.msra.mxu0 0
      %547 = vmatprep.subr.bf16.mxu0 0
      %548 = vmatpush1.bf16.msra.mxu0 0
      %549 = vmatprep.mubr.bf16.mxu0 0
      %550 = vmatmul.mubr.bf16.gmra.mrb[0].mxu0 %v506
      %v551 = vpop.f32.mrb[0].mxu0
      %v552 = vadd.f32 %v480, %v551
      %v553 = vpop.f32.mrb[0].mxu0
      %v554 = vpop.f32.mrb[0].mxu0
      %v555 = vadd.f32 %v480, %v554
      %v556 = vpop.f32.mrb[0].mxu0
      %557 = vmatprep.mubr.bf16.mxu0 0
      %558 = vmatmul.mubr.bf16.gmra.mrb[0].mxu0 %v509
      %v559 = vpop.f32.mrb[0].mxu0
      %v560 = vadd.f32 %v480, %v559
      %v561 = vpop.f32.mrb[0].mxu0
      %v562 = vpop.f32.mrb[0].mxu0
      %v563 = vadd.f32 %v480, %v562
      %v564 = vpop.f32.mrb[0].mxu0
      %565 = vmatprep.mubr.bf16.mxu0 0
      %566 = vmatmul.mubr.bf16.gmra.mrb[0].mxu0 %v512
      %v567 = vpop.f32.mrb[0].mxu0
      %v568 = vadd.f32 %v480, %v567
      %v569 = vpop.f32.mrb[0].mxu0
      %v570 = vpop.f32.mrb[0].mxu0
      %v571 = vadd.f32 %v480, %v570
      %v572 = vpop.f32.mrb[0].mxu0
      %573 = vmatprep.mubr.bf16.mxu0 0
      %574 = vmatmul.mubr.bf16.gmra.mrb[0].mxu0 %v515
      %v575 = vpop.f32.mrb[0].mxu0
      %v576 = vadd.f32 %v480, %v575
      %v577 = vpop.f32.mrb[0].mxu0
      %v578 = vpop.f32.mrb[0].mxu0
      %v579 = vadd.f32 %v480, %v578
      %v580 = vpop.f32.mrb[0].mxu0
      %581 = vdwg.mxu0
      %v582 = vld [vmem:[%s1] sm:$0xff]
      %v583 = vld [vmem:[%s1 + $0x8] sm:$0xff]
      %v584 = vld [vmem:[%s1 + $0x10] sm:$0xff]
      %v585 = vld [vmem:[%s1 + $0x18] sm:$0xff]
      %v586 = vld [vmem:[%s1 + $0x20] sm:$0xff]
      %v587 = vld [vmem:[%s1 + $0x28] sm:$0xff]
      %v588 = vld [vmem:[%s1 + $0x30] sm:$0xff]
      %v589 = vld [vmem:[%s1 + $0x38] sm:$0xff]
      %v590 = vadd.f32 %v552, %v582
      %v591 = vadd.f32 %v555, %v583
      %v592 = vadd.f32 %v560, %v584
      %v593 = vadd.f32 %v563, %v585
      %v594 = vadd.f32 %v568, %v586
      %v595 = vadd.f32 %v571, %v587
      %v596 = vadd.f32 %v576, %v588
      %v597 = vadd.f32 %v579, %v589
      %v598 = vld [vmem:[%s3 + $0x80] sm:$0xf]
      %v599 = vld [vmem:[%s3 + $0x84] sm:$0xf]
      %v600 = vld [vmem:[%s3 + $0x88] sm:$0xf]
      %v601 = vld [vmem:[%s3 + $0x8c] sm:$0xf]
      %v602 = vpack.c.bf16 %v591, %v590
      %v603 = vpack.c.bf16 %v593, %v592
      %v604 = vpack.c.bf16 %v595, %v594
      %v605 = vpack.c.bf16 %v597, %v596
      %v606 = vlaneseq
      %v607 = vshrl.u32 %v606, 7
      %v608 = vsub.s32 2, %v607
      %v609 = vrot.slane %v232, %v608
      %v614 = vunpack.c.l.b16 %v598
      %v615 = vunpack.c.l.b16 %v599
      %v616 = vunpack.c.l.b16 %v600
      %v617 = vunpack.c.l.b16 %v601
      %v618 = vpack.c.b16 %v615, %v614
      %v619 = vpack.c.b16 %v617, %v616
      %vm622 = vcmask 261120
      %v624 = vsel %vm622, %v602, 0
      %v627 = vsel %vm622, %v603, 0
      %v630 = vsel %vm622, %v604, 0
      %v633 = vsel %vm622, %v605, 0
      %635 = vmatprep.subr.bf16.mxu0 0
      %636 = vmatpush1.bf16.msra.mxu0 %v618
      %637 = vmatprep.subr.bf16.mxu0 0
      %638 = vmatpush1.bf16.msra.mxu0 %v619
      %639 = vmatprep.subr.bf16.mxu0 0
      %640 = vmatpush1.bf16.msra.mxu0 0
      %641 = vmatprep.subr.bf16.mxu0 0
      %642 = vmatpush1.bf16.msra.mxu0 0
      %643 = vmatprep.subr.bf16.mxu0 0
      %644 = vmatpush1.bf16.msra.mxu0 0
      %645 = vmatprep.subr.bf16.mxu0 0
      %646 = vmatpush1.bf16.msra.mxu0 0
      %647 = vmatprep.subr.bf16.mxu0 0
      %648 = vmatpush1.bf16.msra.mxu0 0
      %649 = vmatprep.subr.bf16.mxu0 0
      %650 = vmatpush1.bf16.msra.mxu0 0
      %651 = vmatprep.subr.bf16.mxu0 0
      %652 = vmatpush1.bf16.msra.mxu0 0
      %653 = vmatprep.subr.bf16.mxu0 0
      %654 = vmatpush1.bf16.msra.mxu0 0
      %655 = vmatprep.subr.bf16.mxu0 0
      %656 = vmatpush1.bf16.msra.mxu0 0
      %657 = vmatprep.subr.bf16.mxu0 0
      %658 = vmatpush1.bf16.msra.mxu0 0
      %659 = vmatprep.subr.bf16.mxu0 0
      %660 = vmatpush1.bf16.msra.mxu0 0
      %661 = vmatprep.subr.bf16.mxu0 0
      %662 = vmatpush1.bf16.msra.mxu0 0
      %663 = vmatprep.subr.bf16.mxu0 0
      %664 = vmatpush1.bf16.msra.mxu0 0
      %665 = vmatprep.subr.bf16.mxu0 0
      %666 = vmatpush1.bf16.msra.mxu0 0
      %667 = vmatprep.mubr.bf16.mxu0 0
      %668 = vmatmul.mubr.bf16.gmra.mrb[0].mxu0 %v624
      %v669 = vpop.f32.mrb[0].mxu0
      %v670 = vadd.f32 %v609, %v669
      %v671 = vpop.f32.mrb[0].mxu0
      %v672 = vpop.f32.mrb[0].mxu0
      %v673 = vadd.f32 %v609, %v672
      %v674 = vpop.f32.mrb[0].mxu0
      %675 = vmatprep.mubr.bf16.mxu0 0
      %676 = vmatmul.mubr.bf16.gmra.mrb[0].mxu0 %v627
      %v677 = vpop.f32.mrb[0].mxu0
      %v678 = vadd.f32 %v609, %v677
      %v679 = vpop.f32.mrb[0].mxu0
      %v680 = vpop.f32.mrb[0].mxu0
      %v681 = vadd.f32 %v609, %v680
      %v682 = vpop.f32.mrb[0].mxu0
      %683 = vmatprep.mubr.bf16.mxu0 0
      %684 = vmatmul.mubr.bf16.gmra.mrb[0].mxu0 %v630
      %v685 = vpop.f32.mrb[0].mxu0
      %v686 = vadd.f32 %v609, %v685
      %v687 = vpop.f32.mrb[0].mxu0
      %v688 = vpop.f32.mrb[0].mxu0
      %v689 = vadd.f32 %v609, %v688
      %v690 = vpop.f32.mrb[0].mxu0
      %691 = vmatprep.mubr.bf16.mxu0 0
      %692 = vmatmul.mubr.bf16.gmra.mrb[0].mxu0 %v633
      %v693 = vpop.f32.mrb[0].mxu0
      %v694 = vadd.f32 %v609, %v693
      %v695 = vpop.f32.mrb[0].mxu0
      %v696 = vpop.f32.mrb[0].mxu0
      %v697 = vadd.f32 %v609, %v696
      %v698 = vpop.f32.mrb[0].mxu0
      %699 = vdwg.mxu0
      %v700 = vpack.c.bf16 %v673, %v670
      %v701 = vpack.c.bf16 %v681, %v678
      %v702 = vpack.c.bf16 %v689, %v686
      %v703 = vpack.c.bf16 %v697, %v694
      %705 = vrot.lane.b32.xlu0 %v700, 96
      %v706 = vpop.permute.xlu0 %705
      %vm707 = vcmask 64512
      %v709 = vsel %vm707, %v700, 0
      %v712 = vsel %vm707, %v706, 0
      %714 = vmatprep.subr.bf16.mxu0 0
      %715 = vmatpush1.bf16.xpose.msra.mxu0 %v712
      %716 = vmatprep.subr.bf16.mxu0 0
      %717 = vmatpush1.bf16.xpose.msra.mxu0 0
      %718 = vmatprep.subr.bf16.mxu0 0
      %719 = vmatpush1.bf16.xpose.msra.mxu0 0
      %720 = vmatprep.subr.bf16.mxu0 0
      %721 = vmatpush1.bf16.xpose.msra.mxu0 0
      %722 = vmatprep.subr.bf16.mxu0 0
      %723 = vmatpush1.bf16.xpose.msra.mxu0 0
      %724 = vmatprep.subr.bf16.mxu0 0
      %725 = vmatpush1.bf16.xpose.msra.mxu0 0
      %726 = vmatprep.subr.bf16.mxu0 0
      %727 = vmatpush1.bf16.xpose.msra.mxu0 0
      %728 = vmatprep.subr.bf16.mxu0 0
      %729 = vmatpush1.bf16.xpose.msra.mxu0 0
      %730 = vmatprep.subr.bf16.mxu0 0
      %731 = vmatpush1.bf16.xpose.msra.mxu0 0
      %732 = vmatprep.subr.bf16.mxu0 0
      %733 = vmatpush1.bf16.xpose.msra.mxu0 0
      %734 = vmatprep.subr.bf16.mxu0 0
      %735 = vmatpush1.bf16.xpose.msra.mxu0 0
      %736 = vmatprep.subr.bf16.mxu0 0
      %737 = vmatpush1.bf16.xpose.msra.mxu0 0
      %738 = vmatprep.subr.bf16.mxu0 0
      %739 = vmatpush1.bf16.xpose.msra.mxu0 0
      %740 = vmatprep.subr.bf16.mxu0 0
      %741 = vmatpush1.bf16.xpose.msra.mxu0 0
      %742 = vmatprep.subr.bf16.mxu0 0
      %743 = vmatpush1.bf16.xpose.msra.mxu0 0
      %744 = vmatprep.subr.bf16.mxu0 0
      %745 = vmatpush1.bf16.xpose.msra.mxu0 0
      %746 = vmatprep.mubr.bf16.mxu0 0
      %747 = vmatmul.mubr.bf16.gmra.mrb[0].mxu0 %v709
      %v748 = vpop.f32.mrb[0].mxu0
      %v749 = vadd.f32 0.0, %v748
      %v750 = vpop.f32.mrb[0].mxu0
      %v751 = vpop.f32.mrb[0].mxu0
      %v752 = vadd.f32 0.0, %v751
      %v753 = vpop.f32.mrb[0].mxu0
      %754 = vdwg.mxu0
      %756 = vrot.lane.b32.xlu0 %v701, 96
      %v757 = vpop.permute.xlu0 %756
      %v759 = vsel %vm707, %v701, 0
      %v762 = vsel %vm707, %v757, 0
      %764 = vmatprep.subr.bf16.mxu0 0
      %765 = vmatpush1.bf16.xpose.msra.mxu0 %v762
      %766 = vmatprep.subr.bf16.mxu0 0
      %767 = vmatpush1.bf16.xpose.msra.mxu0 0
      %768 = vmatprep.subr.bf16.mxu0 0
      %769 = vmatpush1.bf16.xpose.msra.mxu0 0
      %770 = vmatprep.subr.bf16.mxu0 0
      %771 = vmatpush1.bf16.xpose.msra.mxu0 0
      %772 = vmatprep.subr.bf16.mxu0 0
      %773 = vmatpush1.bf16.xpose.msra.mxu0 0
      %774 = vmatprep.subr.bf16.mxu0 0
      %775 = vmatpush1.bf16.xpose.msra.mxu0 0
      %776 = vmatprep.subr.bf16.mxu0 0
      %777 = vmatpush1.bf16.xpose.msra.mxu0 0
      %778 = vmatprep.subr.bf16.mxu0 0
      %779 = vmatpush1.bf16.xpose.msra.mxu0 0
      %780 = vmatprep.subr.bf16.mxu0 0
      %781 = vmatpush1.bf16.xpose.msra.mxu0 0
      %782 = vmatprep.subr.bf16.mxu0 0
      %783 = vmatpush1.bf16.xpose.msra.mxu0 0
      %784 = vmatprep.subr.bf16.mxu0 0
      %785 = vmatpush1.bf16.xpose.msra.mxu0 0
      %786 = vmatprep.subr.bf16.mxu0 0
      %787 = vmatpush1.bf16.xpose.msra.mxu0 0
      %788 = vmatprep.subr.bf16.mxu0 0
      %789 = vmatpush1.bf16.xpose.msra.mxu0 0
      %790 = vmatprep.subr.bf16.mxu0 0
      %791 = vmatpush1.bf16.xpose.msra.mxu0 0
      %792 = vmatprep.subr.bf16.mxu0 0
      %793 = vmatpush1.bf16.xpose.msra.mxu0 0
      %794 = vmatprep.subr.bf16.mxu0 0
      %795 = vmatpush1.bf16.xpose.msra.mxu0 0
      %796 = vmatprep.mubr.bf16.mxu0 0
      %797 = vmatmul.mubr.bf16.gmra.mrb[0].mxu0 %v759
      %v798 = vpop.f32.mrb[0].mxu0
      %v799 = vadd.f32 0.0, %v798
      %v800 = vpop.f32.mrb[0].mxu0
      %v801 = vpop.f32.mrb[0].mxu0
      %v802 = vadd.f32 0.0, %v801
      %v803 = vpop.f32.mrb[0].mxu0
      %804 = vdwg.mxu0
      %806 = vrot.lane.b32.xlu0 %v702, 96
      %v807 = vpop.permute.xlu0 %806
      %v809 = vsel %vm707, %v702, 0
      %v812 = vsel %vm707, %v807, 0
      %814 = vmatprep.subr.bf16.mxu0 0
      %815 = vmatpush1.bf16.xpose.msra.mxu0 %v812
      %816 = vmatprep.subr.bf16.mxu0 0
      %817 = vmatpush1.bf16.xpose.msra.mxu0 0
      %818 = vmatprep.subr.bf16.mxu0 0
      %819 = vmatpush1.bf16.xpose.msra.mxu0 0
      %820 = vmatprep.subr.bf16.mxu0 0
      %821 = vmatpush1.bf16.xpose.msra.mxu0 0
      %822 = vmatprep.subr.bf16.mxu0 0
      %823 = vmatpush1.bf16.xpose.msra.mxu0 0
      %824 = vmatprep.subr.bf16.mxu0 0
      %825 = vmatpush1.bf16.xpose.msra.mxu0 0
      %826 = vmatprep.subr.bf16.mxu0 0
      %827 = vmatpush1.bf16.xpose.msra.mxu0 0
      %828 = vmatprep.subr.bf16.mxu0 0
      %829 = vmatpush1.bf16.xpose.msra.mxu0 0
      %830 = vmatprep.subr.bf16.mxu0 0
      %831 = vmatpush1.bf16.xpose.msra.mxu0 0
      %832 = vmatprep.subr.bf16.mxu0 0
      %833 = vmatpush1.bf16.xpose.msra.mxu0 0
      %834 = vmatprep.subr.bf16.mxu0 0
      %835 = vmatpush1.bf16.xpose.msra.mxu0 0
      %836 = vmatprep.subr.bf16.mxu0 0
      %837 = vmatpush1.bf16.xpose.msra.mxu0 0
      %838 = vmatprep.subr.bf16.mxu0 0
      %839 = vmatpush1.bf16.xpose.msra.mxu0 0
      %840 = vmatprep.subr.bf16.mxu0 0
      %841 = vmatpush1.bf16.xpose.msra.mxu0 0
      %842 = vmatprep.subr.bf16.mxu0 0
      %843 = vmatpush1.bf16.xpose.msra.mxu0 0
      %844 = vmatprep.subr.bf16.mxu0 0
      %845 = vmatpush1.bf16.xpose.msra.mxu0 0
      %846 = vmatprep.mubr.bf16.mxu0 0
      %847 = vmatmul.mubr.bf16.gmra.mrb[0].mxu0 %v809
      %v848 = vpop.f32.mrb[0].mxu0
      %v849 = vadd.f32 0.0, %v848
      %v850 = vpop.f32.mrb[0].mxu0
      %v851 = vpop.f32.mrb[0].mxu0
      %v852 = vadd.f32 0.0, %v851
      %v853 = vpop.f32.mrb[0].mxu0
      %854 = vdwg.mxu0
      %856 = vrot.lane.b32.xlu0 %v703, 96
      %v857 = vpop.permute.xlu0 %856
      %v859 = vsel %vm707, %v703, 0
      %v862 = vsel %vm707, %v857, 0
      %864 = vmatprep.subr.bf16.mxu0 0
      %865 = vmatpush1.bf16.xpose.msra.mxu0 %v862
      %866 = vmatprep.subr.bf16.mxu0 0
      %867 = vmatpush1.bf16.xpose.msra.mxu0 0
      %868 = vmatprep.subr.bf16.mxu0 0
      %869 = vmatpush1.bf16.xpose.msra.mxu0 0
      %870 = vmatprep.subr.bf16.mxu0 0
      %871 = vmatpush1.bf16.xpose.msra.mxu0 0
      %872 = vmatprep.subr.bf16.mxu0 0
      %873 = vmatpush1.bf16.xpose.msra.mxu0 0
      %874 = vmatprep.subr.bf16.mxu0 0
      %875 = vmatpush1.bf16.xpose.msra.mxu0 0
      %876 = vmatprep.subr.bf16.mxu0 0
      %877 = vmatpush1.bf16.xpose.msra.mxu0 0
      %878 = vmatprep.subr.bf16.mxu0 0
      %879 = vmatpush1.bf16.xpose.msra.mxu0 0
      %880 = vmatprep.subr.bf16.mxu0 0
      %881 = vmatpush1.bf16.xpose.msra.mxu0 0
      %882 = vmatprep.subr.bf16.mxu0 0
      %883 = vmatpush1.bf16.xpose.msra.mxu0 0
      %884 = vmatprep.subr.bf16.mxu0 0
      %885 = vmatpush1.bf16.xpose.msra.mxu0 0
      %886 = vmatprep.subr.bf16.mxu0 0
      %887 = vmatpush1.bf16.xpose.msra.mxu0 0
      %888 = vmatprep.subr.bf16.mxu0 0
      %889 = vmatpush1.bf16.xpose.msra.mxu0 0
      %890 = vmatprep.subr.bf16.mxu0 0
      %891 = vmatpush1.bf16.xpose.msra.mxu0 0
      %892 = vmatprep.subr.bf16.mxu0 0
      %893 = vmatpush1.bf16.xpose.msra.mxu0 0
      %894 = vmatprep.subr.bf16.mxu0 0
      %895 = vmatpush1.bf16.xpose.msra.mxu0 0
      %896 = vmatprep.mubr.bf16.mxu0 0
      %897 = vmatmul.mubr.bf16.gmra.mrb[0].mxu0 %v859
      %v898 = vpop.f32.mrb[0].mxu0
      %v899 = vadd.f32 0.0, %v898
      %v900 = vpop.f32.mrb[0].mxu0
      %v901 = vpop.f32.mrb[0].mxu0
      %v902 = vadd.f32 0.0, %v901
      %v903 = vpop.f32.mrb[0].mxu0
      %904 = vdwg.mxu0
      %v905 = vmul.f32 %v749, 0.35355338
      %v906 = vmul.f32 %v752, 0.35355338
      %v907 = vmul.f32 %v799, 0.35355338
      %v908 = vmul.f32 %v802, 0.35355338
      %v909 = vmul.f32 %v849, 0.35355338
      %v910 = vmul.f32 %v852, 0.35355338
      %v911 = vmul.f32 %v899, 0.35355338
      %v912 = vmul.f32 %v902, 0.35355338
      %vm913 = vcmask 130048
      %v914 = vsel %vm913, %v905, -inf
      %915 = vmax.xlane.f32.xlu0 %v914
      %v916 = vpop.xlane.xlu0 %915
      %v917 = vsel %vm913, %v906, -inf
      %918 = vmax.xlane.f32.xlu0 %v917
      %v919 = vpop.xlane.xlu0 %918
      %v920 = vsel %vm913, %v907, -inf
      %921 = vmax.xlane.f32.xlu0 %v920
      %v922 = vpop.xlane.xlu0 %921
      %v923 = vsel %vm913, %v908, -inf
      %924 = vmax.xlane.f32.xlu0 %v923
      %v925 = vpop.xlane.xlu0 %924
      %v926 = vsel %vm913, %v909, -inf
      %927 = vmax.xlane.f32.xlu0 %v926
      %v928 = vpop.xlane.xlu0 %927
      %v929 = vsel %vm913, %v910, -inf
      %930 = vmax.xlane.f32.xlu0 %v929
      %v931 = vpop.xlane.xlu0 %930
      %v932 = vsel %vm913, %v911, -inf
      %933 = vmax.xlane.f32.xlu0 %v932
      %v934 = vpop.xlane.xlu0 %933
      %v935 = vsel %vm913, %v912, -inf
      %936 = vmax.xlane.f32.xlu0 %v935
      %v937 = vpop.xlane.xlu0 %936
      %v938 = vsub.f32 %v905, %v916
      %v939 = vsub.f32 %v906, %v919
      %v940 = vsub.f32 %v907, %v922
      %v941 = vsub.f32 %v908, %v925
      %v942 = vsub.f32 %v909, %v928
      %v943 = vsub.f32 %v910, %v931
      %v944 = vsub.f32 %v911, %v934
      %v945 = vsub.f32 %v912, %v937
      %v946 = vmul.f32 %v938, 1.442695
      %v947 = vpow.pop %v946
      %v948 = vmul.f32 %v939, 1.442695
      %v949 = vpow.pop %v948
      %v950 = vmul.f32 %v940, 1.442695
      %v951 = vpow.pop %v950
      %v952 = vmul.f32 %v941, 1.442695
      %v953 = vpow.pop %v952
      %v954 = vmul.f32 %v942, 1.442695
      %v955 = vpow.pop %v954
      %v956 = vmul.f32 %v943, 1.442695
      %v957 = vpow.pop %v956
      %v958 = vmul.f32 %v944, 1.442695
      %v959 = vpow.pop %v958
      %v960 = vmul.f32 %v945, 1.442695
      %v961 = vpow.pop %v960
      %v962 = vsel %vm913, %v947, 0.0
      %963 = vadd.xlane.f32.xlu0 %v962
      %v964 = vpop.xlane.xlu0 %963
      %v965 = vsel %vm913, %v949, 0.0
      %966 = vadd.xlane.f32.xlu0 %v965
      %v967 = vpop.xlane.xlu0 %966
      %v968 = vsel %vm913, %v951, 0.0
      %969 = vadd.xlane.f32.xlu0 %v968
      %v970 = vpop.xlane.xlu0 %969
      %v971 = vsel %vm913, %v953, 0.0
      %972 = vadd.xlane.f32.xlu0 %v971
      %v973 = vpop.xlane.xlu0 %972
      %v974 = vsel %vm913, %v955, 0.0
      %975 = vadd.xlane.f32.xlu0 %v974
      %v976 = vpop.xlane.xlu0 %975
      %v977 = vsel %vm913, %v957, 0.0
      %978 = vadd.xlane.f32.xlu0 %v977
      %v979 = vpop.xlane.xlu0 %978
      %v980 = vsel %vm913, %v959, 0.0
      %981 = vadd.xlane.f32.xlu0 %v980
      %v982 = vpop.xlane.xlu0 %981
      %v983 = vsel %vm913, %v961, 0.0
      %984 = vadd.xlane.f32.xlu0 %v983
      %v985 = vpop.xlane.xlu0 %984
      %v986 = vrcp.pop %v964
      %v987 = vrcp.pop %v967
      %v988 = vrcp.pop %v970
      %v989 = vrcp.pop %v973
      %v990 = vrcp.pop %v976
      %v991 = vrcp.pop %v979
      %v992 = vrcp.pop %v982
      %v993 = vrcp.pop %v985
      %v994 = vmul.f32 %v947, %v986
      %v995 = vmul.f32 %v949, %v987
      %v996 = vmul.f32 %v951, %v988
      %v997 = vmul.f32 %v953, %v989
      %v998 = vmul.f32 %v955, %v990
      %v999 = vmul.f32 %v957, %v991
      %v1000 = vmul.f32 %v959, %v992
      %v1001 = vmul.f32 %v961, %v993
      %v1002 = vpack.c.bf16 %v995, %v994
      %v1003 = vpack.c.bf16 %v997, %v996
      %v1004 = vpack.c.bf16 %v999, %v998
      %v1005 = vpack.c.bf16 %v1001, %v1000
      %1006 = vrot.lane.b32.xlu0 %v700, 64
      %v1007 = vpop.permute.xlu0 %1006
      %v1010 = vsel %vm913, %v1002, 0
      %1012 = vmatprep.subr.bf16.mxu0 0
      %1013 = vmatpush1.bf16.msra.mxu0 %v1007
      %1014 = vmatprep.subr.bf16.mxu0 0
      %1015 = vmatpush1.bf16.msra.mxu0 0
      %1016 = vmatprep.subr.bf16.mxu0 0
      %1017 = vmatpush1.bf16.msra.mxu0 0
      %1018 = vmatprep.subr.bf16.mxu0 0
      %1019 = vmatpush1.bf16.msra.mxu0 0
      %1020 = vmatprep.subr.bf16.mxu0 0
      %1021 = vmatpush1.bf16.msra.mxu0 0
      %1022 = vmatprep.subr.bf16.mxu0 0
      %1023 = vmatpush1.bf16.msra.mxu0 0
      %1024 = vmatprep.subr.bf16.mxu0 0
      %1025 = vmatpush1.bf16.msra.mxu0 0
      %1026 = vmatprep.subr.bf16.mxu0 0
      %1027 = vmatpush1.bf16.msra.mxu0 0
      %1028 = vmatprep.subr.bf16.mxu0 0
      %1029 = vmatpush1.bf16.msra.mxu0 0
      %1030 = vmatprep.subr.bf16.mxu0 0
      %1031 = vmatpush1.bf16.msra.mxu0 0
      %1032 = vmatprep.subr.bf16.mxu0 0
      %1033 = vmatpush1.bf16.msra.mxu0 0
      %1034 = vmatprep.subr.bf16.mxu0 0
      %1035 = vmatpush1.bf16.msra.mxu0 0
      %1036 = vmatprep.subr.bf16.mxu0 0
      %1037 = vmatpush1.bf16.msra.mxu0 0
      %1038 = vmatprep.subr.bf16.mxu0 0
      %1039 = vmatpush1.bf16.msra.mxu0 0
      %1040 = vmatprep.subr.bf16.mxu0 0
      %1041 = vmatpush1.bf16.msra.mxu0 0
      %1042 = vmatprep.subr.bf16.mxu0 0
      %1043 = vmatpush1.bf16.msra.mxu0 0
      %1044 = vmatprep.mubr.bf16.mxu0 0
      %1045 = vmatmul.mubr.bf16.gmra.mrb[0].mxu0 %v1010
      %v1046 = vpop.f32.mrb[0].mxu0
      %v1047 = vadd.f32 0.0, %v1046
      %v1048 = vpop.f32.mrb[0].mxu0
      %v1049 = vpop.f32.mrb[0].mxu0
      %v1050 = vadd.f32 0.0, %v1049
      %v1051 = vpop.f32.mrb[0].mxu0
      %1052 = vdwg.mxu0
      %1053 = vrot.lane.b32.xlu0 %v701, 64
      %v1054 = vpop.permute.xlu0 %1053
      %v1057 = vsel %vm913, %v1003, 0
      %1059 = vmatprep.subr.bf16.mxu0 0
      %1060 = vmatpush1.bf16.msra.mxu0 %v1054
      %1061 = vmatprep.subr.bf16.mxu0 0
      %1062 = vmatpush1.bf16.msra.mxu0 0
      %1063 = vmatprep.subr.bf16.mxu0 0
      %1064 = vmatpush1.bf16.msra.mxu0 0
      %1065 = vmatprep.subr.bf16.mxu0 0
      %1066 = vmatpush1.bf16.msra.mxu0 0
      %1067 = vmatprep.subr.bf16.mxu0 0
      %1068 = vmatpush1.bf16.msra.mxu0 0
      %1069 = vmatprep.subr.bf16.mxu0 0
      %1070 = vmatpush1.bf16.msra.mxu0 0
      %1071 = vmatprep.subr.bf16.mxu0 0
      %1072 = vmatpush1.bf16.msra.mxu0 0
      %1073 = vmatprep.subr.bf16.mxu0 0
      %1074 = vmatpush1.bf16.msra.mxu0 0
      %1075 = vmatprep.subr.bf16.mxu0 0
      %1076 = vmatpush1.bf16.msra.mxu0 0
      %1077 = vmatprep.subr.bf16.mxu0 0
      %1078 = vmatpush1.bf16.msra.mxu0 0
      %1079 = vmatprep.subr.bf16.mxu0 0
      %1080 = vmatpush1.bf16.msra.mxu0 0
      %1081 = vmatprep.subr.bf16.mxu0 0
      %1082 = vmatpush1.bf16.msra.mxu0 0
      %1083 = vmatprep.subr.bf16.mxu0 0
      %1084 = vmatpush1.bf16.msra.mxu0 0
      %1085 = vmatprep.subr.bf16.mxu0 0
      %1086 = vmatpush1.bf16.msra.mxu0 0
      %1087 = vmatprep.subr.bf16.mxu0 0
      %1088 = vmatpush1.bf16.msra.mxu0 0
      %1089 = vmatprep.subr.bf16.mxu0 0
      %1090 = vmatpush1.bf16.msra.mxu0 0
      %1091 = vmatprep.mubr.bf16.mxu0 0
      %1092 = vmatmul.mubr.bf16.gmra.mrb[0].mxu0 %v1057
      %v1093 = vpop.f32.mrb[0].mxu0
      %v1094 = vadd.f32 0.0, %v1093
      %v1095 = vpop.f32.mrb[0].mxu0
      %v1096 = vpop.f32.mrb[0].mxu0
      %v1097 = vadd.f32 0.0, %v1096
      %v1098 = vpop.f32.mrb[0].mxu0
      %1099 = vdwg.mxu0
      %1100 = vrot.lane.b32.xlu0 %v702, 64
      %v1101 = vpop.permute.xlu0 %1100
      %v1104 = vsel %vm913, %v1004, 0
      %1106 = vmatprep.subr.bf16.mxu0 0
      %1107 = vmatpush1.bf16.msra.mxu0 %v1101
      %1108 = vmatprep.subr.bf16.mxu0 0
      %1109 = vmatpush1.bf16.msra.mxu0 0
      %1110 = vmatprep.subr.bf16.mxu0 0
      %1111 = vmatpush1.bf16.msra.mxu0 0
      %1112 = vmatprep.subr.bf16.mxu0 0
      %1113 = vmatpush1.bf16.msra.mxu0 0
      %1114 = vmatprep.subr.bf16.mxu0 0
      %1115 = vmatpush1.bf16.msra.mxu0 0
      %1116 = vmatprep.subr.bf16.mxu0 0
      %1117 = vmatpush1.bf16.msra.mxu0 0
      %1118 = vmatprep.subr.bf16.mxu0 0
      %1119 = vmatpush1.bf16.msra.mxu0 0
      %1120 = vmatprep.subr.bf16.mxu0 0
      %1121 = vmatpush1.bf16.msra.mxu0 0
      %1122 = vmatprep.subr.bf16.mxu0 0
      %1123 = vmatpush1.bf16.msra.mxu0 0
      %1124 = vmatprep.subr.bf16.mxu0 0
      %1125 = vmatpush1.bf16.msra.mxu0 0
      %1126 = vmatprep.subr.bf16.mxu0 0
      %1127 = vmatpush1.bf16.msra.mxu0 0
      %1128 = vmatprep.subr.bf16.mxu0 0
      %1129 = vmatpush1.bf16.msra.mxu0 0
      %1130 = vmatprep.subr.bf16.mxu0 0
      %1131 = vmatpush1.bf16.msra.mxu0 0
      %1132 = vmatprep.subr.bf16.mxu0 0
      %1133 = vmatpush1.bf16.msra.mxu0 0
      %1134 = vmatprep.subr.bf16.mxu0 0
      %1135 = vmatpush1.bf16.msra.mxu0 0
      %1136 = vmatprep.subr.bf16.mxu0 0
      %1137 = vmatpush1.bf16.msra.mxu0 0
      %1138 = vmatprep.mubr.bf16.mxu0 0
      %1139 = vmatmul.mubr.bf16.gmra.mrb[0].mxu0 %v1104
      %v1140 = vpop.f32.mrb[0].mxu0
      %v1141 = vadd.f32 0.0, %v1140
      %v1142 = vpop.f32.mrb[0].mxu0
      %v1143 = vpop.f32.mrb[0].mxu0
      %v1144 = vadd.f32 0.0, %v1143
      %v1145 = vpop.f32.mrb[0].mxu0
      %1146 = vdwg.mxu0
      %1147 = vrot.lane.b32.xlu0 %v703, 64
      %v1148 = vpop.permute.xlu0 %1147
      %v1151 = vsel %vm913, %v1005, 0
      %1153 = vmatprep.subr.bf16.mxu0 0
      %1154 = vmatpush1.bf16.msra.mxu0 %v1148
      %1155 = vmatprep.subr.bf16.mxu0 0
      %1156 = vmatpush1.bf16.msra.mxu0 0
      %1157 = vmatprep.subr.bf16.mxu0 0
      %1158 = vmatpush1.bf16.msra.mxu0 0
      %1159 = vmatprep.subr.bf16.mxu0 0
      %1160 = vmatpush1.bf16.msra.mxu0 0
      %1161 = vmatprep.subr.bf16.mxu0 0
      %1162 = vmatpush1.bf16.msra.mxu0 0
      %1163 = vmatprep.subr.bf16.mxu0 0
      %1164 = vmatpush1.bf16.msra.mxu0 0
      %1165 = vmatprep.subr.bf16.mxu0 0
      %1166 = vmatpush1.bf16.msra.mxu0 0
      %1167 = vmatprep.subr.bf16.mxu0 0
      %1168 = vmatpush1.bf16.msra.mxu0 0
      %1169 = vmatprep.subr.bf16.mxu0 0
      %1170 = vmatpush1.bf16.msra.mxu0 0
      %1171 = vmatprep.subr.bf16.mxu0 0
      %1172 = vmatpush1.bf16.msra.mxu0 0
      %1173 = vmatprep.subr.bf16.mxu0 0
      %1174 = vmatpush1.bf16.msra.mxu0 0
      %1175 = vmatprep.subr.bf16.mxu0 0
      %1176 = vmatpush1.bf16.msra.mxu0 0
      %1177 = vmatprep.subr.bf16.mxu0 0
      %1178 = vmatpush1.bf16.msra.mxu0 0
      %1179 = vmatprep.subr.bf16.mxu0 0
      %1180 = vmatpush1.bf16.msra.mxu0 0
      %1181 = vmatprep.subr.bf16.mxu0 0
      %1182 = vmatpush1.bf16.msra.mxu0 0
      %1183 = vmatprep.subr.bf16.mxu0 0
      %1184 = vmatpush1.bf16.msra.mxu0 0
      %1185 = vmatprep.mubr.bf16.mxu0 0
      %1186 = vmatmul.mubr.bf16.gmra.mrb[0].mxu0 %v1151
      %v1187 = vpop.f32.mrb[0].mxu0
      %v1188 = vadd.f32 0.0, %v1187
      %v1189 = vpop.f32.mrb[0].mxu0
      %v1190 = vpop.f32.mrb[0].mxu0
      %v1191 = vadd.f32 0.0, %v1190
      %v1192 = vpop.f32.mrb[0].mxu0
      %1193 = vdwg.mxu0
      %1194 = vrot.lane.b32.xlu0 %v700, 120
      %v1195 = vpop.permute.xlu0 %1194
      %1196 = vrot.lane.b32.xlu0 %v700, 88
      %v1197 = vpop.permute.xlu0 %1196
      %v1199 = vsel %vm707, %v1195, 0
      %v1202 = vsel %vm707, %v1197, 0
      %1204 = vmatprep.subr.bf16.mxu0 0
      %1205 = vmatpush1.bf16.xpose.msra.mxu0 %v1202
      %1206 = vmatprep.subr.bf16.mxu0 0
      %1207 = vmatpush1.bf16.xpose.msra.mxu0 0
      %1208 = vmatprep.subr.bf16.mxu0 0
      %1209 = vmatpush1.bf16.xpose.msra.mxu0 0
      %1210 = vmatprep.subr.bf16.mxu0 0
      %1211 = vmatpush1.bf16.xpose.msra.mxu0 0
      %1212 = vmatprep.subr.bf16.mxu0 0
      %1213 = vmatpush1.bf16.xpose.msra.mxu0 0
      %1214 = vmatprep.subr.bf16.mxu0 0
      %1215 = vmatpush1.bf16.xpose.msra.mxu0 0
      %1216 = vmatprep.subr.bf16.mxu0 0
      %1217 = vmatpush1.bf16.xpose.msra.mxu0 0
      %1218 = vmatprep.subr.bf16.mxu0 0
      %1219 = vmatpush1.bf16.xpose.msra.mxu0 0
      %1220 = vmatprep.subr.bf16.mxu0 0
      %1221 = vmatpush1.bf16.xpose.msra.mxu0 0
      %1222 = vmatprep.subr.bf16.mxu0 0
      %1223 = vmatpush1.bf16.xpose.msra.mxu0 0
      %1224 = vmatprep.subr.bf16.mxu0 0
      %1225 = vmatpush1.bf16.xpose.msra.mxu0 0
      %1226 = vmatprep.subr.bf16.mxu0 0
      %1227 = vmatpush1.bf16.xpose.msra.mxu0 0
      %1228 = vmatprep.subr.bf16.mxu0 0
      %1229 = vmatpush1.bf16.xpose.msra.mxu0 0
      %1230 = vmatprep.subr.bf16.mxu0 0
      %1231 = vmatpush1.bf16.xpose.msra.mxu0 0
      %1232 = vmatprep.subr.bf16.mxu0 0
      %1233 = vmatpush1.bf16.xpose.msra.mxu0 0
      %1234 = vmatprep.subr.bf16.mxu0 0
      %1235 = vmatpush1.bf16.xpose.msra.mxu0 0
      %1236 = vmatprep.mubr.bf16.mxu0 0
      %1237 = vmatmul.mubr.bf16.gmra.mrb[0].mxu0 %v1199
      %v1238 = vpop.f32.mrb[0].mxu0
      %v1239 = vadd.f32 0.0, %v1238
      %v1240 = vpop.f32.mrb[0].mxu0
      %v1241 = vpop.f32.mrb[0].mxu0
      %v1242 = vadd.f32 0.0, %v1241
      %v1243 = vpop.f32.mrb[0].mxu0
      %1244 = vdwg.mxu0
      %1245 = vrot.lane.b32.xlu0 %v701, 120
      %v1246 = vpop.permute.xlu0 %1245
      %1247 = vrot.lane.b32.xlu0 %v701, 88
      %v1248 = vpop.permute.xlu0 %1247
      %v1250 = vsel %vm707, %v1246, 0
      %v1253 = vsel %vm707, %v1248, 0
      %1255 = vmatprep.subr.bf16.mxu0 0
      %1256 = vmatpush1.bf16.xpose.msra.mxu0 %v1253
      %1257 = vmatprep.subr.bf16.mxu0 0
      %1258 = vmatpush1.bf16.xpose.msra.mxu0 0
      %1259 = vmatprep.subr.bf16.mxu0 0
      %1260 = vmatpush1.bf16.xpose.msra.mxu0 0
      %1261 = vmatprep.subr.bf16.mxu0 0
      %1262 = vmatpush1.bf16.xpose.msra.mxu0 0
      %1263 = vmatprep.subr.bf16.mxu0 0
      %1264 = vmatpush1.bf16.xpose.msra.mxu0 0
      %1265 = vmatprep.subr.bf16.mxu0 0
      %1266 = vmatpush1.bf16.xpose.msra.mxu0 0
      %1267 = vmatprep.subr.bf16.mxu0 0
      %1268 = vmatpush1.bf16.xpose.msra.mxu0 0
      %1269 = vmatprep.subr.bf16.mxu0 0
      %1270 = vmatpush1.bf16.xpose.msra.mxu0 0
      %1271 = vmatprep.subr.bf16.mxu0 0
      %1272 = vmatpush1.bf16.xpose.msra.mxu0 0
      %1273 = vmatprep.subr.bf16.mxu0 0
      %1274 = vmatpush1.bf16.xpose.msra.mxu0 0
      %1275 = vmatprep.subr.bf16.mxu0 0
      %1276 = vmatpush1.bf16.xpose.msra.mxu0 0
      %1277 = vmatprep.subr.bf16.mxu0 0
      %1278 = vmatpush1.bf16.xpose.msra.mxu0 0
      %1279 = vmatprep.subr.bf16.mxu0 0
      %1280 = vmatpush1.bf16.xpose.msra.mxu0 0
      %1281 = vmatprep.subr.bf16.mxu0 0
      %1282 = vmatpush1.bf16.xpose.msra.mxu0 0
      %1283 = vmatprep.subr.bf16.mxu0 0
      %1284 = vmatpush1.bf16.xpose.msra.mxu0 0
      %1285 = vmatprep.subr.bf16.mxu0 0
      %1286 = vmatpush1.bf16.xpose.msra.mxu0 0
      %1287 = vmatprep.mubr.bf16.mxu0 0
      %1288 = vmatmul.mubr.bf16.gmra.mrb[0].mxu0 %v1250
      %v1289 = vpop.f32.mrb[0].mxu0
      %v1290 = vadd.f32 0.0, %v1289
      %v1291 = vpop.f32.mrb[0].mxu0
      %v1292 = vpop.f32.mrb[0].mxu0
      %v1293 = vadd.f32 0.0, %v1292
      %v1294 = vpop.f32.mrb[0].mxu0
      %1295 = vdwg.mxu0
      %1296 = vrot.lane.b32.xlu0 %v702, 120
      %v1297 = vpop.permute.xlu0 %1296
      %1298 = vrot.lane.b32.xlu0 %v702, 88
      %v1299 = vpop.permute.xlu0 %1298
      %v1301 = vsel %vm707, %v1297, 0
      %v1304 = vsel %vm707, %v1299, 0
      %1306 = vmatprep.subr.bf16.mxu0 0
      %1307 = vmatpush1.bf16.xpose.msra.mxu0 %v1304
      %1308 = vmatprep.subr.bf16.mxu0 0
      %1309 = vmatpush1.bf16.xpose.msra.mxu0 0
      %1310 = vmatprep.subr.bf16.mxu0 0
      %1311 = vmatpush1.bf16.xpose.msra.mxu0 0
      %1312 = vmatprep.subr.bf16.mxu0 0
      %1313 = vmatpush1.bf16.xpose.msra.mxu0 0
      %1314 = vmatprep.subr.bf16.mxu0 0
      %1315 = vmatpush1.bf16.xpose.msra.mxu0 0
      %1316 = vmatprep.subr.bf16.mxu0 0
      %1317 = vmatpush1.bf16.xpose.msra.mxu0 0
      %1318 = vmatprep.subr.bf16.mxu0 0
      %1319 = vmatpush1.bf16.xpose.msra.mxu0 0
      %1320 = vmatprep.subr.bf16.mxu0 0
      %1321 = vmatpush1.bf16.xpose.msra.mxu0 0
      %1322 = vmatprep.subr.bf16.mxu0 0
      %1323 = vmatpush1.bf16.xpose.msra.mxu0 0
      %1324 = vmatprep.subr.bf16.mxu0 0
      %1325 = vmatpush1.bf16.xpose.msra.mxu0 0
      %1326 = vmatprep.subr.bf16.mxu0 0
      %1327 = vmatpush1.bf16.xpose.msra.mxu0 0
      %1328 = vmatprep.subr.bf16.mxu0 0
      %1329 = vmatpush1.bf16.xpose.msra.mxu0 0
      %1330 = vmatprep.subr.bf16.mxu0 0
      %1331 = vmatpush1.bf16.xpose.msra.mxu0 0
      %1332 = vmatprep.subr.bf16.mxu0 0
      %1333 = vmatpush1.bf16.xpose.msra.mxu0 0
      %1334 = vmatprep.subr.bf16.mxu0 0
      %1335 = vmatpush1.bf16.xpose.msra.mxu0 0
      %1336 = vmatprep.subr.bf16.mxu0 0
      %1337 = vmatpush1.bf16.xpose.msra.mxu0 0
      %1338 = vmatprep.mubr.bf16.mxu0 0
      %1339 = vmatmul.mubr.bf16.gmra.mrb[0].mxu0 %v1301
      %v1340 = vpop.f32.mrb[0].mxu0
      %v1341 = vadd.f32 0.0, %v1340
      %v1342 = vpop.f32.mrb[0].mxu0
      %v1343 = vpop.f32.mrb[0].mxu0
      %v1344 = vadd.f32 0.0, %v1343
      %v1345 = vpop.f32.mrb[0].mxu0
      %1346 = vdwg.mxu0
      %1347 = vrot.lane.b32.xlu0 %v703, 120
      %v1348 = vpop.permute.xlu0 %1347
      %1349 = vrot.lane.b32.xlu0 %v703, 88
      %v1350 = vpop.permute.xlu0 %1349
      %v1352 = vsel %vm707, %v1348, 0
      %v1355 = vsel %vm707, %v1350, 0
      %1357 = vmatprep.subr.bf16.mxu0 0
      %1358 = vmatpush1.bf16.xpose.msra.mxu0 %v1355
      %1359 = vmatprep.subr.bf16.mxu0 0
      %1360 = vmatpush1.bf16.xpose.msra.mxu0 0
      %1361 = vmatprep.subr.bf16.mxu0 0
      %1362 = vmatpush1.bf16.xpose.msra.mxu0 0
      %1363 = vmatprep.subr.bf16.mxu0 0
      %1364 = vmatpush1.bf16.xpose.msra.mxu0 0
      %1365 = vmatprep.subr.bf16.mxu0 0
      %1366 = vmatpush1.bf16.xpose.msra.mxu0 0
      %1367 = vmatprep.subr.bf16.mxu0 0
      %1368 = vmatpush1.bf16.xpose.msra.mxu0 0
      %1369 = vmatprep.subr.bf16.mxu0 0
      %1370 = vmatpush1.bf16.xpose.msra.mxu0 0
      %1371 = vmatprep.subr.bf16.mxu0 0
      %1372 = vmatpush1.bf16.xpose.msra.mxu0 0
      %1373 = vmatprep.subr.bf16.mxu0 0
      %1374 = vmatpush1.bf16.xpose.msra.mxu0 0
      %1375 = vmatprep.subr.bf16.mxu0 0
      %1376 = vmatpush1.bf16.xpose.msra.mxu0 0
      %1377 = vmatprep.subr.bf16.mxu0 0
      %1378 = vmatpush1.bf16.xpose.msra.mxu0 0
      %1379 = vmatprep.subr.bf16.mxu0 0
      %1380 = vmatpush1.bf16.xpose.msra.mxu0 0
      %1381 = vmatprep.subr.bf16.mxu0 0
      %1382 = vmatpush1.bf16.xpose.msra.mxu0 0
      %1383 = vmatprep.subr.bf16.mxu0 0
      %1384 = vmatpush1.bf16.xpose.msra.mxu0 0
      %1385 = vmatprep.subr.bf16.mxu0 0
      %1386 = vmatpush1.bf16.xpose.msra.mxu0 0
      %1387 = vmatprep.subr.bf16.mxu0 0
      %1388 = vmatpush1.bf16.xpose.msra.mxu0 0
      %1389 = vmatprep.mubr.bf16.mxu0 0
      %1390 = vmatmul.mubr.bf16.gmra.mrb[0].mxu0 %v1352
      %v1391 = vpop.f32.mrb[0].mxu0
      %v1392 = vadd.f32 0.0, %v1391
      %v1393 = vpop.f32.mrb[0].mxu0
      %v1394 = vpop.f32.mrb[0].mxu0
      %v1395 = vadd.f32 0.0, %v1394
      %v1396 = vpop.f32.mrb[0].mxu0
      %1397 = vdwg.mxu0
      %v1398 = vmul.f32 %v1239, 0.35355338
      %v1399 = vmul.f32 %v1242, 0.35355338
      %v1400 = vmul.f32 %v1290, 0.35355338
      %v1401 = vmul.f32 %v1293, 0.35355338
      %v1402 = vmul.f32 %v1341, 0.35355338
      %v1403 = vmul.f32 %v1344, 0.35355338
      %v1404 = vmul.f32 %v1392, 0.35355338
      %v1405 = vmul.f32 %v1395, 0.35355338
      %v1406 = vsel %vm913, %v1398, -inf
      %1407 = vmax.xlane.f32.xlu0 %v1406
      %v1408 = vpop.xlane.xlu0 %1407
      %v1409 = vsel %vm913, %v1399, -inf
      %1410 = vmax.xlane.f32.xlu0 %v1409
      %v1411 = vpop.xlane.xlu0 %1410
      %v1412 = vsel %vm913, %v1400, -inf
      %1413 = vmax.xlane.f32.xlu0 %v1412
      %v1414 = vpop.xlane.xlu0 %1413
      %v1415 = vsel %vm913, %v1401, -inf
      %1416 = vmax.xlane.f32.xlu0 %v1415
      %v1417 = vpop.xlane.xlu0 %1416
      %v1418 = vsel %vm913, %v1402, -inf
      %1419 = vmax.xlane.f32.xlu0 %v1418
      %v1420 = vpop.xlane.xlu0 %1419
      %v1421 = vsel %vm913, %v1403, -inf
      %1422 = vmax.xlane.f32.xlu0 %v1421
      %v1423 = vpop.xlane.xlu0 %1422
      %v1424 = vsel %vm913, %v1404, -inf
      %1425 = vmax.xlane.f32.xlu0 %v1424
      %v1426 = vpop.xlane.xlu0 %1425
      %v1427 = vsel %vm913, %v1405, -inf
      %1428 = vmax.xlane.f32.xlu0 %v1427
      %v1429 = vpop.xlane.xlu0 %1428
      %v1430 = vsub.f32 %v1398, %v1408
      %v1431 = vsub.f32 %v1399, %v1411
      %v1432 = vsub.f32 %v1400, %v1414
      %v1433 = vsub.f32 %v1401, %v1417
      %v1434 = vsub.f32 %v1402, %v1420
      %v1435 = vsub.f32 %v1403, %v1423
      %v1436 = vsub.f32 %v1404, %v1426
      %v1437 = vsub.f32 %v1405, %v1429
      %v1438 = vmul.f32 %v1430, 1.442695
      %v1439 = vpow.pop %v1438
      %v1440 = vmul.f32 %v1431, 1.442695
      %v1441 = vpow.pop %v1440
      %v1442 = vmul.f32 %v1432, 1.442695
      %v1443 = vpow.pop %v1442
      %v1444 = vmul.f32 %v1433, 1.442695
      %v1445 = vpow.pop %v1444
      %v1446 = vmul.f32 %v1434, 1.442695
      %v1447 = vpow.pop %v1446
      %v1448 = vmul.f32 %v1435, 1.442695
      %v1449 = vpow.pop %v1448
      %v1450 = vmul.f32 %v1436, 1.442695
      %v1451 = vpow.pop %v1450
      %v1452 = vmul.f32 %v1437, 1.442695
      %v1453 = vpow.pop %v1452
      %v1454 = vsel %vm913, %v1439, 0.0
      %1455 = vadd.xlane.f32.xlu0 %v1454
      %v1456 = vpop.xlane.xlu0 %1455
      %v1457 = vsel %vm913, %v1441, 0.0
      %1458 = vadd.xlane.f32.xlu0 %v1457
      %v1459 = vpop.xlane.xlu0 %1458
      %v1460 = vsel %vm913, %v1443, 0.0
      %1461 = vadd.xlane.f32.xlu0 %v1460
      %v1462 = vpop.xlane.xlu0 %1461
      %v1463 = vsel %vm913, %v1445, 0.0
      %1464 = vadd.xlane.f32.xlu0 %v1463
      %v1465 = vpop.xlane.xlu0 %1464
      %v1466 = vsel %vm913, %v1447, 0.0
      %1467 = vadd.xlane.f32.xlu0 %v1466
      %v1468 = vpop.xlane.xlu0 %1467
      %v1469 = vsel %vm913, %v1449, 0.0
      %1470 = vadd.xlane.f32.xlu0 %v1469
      %v1471 = vpop.xlane.xlu0 %1470
      %v1472 = vsel %vm913, %v1451, 0.0
      %1473 = vadd.xlane.f32.xlu0 %v1472
      %v1474 = vpop.xlane.xlu0 %1473
      %v1475 = vsel %vm913, %v1453, 0.0
      %1476 = vadd.xlane.f32.xlu0 %v1475
      %v1477 = vpop.xlane.xlu0 %1476
      %v1478 = vrcp.pop %v1456
      %v1479 = vrcp.pop %v1459
      %v1480 = vrcp.pop %v1462
      %v1481 = vrcp.pop %v1465
      %v1482 = vrcp.pop %v1468
      %v1483 = vrcp.pop %v1471
      %v1484 = vrcp.pop %v1474
      %v1485 = vrcp.pop %v1477
      %v1486 = vmul.f32 %v1439, %v1478
      %v1487 = vmul.f32 %v1441, %v1479
      %v1488 = vmul.f32 %v1443, %v1480
      %v1489 = vmul.f32 %v1445, %v1481
      %v1490 = vmul.f32 %v1447, %v1482
      %v1491 = vmul.f32 %v1449, %v1483
      %v1492 = vmul.f32 %v1451, %v1484
      %v1493 = vmul.f32 %v1453, %v1485
      %v1494 = vpack.c.bf16 %v1487, %v1486
      %v1495 = vpack.c.bf16 %v1489, %v1488
      %v1496 = vpack.c.bf16 %v1491, %v1490
      %v1497 = vpack.c.bf16 %v1493, %v1492
      %1498 = vrot.lane.b32.xlu0 %v700, 56
      %v1499 = vpop.permute.xlu0 %1498
      %v1502 = vsel %vm913, %v1494, 0
      %1504 = vmatprep.subr.bf16.mxu0 0
      %1505 = vmatpush1.bf16.msra.mxu0 %v1499
      %1506 = vmatprep.subr.bf16.mxu0 0
      %1507 = vmatpush1.bf16.msra.mxu0 0
      %1508 = vmatprep.subr.bf16.mxu0 0
      %1509 = vmatpush1.bf16.msra.mxu0 0
      %1510 = vmatprep.subr.bf16.mxu0 0
      %1511 = vmatpush1.bf16.msra.mxu0 0
      %1512 = vmatprep.subr.bf16.mxu0 0
      %1513 = vmatpush1.bf16.msra.mxu0 0
      %1514 = vmatprep.subr.bf16.mxu0 0
      %1515 = vmatpush1.bf16.msra.mxu0 0
      %1516 = vmatprep.subr.bf16.mxu0 0
      %1517 = vmatpush1.bf16.msra.mxu0 0
      %1518 = vmatprep.subr.bf16.mxu0 0
      %1519 = vmatpush1.bf16.msra.mxu0 0
      %1520 = vmatprep.subr.bf16.mxu0 0
      %1521 = vmatpush1.bf16.msra.mxu0 0
      %1522 = vmatprep.subr.bf16.mxu0 0
      %1523 = vmatpush1.bf16.msra.mxu0 0
      %1524 = vmatprep.subr.bf16.mxu0 0
      %1525 = vmatpush1.bf16.msra.mxu0 0
      %1526 = vmatprep.subr.bf16.mxu0 0
      %1527 = vmatpush1.bf16.msra.mxu0 0
      %1528 = vmatprep.subr.bf16.mxu0 0
      %1529 = vmatpush1.bf16.msra.mxu0 0
      %1530 = vmatprep.subr.bf16.mxu0 0
      %1531 = vmatpush1.bf16.msra.mxu0 0
      %1532 = vmatprep.subr.bf16.mxu0 0
      %1533 = vmatpush1.bf16.msra.mxu0 0
      %1534 = vmatprep.subr.bf16.mxu0 0
      %1535 = vmatpush1.bf16.msra.mxu0 0
      %1536 = vmatprep.mubr.bf16.mxu0 0
      %1537 = vmatmul.mubr.bf16.gmra.mrb[0].mxu0 %v1502
      %v1538 = vpop.f32.mrb[0].mxu0
      %v1539 = vadd.f32 0.0, %v1538
      %v1540 = vpop.f32.mrb[0].mxu0
      %v1541 = vpop.f32.mrb[0].mxu0
      %v1542 = vadd.f32 0.0, %v1541
      %v1543 = vpop.f32.mrb[0].mxu0
      %1544 = vdwg.mxu0
      %1545 = vrot.lane.b32.xlu0 %v701, 56
      %v1546 = vpop.permute.xlu0 %1545
      %v1549 = vsel %vm913, %v1495, 0
      %1551 = vmatprep.subr.bf16.mxu0 0
      %1552 = vmatpush1.bf16.msra.mxu0 %v1546
      %1553 = vmatprep.subr.bf16.mxu0 0
      %1554 = vmatpush1.bf16.msra.mxu0 0
      %1555 = vmatprep.subr.bf16.mxu0 0
      %1556 = vmatpush1.bf16.msra.mxu0 0
      %1557 = vmatprep.subr.bf16.mxu0 0
      %1558 = vmatpush1.bf16.msra.mxu0 0
      %1559 = vmatprep.subr.bf16.mxu0 0
      %1560 = vmatpush1.bf16.msra.mxu0 0
      %1561 = vmatprep.subr.bf16.mxu0 0
      %1562 = vmatpush1.bf16.msra.mxu0 0
      %1563 = vmatprep.subr.bf16.mxu0 0
      %1564 = vmatpush1.bf16.msra.mxu0 0
      %1565 = vmatprep.subr.bf16.mxu0 0
      %1566 = vmatpush1.bf16.msra.mxu0 0
      %1567 = vmatprep.subr.bf16.mxu0 0
      %1568 = vmatpush1.bf16.msra.mxu0 0
      %1569 = vmatprep.subr.bf16.mxu0 0
      %1570 = vmatpush1.bf16.msra.mxu0 0
      %1571 = vmatprep.subr.bf16.mxu0 0
      %1572 = vmatpush1.bf16.msra.mxu0 0
      %1573 = vmatprep.subr.bf16.mxu0 0
      %1574 = vmatpush1.bf16.msra.mxu0 0
      %1575 = vmatprep.subr.bf16.mxu0 0
      %1576 = vmatpush1.bf16.msra.mxu0 0
      %1577 = vmatprep.subr.bf16.mxu0 0
      %1578 = vmatpush1.bf16.msra.mxu0 0
      %1579 = vmatprep.subr.bf16.mxu0 0
      %1580 = vmatpush1.bf16.msra.mxu0 0
      %1581 = vmatprep.subr.bf16.mxu0 0
      %1582 = vmatpush1.bf16.msra.mxu0 0
      %1583 = vmatprep.mubr.bf16.mxu0 0
      %1584 = vmatmul.mubr.bf16.gmra.mrb[0].mxu0 %v1549
      %v1585 = vpop.f32.mrb[0].mxu0
      %v1586 = vadd.f32 0.0, %v1585
      %v1587 = vpop.f32.mrb[0].mxu0
      %v1588 = vpop.f32.mrb[0].mxu0
      %v1589 = vadd.f32 0.0, %v1588
      %v1590 = vpop.f32.mrb[0].mxu0
      %1591 = vdwg.mxu0
      %1592 = vrot.lane.b32.xlu0 %v702, 56
      %v1593 = vpop.permute.xlu0 %1592
      %v1596 = vsel %vm913, %v1496, 0
      %1598 = vmatprep.subr.bf16.mxu0 0
      %1599 = vmatpush1.bf16.msra.mxu0 %v1593
      %1600 = vmatprep.subr.bf16.mxu0 0
      %1601 = vmatpush1.bf16.msra.mxu0 0
      %1602 = vmatprep.subr.bf16.mxu0 0
      %1603 = vmatpush1.bf16.msra.mxu0 0
      %1604 = vmatprep.subr.bf16.mxu0 0
      %1605 = vmatpush1.bf16.msra.mxu0 0
      %1606 = vmatprep.subr.bf16.mxu0 0
      %1607 = vmatpush1.bf16.msra.mxu0 0
      %1608 = vmatprep.subr.bf16.mxu0 0
      %1609 = vmatpush1.bf16.msra.mxu0 0
      %1610 = vmatprep.subr.bf16.mxu0 0
      %1611 = vmatpush1.bf16.msra.mxu0 0
      %1612 = vmatprep.subr.bf16.mxu0 0
      %1613 = vmatpush1.bf16.msra.mxu0 0
      %1614 = vmatprep.subr.bf16.mxu0 0
      %1615 = vmatpush1.bf16.msra.mxu0 0
      %1616 = vmatprep.subr.bf16.mxu0 0
      %1617 = vmatpush1.bf16.msra.mxu0 0
      %1618 = vmatprep.subr.bf16.mxu0 0
      %1619 = vmatpush1.bf16.msra.mxu0 0
      %1620 = vmatprep.subr.bf16.mxu0 0
      %1621 = vmatpush1.bf16.msra.mxu0 0
      %1622 = vmatprep.subr.bf16.mxu0 0
      %1623 = vmatpush1.bf16.msra.mxu0 0
      %1624 = vmatprep.subr.bf16.mxu0 0
      %1625 = vmatpush1.bf16.msra.mxu0 0
      %1626 = vmatprep.subr.bf16.mxu0 0
      %1627 = vmatpush1.bf16.msra.mxu0 0
      %1628 = vmatprep.subr.bf16.mxu0 0
      %1629 = vmatpush1.bf16.msra.mxu0 0
      %1630 = vmatprep.mubr.bf16.mxu0 0
      %1631 = vmatmul.mubr.bf16.gmra.mrb[0].mxu0 %v1596
      %v1632 = vpop.f32.mrb[0].mxu0
      %v1633 = vadd.f32 0.0, %v1632
      %v1634 = vpop.f32.mrb[0].mxu0
      %v1635 = vpop.f32.mrb[0].mxu0
      %v1636 = vadd.f32 0.0, %v1635
      %v1637 = vpop.f32.mrb[0].mxu0
      %1638 = vdwg.mxu0
      %1639 = vrot.lane.b32.xlu0 %v703, 56
      %v1640 = vpop.permute.xlu0 %1639
      %v1643 = vsel %vm913, %v1497, 0
      %1645 = vmatprep.subr.bf16.mxu0 0
      %1646 = vmatpush1.bf16.msra.mxu0 %v1640
      %1647 = vmatprep.subr.bf16.mxu0 0
      %1648 = vmatpush1.bf16.msra.mxu0 0
      %1649 = vmatprep.subr.bf16.mxu0 0
      %1650 = vmatpush1.bf16.msra.mxu0 0
      %1651 = vmatprep.subr.bf16.mxu0 0
      %1652 = vmatpush1.bf16.msra.mxu0 0
      %1653 = vmatprep.subr.bf16.mxu0 0
      %1654 = vmatpush1.bf16.msra.mxu0 0
      %1655 = vmatprep.subr.bf16.mxu0 0
      %1656 = vmatpush1.bf16.msra.mxu0 0
      %1657 = vmatprep.subr.bf16.mxu0 0
      %1658 = vmatpush1.bf16.msra.mxu0 0
      %1659 = vmatprep.subr.bf16.mxu0 0
      %1660 = vmatpush1.bf16.msra.mxu0 0
      %1661 = vmatprep.subr.bf16.mxu0 0
      %1662 = vmatpush1.bf16.msra.mxu0 0
      %1663 = vmatprep.subr.bf16.mxu0 0
      %1664 = vmatpush1.bf16.msra.mxu0 0
      %1665 = vmatprep.subr.bf16.mxu0 0
      %1666 = vmatpush1.bf16.msra.mxu0 0
      %1667 = vmatprep.subr.bf16.mxu0 0
      %1668 = vmatpush1.bf16.msra.mxu0 0
      %1669 = vmatprep.subr.bf16.mxu0 0
      %1670 = vmatpush1.bf16.msra.mxu0 0
      %1671 = vmatprep.subr.bf16.mxu0 0
      %1672 = vmatpush1.bf16.msra.mxu0 0
      %1673 = vmatprep.subr.bf16.mxu0 0
      %1674 = vmatpush1.bf16.msra.mxu0 0
      %1675 = vmatprep.subr.bf16.mxu0 0
      %1676 = vmatpush1.bf16.msra.mxu0 0
      %1677 = vmatprep.mubr.bf16.mxu0 0
      %1678 = vmatmul.mubr.bf16.gmra.mrb[0].mxu0 %v1643
      %v1679 = vpop.f32.mrb[0].mxu0
      %v1680 = vadd.f32 0.0, %v1679
      %v1681 = vpop.f32.mrb[0].mxu0
      %v1682 = vpop.f32.mrb[0].mxu0
      %v1683 = vadd.f32 0.0, %v1682
      %v1684 = vpop.f32.mrb[0].mxu0
      %1685 = vdwg.mxu0
      %1686 = vrot.lane.b32.xlu0 %v700, 112
      %v1687 = vpop.permute.xlu0 %1686
      %1688 = vrot.lane.b32.xlu0 %v700, 80
      %v1689 = vpop.permute.xlu0 %1688
      %v1691 = vsel %vm707, %v1687, 0
      %v1694 = vsel %vm707, %v1689, 0
      %1696 = vmatprep.subr.bf16.mxu0 0
      %1697 = vmatpush1.bf16.xpose.msra.mxu0 %v1694
      %1698 = vmatprep.subr.bf16.mxu0 0
      %1699 = vmatpush1.bf16.xpose.msra.mxu0 0
      %1700 = vmatprep.subr.bf16.mxu0 0
      %1701 = vmatpush1.bf16.xpose.msra.mxu0 0
      %1702 = vmatprep.subr.bf16.mxu0 0
      %1703 = vmatpush1.bf16.xpose.msra.mxu0 0
      %1704 = vmatprep.subr.bf16.mxu0 0
      %1705 = vmatpush1.bf16.xpose.msra.mxu0 0
      %1706 = vmatprep.subr.bf16.mxu0 0
      %1707 = vmatpush1.bf16.xpose.msra.mxu0 0
      %1708 = vmatprep.subr.bf16.mxu0 0
      %1709 = vmatpush1.bf16.xpose.msra.mxu0 0
      %1710 = vmatprep.subr.bf16.mxu0 0
      %1711 = vmatpush1.bf16.xpose.msra.mxu0 0
      %1712 = vmatprep.subr.bf16.mxu0 0
      %1713 = vmatpush1.bf16.xpose.msra.mxu0 0
      %1714 = vmatprep.subr.bf16.mxu0 0
      %1715 = vmatpush1.bf16.xpose.msra.mxu0 0
      %1716 = vmatprep.subr.bf16.mxu0 0
      %1717 = vmatpush1.bf16.xpose.msra.mxu0 0
      %1718 = vmatprep.subr.bf16.mxu0 0
      %1719 = vmatpush1.bf16.xpose.msra.mxu0 0
      %1720 = vmatprep.subr.bf16.mxu0 0
      %1721 = vmatpush1.bf16.xpose.msra.mxu0 0
      %1722 = vmatprep.subr.bf16.mxu0 0
      %1723 = vmatpush1.bf16.xpose.msra.mxu0 0
      %1724 = vmatprep.subr.bf16.mxu0 0
      %1725 = vmatpush1.bf16.xpose.msra.mxu0 0
      %1726 = vmatprep.subr.bf16.mxu0 0
      %1727 = vmatpush1.bf16.xpose.msra.mxu0 0
      %1728 = vmatprep.mubr.bf16.mxu0 0
      %1729 = vmatmul.mubr.bf16.gmra.mrb[0].mxu0 %v1691
      %v1730 = vpop.f32.mrb[0].mxu0
      %v1731 = vadd.f32 0.0, %v1730
      %v1732 = vpop.f32.mrb[0].mxu0
      %v1733 = vpop.f32.mrb[0].mxu0
      %v1734 = vadd.f32 0.0, %v1733
      %v1735 = vpop.f32.mrb[0].mxu0
      %1736 = vdwg.mxu0
      %1737 = vrot.lane.b32.xlu0 %v701, 112
      %v1738 = vpop.permute.xlu0 %1737
      %1739 = vrot.lane.b32.xlu0 %v701, 80
      %v1740 = vpop.permute.xlu0 %1739
      %v1742 = vsel %vm707, %v1738, 0
      %v1745 = vsel %vm707, %v1740, 0
      %1747 = vmatprep.subr.bf16.mxu0 0
      %1748 = vmatpush1.bf16.xpose.msra.mxu0 %v1745
      %1749 = vmatprep.subr.bf16.mxu0 0
      %1750 = vmatpush1.bf16.xpose.msra.mxu0 0
      %1751 = vmatprep.subr.bf16.mxu0 0
      %1752 = vmatpush1.bf16.xpose.msra.mxu0 0
      %1753 = vmatprep.subr.bf16.mxu0 0
      %1754 = vmatpush1.bf16.xpose.msra.mxu0 0
      %1755 = vmatprep.subr.bf16.mxu0 0
      %1756 = vmatpush1.bf16.xpose.msra.mxu0 0
      %1757 = vmatprep.subr.bf16.mxu0 0
      %1758 = vmatpush1.bf16.xpose.msra.mxu0 0
      %1759 = vmatprep.subr.bf16.mxu0 0
      %1760 = vmatpush1.bf16.xpose.msra.mxu0 0
      %1761 = vmatprep.subr.bf16.mxu0 0
      %1762 = vmatpush1.bf16.xpose.msra.mxu0 0
      %1763 = vmatprep.subr.bf16.mxu0 0
      %1764 = vmatpush1.bf16.xpose.msra.mxu0 0
      %1765 = vmatprep.subr.bf16.mxu0 0
      %1766 = vmatpush1.bf16.xpose.msra.mxu0 0
      %1767 = vmatprep.subr.bf16.mxu0 0
      %1768 = vmatpush1.bf16.xpose.msra.mxu0 0
      %1769 = vmatprep.subr.bf16.mxu0 0
      %1770 = vmatpush1.bf16.xpose.msra.mxu0 0
      %1771 = vmatprep.subr.bf16.mxu0 0
      %1772 = vmatpush1.bf16.xpose.msra.mxu0 0
      %1773 = vmatprep.subr.bf16.mxu0 0
      %1774 = vmatpush1.bf16.xpose.msra.mxu0 0
      %1775 = vmatprep.subr.bf16.mxu0 0
      %1776 = vmatpush1.bf16.xpose.msra.mxu0 0
      %1777 = vmatprep.subr.bf16.mxu0 0
      %1778 = vmatpush1.bf16.xpose.msra.mxu0 0
      %1779 = vmatprep.mubr.bf16.mxu0 0
      %1780 = vmatmul.mubr.bf16.gmra.mrb[0].mxu0 %v1742
      %v1781 = vpop.f32.mrb[0].mxu0
      %v1782 = vadd.f32 0.0, %v1781
      %v1783 = vpop.f32.mrb[0].mxu0
      %v1784 = vpop.f32.mrb[0].mxu0
      %v1785 = vadd.f32 0.0, %v1784
      %v1786 = vpop.f32.mrb[0].mxu0
      %1787 = vdwg.mxu0
      %1788 = vrot.lane.b32.xlu0 %v702, 112
      %v1789 = vpop.permute.xlu0 %1788
      %1790 = vrot.lane.b32.xlu0 %v702, 80
      %v1791 = vpop.permute.xlu0 %1790
      %v1793 = vsel %vm707, %v1789, 0
      %v1796 = vsel %vm707, %v1791, 0
      %1798 = vmatprep.subr.bf16.mxu0 0
      %1799 = vmatpush1.bf16.xpose.msra.mxu0 %v1796
      %1800 = vmatprep.subr.bf16.mxu0 0
      %1801 = vmatpush1.bf16.xpose.msra.mxu0 0
      %1802 = vmatprep.subr.bf16.mxu0 0
      %1803 = vmatpush1.bf16.xpose.msra.mxu0 0
      %1804 = vmatprep.subr.bf16.mxu0 0
      %1805 = vmatpush1.bf16.xpose.msra.mxu0 0
      %1806 = vmatprep.subr.bf16.mxu0 0
      %1807 = vmatpush1.bf16.xpose.msra.mxu0 0
      %1808 = vmatprep.subr.bf16.mxu0 0
      %1809 = vmatpush1.bf16.xpose.msra.mxu0 0
      %1810 = vmatprep.subr.bf16.mxu0 0
      %1811 = vmatpush1.bf16.xpose.msra.mxu0 0
      %1812 = vmatprep.subr.bf16.mxu0 0
      %1813 = vmatpush1.bf16.xpose.msra.mxu0 0
      %1814 = vmatprep.subr.bf16.mxu0 0
      %1815 = vmatpush1.bf16.xpose.msra.mxu0 0
      %1816 = vmatprep.subr.bf16.mxu0 0
      %1817 = vmatpush1.bf16.xpose.msra.mxu0 0
      %1818 = vmatprep.subr.bf16.mxu0 0
      %1819 = vmatpush1.bf16.xpose.msra.mxu0 0
      %1820 = vmatprep.subr.bf16.mxu0 0
      %1821 = vmatpush1.bf16.xpose.msra.mxu0 0
      %1822 = vmatprep.subr.bf16.mxu0 0
      %1823 = vmatpush1.bf16.xpose.msra.mxu0 0
      %1824 = vmatprep.subr.bf16.mxu0 0
      %1825 = vmatpush1.bf16.xpose.msra.mxu0 0
      %1826 = vmatprep.subr.bf16.mxu0 0
      %1827 = vmatpush1.bf16.xpose.msra.mxu0 0
      %1828 = vmatprep.subr.bf16.mxu0 0
      %1829 = vmatpush1.bf16.xpose.msra.mxu0 0
      %1830 = vmatprep.mubr.bf16.mxu0 0
      %1831 = vmatmul.mubr.bf16.gmra.mrb[0].mxu0 %v1793
      %v1832 = vpop.f32.mrb[0].mxu0
      %v1833 = vadd.f32 0.0, %v1832
      %v1834 = vpop.f32.mrb[0].mxu0
      %v1835 = vpop.f32.mrb[0].mxu0
      %v1836 = vadd.f32 0.0, %v1835
      %v1837 = vpop.f32.mrb[0].mxu0
      %1838 = vdwg.mxu0
      %1839 = vrot.lane.b32.xlu0 %v703, 112
      %v1840 = vpop.permute.xlu0 %1839
      %1841 = vrot.lane.b32.xlu0 %v703, 80
      %v1842 = vpop.permute.xlu0 %1841
      %v1844 = vsel %vm707, %v1840, 0
      %v1847 = vsel %vm707, %v1842, 0
      %1849 = vmatprep.subr.bf16.mxu0 0
      %1850 = vmatpush1.bf16.xpose.msra.mxu0 %v1847
      %1851 = vmatprep.subr.bf16.mxu0 0
      %1852 = vmatpush1.bf16.xpose.msra.mxu0 0
      %1853 = vmatprep.subr.bf16.mxu0 0
      %1854 = vmatpush1.bf16.xpose.msra.mxu0 0
      %1855 = vmatprep.subr.bf16.mxu0 0
      %1856 = vmatpush1.bf16.xpose.msra.mxu0 0
      %1857 = vmatprep.subr.bf16.mxu0 0
      %1858 = vmatpush1.bf16.xpose.msra.mxu0 0
      %1859 = vmatprep.subr.bf16.mxu0 0
      %1860 = vmatpush1.bf16.xpose.msra.mxu0 0
      %1861 = vmatprep.subr.bf16.mxu0 0
      %1862 = vmatpush1.bf16.xpose.msra.mxu0 0
      %1863 = vmatprep.subr.bf16.mxu0 0
      %1864 = vmatpush1.bf16.xpose.msra.mxu0 0
      %1865 = vmatprep.subr.bf16.mxu0 0
      %1866 = vmatpush1.bf16.xpose.msra.mxu0 0
      %1867 = vmatprep.subr.bf16.mxu0 0
      %1868 = vmatpush1.bf16.xpose.msra.mxu0 0
      %1869 = vmatprep.subr.bf16.mxu0 0
      %1870 = vmatpush1.bf16.xpose.msra.mxu0 0
      %1871 = vmatprep.subr.bf16.mxu0 0
      %1872 = vmatpush1.bf16.xpose.msra.mxu0 0
      %1873 = vmatprep.subr.bf16.mxu0 0
      %1874 = vmatpush1.bf16.xpose.msra.mxu0 0
      %1875 = vmatprep.subr.bf16.mxu0 0
      %1876 = vmatpush1.bf16.xpose.msra.mxu0 0
      %1877 = vmatprep.subr.bf16.mxu0 0
      %1878 = vmatpush1.bf16.xpose.msra.mxu0 0
      %1879 = vmatprep.subr.bf16.mxu0 0
      %1880 = vmatpush1.bf16.xpose.msra.mxu0 0
      %1881 = vmatprep.mubr.bf16.mxu0 0
      %1882 = vmatmul.mubr.bf16.gmra.mrb[0].mxu0 %v1844
      %v1883 = vpop.f32.mrb[0].mxu0
      %v1884 = vadd.f32 0.0, %v1883
      %v1885 = vpop.f32.mrb[0].mxu0
      %v1886 = vpop.f32.mrb[0].mxu0
      %v1887 = vadd.f32 0.0, %v1886
      %v1888 = vpop.f32.mrb[0].mxu0
      %1889 = vdwg.mxu0
      %v1890 = vmul.f32 %v1731, 0.35355338
      %v1891 = vmul.f32 %v1734, 0.35355338
      %v1892 = vmul.f32 %v1782, 0.35355338
      %v1893 = vmul.f32 %v1785, 0.35355338
      %v1894 = vmul.f32 %v1833, 0.35355338
      %v1895 = vmul.f32 %v1836, 0.35355338
      %v1896 = vmul.f32 %v1884, 0.35355338
      %v1897 = vmul.f32 %v1887, 0.35355338
      %v1898 = vsel %vm913, %v1890, -inf
      %1899 = vmax.xlane.f32.xlu0 %v1898
      %v1900 = vpop.xlane.xlu0 %1899
      %v1901 = vsel %vm913, %v1891, -inf
      %1902 = vmax.xlane.f32.xlu0 %v1901
      %v1903 = vpop.xlane.xlu0 %1902
      %v1904 = vsel %vm913, %v1892, -inf
      %1905 = vmax.xlane.f32.xlu0 %v1904
      %v1906 = vpop.xlane.xlu0 %1905
      %v1907 = vsel %vm913, %v1893, -inf
      %1908 = vmax.xlane.f32.xlu0 %v1907
      %v1909 = vpop.xlane.xlu0 %1908
      %v1910 = vsel %vm913, %v1894, -inf
      %1911 = vmax.xlane.f32.xlu0 %v1910
      %v1912 = vpop.xlane.xlu0 %1911
      %v1913 = vsel %vm913, %v1895, -inf
      %1914 = vmax.xlane.f32.xlu0 %v1913
      %v1915 = vpop.xlane.xlu0 %1914
      %v1916 = vsel %vm913, %v1896, -inf
      %1917 = vmax.xlane.f32.xlu0 %v1916
      %v1918 = vpop.xlane.xlu0 %1917
      %v1919 = vsel %vm913, %v1897, -inf
      %1920 = vmax.xlane.f32.xlu0 %v1919
      %v1921 = vpop.xlane.xlu0 %1920
      %v1922 = vsub.f32 %v1890, %v1900
      %v1923 = vsub.f32 %v1891, %v1903
      %v1924 = vsub.f32 %v1892, %v1906
      %v1925 = vsub.f32 %v1893, %v1909
      %v1926 = vsub.f32 %v1894, %v1912
      %v1927 = vsub.f32 %v1895, %v1915
      %v1928 = vsub.f32 %v1896, %v1918
      %v1929 = vsub.f32 %v1897, %v1921
      %v1930 = vmul.f32 %v1922, 1.442695
      %v1931 = vpow.pop %v1930
      %v1932 = vmul.f32 %v1923, 1.442695
      %v1933 = vpow.pop %v1932
      %v1934 = vmul.f32 %v1924, 1.442695
      %v1935 = vpow.pop %v1934
      %v1936 = vmul.f32 %v1925, 1.442695
      %v1937 = vpow.pop %v1936
      %v1938 = vmul.f32 %v1926, 1.442695
      %v1939 = vpow.pop %v1938
      %v1940 = vmul.f32 %v1927, 1.442695
      %v1941 = vpow.pop %v1940
      %v1942 = vmul.f32 %v1928, 1.442695
      %v1943 = vpow.pop %v1942
      %v1944 = vmul.f32 %v1929, 1.442695
      %v1945 = vpow.pop %v1944
      %v1946 = vsel %vm913, %v1931, 0.0
      %1947 = vadd.xlane.f32.xlu0 %v1946
      %v1948 = vpop.xlane.xlu0 %1947
      %v1949 = vsel %vm913, %v1933, 0.0
      %1950 = vadd.xlane.f32.xlu0 %v1949
      %v1951 = vpop.xlane.xlu0 %1950
      %v1952 = vsel %vm913, %v1935, 0.0
      %1953 = vadd.xlane.f32.xlu0 %v1952
      %v1954 = vpop.xlane.xlu0 %1953
      %v1955 = vsel %vm913, %v1937, 0.0
      %1956 = vadd.xlane.f32.xlu0 %v1955
      %v1957 = vpop.xlane.xlu0 %1956
      %v1958 = vsel %vm913, %v1939, 0.0
      %1959 = vadd.xlane.f32.xlu0 %v1958
      %v1960 = vpop.xlane.xlu0 %1959
      %v1961 = vsel %vm913, %v1941, 0.0
      %1962 = vadd.xlane.f32.xlu0 %v1961
      %v1963 = vpop.xlane.xlu0 %1962
      %v1964 = vsel %vm913, %v1943, 0.0
      %1965 = vadd.xlane.f32.xlu0 %v1964
      %v1966 = vpop.xlane.xlu0 %1965
      %v1967 = vsel %vm913, %v1945, 0.0
      %1968 = vadd.xlane.f32.xlu0 %v1967
      %v1969 = vpop.xlane.xlu0 %1968
      %v1970 = vrcp.pop %v1948
      %v1971 = vrcp.pop %v1951
      %v1972 = vrcp.pop %v1954
      %v1973 = vrcp.pop %v1957
      %v1974 = vrcp.pop %v1960
      %v1975 = vrcp.pop %v1963
      %v1976 = vrcp.pop %v1966
      %v1977 = vrcp.pop %v1969
      %v1978 = vmul.f32 %v1931, %v1970
      %v1979 = vmul.f32 %v1933, %v1971
      %v1980 = vmul.f32 %v1935, %v1972
      %v1981 = vmul.f32 %v1937, %v1973
      %v1982 = vmul.f32 %v1939, %v1974
      %v1983 = vmul.f32 %v1941, %v1975
      %v1984 = vmul.f32 %v1943, %v1976
      %v1985 = vmul.f32 %v1945, %v1977
      %v1986 = vpack.c.bf16 %v1979, %v1978
      %v1987 = vpack.c.bf16 %v1981, %v1980
      %v1988 = vpack.c.bf16 %v1983, %v1982
      %v1989 = vpack.c.bf16 %v1985, %v1984
      %1990 = vrot.lane.b32.xlu0 %v700, 48
      %v1991 = vpop.permute.xlu0 %1990
      %v1994 = vsel %vm913, %v1986, 0
      %1996 = vmatprep.subr.bf16.mxu0 0
      %1997 = vmatpush1.bf16.msra.mxu0 %v1991
      %1998 = vmatprep.subr.bf16.mxu0 0
      %1999 = vmatpush1.bf16.msra.mxu0 0
      %2000 = vmatprep.subr.bf16.mxu0 0
      %2001 = vmatpush1.bf16.msra.mxu0 0
      %2002 = vmatprep.subr.bf16.mxu0 0
      %2003 = vmatpush1.bf16.msra.mxu0 0
      %2004 = vmatprep.subr.bf16.mxu0 0
      %2005 = vmatpush1.bf16.msra.mxu0 0
      %2006 = vmatprep.subr.bf16.mxu0 0
      %2007 = vmatpush1.bf16.msra.mxu0 0
      %2008 = vmatprep.subr.bf16.mxu0 0
      %2009 = vmatpush1.bf16.msra.mxu0 0
      %2010 = vmatprep.subr.bf16.mxu0 0
      %2011 = vmatpush1.bf16.msra.mxu0 0
      %2012 = vmatprep.subr.bf16.mxu0 0
      %2013 = vmatpush1.bf16.msra.mxu0 0
      %2014 = vmatprep.subr.bf16.mxu0 0
      %2015 = vmatpush1.bf16.msra.mxu0 0
      %2016 = vmatprep.subr.bf16.mxu0 0
      %2017 = vmatpush1.bf16.msra.mxu0 0
      %2018 = vmatprep.subr.bf16.mxu0 0
      %2019 = vmatpush1.bf16.msra.mxu0 0
      %2020 = vmatprep.subr.bf16.mxu0 0
      %2021 = vmatpush1.bf16.msra.mxu0 0
      %2022 = vmatprep.subr.bf16.mxu0 0
      %2023 = vmatpush1.bf16.msra.mxu0 0
      %2024 = vmatprep.subr.bf16.mxu0 0
      %2025 = vmatpush1.bf16.msra.mxu0 0
      %2026 = vmatprep.subr.bf16.mxu0 0
      %2027 = vmatpush1.bf16.msra.mxu0 0
      %2028 = vmatprep.mubr.bf16.mxu0 0
      %2029 = vmatmul.mubr.bf16.gmra.mrb[0].mxu0 %v1994
      %v2030 = vpop.f32.mrb[0].mxu0
      %v2031 = vadd.f32 0.0, %v2030
      %v2032 = vpop.f32.mrb[0].mxu0
      %v2033 = vpop.f32.mrb[0].mxu0
      %v2034 = vadd.f32 0.0, %v2033
      %v2035 = vpop.f32.mrb[0].mxu0
      %2036 = vdwg.mxu0
      %2037 = vrot.lane.b32.xlu0 %v701, 48
      %v2038 = vpop.permute.xlu0 %2037
      %v2041 = vsel %vm913, %v1987, 0
      %2043 = vmatprep.subr.bf16.mxu0 0
      %2044 = vmatpush1.bf16.msra.mxu0 %v2038
      %2045 = vmatprep.subr.bf16.mxu0 0
      %2046 = vmatpush1.bf16.msra.mxu0 0
      %2047 = vmatprep.subr.bf16.mxu0 0
      %2048 = vmatpush1.bf16.msra.mxu0 0
      %2049 = vmatprep.subr.bf16.mxu0 0
      %2050 = vmatpush1.bf16.msra.mxu0 0
      %2051 = vmatprep.subr.bf16.mxu0 0
      %2052 = vmatpush1.bf16.msra.mxu0 0
      %2053 = vmatprep.subr.bf16.mxu0 0
      %2054 = vmatpush1.bf16.msra.mxu0 0
      %2055 = vmatprep.subr.bf16.mxu0 0
      %2056 = vmatpush1.bf16.msra.mxu0 0
      %2057 = vmatprep.subr.bf16.mxu0 0
      %2058 = vmatpush1.bf16.msra.mxu0 0
      %2059 = vmatprep.subr.bf16.mxu0 0
      %2060 = vmatpush1.bf16.msra.mxu0 0
      %2061 = vmatprep.subr.bf16.mxu0 0
      %2062 = vmatpush1.bf16.msra.mxu0 0
      %2063 = vmatprep.subr.bf16.mxu0 0
      %2064 = vmatpush1.bf16.msra.mxu0 0
      %2065 = vmatprep.subr.bf16.mxu0 0
      %2066 = vmatpush1.bf16.msra.mxu0 0
      %2067 = vmatprep.subr.bf16.mxu0 0
      %2068 = vmatpush1.bf16.msra.mxu0 0
      %2069 = vmatprep.subr.bf16.mxu0 0
      %2070 = vmatpush1.bf16.msra.mxu0 0
      %2071 = vmatprep.subr.bf16.mxu0 0
      %2072 = vmatpush1.bf16.msra.mxu0 0
      %2073 = vmatprep.subr.bf16.mxu0 0
      %2074 = vmatpush1.bf16.msra.mxu0 0
      %2075 = vmatprep.mubr.bf16.mxu0 0
      %2076 = vmatmul.mubr.bf16.gmra.mrb[0].mxu0 %v2041
      %v2077 = vpop.f32.mrb[0].mxu0
      %v2078 = vadd.f32 0.0, %v2077
      %v2079 = vpop.f32.mrb[0].mxu0
      %v2080 = vpop.f32.mrb[0].mxu0
      %v2081 = vadd.f32 0.0, %v2080
      %v2082 = vpop.f32.mrb[0].mxu0
      %2083 = vdwg.mxu0
      %2084 = vrot.lane.b32.xlu0 %v702, 48
      %v2085 = vpop.permute.xlu0 %2084
      %v2088 = vsel %vm913, %v1988, 0
      %2090 = vmatprep.subr.bf16.mxu0 0
      %2091 = vmatpush1.bf16.msra.mxu0 %v2085
      %2092 = vmatprep.subr.bf16.mxu0 0
      %2093 = vmatpush1.bf16.msra.mxu0 0
      %2094 = vmatprep.subr.bf16.mxu0 0
      %2095 = vmatpush1.bf16.msra.mxu0 0
      %2096 = vmatprep.subr.bf16.mxu0 0
      %2097 = vmatpush1.bf16.msra.mxu0 0
      %2098 = vmatprep.subr.bf16.mxu0 0
      %2099 = vmatpush1.bf16.msra.mxu0 0
      %2100 = vmatprep.subr.bf16.mxu0 0
      %2101 = vmatpush1.bf16.msra.mxu0 0
      %2102 = vmatprep.subr.bf16.mxu0 0
      %2103 = vmatpush1.bf16.msra.mxu0 0
      %2104 = vmatprep.subr.bf16.mxu0 0
      %2105 = vmatpush1.bf16.msra.mxu0 0
      %2106 = vmatprep.subr.bf16.mxu0 0
      %2107 = vmatpush1.bf16.msra.mxu0 0
      %2108 = vmatprep.subr.bf16.mxu0 0
      %2109 = vmatpush1.bf16.msra.mxu0 0
      %2110 = vmatprep.subr.bf16.mxu0 0
      %2111 = vmatpush1.bf16.msra.mxu0 0
      %2112 = vmatprep.subr.bf16.mxu0 0
      %2113 = vmatpush1.bf16.msra.mxu0 0
      %2114 = vmatprep.subr.bf16.mxu0 0
      %2115 = vmatpush1.bf16.msra.mxu0 0
      %2116 = vmatprep.subr.bf16.mxu0 0
      %2117 = vmatpush1.bf16.msra.mxu0 0
      %2118 = vmatprep.subr.bf16.mxu0 0
      %2119 = vmatpush1.bf16.msra.mxu0 0
      %2120 = vmatprep.subr.bf16.mxu0 0
      %2121 = vmatpush1.bf16.msra.mxu0 0
      %2122 = vmatprep.mubr.bf16.mxu0 0
      %2123 = vmatmul.mubr.bf16.gmra.mrb[0].mxu0 %v2088
      %v2124 = vpop.f32.mrb[0].mxu0
      %v2125 = vadd.f32 0.0, %v2124
      %v2126 = vpop.f32.mrb[0].mxu0
      %v2127 = vpop.f32.mrb[0].mxu0
      %v2128 = vadd.f32 0.0, %v2127
      %v2129 = vpop.f32.mrb[0].mxu0
      %2130 = vdwg.mxu0
      %2131 = vrot.lane.b32.xlu0 %v703, 48
      %v2132 = vpop.permute.xlu0 %2131
      %v2135 = vsel %vm913, %v1989, 0
      %2137 = vmatprep.subr.bf16.mxu0 0
      %2138 = vmatpush1.bf16.msra.mxu0 %v2132
      %2139 = vmatprep.subr.bf16.mxu0 0
      %2140 = vmatpush1.bf16.msra.mxu0 0
      %2141 = vmatprep.subr.bf16.mxu0 0
      %2142 = vmatpush1.bf16.msra.mxu0 0
      %2143 = vmatprep.subr.bf16.mxu0 0
      %2144 = vmatpush1.bf16.msra.mxu0 0
      %2145 = vmatprep.subr.bf16.mxu0 0
      %2146 = vmatpush1.bf16.msra.mxu0 0
      %2147 = vmatprep.subr.bf16.mxu0 0
      %2148 = vmatpush1.bf16.msra.mxu0 0
      %2149 = vmatprep.subr.bf16.mxu0 0
      %2150 = vmatpush1.bf16.msra.mxu0 0
      %2151 = vmatprep.subr.bf16.mxu0 0
      %2152 = vmatpush1.bf16.msra.mxu0 0
      %2153 = vmatprep.subr.bf16.mxu0 0
      %2154 = vmatpush1.bf16.msra.mxu0 0
      %2155 = vmatprep.subr.bf16.mxu0 0
      %2156 = vmatpush1.bf16.msra.mxu0 0
      %2157 = vmatprep.subr.bf16.mxu0 0
      %2158 = vmatpush1.bf16.msra.mxu0 0
      %2159 = vmatprep.subr.bf16.mxu0 0
      %2160 = vmatpush1.bf16.msra.mxu0 0
      %2161 = vmatprep.subr.bf16.mxu0 0
      %2162 = vmatpush1.bf16.msra.mxu0 0
      %2163 = vmatprep.subr.bf16.mxu0 0
      %2164 = vmatpush1.bf16.msra.mxu0 0
      %2165 = vmatprep.subr.bf16.mxu0 0
      %2166 = vmatpush1.bf16.msra.mxu0 0
      %2167 = vmatprep.subr.bf16.mxu0 0
      %2168 = vmatpush1.bf16.msra.mxu0 0
      %2169 = vmatprep.mubr.bf16.mxu0 0
      %2170 = vmatmul.mubr.bf16.gmra.mrb[0].mxu0 %v2135
      %v2171 = vpop.f32.mrb[0].mxu0
      %v2172 = vadd.f32 0.0, %v2171
      %v2173 = vpop.f32.mrb[0].mxu0
      %v2174 = vpop.f32.mrb[0].mxu0
      %v2175 = vadd.f32 0.0, %v2174
      %v2176 = vpop.f32.mrb[0].mxu0
      %2177 = vdwg.mxu0
      %2178 = vrot.lane.b32.xlu0 %v700, 104
      %v2179 = vpop.permute.xlu0 %2178
      %2180 = vrot.lane.b32.xlu0 %v700, 72
      %v2181 = vpop.permute.xlu0 %2180
      %v2183 = vsel %vm707, %v2179, 0
      %v2186 = vsel %vm707, %v2181, 0
      %2188 = vmatprep.subr.bf16.mxu0 0
      %2189 = vmatpush1.bf16.xpose.msra.mxu0 %v2186
      %2190 = vmatprep.subr.bf16.mxu0 0
      %2191 = vmatpush1.bf16.xpose.msra.mxu0 0
      %2192 = vmatprep.subr.bf16.mxu0 0
      %2193 = vmatpush1.bf16.xpose.msra.mxu0 0
      %2194 = vmatprep.subr.bf16.mxu0 0
      %2195 = vmatpush1.bf16.xpose.msra.mxu0 0
      %2196 = vmatprep.subr.bf16.mxu0 0
      %2197 = vmatpush1.bf16.xpose.msra.mxu0 0
      %2198 = vmatprep.subr.bf16.mxu0 0
      %2199 = vmatpush1.bf16.xpose.msra.mxu0 0
      %2200 = vmatprep.subr.bf16.mxu0 0
      %2201 = vmatpush1.bf16.xpose.msra.mxu0 0
      %2202 = vmatprep.subr.bf16.mxu0 0
      %2203 = vmatpush1.bf16.xpose.msra.mxu0 0
      %2204 = vmatprep.subr.bf16.mxu0 0
      %2205 = vmatpush1.bf16.xpose.msra.mxu0 0
      %2206 = vmatprep.subr.bf16.mxu0 0
      %2207 = vmatpush1.bf16.xpose.msra.mxu0 0
      %2208 = vmatprep.subr.bf16.mxu0 0
      %2209 = vmatpush1.bf16.xpose.msra.mxu0 0
      %2210 = vmatprep.subr.bf16.mxu0 0
      %2211 = vmatpush1.bf16.xpose.msra.mxu0 0
      %2212 = vmatprep.subr.bf16.mxu0 0
      %2213 = vmatpush1.bf16.xpose.msra.mxu0 0
      %2214 = vmatprep.subr.bf16.mxu0 0
      %2215 = vmatpush1.bf16.xpose.msra.mxu0 0
      %2216 = vmatprep.subr.bf16.mxu0 0
      %2217 = vmatpush1.bf16.xpose.msra.mxu0 0
      %2218 = vmatprep.subr.bf16.mxu0 0
      %2219 = vmatpush1.bf16.xpose.msra.mxu0 0
      %2220 = vmatprep.mubr.bf16.mxu0 0
      %2221 = vmatmul.mubr.bf16.gmra.mrb[0].mxu0 %v2183
      %v2222 = vpop.f32.mrb[0].mxu0
      %v2223 = vadd.f32 0.0, %v2222
      %v2224 = vpop.f32.mrb[0].mxu0
      %v2225 = vpop.f32.mrb[0].mxu0
      %v2226 = vadd.f32 0.0, %v2225
      %v2227 = vpop.f32.mrb[0].mxu0
      %2228 = vdwg.mxu0
      %2229 = vrot.lane.b32.xlu0 %v701, 104
      %v2230 = vpop.permute.xlu0 %2229
      %2231 = vrot.lane.b32.xlu0 %v701, 72
      %v2232 = vpop.permute.xlu0 %2231
      %v2234 = vsel %vm707, %v2230, 0
      %v2237 = vsel %vm707, %v2232, 0
      %2239 = vmatprep.subr.bf16.mxu0 0
      %2240 = vmatpush1.bf16.xpose.msra.mxu0 %v2237
      %2241 = vmatprep.subr.bf16.mxu0 0
      %2242 = vmatpush1.bf16.xpose.msra.mxu0 0
      %2243 = vmatprep.subr.bf16.mxu0 0
      %2244 = vmatpush1.bf16.xpose.msra.mxu0 0
      %2245 = vmatprep.subr.bf16.mxu0 0
      %2246 = vmatpush1.bf16.xpose.msra.mxu0 0
      %2247 = vmatprep.subr.bf16.mxu0 0
      %2248 = vmatpush1.bf16.xpose.msra.mxu0 0
      %2249 = vmatprep.subr.bf16.mxu0 0
      %2250 = vmatpush1.bf16.xpose.msra.mxu0 0
      %2251 = vmatprep.subr.bf16.mxu0 0
      %2252 = vmatpush1.bf16.xpose.msra.mxu0 0
      %2253 = vmatprep.subr.bf16.mxu0 0
      %2254 = vmatpush1.bf16.xpose.msra.mxu0 0
      %2255 = vmatprep.subr.bf16.mxu0 0
      %2256 = vmatpush1.bf16.xpose.msra.mxu0 0
      %2257 = vmatprep.subr.bf16.mxu0 0
      %2258 = vmatpush1.bf16.xpose.msra.mxu0 0
      %2259 = vmatprep.subr.bf16.mxu0 0
      %2260 = vmatpush1.bf16.xpose.msra.mxu0 0
      %2261 = vmatprep.subr.bf16.mxu0 0
      %2262 = vmatpush1.bf16.xpose.msra.mxu0 0
      %2263 = vmatprep.subr.bf16.mxu0 0
      %2264 = vmatpush1.bf16.xpose.msra.mxu0 0
      %2265 = vmatprep.subr.bf16.mxu0 0
      %2266 = vmatpush1.bf16.xpose.msra.mxu0 0
      %2267 = vmatprep.subr.bf16.mxu0 0
      %2268 = vmatpush1.bf16.xpose.msra.mxu0 0
      %2269 = vmatprep.subr.bf16.mxu0 0
      %2270 = vmatpush1.bf16.xpose.msra.mxu0 0
      %2271 = vmatprep.mubr.bf16.mxu0 0
      %2272 = vmatmul.mubr.bf16.gmra.mrb[0].mxu0 %v2234
      %v2273 = vpop.f32.mrb[0].mxu0
      %v2274 = vadd.f32 0.0, %v2273
      %v2275 = vpop.f32.mrb[0].mxu0
      %v2276 = vpop.f32.mrb[0].mxu0
      %v2277 = vadd.f32 0.0, %v2276
      %v2278 = vpop.f32.mrb[0].mxu0
      %2279 = vdwg.mxu0
      %2280 = vrot.lane.b32.xlu0 %v702, 104
      %v2281 = vpop.permute.xlu0 %2280
      %2282 = vrot.lane.b32.xlu0 %v702, 72
      %v2283 = vpop.permute.xlu0 %2282
      %v2285 = vsel %vm707, %v2281, 0
      %v2288 = vsel %vm707, %v2283, 0
      %2290 = vmatprep.subr.bf16.mxu0 0
      %2291 = vmatpush1.bf16.xpose.msra.mxu0 %v2288
      %2292 = vmatprep.subr.bf16.mxu0 0
      %2293 = vmatpush1.bf16.xpose.msra.mxu0 0
      %2294 = vmatprep.subr.bf16.mxu0 0
      %2295 = vmatpush1.bf16.xpose.msra.mxu0 0
      %2296 = vmatprep.subr.bf16.mxu0 0
      %2297 = vmatpush1.bf16.xpose.msra.mxu0 0
      %2298 = vmatprep.subr.bf16.mxu0 0
      %2299 = vmatpush1.bf16.xpose.msra.mxu0 0
      %2300 = vmatprep.subr.bf16.mxu0 0
      %2301 = vmatpush1.bf16.xpose.msra.mxu0 0
      %2302 = vmatprep.subr.bf16.mxu0 0
      %2303 = vmatpush1.bf16.xpose.msra.mxu0 0
      %2304 = vmatprep.subr.bf16.mxu0 0
      %2305 = vmatpush1.bf16.xpose.msra.mxu0 0
      %2306 = vmatprep.subr.bf16.mxu0 0
      %2307 = vmatpush1.bf16.xpose.msra.mxu0 0
      %2308 = vmatprep.subr.bf16.mxu0 0
      %2309 = vmatpush1.bf16.xpose.msra.mxu0 0
      %2310 = vmatprep.subr.bf16.mxu0 0
      %2311 = vmatpush1.bf16.xpose.msra.mxu0 0
      %2312 = vmatprep.subr.bf16.mxu0 0
      %2313 = vmatpush1.bf16.xpose.msra.mxu0 0
      %2314 = vmatprep.subr.bf16.mxu0 0
      %2315 = vmatpush1.bf16.xpose.msra.mxu0 0
      %2316 = vmatprep.subr.bf16.mxu0 0
      %2317 = vmatpush1.bf16.xpose.msra.mxu0 0
      %2318 = vmatprep.subr.bf16.mxu0 0
      %2319 = vmatpush1.bf16.xpose.msra.mxu0 0
      %2320 = vmatprep.subr.bf16.mxu0 0
      %2321 = vmatpush1.bf16.xpose.msra.mxu0 0
      %2322 = vmatprep.mubr.bf16.mxu0 0
      %2323 = vmatmul.mubr.bf16.gmra.mrb[0].mxu0 %v2285
      %v2324 = vpop.f32.mrb[0].mxu0
      %v2325 = vadd.f32 0.0, %v2324
      %v2326 = vpop.f32.mrb[0].mxu0
      %v2327 = vpop.f32.mrb[0].mxu0
      %v2328 = vadd.f32 0.0, %v2327
      %v2329 = vpop.f32.mrb[0].mxu0
      %2330 = vdwg.mxu0
      %2331 = vrot.lane.b32.xlu0 %v703, 104
      %v2332 = vpop.permute.xlu0 %2331
      %2333 = vrot.lane.b32.xlu0 %v703, 72
      %v2334 = vpop.permute.xlu0 %2333
      %v2336 = vsel %vm707, %v2332, 0
      %v2339 = vsel %vm707, %v2334, 0
      %2341 = vmatprep.subr.bf16.mxu0 0
      %2342 = vmatpush1.bf16.xpose.msra.mxu0 %v2339
      %2343 = vmatprep.subr.bf16.mxu0 0
      %2344 = vmatpush1.bf16.xpose.msra.mxu0 0
      %2345 = vmatprep.subr.bf16.mxu0 0
      %2346 = vmatpush1.bf16.xpose.msra.mxu0 0
      %2347 = vmatprep.subr.bf16.mxu0 0
      %2348 = vmatpush1.bf16.xpose.msra.mxu0 0
      %2349 = vmatprep.subr.bf16.mxu0 0
      %2350 = vmatpush1.bf16.xpose.msra.mxu0 0
      %2351 = vmatprep.subr.bf16.mxu0 0
      %2352 = vmatpush1.bf16.xpose.msra.mxu0 0
      %2353 = vmatprep.subr.bf16.mxu0 0
      %2354 = vmatpush1.bf16.xpose.msra.mxu0 0
      %2355 = vmatprep.subr.bf16.mxu0 0
      %2356 = vmatpush1.bf16.xpose.msra.mxu0 0
      %2357 = vmatprep.subr.bf16.mxu0 0
      %2358 = vmatpush1.bf16.xpose.msra.mxu0 0
      %2359 = vmatprep.subr.bf16.mxu0 0
      %2360 = vmatpush1.bf16.xpose.msra.mxu0 0
      %2361 = vmatprep.subr.bf16.mxu0 0
      %2362 = vmatpush1.bf16.xpose.msra.mxu0 0
      %2363 = vmatprep.subr.bf16.mxu0 0
      %2364 = vmatpush1.bf16.xpose.msra.mxu0 0
      %2365 = vmatprep.subr.bf16.mxu0 0
      %2366 = vmatpush1.bf16.xpose.msra.mxu0 0
      %2367 = vmatprep.subr.bf16.mxu0 0
      %2368 = vmatpush1.bf16.xpose.msra.mxu0 0
      %2369 = vmatprep.subr.bf16.mxu0 0
      %2370 = vmatpush1.bf16.xpose.msra.mxu0 0
      %2371 = vmatprep.subr.bf16.mxu0 0
      %2372 = vmatpush1.bf16.xpose.msra.mxu0 0
      %2373 = vmatprep.mubr.bf16.mxu0 0
      %2374 = vmatmul.mubr.bf16.gmra.mrb[0].mxu0 %v2336
      %v2375 = vpop.f32.mrb[0].mxu0
      %v2376 = vadd.f32 0.0, %v2375
      %v2377 = vpop.f32.mrb[0].mxu0
      %v2378 = vpop.f32.mrb[0].mxu0
      %v2379 = vadd.f32 0.0, %v2378
      %v2380 = vpop.f32.mrb[0].mxu0
      %2381 = vdwg.mxu0
      %v2382 = vmul.f32 %v2223, 0.35355338
      %v2383 = vmul.f32 %v2226, 0.35355338
      %v2384 = vmul.f32 %v2274, 0.35355338
      %v2385 = vmul.f32 %v2277, 0.35355338
      %v2386 = vmul.f32 %v2325, 0.35355338
      %v2387 = vmul.f32 %v2328, 0.35355338
      %v2388 = vmul.f32 %v2376, 0.35355338
      %v2389 = vmul.f32 %v2379, 0.35355338
      %v2390 = vsel %vm913, %v2382, -inf
      %2391 = vmax.xlane.f32.xlu0 %v2390
      %v2392 = vpop.xlane.xlu0 %2391
      %v2393 = vsel %vm913, %v2383, -inf
      %2394 = vmax.xlane.f32.xlu0 %v2393
      %v2395 = vpop.xlane.xlu0 %2394
      %v2396 = vsel %vm913, %v2384, -inf
      %2397 = vmax.xlane.f32.xlu0 %v2396
      %v2398 = vpop.xlane.xlu0 %2397
      %v2399 = vsel %vm913, %v2385, -inf
      %2400 = vmax.xlane.f32.xlu0 %v2399
      %v2401 = vpop.xlane.xlu0 %2400
      %v2402 = vsel %vm913, %v2386, -inf
      %2403 = vmax.xlane.f32.xlu0 %v2402
      %v2404 = vpop.xlane.xlu0 %2403
      %v2405 = vsel %vm913, %v2387, -inf
      %2406 = vmax.xlane.f32.xlu0 %v2405
      %v2407 = vpop.xlane.xlu0 %2406
      %v2408 = vsel %vm913, %v2388, -inf
      %2409 = vmax.xlane.f32.xlu0 %v2408
      %v2410 = vpop.xlane.xlu0 %2409
      %v2411 = vsel %vm913, %v2389, -inf
      %2412 = vmax.xlane.f32.xlu0 %v2411
      %v2413 = vpop.xlane.xlu0 %2412
      %v2414 = vsub.f32 %v2382, %v2392
      %v2415 = vsub.f32 %v2383, %v2395
      %v2416 = vsub.f32 %v2384, %v2398
      %v2417 = vsub.f32 %v2385, %v2401
      %v2418 = vsub.f32 %v2386, %v2404
      %v2419 = vsub.f32 %v2387, %v2407
      %v2420 = vsub.f32 %v2388, %v2410
      %v2421 = vsub.f32 %v2389, %v2413
      %v2422 = vmul.f32 %v2414, 1.442695
      %v2423 = vpow.pop %v2422
      %v2424 = vmul.f32 %v2415, 1.442695
      %v2425 = vpow.pop %v2424
      %v2426 = vmul.f32 %v2416, 1.442695
      %v2427 = vpow.pop %v2426
      %v2428 = vmul.f32 %v2417, 1.442695
      %v2429 = vpow.pop %v2428
      %v2430 = vmul.f32 %v2418, 1.442695
      %v2431 = vpow.pop %v2430
      %v2432 = vmul.f32 %v2419, 1.442695
      %v2433 = vpow.pop %v2432
      %v2434 = vmul.f32 %v2420, 1.442695
      %v2435 = vpow.pop %v2434
      %v2436 = vmul.f32 %v2421, 1.442695
      %v2437 = vpow.pop %v2436
      %v2438 = vsel %vm913, %v2423, 0.0
      %2439 = vadd.xlane.f32.xlu0 %v2438
      %v2440 = vpop.xlane.xlu0 %2439
      %v2441 = vsel %vm913, %v2425, 0.0
      %2442 = vadd.xlane.f32.xlu0 %v2441
      %v2443 = vpop.xlane.xlu0 %2442
      %v2444 = vsel %vm913, %v2427, 0.0
      %2445 = vadd.xlane.f32.xlu0 %v2444
      %v2446 = vpop.xlane.xlu0 %2445
      %v2447 = vsel %vm913, %v2429, 0.0
      %2448 = vadd.xlane.f32.xlu0 %v2447
      %v2449 = vpop.xlane.xlu0 %2448
      %v2450 = vsel %vm913, %v2431, 0.0
      %2451 = vadd.xlane.f32.xlu0 %v2450
      %v2452 = vpop.xlane.xlu0 %2451
      %v2453 = vsel %vm913, %v2433, 0.0
      %2454 = vadd.xlane.f32.xlu0 %v2453
      %v2455 = vpop.xlane.xlu0 %2454
      %v2456 = vsel %vm913, %v2435, 0.0
      %2457 = vadd.xlane.f32.xlu0 %v2456
      %v2458 = vpop.xlane.xlu0 %2457
      %v2459 = vsel %vm913, %v2437, 0.0
      %2460 = vadd.xlane.f32.xlu0 %v2459
      %v2461 = vpop.xlane.xlu0 %2460
      %v2462 = vrcp.pop %v2440
      %v2463 = vrcp.pop %v2443
      %v2464 = vrcp.pop %v2446
      %v2465 = vrcp.pop %v2449
      %v2466 = vrcp.pop %v2452
      %v2467 = vrcp.pop %v2455
      %v2468 = vrcp.pop %v2458
      %v2469 = vrcp.pop %v2461
      %v2470 = vmul.f32 %v2423, %v2462
      %v2471 = vmul.f32 %v2425, %v2463
      %v2472 = vmul.f32 %v2427, %v2464
      %v2473 = vmul.f32 %v2429, %v2465
      %v2474 = vmul.f32 %v2431, %v2466
      %v2475 = vmul.f32 %v2433, %v2467
      %v2476 = vmul.f32 %v2435, %v2468
      %v2477 = vmul.f32 %v2437, %v2469
      %v2478 = vpack.c.bf16 %v2471, %v2470
      %v2479 = vpack.c.bf16 %v2473, %v2472
      %v2480 = vpack.c.bf16 %v2475, %v2474
      %v2481 = vpack.c.bf16 %v2477, %v2476
      %2482 = vrot.lane.b32.xlu0 %v700, 40
      %v2483 = vpop.permute.xlu0 %2482
      %v2486 = vsel %vm913, %v2478, 0
      %2488 = vmatprep.subr.bf16.mxu0 0
      %2489 = vmatpush1.bf16.msra.mxu0 %v2483
      %2490 = vmatprep.subr.bf16.mxu0 0
      %2491 = vmatpush1.bf16.msra.mxu0 0
      %2492 = vmatprep.subr.bf16.mxu0 0
      %2493 = vmatpush1.bf16.msra.mxu0 0
      %2494 = vmatprep.subr.bf16.mxu0 0
      %2495 = vmatpush1.bf16.msra.mxu0 0
      %2496 = vmatprep.subr.bf16.mxu0 0
      %2497 = vmatpush1.bf16.msra.mxu0 0
      %2498 = vmatprep.subr.bf16.mxu0 0
      %2499 = vmatpush1.bf16.msra.mxu0 0
      %2500 = vmatprep.subr.bf16.mxu0 0
      %2501 = vmatpush1.bf16.msra.mxu0 0
      %2502 = vmatprep.subr.bf16.mxu0 0
      %2503 = vmatpush1.bf16.msra.mxu0 0
      %2504 = vmatprep.subr.bf16.mxu0 0
      %2505 = vmatpush1.bf16.msra.mxu0 0
      %2506 = vmatprep.subr.bf16.mxu0 0
      %2507 = vmatpush1.bf16.msra.mxu0 0
      %2508 = vmatprep.subr.bf16.mxu0 0
      %2509 = vmatpush1.bf16.msra.mxu0 0
      %2510 = vmatprep.subr.bf16.mxu0 0
      %2511 = vmatpush1.bf16.msra.mxu0 0
      %2512 = vmatprep.subr.bf16.mxu0 0
      %2513 = vmatpush1.bf16.msra.mxu0 0
      %2514 = vmatprep.subr.bf16.mxu0 0
      %2515 = vmatpush1.bf16.msra.mxu0 0
      %2516 = vmatprep.subr.bf16.mxu0 0
      %2517 = vmatpush1.bf16.msra.mxu0 0
      %2518 = vmatprep.subr.bf16.mxu0 0
      %2519 = vmatpush1.bf16.msra.mxu0 0
      %2520 = vmatprep.mubr.bf16.mxu0 0
      %2521 = vmatmul.mubr.bf16.gmra.mrb[0].mxu0 %v2486
      %v2522 = vpop.f32.mrb[0].mxu0
      %v2523 = vadd.f32 0.0, %v2522
      %v2524 = vpop.f32.mrb[0].mxu0
      %v2525 = vpop.f32.mrb[0].mxu0
      %v2526 = vadd.f32 0.0, %v2525
      %v2527 = vpop.f32.mrb[0].mxu0
      %2528 = vdwg.mxu0
      %2529 = vrot.lane.b32.xlu0 %v701, 40
      %v2530 = vpop.permute.xlu0 %2529
      %v2533 = vsel %vm913, %v2479, 0
      %2535 = vmatprep.subr.bf16.mxu0 0
      %2536 = vmatpush1.bf16.msra.mxu0 %v2530
      %2537 = vmatprep.subr.bf16.mxu0 0
      %2538 = vmatpush1.bf16.msra.mxu0 0
      %2539 = vmatprep.subr.bf16.mxu0 0
      %2540 = vmatpush1.bf16.msra.mxu0 0
      %2541 = vmatprep.subr.bf16.mxu0 0
      %2542 = vmatpush1.bf16.msra.mxu0 0
      %2543 = vmatprep.subr.bf16.mxu0 0
      %2544 = vmatpush1.bf16.msra.mxu0 0
      %2545 = vmatprep.subr.bf16.mxu0 0
      %2546 = vmatpush1.bf16.msra.mxu0 0
      %2547 = vmatprep.subr.bf16.mxu0 0
      %2548 = vmatpush1.bf16.msra.mxu0 0
      %2549 = vmatprep.subr.bf16.mxu0 0
      %2550 = vmatpush1.bf16.msra.mxu0 0
      %2551 = vmatprep.subr.bf16.mxu0 0
      %2552 = vmatpush1.bf16.msra.mxu0 0
      %2553 = vmatprep.subr.bf16.mxu0 0
      %2554 = vmatpush1.bf16.msra.mxu0 0
      %2555 = vmatprep.subr.bf16.mxu0 0
      %2556 = vmatpush1.bf16.msra.mxu0 0
      %2557 = vmatprep.subr.bf16.mxu0 0
      %2558 = vmatpush1.bf16.msra.mxu0 0
      %2559 = vmatprep.subr.bf16.mxu0 0
      %2560 = vmatpush1.bf16.msra.mxu0 0
      %2561 = vmatprep.subr.bf16.mxu0 0
      %2562 = vmatpush1.bf16.msra.mxu0 0
      %2563 = vmatprep.subr.bf16.mxu0 0
      %2564 = vmatpush1.bf16.msra.mxu0 0
      %2565 = vmatprep.subr.bf16.mxu0 0
      %2566 = vmatpush1.bf16.msra.mxu0 0
      %2567 = vmatprep.mubr.bf16.mxu0 0
      %2568 = vmatmul.mubr.bf16.gmra.mrb[0].mxu0 %v2533
      %v2569 = vpop.f32.mrb[0].mxu0
      %v2570 = vadd.f32 0.0, %v2569
      %v2571 = vpop.f32.mrb[0].mxu0
      %v2572 = vpop.f32.mrb[0].mxu0
      %v2573 = vadd.f32 0.0, %v2572
      %v2574 = vpop.f32.mrb[0].mxu0
      %2575 = vdwg.mxu0
      %2576 = vrot.lane.b32.xlu0 %v702, 40
      %v2577 = vpop.permute.xlu0 %2576
      %v2580 = vsel %vm913, %v2480, 0
      %2582 = vmatprep.subr.bf16.mxu0 0
      %2583 = vmatpush1.bf16.msra.mxu0 %v2577
      %2584 = vmatprep.subr.bf16.mxu0 0
      %2585 = vmatpush1.bf16.msra.mxu0 0
      %2586 = vmatprep.subr.bf16.mxu0 0
      %2587 = vmatpush1.bf16.msra.mxu0 0
      %2588 = vmatprep.subr.bf16.mxu0 0
      %2589 = vmatpush1.bf16.msra.mxu0 0
      %2590 = vmatprep.subr.bf16.mxu0 0
      %2591 = vmatpush1.bf16.msra.mxu0 0
      %2592 = vmatprep.subr.bf16.mxu0 0
      %2593 = vmatpush1.bf16.msra.mxu0 0
      %2594 = vmatprep.subr.bf16.mxu0 0
      %2595 = vmatpush1.bf16.msra.mxu0 0
      %2596 = vmatprep.subr.bf16.mxu0 0
      %2597 = vmatpush1.bf16.msra.mxu0 0
      %2598 = vmatprep.subr.bf16.mxu0 0
      %2599 = vmatpush1.bf16.msra.mxu0 0
      %2600 = vmatprep.subr.bf16.mxu0 0
      %2601 = vmatpush1.bf16.msra.mxu0 0
      %2602 = vmatprep.subr.bf16.mxu0 0
      %2603 = vmatpush1.bf16.msra.mxu0 0
      %2604 = vmatprep.subr.bf16.mxu0 0
      %2605 = vmatpush1.bf16.msra.mxu0 0
      %2606 = vmatprep.subr.bf16.mxu0 0
      %2607 = vmatpush1.bf16.msra.mxu0 0
      %2608 = vmatprep.subr.bf16.mxu0 0
      %2609 = vmatpush1.bf16.msra.mxu0 0
      %2610 = vmatprep.subr.bf16.mxu0 0
      %2611 = vmatpush1.bf16.msra.mxu0 0
      %2612 = vmatprep.subr.bf16.mxu0 0
      %2613 = vmatpush1.bf16.msra.mxu0 0
      %2614 = vmatprep.mubr.bf16.mxu0 0
      %2615 = vmatmul.mubr.bf16.gmra.mrb[0].mxu0 %v2580
      %v2616 = vpop.f32.mrb[0].mxu0
      %v2617 = vadd.f32 0.0, %v2616
      %v2618 = vpop.f32.mrb[0].mxu0
      %v2619 = vpop.f32.mrb[0].mxu0
      %v2620 = vadd.f32 0.0, %v2619
      %v2621 = vpop.f32.mrb[0].mxu0
      %2622 = vdwg.mxu0
      %2623 = vrot.lane.b32.xlu0 %v703, 40
      %v2624 = vpop.permute.xlu0 %2623
      %v2627 = vsel %vm913, %v2481, 0
      %2629 = vmatprep.subr.bf16.mxu0 0
      %2630 = vmatpush1.bf16.msra.mxu0 %v2624
      %2631 = vmatprep.subr.bf16.mxu0 0
      %2632 = vmatpush1.bf16.msra.mxu0 0
      %2633 = vmatprep.subr.bf16.mxu0 0
      %2634 = vmatpush1.bf16.msra.mxu0 0
      %2635 = vmatprep.subr.bf16.mxu0 0
      %2636 = vmatpush1.bf16.msra.mxu0 0
      %2637 = vmatprep.subr.bf16.mxu0 0
      %2638 = vmatpush1.bf16.msra.mxu0 0
      %2639 = vmatprep.subr.bf16.mxu0 0
      %2640 = vmatpush1.bf16.msra.mxu0 0
      %2641 = vmatprep.subr.bf16.mxu0 0
      %2642 = vmatpush1.bf16.msra.mxu0 0
      %2643 = vmatprep.subr.bf16.mxu0 0
      %2644 = vmatpush1.bf16.msra.mxu0 0
      %2645 = vmatprep.subr.bf16.mxu0 0
      %2646 = vmatpush1.bf16.msra.mxu0 0
      %2647 = vmatprep.subr.bf16.mxu0 0
      %2648 = vmatpush1.bf16.msra.mxu0 0
      %2649 = vmatprep.subr.bf16.mxu0 0
      %2650 = vmatpush1.bf16.msra.mxu0 0
      %2651 = vmatprep.subr.bf16.mxu0 0
      %2652 = vmatpush1.bf16.msra.mxu0 0
      %2653 = vmatprep.subr.bf16.mxu0 0
      %2654 = vmatpush1.bf16.msra.mxu0 0
      %2655 = vmatprep.subr.bf16.mxu0 0
      %2656 = vmatpush1.bf16.msra.mxu0 0
      %2657 = vmatprep.subr.bf16.mxu0 0
      %2658 = vmatpush1.bf16.msra.mxu0 0
      %2659 = vmatprep.subr.bf16.mxu0 0
      %2660 = vmatpush1.bf16.msra.mxu0 0
      %2661 = vmatprep.mubr.bf16.mxu0 0
      %2662 = vmatmul.mubr.bf16.gmra.mrb[0].mxu0 %v2627
      %v2663 = vpop.f32.mrb[0].mxu0
      %v2664 = vadd.f32 0.0, %v2663
      %v2665 = vpop.f32.mrb[0].mxu0
      %v2666 = vpop.f32.mrb[0].mxu0
      %v2667 = vadd.f32 0.0, %v2666
      %v2668 = vpop.f32.mrb[0].mxu0
      %2669 = vdwg.mxu0
      %2678 = vrot.lane.b32.xlu0 %v1539, 8
      %v2679 = vpop.permute.xlu0 %2678
      %2680 = vrot.lane.b32.xlu0 %v1542, 8
      %v2681 = vpop.permute.xlu0 %2680
      %2682 = vrot.lane.b32.xlu0 %v1586, 8
      %v2683 = vpop.permute.xlu0 %2682
      %2684 = vrot.lane.b32.xlu0 %v1589, 8
      %v2685 = vpop.permute.xlu0 %2684
      %2686 = vrot.lane.b32.xlu0 %v1633, 8
      %v2687 = vpop.permute.xlu0 %2686
      %2688 = vrot.lane.b32.xlu0 %v1636, 8
      %v2689 = vpop.permute.xlu0 %2688
      %2690 = vrot.lane.b32.xlu0 %v1680, 8
      %v2691 = vpop.permute.xlu0 %2690
      %2692 = vrot.lane.b32.xlu0 %v1683, 8
      %v2693 = vpop.permute.xlu0 %2692
      %2710 = vrot.lane.b32.xlu0 %v2031, 16
      %v2711 = vpop.permute.xlu0 %2710
      %2712 = vrot.lane.b32.xlu0 %v2034, 16
      %v2713 = vpop.permute.xlu0 %2712
      %2714 = vrot.lane.b32.xlu0 %v2078, 16
      %v2715 = vpop.permute.xlu0 %2714
      %2716 = vrot.lane.b32.xlu0 %v2081, 16
      %v2717 = vpop.permute.xlu0 %2716
      %2718 = vrot.lane.b32.xlu0 %v2125, 16
      %v2719 = vpop.permute.xlu0 %2718
      %2720 = vrot.lane.b32.xlu0 %v2128, 16
      %v2721 = vpop.permute.xlu0 %2720
      %2722 = vrot.lane.b32.xlu0 %v2172, 16
      %v2723 = vpop.permute.xlu0 %2722
      %2724 = vrot.lane.b32.xlu0 %v2175, 16
      %v2725 = vpop.permute.xlu0 %2724
      %2742 = vrot.lane.b32.xlu0 %v2523, 24
      %v2743 = vpop.permute.xlu0 %2742
      %2744 = vrot.lane.b32.xlu0 %v2526, 24
      %v2745 = vpop.permute.xlu0 %2744
      %2746 = vrot.lane.b32.xlu0 %v2570, 24
      %v2747 = vpop.permute.xlu0 %2746
      %2748 = vrot.lane.b32.xlu0 %v2573, 24
      %v2749 = vpop.permute.xlu0 %2748
      %2750 = vrot.lane.b32.xlu0 %v2617, 24
      %v2751 = vpop.permute.xlu0 %2750
      %2752 = vrot.lane.b32.xlu0 %v2620, 24
      %v2753 = vpop.permute.xlu0 %2752
      %2754 = vrot.lane.b32.xlu0 %v2664, 24
      %v2755 = vpop.permute.xlu0 %2754
      %2756 = vrot.lane.b32.xlu0 %v2667, 24
      %v2757 = vpop.permute.xlu0 %2756
      %v2766 = vsel %vm707, %v1047, %v2679
      %v2767 = vsel %vm707, %v1050, %v2681
      %v2768 = vsel %vm707, %v1094, %v2683
      %v2769 = vsel %vm707, %v1097, %v2685
      %v2770 = vsel %vm707, %v1141, %v2687
      %v2771 = vsel %vm707, %v1144, %v2689
      %v2772 = vsel %vm707, %v1188, %v2691
      %v2773 = vsel %vm707, %v1191, %v2693
      %v2774 = vsel %vm913, %v2766, %v2711
      %v2775 = vsel %vm913, %v2767, %v2713
      %v2776 = vsel %vm913, %v2768, %v2715
      %v2777 = vsel %vm913, %v2769, %v2717
      %v2778 = vsel %vm913, %v2770, %v2719
      %v2779 = vsel %vm913, %v2771, %v2721
      %v2780 = vsel %vm913, %v2772, %v2723
      %v2781 = vsel %vm913, %v2773, %v2725
      %vm2782 = vcmask 195584
      %v2783 = vsel %vm2782, %v2774, %v2743
      %v2784 = vsel %vm2782, %v2775, %v2745
      %v2785 = vsel %vm2782, %v2776, %v2747
      %v2786 = vsel %vm2782, %v2777, %v2749
      %v2787 = vsel %vm2782, %v2778, %v2751
      %v2788 = vsel %vm2782, %v2779, %v2753
      %v2789 = vsel %vm2782, %v2780, %v2755
      %v2790 = vsel %vm2782, %v2781, %v2757
      %v2791 = vld [vmem:[%s3 + $0x90] sm:$0xf]
      %v2792 = vld [vmem:[%s3 + $0x94] sm:$0xf]
      %v2793 = vld [vmem:[%s3 + $0x98] sm:$0xf]
      %v2794 = vld [vmem:[%s3 + $0x9c] sm:$0xf]
      %v2795 = vpack.c.bf16 %v2784, %v2783
      %v2796 = vpack.c.bf16 %v2786, %v2785
      %v2797 = vpack.c.bf16 %v2788, %v2787
      %v2798 = vpack.c.bf16 %v2790, %v2789
      %v2799 = vlaneseq
      %v2800 = vshrl.u32 %v2799, 7
      %v2801 = vsub.s32 3, %v2800
      %v2802 = vrot.slane %v232, %v2801
      %v2807 = vunpack.c.l.b16 %v2791
      %v2808 = vunpack.c.l.b16 %v2792
      %v2809 = vunpack.c.l.b16 %v2793
      %v2810 = vunpack.c.l.b16 %v2794
      %v2811 = vpack.c.b16 %v2808, %v2807
      %v2812 = vpack.c.b16 %v2810, %v2809
      %v2816 = vsel %vm622, %v2795, 0
      %v2819 = vsel %vm622, %v2796, 0
      %v2822 = vsel %vm622, %v2797, 0
      %v2825 = vsel %vm622, %v2798, 0
      %2827 = vmatprep.subr.bf16.mxu0 0
      %2828 = vmatpush1.bf16.msra.mxu0 %v2811
      %2829 = vmatprep.subr.bf16.mxu0 0
      %2830 = vmatpush1.bf16.msra.mxu0 %v2812
      %2831 = vmatprep.subr.bf16.mxu0 0
      %2832 = vmatpush1.bf16.msra.mxu0 0
      %2833 = vmatprep.subr.bf16.mxu0 0
      %2834 = vmatpush1.bf16.msra.mxu0 0
      %2835 = vmatprep.subr.bf16.mxu0 0
      %2836 = vmatpush1.bf16.msra.mxu0 0
      %2837 = vmatprep.subr.bf16.mxu0 0
      %2838 = vmatpush1.bf16.msra.mxu0 0
      %2839 = vmatprep.subr.bf16.mxu0 0
      %2840 = vmatpush1.bf16.msra.mxu0 0
      %2841 = vmatprep.subr.bf16.mxu0 0
      %2842 = vmatpush1.bf16.msra.mxu0 0
      %2843 = vmatprep.subr.bf16.mxu0 0
      %2844 = vmatpush1.bf16.msra.mxu0 0
      %2845 = vmatprep.subr.bf16.mxu0 0
      %2846 = vmatpush1.bf16.msra.mxu0 0
      %2847 = vmatprep.subr.bf16.mxu0 0
      %2848 = vmatpush1.bf16.msra.mxu0 0
      %2849 = vmatprep.subr.bf16.mxu0 0
      %2850 = vmatpush1.bf16.msra.mxu0 0
      %2851 = vmatprep.subr.bf16.mxu0 0
      %2852 = vmatpush1.bf16.msra.mxu0 0
      %2853 = vmatprep.subr.bf16.mxu0 0
      %2854 = vmatpush1.bf16.msra.mxu0 0
      %2855 = vmatprep.subr.bf16.mxu0 0
      %2856 = vmatpush1.bf16.msra.mxu0 0
      %2857 = vmatprep.subr.bf16.mxu0 0
      %2858 = vmatpush1.bf16.msra.mxu0 0
      %2859 = vmatprep.mubr.bf16.mxu0 0
      %2860 = vmatmul.mubr.bf16.gmra.mrb[0].mxu0 %v2816
      %v2861 = vpop.f32.mrb[0].mxu0
      %v2862 = vadd.f32 %v2802, %v2861
      %v2863 = vpop.f32.mrb[0].mxu0
      %v2864 = vpop.f32.mrb[0].mxu0
      %v2865 = vadd.f32 %v2802, %v2864
      %v2866 = vpop.f32.mrb[0].mxu0
      %2867 = vmatprep.mubr.bf16.mxu0 0
      %2868 = vmatmul.mubr.bf16.gmra.mrb[0].mxu0 %v2819
      %v2869 = vpop.f32.mrb[0].mxu0
      %v2870 = vadd.f32 %v2802, %v2869
      %v2871 = vpop.f32.mrb[0].mxu0
      %v2872 = vpop.f32.mrb[0].mxu0
      %v2873 = vadd.f32 %v2802, %v2872
      %v2874 = vpop.f32.mrb[0].mxu0
      %2875 = vmatprep.mubr.bf16.mxu0 0
      %2876 = vmatmul.mubr.bf16.gmra.mrb[0].mxu0 %v2822
      %v2877 = vpop.f32.mrb[0].mxu0
      %v2878 = vadd.f32 %v2802, %v2877
      %v2879 = vpop.f32.mrb[0].mxu0
      %v2880 = vpop.f32.mrb[0].mxu0
      %v2881 = vadd.f32 %v2802, %v2880
      %v2882 = vpop.f32.mrb[0].mxu0
      %2883 = vmatprep.mubr.bf16.mxu0 0
      %2884 = vmatmul.mubr.bf16.gmra.mrb[0].mxu0 %v2825
      %v2885 = vpop.f32.mrb[0].mxu0
      %v2886 = vadd.f32 %v2802, %v2885
      %v2887 = vpop.f32.mrb[0].mxu0
      %v2888 = vpop.f32.mrb[0].mxu0
      %v2889 = vadd.f32 %v2802, %v2888
      %v2890 = vpop.f32.mrb[0].mxu0
      %2891 = vdwg.mxu0
      %v2892 = vadd.f32 %v2862, %v590
      %v2893 = vadd.f32 %v2865, %v591
      %v2894 = vadd.f32 %v2870, %v592
      %v2895 = vadd.f32 %v2873, %v593
      %v2896 = vadd.f32 %v2878, %v594
      %v2897 = vadd.f32 %v2881, %v595
      %v2898 = vadd.f32 %v2886, %v596
      %v2899 = vadd.f32 %v2889, %v597
      %v2900 = vsel %vm622, %v2892, 0.0
      %2901 = vadd.xlane.f32.xlu0 %v2900
      %v2902 = vpop.xlane.xlu0 %2901
      %v2903 = vsel %vm622, %v2893, 0.0
      %2904 = vadd.xlane.f32.xlu0 %v2903
      %v2905 = vpop.xlane.xlu0 %2904
      %v2906 = vsel %vm622, %v2894, 0.0
      %2907 = vadd.xlane.f32.xlu0 %v2906
      %v2908 = vpop.xlane.xlu0 %2907
      %v2909 = vsel %vm622, %v2895, 0.0
      %2910 = vadd.xlane.f32.xlu0 %v2909
      %v2911 = vpop.xlane.xlu0 %2910
      %v2912 = vsel %vm622, %v2896, 0.0
      %2913 = vadd.xlane.f32.xlu0 %v2912
      %v2914 = vpop.xlane.xlu0 %2913
      %v2915 = vsel %vm622, %v2897, 0.0
      %2916 = vadd.xlane.f32.xlu0 %v2915
      %v2917 = vpop.xlane.xlu0 %2916
      %v2918 = vsel %vm622, %v2898, 0.0
      %2919 = vadd.xlane.f32.xlu0 %v2918
      %v2920 = vpop.xlane.xlu0 %2919
      %v2921 = vsel %vm622, %v2899, 0.0
      %2922 = vadd.xlane.f32.xlu0 %v2921
      %v2923 = vpop.xlane.xlu0 %2922
      %v2924 = vrcp.pop 32.0
      %v2925 = vmul.f32 %v2902, %v2924
      %v2926 = vmul.f32 %v2905, %v2924
      %v2927 = vmul.f32 %v2908, %v2924
      %v2928 = vmul.f32 %v2911, %v2924
      %v2929 = vmul.f32 %v2914, %v2924
      %v2930 = vmul.f32 %v2917, %v2924
      %v2931 = vmul.f32 %v2920, %v2924
      %v2932 = vmul.f32 %v2923, %v2924
      %v2933 = vsub.f32 %v2892, %v2925
      %v2934 = vsub.f32 %v2893, %v2926
      %v2935 = vsub.f32 %v2894, %v2927
      %v2936 = vsub.f32 %v2895, %v2928
      %v2937 = vsub.f32 %v2896, %v2929
      %v2938 = vsub.f32 %v2897, %v2930
      %v2939 = vsub.f32 %v2898, %v2931
      %v2940 = vsub.f32 %v2899, %v2932
      %v2941 = vmul.f32 %v2933, %v2933
      %v2942 = vmul.f32 %v2934, %v2934
      %v2943 = vmul.f32 %v2935, %v2935
      %v2944 = vmul.f32 %v2936, %v2936
      %v2945 = vmul.f32 %v2937, %v2937
      %v2946 = vmul.f32 %v2938, %v2938
      %v2947 = vmul.f32 %v2939, %v2939
      %v2948 = vmul.f32 %v2940, %v2940
      %v2949 = vsel %vm622, %v2941, 0.0
      %2950 = vadd.xlane.f32.xlu0 %v2949
      %v2951 = vpop.xlane.xlu0 %2950
      %v2952 = vsel %vm622, %v2942, 0.0
      %2953 = vadd.xlane.f32.xlu0 %v2952
      %v2954 = vpop.xlane.xlu0 %2953
      %v2955 = vsel %vm622, %v2943, 0.0
      %2956 = vadd.xlane.f32.xlu0 %v2955
      %v2957 = vpop.xlane.xlu0 %2956
      %v2958 = vsel %vm622, %v2944, 0.0
      %2959 = vadd.xlane.f32.xlu0 %v2958
      %v2960 = vpop.xlane.xlu0 %2959
      %v2961 = vsel %vm622, %v2945, 0.0
      %2962 = vadd.xlane.f32.xlu0 %v2961
      %v2963 = vpop.xlane.xlu0 %2962
      %v2964 = vsel %vm622, %v2946, 0.0
      %2965 = vadd.xlane.f32.xlu0 %v2964
      %v2966 = vpop.xlane.xlu0 %2965
      %v2967 = vsel %vm622, %v2947, 0.0
      %2968 = vadd.xlane.f32.xlu0 %v2967
      %v2969 = vpop.xlane.xlu0 %2968
      %v2970 = vsel %vm622, %v2948, 0.0
      %2971 = vadd.xlane.f32.xlu0 %v2970
      %v2972 = vpop.xlane.xlu0 %2971
      %v2973 = vmul.f32 %v2951, %v2924
      %v2974 = vmul.f32 %v2954, %v2924
      %v2975 = vmul.f32 %v2957, %v2924
      %v2976 = vmul.f32 %v2960, %v2924
      %v2977 = vmul.f32 %v2963, %v2924
      %v2978 = vmul.f32 %v2966, %v2924
      %v2979 = vmul.f32 %v2969, %v2924
      %v2980 = vmul.f32 %v2972, %v2924
      %v2981 = vadd.f32 %v2973, 1e-05
      %v2982 = vadd.f32 %v2974, 1e-05
      %v2983 = vadd.f32 %v2975, 1e-05
      %v2984 = vadd.f32 %v2976, 1e-05
      %v2985 = vadd.f32 %v2977, 1e-05
      %v2986 = vadd.f32 %v2978, 1e-05
      %v2987 = vadd.f32 %v2979, 1e-05
      %v2988 = vadd.f32 %v2980, 1e-05
      %v2989 = vrsqrt.pop %v2981
      %v2990 = vrsqrt.pop %v2982
      %v2991 = vrsqrt.pop %v2983
      %v2992 = vrsqrt.pop %v2984
      %v2993 = vrsqrt.pop %v2985
      %v2994 = vrsqrt.pop %v2986
      %v2995 = vrsqrt.pop %v2987
      %v2996 = vrsqrt.pop %v2988
      %v2997 = vmul.f32 %v2933, %v2989
      %v2998 = vmul.f32 %v2934, %v2990
      %v2999 = vmul.f32 %v2935, %v2991
      %v3000 = vmul.f32 %v2936, %v2992
      %v3001 = vmul.f32 %v2937, %v2993
      %v3002 = vmul.f32 %v2938, %v2994
      %v3003 = vmul.f32 %v2939, %v2995
      %v3004 = vmul.f32 %v2940, %v2996
      %v3005 = vlaneseq
      %v3006 = vshrl.u32 %v3005, 7
      %v3007 = vsub.s32 4, %v3006
      %v3008 = vrot.slane %v232, %v3007
      %v3009 = vmul.f32 %v2997, %v3008
      %v3010 = vmul.f32 %v2998, %v3008
      %v3011 = vmul.f32 %v2999, %v3008
      %v3012 = vmul.f32 %v3000, %v3008
      %v3013 = vmul.f32 %v3001, %v3008
      %v3014 = vmul.f32 %v3002, %v3008
      %v3015 = vmul.f32 %v3003, %v3008
      %v3016 = vmul.f32 %v3004, %v3008
      %v3017 = vlaneseq
      %v3018 = vshrl.u32 %v3017, 7
      %v3019 = vsub.s32 5, %v3018
      %v3020 = vrot.slane %v232, %v3019
      %v3021 = vadd.f32 %v3009, %v3020
      %v3022 = vadd.f32 %v3010, %v3020
      %v3023 = vadd.f32 %v3011, %v3020
      %v3024 = vadd.f32 %v3012, %v3020
      %v3025 = vadd.f32 %v3013, %v3020
      %v3026 = vadd.f32 %v3014, %v3020
      %v3027 = vadd.f32 %v3015, %v3020
      %v3028 = vadd.f32 %v3016, %v3020
      %v3029 = vld [vmem:[%s3 + $0xa0] sm:$0xf]
      %v3030 = vld [vmem:[%s3 + $0xa4] sm:$0xf]
      %v3031 = vld [vmem:[%s3 + $0xa8] sm:$0xf]
      %v3032 = vld [vmem:[%s3 + $0xac] sm:$0xf]
      %v3033 = vpack.c.bf16 %v3022, %v3021
      %v3034 = vpack.c.bf16 %v3024, %v3023
      %v3035 = vpack.c.bf16 %v3026, %v3025
      %v3036 = vpack.c.bf16 %v3028, %v3027
      %v3037 = vlaneseq
      %v3038 = vshrl.u32 %v3037, 7
      %v3039 = vsub.s32 6, %v3038
      %v3040 = vrot.slane %v232, %v3039
      %v3045 = vunpack.c.l.b16 %v3029
      %v3046 = vunpack.c.l.b16 %v3030
      %v3047 = vunpack.c.l.b16 %v3031
      %v3048 = vunpack.c.l.b16 %v3032
      %v3049 = vpack.c.b16 %v3046, %v3045
      %v3050 = vpack.c.b16 %v3048, %v3047
      %v3054 = vsel %vm622, %v3033, 0
      %v3057 = vsel %vm622, %v3034, 0
      %v3060 = vsel %vm622, %v3035, 0
      %v3063 = vsel %vm622, %v3036, 0
      %3065 = vmatprep.subr.bf16.mxu0 0
      %3066 = vmatpush1.bf16.msra.mxu0 %v3049
      %3067 = vmatprep.subr.bf16.mxu0 0
      %3068 = vmatpush1.bf16.msra.mxu0 %v3050
      %3069 = vmatprep.subr.bf16.mxu0 0
      %3070 = vmatpush1.bf16.msra.mxu0 0
      %3071 = vmatprep.subr.bf16.mxu0 0
      %3072 = vmatpush1.bf16.msra.mxu0 0
      %3073 = vmatprep.subr.bf16.mxu0 0
      %3074 = vmatpush1.bf16.msra.mxu0 0
      %3075 = vmatprep.subr.bf16.mxu0 0
      %3076 = vmatpush1.bf16.msra.mxu0 0
      %3077 = vmatprep.subr.bf16.mxu0 0
      %3078 = vmatpush1.bf16.msra.mxu0 0
      %3079 = vmatprep.subr.bf16.mxu0 0
      %3080 = vmatpush1.bf16.msra.mxu0 0
      %3081 = vmatprep.subr.bf16.mxu0 0
      %3082 = vmatpush1.bf16.msra.mxu0 0
      %3083 = vmatprep.subr.bf16.mxu0 0
      %3084 = vmatpush1.bf16.msra.mxu0 0
      %3085 = vmatprep.subr.bf16.mxu0 0
      %3086 = vmatpush1.bf16.msra.mxu0 0
      %3087 = vmatprep.subr.bf16.mxu0 0
      %3088 = vmatpush1.bf16.msra.mxu0 0
      %3089 = vmatprep.subr.bf16.mxu0 0
      %3090 = vmatpush1.bf16.msra.mxu0 0
      %3091 = vmatprep.subr.bf16.mxu0 0
      %3092 = vmatpush1.bf16.msra.mxu0 0
      %3093 = vmatprep.subr.bf16.mxu0 0
      %3094 = vmatpush1.bf16.msra.mxu0 0
      %3095 = vmatprep.subr.bf16.mxu0 0
      %3096 = vmatpush1.bf16.msra.mxu0 0
      %3097 = vmatprep.mubr.bf16.mxu0 0
      %3098 = vmatmul.mubr.bf16.gmra.mrb[0].mxu0 %v3054
      %v3099 = vpop.f32.mrb[0].mxu0
      %v3100 = vadd.f32 %v3040, %v3099
      %v3101 = vpop.f32.mrb[0].mxu0
      %v3102 = vpop.f32.mrb[0].mxu0
      %v3103 = vadd.f32 %v3040, %v3102
      %v3104 = vpop.f32.mrb[0].mxu0
      %3105 = vmatprep.mubr.bf16.mxu0 0
      %3106 = vmatmul.mubr.bf16.gmra.mrb[0].mxu0 %v3057
      %v3107 = vpop.f32.mrb[0].mxu0
      %v3108 = vadd.f32 %v3040, %v3107
      %v3109 = vpop.f32.mrb[0].mxu0
      %v3110 = vpop.f32.mrb[0].mxu0
      %v3111 = vadd.f32 %v3040, %v3110
      %v3112 = vpop.f32.mrb[0].mxu0
      %3113 = vmatprep.mubr.bf16.mxu0 0
      %3114 = vmatmul.mubr.bf16.gmra.mrb[0].mxu0 %v3060
      %v3115 = vpop.f32.mrb[0].mxu0
      %v3116 = vadd.f32 %v3040, %v3115
      %v3117 = vpop.f32.mrb[0].mxu0
      %v3118 = vpop.f32.mrb[0].mxu0
      %v3119 = vadd.f32 %v3040, %v3118
      %v3120 = vpop.f32.mrb[0].mxu0
      %3121 = vmatprep.mubr.bf16.mxu0 0
      %3122 = vmatmul.mubr.bf16.gmra.mrb[0].mxu0 %v3063
      %v3123 = vpop.f32.mrb[0].mxu0
      %v3124 = vadd.f32 %v3040, %v3123
      %v3125 = vpop.f32.mrb[0].mxu0
      %v3126 = vpop.f32.mrb[0].mxu0
      %v3127 = vadd.f32 %v3040, %v3126
      %v3128 = vpop.f32.mrb[0].mxu0
      %3129 = vdwg.mxu0
      %v3130 = vmax.f32 %v3100, 0.0
      %v3131 = vmax.f32 %v3103, 0.0
      %v3132 = vmax.f32 %v3108, 0.0
      %v3133 = vmax.f32 %v3111, 0.0
      %v3134 = vmax.f32 %v3116, 0.0
      %v3135 = vmax.f32 %v3119, 0.0
      %v3136 = vmax.f32 %v3124, 0.0
      %v3137 = vmax.f32 %v3127, 0.0
      %v3138 = vld [vmem:[%s3 + $0xb0] sm:$0xf]
      %v3139 = vld [vmem:[%s3 + $0xb4] sm:$0xf]
      %v3140 = vld [vmem:[%s3 + $0xb8] sm:$0xf]
      %v3141 = vld [vmem:[%s3 + $0xbc] sm:$0xf]
      %v3142 = vld [vmem:[%s3 + $0xc0] sm:$0xf]
      %v3143 = vld [vmem:[%s3 + $0xc4] sm:$0xf]
      %v3144 = vld [vmem:[%s3 + $0xc8] sm:$0xf]
      %v3145 = vld [vmem:[%s3 + $0xcc] sm:$0xf]
      %v3146 = vpack.c.bf16 %v3131, %v3130
      %v3147 = vpack.c.bf16 %v3133, %v3132
      %v3148 = vpack.c.bf16 %v3135, %v3134
      %v3149 = vpack.c.bf16 %v3137, %v3136
      %v3150 = vlaneseq
      %v3151 = vshrl.u32 %v3150, 7
      %v3152 = vsub.s32 7, %v3151
      %v3153 = vrot.slane %v232, %v3152
      %v3162 = vunpack.c.l.b16 %v3138
      %v3163 = vunpack.c.l.b16 %v3139
      %v3164 = vunpack.c.l.b16 %v3140
      %v3165 = vunpack.c.l.b16 %v3141
      %v3166 = vunpack.c.l.b16 %v3142
      %v3167 = vunpack.c.l.b16 %v3143
      %v3168 = vunpack.c.l.b16 %v3144
      %v3169 = vunpack.c.l.b16 %v3145
      %v3170 = vpack.c.b16 %v3163, %v3162
      %v3171 = vpack.c.b16 %v3165, %v3164
      %v3172 = vpack.c.b16 %v3167, %v3166
      %v3173 = vpack.c.b16 %v3169, %v3168
      %v3179 = vsel %vm379, %v3146, 0
      %v3182 = vsel %vm379, %v3147, 0
      %v3185 = vsel %vm379, %v3148, 0
      %v3188 = vsel %vm379, %v3149, 0
      %3190 = vmatprep.subr.bf16.mxu0 0
      %3191 = vmatpush1.bf16.msra.mxu0 %v3170
      %3192 = vmatprep.subr.bf16.mxu0 0
      %3193 = vmatpush1.bf16.msra.mxu0 %v3171
      %3194 = vmatprep.subr.bf16.mxu0 0
      %3195 = vmatpush1.bf16.msra.mxu0 %v3172
      %3196 = vmatprep.subr.bf16.mxu0 0
      %3197 = vmatpush1.bf16.msra.mxu0 %v3173
      %3198 = vmatprep.subr.bf16.mxu0 0
      %3199 = vmatpush1.bf16.msra.mxu0 0
      %3200 = vmatprep.subr.bf16.mxu0 0
      %3201 = vmatpush1.bf16.msra.mxu0 0
      %3202 = vmatprep.subr.bf16.mxu0 0
      %3203 = vmatpush1.bf16.msra.mxu0 0
      %3204 = vmatprep.subr.bf16.mxu0 0
      %3205 = vmatpush1.bf16.msra.mxu0 0
      %3206 = vmatprep.subr.bf16.mxu0 0
      %3207 = vmatpush1.bf16.msra.mxu0 0
      %3208 = vmatprep.subr.bf16.mxu0 0
      %3209 = vmatpush1.bf16.msra.mxu0 0
      %3210 = vmatprep.subr.bf16.mxu0 0
      %3211 = vmatpush1.bf16.msra.mxu0 0
      %3212 = vmatprep.subr.bf16.mxu0 0
      %3213 = vmatpush1.bf16.msra.mxu0 0
      %3214 = vmatprep.subr.bf16.mxu0 0
      %3215 = vmatpush1.bf16.msra.mxu0 0
      %3216 = vmatprep.subr.bf16.mxu0 0
      %3217 = vmatpush1.bf16.msra.mxu0 0
      %3218 = vmatprep.subr.bf16.mxu0 0
      %3219 = vmatpush1.bf16.msra.mxu0 0
      %3220 = vmatprep.subr.bf16.mxu0 0
      %3221 = vmatpush1.bf16.msra.mxu0 0
      %3222 = vmatprep.mubr.bf16.mxu0 0
      %3223 = vmatmul.mubr.bf16.gmra.mrb[0].mxu0 %v3179
      %v3224 = vpop.f32.mrb[0].mxu0
      %v3225 = vadd.f32 %v3153, %v3224
      %v3226 = vpop.f32.mrb[0].mxu0
      %v3227 = vpop.f32.mrb[0].mxu0
      %v3228 = vadd.f32 %v3153, %v3227
      %v3229 = vpop.f32.mrb[0].mxu0
      %3230 = vmatprep.mubr.bf16.mxu0 0
      %3231 = vmatmul.mubr.bf16.gmra.mrb[0].mxu0 %v3182
      %v3232 = vpop.f32.mrb[0].mxu0
      %v3233 = vadd.f32 %v3153, %v3232
      %v3234 = vpop.f32.mrb[0].mxu0
      %v3235 = vpop.f32.mrb[0].mxu0
      %v3236 = vadd.f32 %v3153, %v3235
      %v3237 = vpop.f32.mrb[0].mxu0
      %3238 = vmatprep.mubr.bf16.mxu0 0
      %3239 = vmatmul.mubr.bf16.gmra.mrb[0].mxu0 %v3185
      %v3240 = vpop.f32.mrb[0].mxu0
      %v3241 = vadd.f32 %v3153, %v3240
      %v3242 = vpop.f32.mrb[0].mxu0
      %v3243 = vpop.f32.mrb[0].mxu0
      %v3244 = vadd.f32 %v3153, %v3243
      %v3245 = vpop.f32.mrb[0].mxu0
      %3246 = vmatprep.mubr.bf16.mxu0 0
      %3247 = vmatmul.mubr.bf16.gmra.mrb[0].mxu0 %v3188
      %v3248 = vpop.f32.mrb[0].mxu0
      %v3249 = vadd.f32 %v3153, %v3248
      %v3250 = vpop.f32.mrb[0].mxu0
      %v3251 = vpop.f32.mrb[0].mxu0
      %v3252 = vadd.f32 %v3153, %v3251
      %v3253 = vpop.f32.mrb[0].mxu0
      %3254 = vdwg.mxu0
      %v3255 = vadd.f32 %v3225, %v3021
      %v3256 = vadd.f32 %v3228, %v3022
      %v3257 = vadd.f32 %v3233, %v3023
      %v3258 = vadd.f32 %v3236, %v3024
      %v3259 = vadd.f32 %v3241, %v3025
      %v3260 = vadd.f32 %v3244, %v3026
      %v3261 = vadd.f32 %v3249, %v3027
      %v3262 = vadd.f32 %v3252, %v3028
      %v3263 = vsel %vm622, %v3255, 0.0
      %3264 = vadd.xlane.f32.xlu0 %v3263
      %v3265 = vpop.xlane.xlu0 %3264
      %v3266 = vsel %vm622, %v3256, 0.0
      %3267 = vadd.xlane.f32.xlu0 %v3266
      %v3268 = vpop.xlane.xlu0 %3267
      %v3269 = vsel %vm622, %v3257, 0.0
      %3270 = vadd.xlane.f32.xlu0 %v3269
      %v3271 = vpop.xlane.xlu0 %3270
      %v3272 = vsel %vm622, %v3258, 0.0
      %3273 = vadd.xlane.f32.xlu0 %v3272
      %v3274 = vpop.xlane.xlu0 %3273
      %v3275 = vsel %vm622, %v3259, 0.0
      %3276 = vadd.xlane.f32.xlu0 %v3275
      %v3277 = vpop.xlane.xlu0 %3276
      %v3278 = vsel %vm622, %v3260, 0.0
      %3279 = vadd.xlane.f32.xlu0 %v3278
      %v3280 = vpop.xlane.xlu0 %3279
      %v3281 = vsel %vm622, %v3261, 0.0
      %3282 = vadd.xlane.f32.xlu0 %v3281
      %v3283 = vpop.xlane.xlu0 %3282
      %v3284 = vsel %vm622, %v3262, 0.0
      %3285 = vadd.xlane.f32.xlu0 %v3284
      %v3286 = vpop.xlane.xlu0 %3285
      %v3287 = vmul.f32 %v3265, %v2924
      %v3288 = vmul.f32 %v3268, %v2924
      %v3289 = vmul.f32 %v3271, %v2924
      %v3290 = vmul.f32 %v3274, %v2924
      %v3291 = vmul.f32 %v3277, %v2924
      %v3292 = vmul.f32 %v3280, %v2924
      %v3293 = vmul.f32 %v3283, %v2924
      %v3294 = vmul.f32 %v3286, %v2924
      %v3295 = vsub.f32 %v3255, %v3287
      %v3296 = vsub.f32 %v3256, %v3288
      %v3297 = vsub.f32 %v3257, %v3289
      %v3298 = vsub.f32 %v3258, %v3290
      %v3299 = vsub.f32 %v3259, %v3291
      %v3300 = vsub.f32 %v3260, %v3292
      %v3301 = vsub.f32 %v3261, %v3293
      %v3302 = vsub.f32 %v3262, %v3294
      %v3303 = vmul.f32 %v3295, %v3295
      %v3304 = vmul.f32 %v3296, %v3296
      %v3305 = vmul.f32 %v3297, %v3297
      %v3306 = vmul.f32 %v3298, %v3298
      %v3307 = vmul.f32 %v3299, %v3299
      %v3308 = vmul.f32 %v3300, %v3300
      %v3309 = vmul.f32 %v3301, %v3301
      %v3310 = vmul.f32 %v3302, %v3302
      %v3311 = vsel %vm622, %v3303, 0.0
      %3312 = vadd.xlane.f32.xlu0 %v3311
      %v3313 = vpop.xlane.xlu0 %3312
      %v3314 = vsel %vm622, %v3304, 0.0
      %3315 = vadd.xlane.f32.xlu0 %v3314
      %v3316 = vpop.xlane.xlu0 %3315
      %v3317 = vsel %vm622, %v3305, 0.0
      %3318 = vadd.xlane.f32.xlu0 %v3317
      %v3319 = vpop.xlane.xlu0 %3318
      %v3320 = vsel %vm622, %v3306, 0.0
      %3321 = vadd.xlane.f32.xlu0 %v3320
      %v3322 = vpop.xlane.xlu0 %3321
      %v3323 = vsel %vm622, %v3307, 0.0
      %3324 = vadd.xlane.f32.xlu0 %v3323
      %v3325 = vpop.xlane.xlu0 %3324
      %v3326 = vsel %vm622, %v3308, 0.0
      %3327 = vadd.xlane.f32.xlu0 %v3326
      %v3328 = vpop.xlane.xlu0 %3327
      %v3329 = vsel %vm622, %v3309, 0.0
      %3330 = vadd.xlane.f32.xlu0 %v3329
      %v3331 = vpop.xlane.xlu0 %3330
      %v3332 = vsel %vm622, %v3310, 0.0
      %3333 = vadd.xlane.f32.xlu0 %v3332
      %v3334 = vpop.xlane.xlu0 %3333
      %v3335 = vmul.f32 %v3313, %v2924
      %v3336 = vmul.f32 %v3316, %v2924
      %v3337 = vmul.f32 %v3319, %v2924
      %v3338 = vmul.f32 %v3322, %v2924
      %v3339 = vmul.f32 %v3325, %v2924
      %v3340 = vmul.f32 %v3328, %v2924
      %v3341 = vmul.f32 %v3331, %v2924
      %v3342 = vmul.f32 %v3334, %v2924
      %v3343 = vadd.f32 %v3335, 1e-05
      %v3344 = vadd.f32 %v3336, 1e-05
      %v3345 = vadd.f32 %v3337, 1e-05
      %v3346 = vadd.f32 %v3338, 1e-05
      %v3347 = vadd.f32 %v3339, 1e-05
      %v3348 = vadd.f32 %v3340, 1e-05
      %v3349 = vadd.f32 %v3341, 1e-05
      %v3350 = vadd.f32 %v3342, 1e-05
      %v3351 = vrsqrt.pop %v3343
      %v3352 = vrsqrt.pop %v3344
      %v3353 = vrsqrt.pop %v3345
      %v3354 = vrsqrt.pop %v3346
      %v3355 = vrsqrt.pop %v3347
      %v3356 = vrsqrt.pop %v3348
      %v3357 = vrsqrt.pop %v3349
      %v3358 = vrsqrt.pop %v3350
      %v3359 = vmul.f32 %v3295, %v3351
      %v3360 = vmul.f32 %v3296, %v3352
      %v3361 = vmul.f32 %v3297, %v3353
      %v3362 = vmul.f32 %v3298, %v3354
      %v3363 = vmul.f32 %v3299, %v3355
      %v3364 = vmul.f32 %v3300, %v3356
      %v3365 = vmul.f32 %v3301, %v3357
      %v3366 = vmul.f32 %v3302, %v3358
      %v3367 = vlaneseq
      %v3368 = vshrl.u32 %v3367, 7
      %v3369 = vsub.s32 0, %v3368
      %v3370 = vrot.slane %v233, %v3369
      %v3371 = vmul.f32 %v3359, %v3370
      %v3372 = vmul.f32 %v3360, %v3370
      %v3373 = vmul.f32 %v3361, %v3370
      %v3374 = vmul.f32 %v3362, %v3370
      %v3375 = vmul.f32 %v3363, %v3370
      %v3376 = vmul.f32 %v3364, %v3370
      %v3377 = vmul.f32 %v3365, %v3370
      %v3378 = vmul.f32 %v3366, %v3370
      %v3379 = vlaneseq
      %v3380 = vshrl.u32 %v3379, 7
      %v3381 = vsub.s32 1, %v3380
      %v3382 = vrot.slane %v233, %v3381
      %v3383 = vadd.f32 %v3371, %v3382
      %v3384 = vadd.f32 %v3372, %v3382
      %v3385 = vadd.f32 %v3373, %v3382
      %v3386 = vadd.f32 %v3374, %v3382
      %v3387 = vadd.f32 %v3375, %v3382
      %v3388 = vadd.f32 %v3376, %v3382
      %v3389 = vadd.f32 %v3377, %v3382
      %v3390 = vadd.f32 %v3378, %v3382
      %v3391 = vld [vmem:[%s2] sm:$0xff]
      %v3392 = vld [vmem:[%s3 + $0xd0] sm:$0xf]
      %v3393 = vld [vmem:[%s3 + $0xd4] sm:$0xf]
      %v3394 = vld [vmem:[%s3 + $0xd8] sm:$0xf]
      %v3395 = vld [vmem:[%s3 + $0xdc] sm:$0xf]
      %v3396 = vpack.c.bf16 %v3391, %v3391
      %v3397 = vlaneseq
      %v3398 = vshrl.u32 %v3397, 7
      %v3399 = vsub.s32 2, %v3398
      %v3400 = vrot.slane %v233, %v3399
      %v3405 = vunpack.c.l.b16 %v3392
      %v3406 = vunpack.c.l.b16 %v3393
      %v3407 = vunpack.c.l.b16 %v3394
      %v3408 = vunpack.c.l.b16 %v3395
      %v3409 = vpack.c.b16 %v3406, %v3405
      %v3410 = vpack.c.b16 %v3408, %v3407
      %v3414 = vsel %vm622, %v3396, 0
      %3416 = vmatprep.subr.bf16.mxu0 0
      %3417 = vmatpush1.bf16.msra.mxu0 %v3409
      %3418 = vmatprep.subr.bf16.mxu0 0
      %3419 = vmatpush1.bf16.msra.mxu0 %v3410
      %3420 = vmatprep.subr.bf16.mxu0 0
      %3421 = vmatpush1.bf16.msra.mxu0 0
      %3422 = vmatprep.subr.bf16.mxu0 0
      %3423 = vmatpush1.bf16.msra.mxu0 0
      %3424 = vmatprep.subr.bf16.mxu0 0
      %3425 = vmatpush1.bf16.msra.mxu0 0
      %3426 = vmatprep.subr.bf16.mxu0 0
      %3427 = vmatpush1.bf16.msra.mxu0 0
      %3428 = vmatprep.subr.bf16.mxu0 0
      %3429 = vmatpush1.bf16.msra.mxu0 0
      %3430 = vmatprep.subr.bf16.mxu0 0
      %3431 = vmatpush1.bf16.msra.mxu0 0
      %3432 = vmatprep.subr.bf16.mxu0 0
      %3433 = vmatpush1.bf16.msra.mxu0 0
      %3434 = vmatprep.subr.bf16.mxu0 0
      %3435 = vmatpush1.bf16.msra.mxu0 0
      %3436 = vmatprep.subr.bf16.mxu0 0
      %3437 = vmatpush1.bf16.msra.mxu0 0
      %3438 = vmatprep.subr.bf16.mxu0 0
      %3439 = vmatpush1.bf16.msra.mxu0 0
      %3440 = vmatprep.subr.bf16.mxu0 0
      %3441 = vmatpush1.bf16.msra.mxu0 0
      %3442 = vmatprep.subr.bf16.mxu0 0
      %3443 = vmatpush1.bf16.msra.mxu0 0
      %3444 = vmatprep.subr.bf16.mxu0 0
      %3445 = vmatpush1.bf16.msra.mxu0 0
      %3446 = vmatprep.subr.bf16.mxu0 0
      %3447 = vmatpush1.bf16.msra.mxu0 0
      %3448 = vmatprep.mubr.bf16.mxu0 0
      %3449 = vmatmul.mubr.bf16.gmra.mrb[0].mxu0 %v3414
      %v3450 = vpop.f32.mrb[0].mxu0
      %v3451 = vadd.f32 %v3400, %v3450
      %v3452 = vpop.f32.mrb[0].mxu0
      %v3453 = vpop.f32.mrb[0].mxu0
      %v3454 = vpop.f32.mrb[0].mxu0
      %3455 = vdwg.mxu0
      %v3456 = vpack.c.bf16 %v3451, %v3451
      %3458 = vrot.lane.b32.xlu0 %v3456, 96
      %v3459 = vpop.permute.xlu0 %3458
      %v3461 = vsel %vm707, %v3456, 0
      %v3464 = vsel %vm707, %v3459, 0
      %3466 = vmatprep.subr.bf16.mxu0 0
      %3467 = vmatpush1.bf16.xpose.msra.mxu0 %v3464
      %3468 = vmatprep.subr.bf16.mxu0 0
      %3469 = vmatpush1.bf16.xpose.msra.mxu0 0
      %3470 = vmatprep.subr.bf16.mxu0 0
      %3471 = vmatpush1.bf16.xpose.msra.mxu0 0
      %3472 = vmatprep.subr.bf16.mxu0 0
      %3473 = vmatpush1.bf16.xpose.msra.mxu0 0
      %3474 = vmatprep.subr.bf16.mxu0 0
      %3475 = vmatpush1.bf16.xpose.msra.mxu0 0
      %3476 = vmatprep.subr.bf16.mxu0 0
      %3477 = vmatpush1.bf16.xpose.msra.mxu0 0
      %3478 = vmatprep.subr.bf16.mxu0 0
      %3479 = vmatpush1.bf16.xpose.msra.mxu0 0
      %3480 = vmatprep.subr.bf16.mxu0 0
      %3481 = vmatpush1.bf16.xpose.msra.mxu0 0
      %3482 = vmatprep.subr.bf16.mxu0 0
      %3483 = vmatpush1.bf16.xpose.msra.mxu0 0
      %3484 = vmatprep.subr.bf16.mxu0 0
      %3485 = vmatpush1.bf16.xpose.msra.mxu0 0
      %3486 = vmatprep.subr.bf16.mxu0 0
      %3487 = vmatpush1.bf16.xpose.msra.mxu0 0
      %3488 = vmatprep.subr.bf16.mxu0 0
      %3489 = vmatpush1.bf16.xpose.msra.mxu0 0
      %3490 = vmatprep.subr.bf16.mxu0 0
      %3491 = vmatpush1.bf16.xpose.msra.mxu0 0
      %3492 = vmatprep.subr.bf16.mxu0 0
      %3493 = vmatpush1.bf16.xpose.msra.mxu0 0
      %3494 = vmatprep.subr.bf16.mxu0 0
      %3495 = vmatpush1.bf16.xpose.msra.mxu0 0
      %3496 = vmatprep.subr.bf16.mxu0 0
      %3497 = vmatpush1.bf16.xpose.msra.mxu0 0
      %3498 = vmatprep.mubr.bf16.mxu0 0
      %3499 = vmatmul.mubr.bf16.gmra.mrb[0].mxu0 %v3461
      %v3500 = vpop.f32.mrb[0].mxu0
      %v3501 = vadd.f32 0.0, %v3500
      %v3502 = vpop.f32.mrb[0].mxu0
      %v3503 = vpop.f32.mrb[0].mxu0
      %v3504 = vpop.f32.mrb[0].mxu0
      %3505 = vdwg.mxu0
      %v3506 = vmul.f32 %v3501, 0.35355338
      %v3507 = vsel %vm707, %v3506, -inf
      %3508 = vmax.xlane.f32.xlu0 %v3507
      %v3509 = vpop.xlane.xlu0 %3508
      %v3510 = vsub.f32 %v3506, %v3509
      %v3511 = vmul.f32 %v3510, 1.442695
      %v3512 = vpow.pop %v3511
      %v3513 = vsel %vm707, %v3512, 0.0
      %3514 = vadd.xlane.f32.xlu0 %v3513
      %v3515 = vpop.xlane.xlu0 %3514
      %v3516 = vrcp.pop %v3515
      %v3517 = vmul.f32 %v3512, %v3516
      %v3518 = vpack.c.bf16 %v3517, %v3517
      %3519 = vrot.lane.b32.xlu0 %v3456, 64
      %v3520 = vpop.permute.xlu0 %3519
      %v3522 = vsel %vm707, %v3518, 0
      %vm3524 = vcmask 1043456
      %v3526 = vsel %vm3524, %v3520, 0
      %3528 = vmatprep.subr.bf16.mxu0 0
      %3529 = vmatpush1.bf16.msra.mxu0 %v3526
      %3530 = vmatprep.subr.bf16.mxu0 0
      %3531 = vmatpush1.bf16.msra.mxu0 0
      %3532 = vmatprep.subr.bf16.mxu0 0
      %3533 = vmatpush1.bf16.msra.mxu0 0
      %3534 = vmatprep.subr.bf16.mxu0 0
      %3535 = vmatpush1.bf16.msra.mxu0 0
      %3536 = vmatprep.subr.bf16.mxu0 0
      %3537 = vmatpush1.bf16.msra.mxu0 0
      %3538 = vmatprep.subr.bf16.mxu0 0
      %3539 = vmatpush1.bf16.msra.mxu0 0
      %3540 = vmatprep.subr.bf16.mxu0 0
      %3541 = vmatpush1.bf16.msra.mxu0 0
      %3542 = vmatprep.subr.bf16.mxu0 0
      %3543 = vmatpush1.bf16.msra.mxu0 0
      %3544 = vmatprep.subr.bf16.mxu0 0
      %3545 = vmatpush1.bf16.msra.mxu0 0
      %3546 = vmatprep.subr.bf16.mxu0 0
      %3547 = vmatpush1.bf16.msra.mxu0 0
      %3548 = vmatprep.subr.bf16.mxu0 0
      %3549 = vmatpush1.bf16.msra.mxu0 0
      %3550 = vmatprep.subr.bf16.mxu0 0
      %3551 = vmatpush1.bf16.msra.mxu0 0
      %3552 = vmatprep.subr.bf16.mxu0 0
      %3553 = vmatpush1.bf16.msra.mxu0 0
      %3554 = vmatprep.subr.bf16.mxu0 0
      %3555 = vmatpush1.bf16.msra.mxu0 0
      %3556 = vmatprep.subr.bf16.mxu0 0
      %3557 = vmatpush1.bf16.msra.mxu0 0
      %3558 = vmatprep.subr.bf16.mxu0 0
      %3559 = vmatpush1.bf16.msra.mxu0 0
      %3560 = vmatprep.mubr.bf16.mxu0 0
      %3561 = vmatmul.mubr.bf16.gmra.mrb[0].mxu0 %v3522
      %v3562 = vpop.f32.mrb[0].mxu0
      %v3563 = vadd.f32 0.0, %v3562
      %v3564 = vpop.f32.mrb[0].mxu0
      %v3565 = vpop.f32.mrb[0].mxu0
      %v3566 = vpop.f32.mrb[0].mxu0
      %3567 = vdwg.mxu0
      %3568 = vrot.lane.b32.xlu0 %v3456, 120
      %v3569 = vpop.permute.xlu0 %3568
      %3570 = vrot.lane.b32.xlu0 %v3456, 88
      %v3571 = vpop.permute.xlu0 %3570
      %v3573 = vsel %vm707, %v3569, 0
      %v3576 = vsel %vm707, %v3571, 0
      %3578 = vmatprep.subr.bf16.mxu0 0
      %3579 = vmatpush1.bf16.xpose.msra.mxu0 %v3576
      %3580 = vmatprep.subr.bf16.mxu0 0
      %3581 = vmatpush1.bf16.xpose.msra.mxu0 0
      %3582 = vmatprep.subr.bf16.mxu0 0
      %3583 = vmatpush1.bf16.xpose.msra.mxu0 0
      %3584 = vmatprep.subr.bf16.mxu0 0
      %3585 = vmatpush1.bf16.xpose.msra.mxu0 0
      %3586 = vmatprep.subr.bf16.mxu0 0
      %3587 = vmatpush1.bf16.xpose.msra.mxu0 0
      %3588 = vmatprep.subr.bf16.mxu0 0
      %3589 = vmatpush1.bf16.xpose.msra.mxu0 0
      %3590 = vmatprep.subr.bf16.mxu0 0
      %3591 = vmatpush1.bf16.xpose.msra.mxu0 0
      %3592 = vmatprep.subr.bf16.mxu0 0
      %3593 = vmatpush1.bf16.xpose.msra.mxu0 0
      %3594 = vmatprep.subr.bf16.mxu0 0
      %3595 = vmatpush1.bf16.xpose.msra.mxu0 0
      %3596 = vmatprep.subr.bf16.mxu0 0
      %3597 = vmatpush1.bf16.xpose.msra.mxu0 0
      %3598 = vmatprep.subr.bf16.mxu0 0
      %3599 = vmatpush1.bf16.xpose.msra.mxu0 0
      %3600 = vmatprep.subr.bf16.mxu0 0
      %3601 = vmatpush1.bf16.xpose.msra.mxu0 0
      %3602 = vmatprep.subr.bf16.mxu0 0
      %3603 = vmatpush1.bf16.xpose.msra.mxu0 0
      %3604 = vmatprep.subr.bf16.mxu0 0
      %3605 = vmatpush1.bf16.xpose.msra.mxu0 0
      %3606 = vmatprep.subr.bf16.mxu0 0
      %3607 = vmatpush1.bf16.xpose.msra.mxu0 0
      %3608 = vmatprep.subr.bf16.mxu0 0
      %3609 = vmatpush1.bf16.xpose.msra.mxu0 0
      %3610 = vmatprep.mubr.bf16.mxu0 0
      %3611 = vmatmul.mubr.bf16.gmra.mrb[0].mxu0 %v3573
      %v3612 = vpop.f32.mrb[0].mxu0
      %v3613 = vadd.f32 0.0, %v3612
      %v3614 = vpop.f32.mrb[0].mxu0
      %v3615 = vpop.f32.mrb[0].mxu0
      %v3616 = vpop.f32.mrb[0].mxu0
      %3617 = vdwg.mxu0
      %v3618 = vmul.f32 %v3613, 0.35355338
      %v3619 = vsel %vm707, %v3618, -inf
      %3620 = vmax.xlane.f32.xlu0 %v3619
      %v3621 = vpop.xlane.xlu0 %3620
      %v3622 = vsub.f32 %v3618, %v3621
      %v3623 = vmul.f32 %v3622, 1.442695
      %v3624 = vpow.pop %v3623
      %v3625 = vsel %vm707, %v3624, 0.0
      %3626 = vadd.xlane.f32.xlu0 %v3625
      %v3627 = vpop.xlane.xlu0 %3626
      %v3628 = vrcp.pop %v3627
      %v3629 = vmul.f32 %v3624, %v3628
      %v3630 = vpack.c.bf16 %v3629, %v3629
      %3631 = vrot.lane.b32.xlu0 %v3456, 56
      %v3632 = vpop.permute.xlu0 %3631
      %v3634 = vsel %vm707, %v3630, 0
      %v3637 = vsel %vm3524, %v3632, 0
      %3639 = vmatprep.subr.bf16.mxu0 0
      %3640 = vmatpush1.bf16.msra.mxu0 %v3637
      %3641 = vmatprep.subr.bf16.mxu0 0
      %3642 = vmatpush1.bf16.msra.mxu0 0
      %3643 = vmatprep.subr.bf16.mxu0 0
      %3644 = vmatpush1.bf16.msra.mxu0 0
      %3645 = vmatprep.subr.bf16.mxu0 0
      %3646 = vmatpush1.bf16.msra.mxu0 0
      %3647 = vmatprep.subr.bf16.mxu0 0
      %3648 = vmatpush1.bf16.msra.mxu0 0
      %3649 = vmatprep.subr.bf16.mxu0 0
      %3650 = vmatpush1.bf16.msra.mxu0 0
      %3651 = vmatprep.subr.bf16.mxu0 0
      %3652 = vmatpush1.bf16.msra.mxu0 0
      %3653 = vmatprep.subr.bf16.mxu0 0
      %3654 = vmatpush1.bf16.msra.mxu0 0
      %3655 = vmatprep.subr.bf16.mxu0 0
      %3656 = vmatpush1.bf16.msra.mxu0 0
      %3657 = vmatprep.subr.bf16.mxu0 0
      %3658 = vmatpush1.bf16.msra.mxu0 0
      %3659 = vmatprep.subr.bf16.mxu0 0
      %3660 = vmatpush1.bf16.msra.mxu0 0
      %3661 = vmatprep.subr.bf16.mxu0 0
      %3662 = vmatpush1.bf16.msra.mxu0 0
      %3663 = vmatprep.subr.bf16.mxu0 0
      %3664 = vmatpush1.bf16.msra.mxu0 0
      %3665 = vmatprep.subr.bf16.mxu0 0
      %3666 = vmatpush1.bf16.msra.mxu0 0
      %3667 = vmatprep.subr.bf16.mxu0 0
      %3668 = vmatpush1.bf16.msra.mxu0 0
      %3669 = vmatprep.subr.bf16.mxu0 0
      %3670 = vmatpush1.bf16.msra.mxu0 0
      %3671 = vmatprep.mubr.bf16.mxu0 0
      %3672 = vmatmul.mubr.bf16.gmra.mrb[0].mxu0 %v3634
      %v3673 = vpop.f32.mrb[0].mxu0
      %v3674 = vadd.f32 0.0, %v3673
      %v3675 = vpop.f32.mrb[0].mxu0
      %v3676 = vpop.f32.mrb[0].mxu0
      %v3677 = vpop.f32.mrb[0].mxu0
      %3678 = vdwg.mxu0
      %3679 = vrot.lane.b32.xlu0 %v3456, 112
      %v3680 = vpop.permute.xlu0 %3679
      %3681 = vrot.lane.b32.xlu0 %v3456, 80
      %v3682 = vpop.permute.xlu0 %3681
      %v3684 = vsel %vm707, %v3680, 0
      %v3687 = vsel %vm707, %v3682, 0
      %3689 = vmatprep.subr.bf16.mxu0 0
      %3690 = vmatpush1.bf16.xpose.msra.mxu0 %v3687
      %3691 = vmatprep.subr.bf16.mxu0 0
      %3692 = vmatpush1.bf16.xpose.msra.mxu0 0
      %3693 = vmatprep.subr.bf16.mxu0 0
      %3694 = vmatpush1.bf16.xpose.msra.mxu0 0
      %3695 = vmatprep.subr.bf16.mxu0 0
      %3696 = vmatpush1.bf16.xpose.msra.mxu0 0
      %3697 = vmatprep.subr.bf16.mxu0 0
      %3698 = vmatpush1.bf16.xpose.msra.mxu0 0
      %3699 = vmatprep.subr.bf16.mxu0 0
      %3700 = vmatpush1.bf16.xpose.msra.mxu0 0
      %3701 = vmatprep.subr.bf16.mxu0 0
      %3702 = vmatpush1.bf16.xpose.msra.mxu0 0
      %3703 = vmatprep.subr.bf16.mxu0 0
      %3704 = vmatpush1.bf16.xpose.msra.mxu0 0
      %3705 = vmatprep.subr.bf16.mxu0 0
      %3706 = vmatpush1.bf16.xpose.msra.mxu0 0
      %3707 = vmatprep.subr.bf16.mxu0 0
      %3708 = vmatpush1.bf16.xpose.msra.mxu0 0
      %3709 = vmatprep.subr.bf16.mxu0 0
      %3710 = vmatpush1.bf16.xpose.msra.mxu0 0
      %3711 = vmatprep.subr.bf16.mxu0 0
      %3712 = vmatpush1.bf16.xpose.msra.mxu0 0
      %3713 = vmatprep.subr.bf16.mxu0 0
      %3714 = vmatpush1.bf16.xpose.msra.mxu0 0
      %3715 = vmatprep.subr.bf16.mxu0 0
      %3716 = vmatpush1.bf16.xpose.msra.mxu0 0
      %3717 = vmatprep.subr.bf16.mxu0 0
      %3718 = vmatpush1.bf16.xpose.msra.mxu0 0
      %3719 = vmatprep.subr.bf16.mxu0 0
      %3720 = vmatpush1.bf16.xpose.msra.mxu0 0
      %3721 = vmatprep.mubr.bf16.mxu0 0
      %3722 = vmatmul.mubr.bf16.gmra.mrb[0].mxu0 %v3684
      %v3723 = vpop.f32.mrb[0].mxu0
      %v3724 = vadd.f32 0.0, %v3723
      %v3725 = vpop.f32.mrb[0].mxu0
      %v3726 = vpop.f32.mrb[0].mxu0
      %v3727 = vpop.f32.mrb[0].mxu0
      %3728 = vdwg.mxu0
      %v3729 = vmul.f32 %v3724, 0.35355338
      %v3730 = vsel %vm707, %v3729, -inf
      %3731 = vmax.xlane.f32.xlu0 %v3730
      %v3732 = vpop.xlane.xlu0 %3731
      %v3733 = vsub.f32 %v3729, %v3732
      %v3734 = vmul.f32 %v3733, 1.442695
      %v3735 = vpow.pop %v3734
      %v3736 = vsel %vm707, %v3735, 0.0
      %3737 = vadd.xlane.f32.xlu0 %v3736
      %v3738 = vpop.xlane.xlu0 %3737
      %v3739 = vrcp.pop %v3738
      %v3740 = vmul.f32 %v3735, %v3739
      %v3741 = vpack.c.bf16 %v3740, %v3740
      %3742 = vrot.lane.b32.xlu0 %v3456, 48
      %v3743 = vpop.permute.xlu0 %3742
      %v3745 = vsel %vm707, %v3741, 0
      %v3748 = vsel %vm3524, %v3743, 0
      %3750 = vmatprep.subr.bf16.mxu0 0
      %3751 = vmatpush1.bf16.msra.mxu0 %v3748
      %3752 = vmatprep.subr.bf16.mxu0 0
      %3753 = vmatpush1.bf16.msra.mxu0 0
      %3754 = vmatprep.subr.bf16.mxu0 0
      %3755 = vmatpush1.bf16.msra.mxu0 0
      %3756 = vmatprep.subr.bf16.mxu0 0
      %3757 = vmatpush1.bf16.msra.mxu0 0
      %3758 = vmatprep.subr.bf16.mxu0 0
      %3759 = vmatpush1.bf16.msra.mxu0 0
      %3760 = vmatprep.subr.bf16.mxu0 0
      %3761 = vmatpush1.bf16.msra.mxu0 0
      %3762 = vmatprep.subr.bf16.mxu0 0
      %3763 = vmatpush1.bf16.msra.mxu0 0
      %3764 = vmatprep.subr.bf16.mxu0 0
      %3765 = vmatpush1.bf16.msra.mxu0 0
      %3766 = vmatprep.subr.bf16.mxu0 0
      %3767 = vmatpush1.bf16.msra.mxu0 0
      %3768 = vmatprep.subr.bf16.mxu0 0
      %3769 = vmatpush1.bf16.msra.mxu0 0
      %3770 = vmatprep.subr.bf16.mxu0 0
      %3771 = vmatpush1.bf16.msra.mxu0 0
      %3772 = vmatprep.subr.bf16.mxu0 0
      %3773 = vmatpush1.bf16.msra.mxu0 0
      %3774 = vmatprep.subr.bf16.mxu0 0
      %3775 = vmatpush1.bf16.msra.mxu0 0
      %3776 = vmatprep.subr.bf16.mxu0 0
      %3777 = vmatpush1.bf16.msra.mxu0 0
      %3778 = vmatprep.subr.bf16.mxu0 0
      %3779 = vmatpush1.bf16.msra.mxu0 0
      %3780 = vmatprep.subr.bf16.mxu0 0
      %3781 = vmatpush1.bf16.msra.mxu0 0
      %3782 = vmatprep.mubr.bf16.mxu0 0
      %3783 = vmatmul.mubr.bf16.gmra.mrb[0].mxu0 %v3745
      %v3784 = vpop.f32.mrb[0].mxu0
      %v3785 = vadd.f32 0.0, %v3784
      %v3786 = vpop.f32.mrb[0].mxu0
      %v3787 = vpop.f32.mrb[0].mxu0
      %v3788 = vpop.f32.mrb[0].mxu0
      %3789 = vdwg.mxu0
      %3790 = vrot.lane.b32.xlu0 %v3456, 104
      %v3791 = vpop.permute.xlu0 %3790
      %3792 = vrot.lane.b32.xlu0 %v3456, 72
      %v3793 = vpop.permute.xlu0 %3792
      %v3795 = vsel %vm707, %v3791, 0
      %v3798 = vsel %vm707, %v3793, 0
      %3800 = vmatprep.subr.bf16.mxu0 0
      %3801 = vmatpush1.bf16.xpose.msra.mxu0 %v3798
      %3802 = vmatprep.subr.bf16.mxu0 0
      %3803 = vmatpush1.bf16.xpose.msra.mxu0 0
      %3804 = vmatprep.subr.bf16.mxu0 0
      %3805 = vmatpush1.bf16.xpose.msra.mxu0 0
      %3806 = vmatprep.subr.bf16.mxu0 0
      %3807 = vmatpush1.bf16.xpose.msra.mxu0 0
      %3808 = vmatprep.subr.bf16.mxu0 0
      %3809 = vmatpush1.bf16.xpose.msra.mxu0 0
      %3810 = vmatprep.subr.bf16.mxu0 0
      %3811 = vmatpush1.bf16.xpose.msra.mxu0 0
      %3812 = vmatprep.subr.bf16.mxu0 0
      %3813 = vmatpush1.bf16.xpose.msra.mxu0 0
      %3814 = vmatprep.subr.bf16.mxu0 0
      %3815 = vmatpush1.bf16.xpose.msra.mxu0 0
      %3816 = vmatprep.subr.bf16.mxu0 0
      %3817 = vmatpush1.bf16.xpose.msra.mxu0 0
      %3818 = vmatprep.subr.bf16.mxu0 0
      %3819 = vmatpush1.bf16.xpose.msra.mxu0 0
      %3820 = vmatprep.subr.bf16.mxu0 0
      %3821 = vmatpush1.bf16.xpose.msra.mxu0 0
      %3822 = vmatprep.subr.bf16.mxu0 0
      %3823 = vmatpush1.bf16.xpose.msra.mxu0 0
      %3824 = vmatprep.subr.bf16.mxu0 0
      %3825 = vmatpush1.bf16.xpose.msra.mxu0 0
      %3826 = vmatprep.subr.bf16.mxu0 0
      %3827 = vmatpush1.bf16.xpose.msra.mxu0 0
      %3828 = vmatprep.subr.bf16.mxu0 0
      %3829 = vmatpush1.bf16.xpose.msra.mxu0 0
      %3830 = vmatprep.subr.bf16.mxu0 0
      %3831 = vmatpush1.bf16.xpose.msra.mxu0 0
      %3832 = vmatprep.mubr.bf16.mxu0 0
      %3833 = vmatmul.mubr.bf16.gmra.mrb[0].mxu0 %v3795
      %v3834 = vpop.f32.mrb[0].mxu0
      %v3835 = vadd.f32 0.0, %v3834
      %v3836 = vpop.f32.mrb[0].mxu0
      %v3837 = vpop.f32.mrb[0].mxu0
      %v3838 = vpop.f32.mrb[0].mxu0
      %3839 = vdwg.mxu0
      %v3840 = vmul.f32 %v3835, 0.35355338
      %v3841 = vsel %vm707, %v3840, -inf
      %3842 = vmax.xlane.f32.xlu0 %v3841
      %v3843 = vpop.xlane.xlu0 %3842
      %v3844 = vsub.f32 %v3840, %v3843
      %v3845 = vmul.f32 %v3844, 1.442695
      %v3846 = vpow.pop %v3845
      %v3847 = vsel %vm707, %v3846, 0.0
      %3848 = vadd.xlane.f32.xlu0 %v3847
      %v3849 = vpop.xlane.xlu0 %3848
      %v3850 = vrcp.pop %v3849
      %v3851 = vmul.f32 %v3846, %v3850
      %v3852 = vpack.c.bf16 %v3851, %v3851
      %3853 = vrot.lane.b32.xlu0 %v3456, 40
      %v3854 = vpop.permute.xlu0 %3853
      %v3856 = vsel %vm707, %v3852, 0
      %v3859 = vsel %vm3524, %v3854, 0
      %3861 = vmatprep.subr.bf16.mxu0 0
      %3862 = vmatpush1.bf16.msra.mxu0 %v3859
      %3863 = vmatprep.subr.bf16.mxu0 0
      %3864 = vmatpush1.bf16.msra.mxu0 0
      %3865 = vmatprep.subr.bf16.mxu0 0
      %3866 = vmatpush1.bf16.msra.mxu0 0
      %3867 = vmatprep.subr.bf16.mxu0 0
      %3868 = vmatpush1.bf16.msra.mxu0 0
      %3869 = vmatprep.subr.bf16.mxu0 0
      %3870 = vmatpush1.bf16.msra.mxu0 0
      %3871 = vmatprep.subr.bf16.mxu0 0
      %3872 = vmatpush1.bf16.msra.mxu0 0
      %3873 = vmatprep.subr.bf16.mxu0 0
      %3874 = vmatpush1.bf16.msra.mxu0 0
      %3875 = vmatprep.subr.bf16.mxu0 0
      %3876 = vmatpush1.bf16.msra.mxu0 0
      %3877 = vmatprep.subr.bf16.mxu0 0
      %3878 = vmatpush1.bf16.msra.mxu0 0
      %3879 = vmatprep.subr.bf16.mxu0 0
      %3880 = vmatpush1.bf16.msra.mxu0 0
      %3881 = vmatprep.subr.bf16.mxu0 0
      %3882 = vmatpush1.bf16.msra.mxu0 0
      %3883 = vmatprep.subr.bf16.mxu0 0
      %3884 = vmatpush1.bf16.msra.mxu0 0
      %3885 = vmatprep.subr.bf16.mxu0 0
      %3886 = vmatpush1.bf16.msra.mxu0 0
      %3887 = vmatprep.subr.bf16.mxu0 0
      %3888 = vmatpush1.bf16.msra.mxu0 0
      %3889 = vmatprep.subr.bf16.mxu0 0
      %3890 = vmatpush1.bf16.msra.mxu0 0
      %3891 = vmatprep.subr.bf16.mxu0 0
      %3892 = vmatpush1.bf16.msra.mxu0 0
      %3893 = vmatprep.mubr.bf16.mxu0 0
      %3894 = vmatmul.mubr.bf16.gmra.mrb[0].mxu0 %v3856
      %v3895 = vpop.f32.mrb[0].mxu0
      %v3896 = vadd.f32 0.0, %v3895
      %v3897 = vpop.f32.mrb[0].mxu0
      %v3898 = vpop.f32.mrb[0].mxu0
      %v3899 = vpop.f32.mrb[0].mxu0
      %3900 = vdwg.mxu0
      %3902 = vrot.lane.b32.xlu0 %v3674, 8
      %v3903 = vpop.permute.xlu0 %3902
      %3906 = vrot.lane.b32.xlu0 %v3785, 16
      %v3907 = vpop.permute.xlu0 %3906
      %3910 = vrot.lane.b32.xlu0 %v3896, 24
      %v3911 = vpop.permute.xlu0 %3910
      %v3913 = vsel %vm707, %v3563, %v3903
      %v3914 = vsel %vm913, %v3913, %v3907
      %v3915 = vsel %vm2782, %v3914, %v3911
      %v3916 = vld [vmem:[%s3 + $0xe0] sm:$0xf]
      %v3917 = vld [vmem:[%s3 + $0xe4] sm:$0xf]
      %v3918 = vld [vmem:[%s3 + $0xe8] sm:$0xf]
      %v3919 = vld [vmem:[%s3 + $0xec] sm:$0xf]
      %v3920 = vpack.c.bf16 %v3915, %v3915
      %v3921 = vlaneseq
      %v3922 = vshrl.u32 %v3921, 7
      %v3923 = vsub.s32 3, %v3922
      %v3924 = vrot.slane %v233, %v3923
      %v3929 = vunpack.c.l.b16 %v3916
      %v3930 = vunpack.c.l.b16 %v3917
      %v3931 = vunpack.c.l.b16 %v3918
      %v3932 = vunpack.c.l.b16 %v3919
      %v3933 = vpack.c.b16 %v3930, %v3929
      %v3934 = vpack.c.b16 %v3932, %v3931
      %v3938 = vsel %vm622, %v3920, 0
      %3940 = vmatprep.subr.bf16.mxu0 0
      %3941 = vmatpush1.bf16.msra.mxu0 %v3933
      %3942 = vmatprep.subr.bf16.mxu0 0
      %3943 = vmatpush1.bf16.msra.mxu0 %v3934
      %3944 = vmatprep.subr.bf16.mxu0 0
      %3945 = vmatpush1.bf16.msra.mxu0 0
      %3946 = vmatprep.subr.bf16.mxu0 0
      %3947 = vmatpush1.bf16.msra.mxu0 0
      %3948 = vmatprep.subr.bf16.mxu0 0
      %3949 = vmatpush1.bf16.msra.mxu0 0
      %3950 = vmatprep.subr.bf16.mxu0 0
      %3951 = vmatpush1.bf16.msra.mxu0 0
      %3952 = vmatprep.subr.bf16.mxu0 0
      %3953 = vmatpush1.bf16.msra.mxu0 0
      %3954 = vmatprep.subr.bf16.mxu0 0
      %3955 = vmatpush1.bf16.msra.mxu0 0
      %3956 = vmatprep.subr.bf16.mxu0 0
      %3957 = vmatpush1.bf16.msra.mxu0 0
      %3958 = vmatprep.subr.bf16.mxu0 0
      %3959 = vmatpush1.bf16.msra.mxu0 0
      %3960 = vmatprep.subr.bf16.mxu0 0
      %3961 = vmatpush1.bf16.msra.mxu0 0
      %3962 = vmatprep.subr.bf16.mxu0 0
      %3963 = vmatpush1.bf16.msra.mxu0 0
      %3964 = vmatprep.subr.bf16.mxu0 0
      %3965 = vmatpush1.bf16.msra.mxu0 0
      %3966 = vmatprep.subr.bf16.mxu0 0
      %3967 = vmatpush1.bf16.msra.mxu0 0
      %3968 = vmatprep.subr.bf16.mxu0 0
      %3969 = vmatpush1.bf16.msra.mxu0 0
      %3970 = vmatprep.subr.bf16.mxu0 0
      %3971 = vmatpush1.bf16.msra.mxu0 0
      %3972 = vmatprep.mubr.bf16.mxu0 0
      %3973 = vmatmul.mubr.bf16.gmra.mrb[0].mxu0 %v3938
      %v3974 = vpop.f32.mrb[0].mxu0
      %v3975 = vadd.f32 %v3924, %v3974
      %v3976 = vpop.f32.mrb[0].mxu0
      %v3977 = vpop.f32.mrb[0].mxu0
      %v3978 = vpop.f32.mrb[0].mxu0
      %3979 = vdwg.mxu0
      %v3980 = vadd.f32 %v3975, %v3391
      %v3981 = vsel %vm622, %v3980, 0.0
      %3982 = vadd.xlane.f32.xlu0 %v3981
      %v3983 = vpop.xlane.xlu0 %3982
      %v3984 = vmul.f32 %v3983, %v2924
      %v3985 = vsub.f32 %v3980, %v3984
      %v3986 = vmul.f32 %v3985, %v3985
      %v3987 = vsel %vm622, %v3986, 0.0
      %3988 = vadd.xlane.f32.xlu0 %v3987
      %v3989 = vpop.xlane.xlu0 %3988
      %v3990 = vmul.f32 %v3989, %v2924
      %v3991 = vadd.f32 %v3990, 1e-05
      %v3992 = vrsqrt.pop %v3991
      %v3993 = vmul.f32 %v3985, %v3992
      %v3994 = vlaneseq
      %v3995 = vshrl.u32 %v3994, 7
      %v3996 = vsub.s32 4, %v3995
      %v3997 = vrot.slane %v233, %v3996
      %v3998 = vmul.f32 %v3993, %v3997
      %v3999 = vlaneseq
      %v4000 = vshrl.u32 %v3999, 7
      %v4001 = vsub.s32 5, %v4000
      %v4002 = vrot.slane %v233, %v4001
      %v4003 = vadd.f32 %v3998, %v4002
      %v4004 = vld [vmem:[%s3 + $0xf0] sm:$0xf]
      %v4005 = vld [vmem:[%s3 + $0xf4] sm:$0xf]
      %v4006 = vld [vmem:[%s3 + $0xf8] sm:$0xf]
      %v4007 = vld [vmem:[%s3 + $0xfc] sm:$0xf]
      %v4008 = vpack.c.bf16 %v4003, %v4003
      %v4009 = vlaneseq
      %v4010 = vshrl.u32 %v4009, 7
      %v4011 = vsub.s32 6, %v4010
      %v4012 = vrot.slane %v233, %v4011
      %v4017 = vunpack.c.l.b16 %v4004
      %v4018 = vunpack.c.l.b16 %v4005
      %v4019 = vunpack.c.l.b16 %v4006
      %v4020 = vunpack.c.l.b16 %v4007
      %v4021 = vpack.c.b16 %v4018, %v4017
      %v4022 = vpack.c.b16 %v4020, %v4019
      %v4026 = vsel %vm622, %v4008, 0
      %4028 = vmatprep.subr.bf16.mxu0 0
      %4029 = vmatpush1.bf16.msra.mxu0 %v4021
      %4030 = vmatprep.subr.bf16.mxu0 0
      %4031 = vmatpush1.bf16.msra.mxu0 %v4022
      %4032 = vmatprep.subr.bf16.mxu0 0
      %4033 = vmatpush1.bf16.msra.mxu0 0
      %4034 = vmatprep.subr.bf16.mxu0 0
      %4035 = vmatpush1.bf16.msra.mxu0 0
      %4036 = vmatprep.subr.bf16.mxu0 0
      %4037 = vmatpush1.bf16.msra.mxu0 0
      %4038 = vmatprep.subr.bf16.mxu0 0
      %4039 = vmatpush1.bf16.msra.mxu0 0
      %4040 = vmatprep.subr.bf16.mxu0 0
      %4041 = vmatpush1.bf16.msra.mxu0 0
      %4042 = vmatprep.subr.bf16.mxu0 0
      %4043 = vmatpush1.bf16.msra.mxu0 0
      %4044 = vmatprep.subr.bf16.mxu0 0
      %4045 = vmatpush1.bf16.msra.mxu0 0
      %4046 = vmatprep.subr.bf16.mxu0 0
      %4047 = vmatpush1.bf16.msra.mxu0 0
      %4048 = vmatprep.subr.bf16.mxu0 0
      %4049 = vmatpush1.bf16.msra.mxu0 0
      %4050 = vmatprep.subr.bf16.mxu0 0
      %4051 = vmatpush1.bf16.msra.mxu0 0
      %4052 = vmatprep.subr.bf16.mxu0 0
      %4053 = vmatpush1.bf16.msra.mxu0 0
      %4054 = vmatprep.subr.bf16.mxu0 0
      %4055 = vmatpush1.bf16.msra.mxu0 0
      %4056 = vmatprep.subr.bf16.mxu0 0
      %4057 = vmatpush1.bf16.msra.mxu0 0
      %4058 = vmatprep.subr.bf16.mxu0 0
      %4059 = vmatpush1.bf16.msra.mxu0 0
      %4060 = vmatprep.mubr.bf16.mxu0 0
      %4061 = vmatmul.mubr.bf16.gmra.mrb[0].mxu0 %v4026
      %v4062 = vpop.f32.mrb[0].mxu0
      %v4063 = vadd.f32 %v4012, %v4062
      %v4064 = vpop.f32.mrb[0].mxu0
      %v4065 = vpop.f32.mrb[0].mxu0
      %v4066 = vadd.f32 %v4012, %v4065
      %v4067 = vpop.f32.mrb[0].mxu0
      %4068 = vmatprep.mubr.bf16.mxu0 0
      %4069 = vmatmul.mubr.bf16.gmra.mrb[0].mxu0 %v4026
      %v4070 = vpop.f32.mrb[0].mxu0
      %v4071 = vadd.f32 %v4012, %v4070
      %v4072 = vpop.f32.mrb[0].mxu0
      %v4073 = vpop.f32.mrb[0].mxu0
      %v4074 = vadd.f32 %v4012, %v4073
      %v4075 = vpop.f32.mrb[0].mxu0
      %4076 = vdwg.mxu0
      %v4077 = vpack.c.bf16 %v3384, %v3383
      %v4078 = vpack.c.bf16 %v3386, %v3385
      %v4079 = vpack.c.bf16 %v3388, %v3387
      %v4080 = vpack.c.bf16 %v3390, %v3389
      %4081 = vrot.lane.b32.xlu0 %v4021, 96
      %v4082 = vpop.permute.xlu0 %4081
      %4083 = vrot.lane.b32.xlu0 %v4022, 96
      %v4084 = vpop.permute.xlu0 %4083
      %4088 = vrot.lane.b32.xlu0 %v4012, 96
      %v4089 = vpop.permute.xlu0 %4088
      %v4092 = vsel %vm622, %v4077, 0
      %v4095 = vsel %vm622, %v4078, 0
      %v4098 = vsel %vm622, %v4079, 0
      %v4101 = vsel %vm622, %v4080, 0
      %4103 = vmatprep.subr.bf16.mxu0 0
      %4104 = vmatpush1.bf16.msra.mxu0 %v4082
      %4105 = vmatprep.subr.bf16.mxu0 0
      %4106 = vmatpush1.bf16.msra.mxu0 %v4084
      %4107 = vmatprep.subr.bf16.mxu0 0
      %4108 = vmatpush1.bf16.msra.mxu0 0
      %4109 = vmatprep.subr.bf16.mxu0 0
      %4110 = vmatpush1.bf16.msra.mxu0 0
      %4111 = vmatprep.subr.bf16.mxu0 0
      %4112 = vmatpush1.bf16.msra.mxu0 0
      %4113 = vmatprep.subr.bf16.mxu0 0
      %4114 = vmatpush1.bf16.msra.mxu0 0
      %4115 = vmatprep.subr.bf16.mxu0 0
      %4116 = vmatpush1.bf16.msra.mxu0 0
      %4117 = vmatprep.subr.bf16.mxu0 0
      %4118 = vmatpush1.bf16.msra.mxu0 0
      %4119 = vmatprep.subr.bf16.mxu0 0
      %4120 = vmatpush1.bf16.msra.mxu0 0
      %4121 = vmatprep.subr.bf16.mxu0 0
      %4122 = vmatpush1.bf16.msra.mxu0 0
      %4123 = vmatprep.subr.bf16.mxu0 0
      %4124 = vmatpush1.bf16.msra.mxu0 0
      %4125 = vmatprep.subr.bf16.mxu0 0
      %4126 = vmatpush1.bf16.msra.mxu0 0
      %4127 = vmatprep.subr.bf16.mxu0 0
      %4128 = vmatpush1.bf16.msra.mxu0 0
      %4129 = vmatprep.subr.bf16.mxu0 0
      %4130 = vmatpush1.bf16.msra.mxu0 0
      %4131 = vmatprep.subr.bf16.mxu0 0
      %4132 = vmatpush1.bf16.msra.mxu0 0
      %4133 = vmatprep.subr.bf16.mxu0 0
      %4134 = vmatpush1.bf16.msra.mxu0 0
      %4135 = vmatprep.mubr.bf16.mxu0 0
      %4136 = vmatmul.mubr.bf16.gmra.mrb[0].mxu0 %v4092
      %v4137 = vpop.f32.mrb[0].mxu0
      %v4138 = vadd.f32 %v4089, %v4137
      %v4139 = vpop.f32.mrb[0].mxu0
      %v4140 = vpop.f32.mrb[0].mxu0
      %v4141 = vadd.f32 %v4089, %v4140
      %v4142 = vpop.f32.mrb[0].mxu0
      %4143 = vmatprep.mubr.bf16.mxu0 0
      %4144 = vmatmul.mubr.bf16.gmra.mrb[0].mxu0 %v4095
      %v4145 = vpop.f32.mrb[0].mxu0
      %v4146 = vadd.f32 %v4089, %v4145
      %v4147 = vpop.f32.mrb[0].mxu0
      %v4148 = vpop.f32.mrb[0].mxu0
      %v4149 = vadd.f32 %v4089, %v4148
      %v4150 = vpop.f32.mrb[0].mxu0
      %4151 = vmatprep.mubr.bf16.mxu0 0
      %4152 = vmatmul.mubr.bf16.gmra.mrb[0].mxu0 %v4098
      %v4153 = vpop.f32.mrb[0].mxu0
      %v4154 = vadd.f32 %v4089, %v4153
      %v4155 = vpop.f32.mrb[0].mxu0
      %v4156 = vpop.f32.mrb[0].mxu0
      %v4157 = vadd.f32 %v4089, %v4156
      %v4158 = vpop.f32.mrb[0].mxu0
      %4159 = vmatprep.mubr.bf16.mxu0 0
      %4160 = vmatmul.mubr.bf16.gmra.mrb[0].mxu0 %v4101
      %v4161 = vpop.f32.mrb[0].mxu0
      %v4162 = vadd.f32 %v4089, %v4161
      %v4163 = vpop.f32.mrb[0].mxu0
      %v4164 = vpop.f32.mrb[0].mxu0
      %v4165 = vadd.f32 %v4089, %v4164
      %v4166 = vpop.f32.mrb[0].mxu0
      %4167 = vdwg.mxu0
      %v4168 = vpack.c.bf16 %v4063, %v4063
      %v4169 = vpack.c.bf16 %v4066, %v4066
      %v4170 = vpack.c.bf16 %v4071, %v4071
      %v4171 = vpack.c.bf16 %v4074, %v4074
      %v4172 = vpack.c.bf16 %v4141, %v4138
      %v4173 = vpack.c.bf16 %v4149, %v4146
      %v4174 = vpack.c.bf16 %v4157, %v4154
      %v4175 = vpack.c.bf16 %v4165, %v4162
      %v4177 = vsel %vm707, %v4168, 0
      %v4180 = vsel %vm707, %v4172, 0
      %4182 = vmatprep.subr.bf16.mxu0 0
      %4183 = vmatpush1.bf16.xpose.msra.mxu0 %v4180
      %4184 = vmatprep.subr.bf16.mxu0 0
      %4185 = vmatpush1.bf16.xpose.msra.mxu0 0
      %4186 = vmatprep.subr.bf16.mxu0 0
      %4187 = vmatpush1.bf16.xpose.msra.mxu0 0
      %4188 = vmatprep.subr.bf16.mxu0 0
      %4189 = vmatpush1.bf16.xpose.msra.mxu0 0
      %4190 = vmatprep.subr.bf16.mxu0 0
      %4191 = vmatpush1.bf16.xpose.msra.mxu0 0
      %4192 = vmatprep.subr.bf16.mxu0 0
      %4193 = vmatpush1.bf16.xpose.msra.mxu0 0
      %4194 = vmatprep.subr.bf16.mxu0 0
      %4195 = vmatpush1.bf16.xpose.msra.mxu0 0
      %4196 = vmatprep.subr.bf16.mxu0 0
      %4197 = vmatpush1.bf16.xpose.msra.mxu0 0
      %4198 = vmatprep.subr.bf16.mxu0 0
      %4199 = vmatpush1.bf16.xpose.msra.mxu0 0
      %4200 = vmatprep.subr.bf16.mxu0 0
      %4201 = vmatpush1.bf16.xpose.msra.mxu0 0
      %4202 = vmatprep.subr.bf16.mxu0 0
      %4203 = vmatpush1.bf16.xpose.msra.mxu0 0
      %4204 = vmatprep.subr.bf16.mxu0 0
      %4205 = vmatpush1.bf16.xpose.msra.mxu0 0
      %4206 = vmatprep.subr.bf16.mxu0 0
      %4207 = vmatpush1.bf16.xpose.msra.mxu0 0
      %4208 = vmatprep.subr.bf16.mxu0 0
      %4209 = vmatpush1.bf16.xpose.msra.mxu0 0
      %4210 = vmatprep.subr.bf16.mxu0 0
      %4211 = vmatpush1.bf16.xpose.msra.mxu0 0
      %4212 = vmatprep.subr.bf16.mxu0 0
      %4213 = vmatpush1.bf16.xpose.msra.mxu0 0
      %4214 = vmatprep.mubr.bf16.mxu0 0
      %4215 = vmatmul.mubr.bf16.gmra.mrb[0].mxu0 %v4177
      %v4216 = vpop.f32.mrb[0].mxu0
      %v4217 = vadd.f32 0.0, %v4216
      %v4218 = vpop.f32.mrb[0].mxu0
      %v4219 = vpop.f32.mrb[0].mxu0
      %v4220 = vpop.f32.mrb[0].mxu0
      %4221 = vdwg.mxu0
      %v4223 = vsel %vm707, %v4169, 0
      %v4226 = vsel %vm707, %v4173, 0
      %4228 = vmatprep.subr.bf16.mxu0 0
      %4229 = vmatpush1.bf16.xpose.msra.mxu0 %v4226
      %4230 = vmatprep.subr.bf16.mxu0 0
      %4231 = vmatpush1.bf16.xpose.msra.mxu0 0
      %4232 = vmatprep.subr.bf16.mxu0 0
      %4233 = vmatpush1.bf16.xpose.msra.mxu0 0
      %4234 = vmatprep.subr.bf16.mxu0 0
      %4235 = vmatpush1.bf16.xpose.msra.mxu0 0
      %4236 = vmatprep.subr.bf16.mxu0 0
      %4237 = vmatpush1.bf16.xpose.msra.mxu0 0
      %4238 = vmatprep.subr.bf16.mxu0 0
      %4239 = vmatpush1.bf16.xpose.msra.mxu0 0
      %4240 = vmatprep.subr.bf16.mxu0 0
      %4241 = vmatpush1.bf16.xpose.msra.mxu0 0
      %4242 = vmatprep.subr.bf16.mxu0 0
      %4243 = vmatpush1.bf16.xpose.msra.mxu0 0
      %4244 = vmatprep.subr.bf16.mxu0 0
      %4245 = vmatpush1.bf16.xpose.msra.mxu0 0
      %4246 = vmatprep.subr.bf16.mxu0 0
      %4247 = vmatpush1.bf16.xpose.msra.mxu0 0
      %4248 = vmatprep.subr.bf16.mxu0 0
      %4249 = vmatpush1.bf16.xpose.msra.mxu0 0
      %4250 = vmatprep.subr.bf16.mxu0 0
      %4251 = vmatpush1.bf16.xpose.msra.mxu0 0
      %4252 = vmatprep.subr.bf16.mxu0 0
      %4253 = vmatpush1.bf16.xpose.msra.mxu0 0
      %4254 = vmatprep.subr.bf16.mxu0 0
      %4255 = vmatpush1.bf16.xpose.msra.mxu0 0
      %4256 = vmatprep.subr.bf16.mxu0 0
      %4257 = vmatpush1.bf16.xpose.msra.mxu0 0
      %4258 = vmatprep.subr.bf16.mxu0 0
      %4259 = vmatpush1.bf16.xpose.msra.mxu0 0
      %4260 = vmatprep.mubr.bf16.mxu0 0
      %4261 = vmatmul.mubr.bf16.gmra.mrb[0].mxu0 %v4223
      %v4262 = vpop.f32.mrb[0].mxu0
      %v4263 = vadd.f32 0.0, %v4262
      %v4264 = vpop.f32.mrb[0].mxu0
      %v4265 = vpop.f32.mrb[0].mxu0
      %v4266 = vpop.f32.mrb[0].mxu0
      %4267 = vdwg.mxu0
      %v4269 = vsel %vm707, %v4170, 0
      %v4272 = vsel %vm707, %v4174, 0
      %4274 = vmatprep.subr.bf16.mxu0 0
      %4275 = vmatpush1.bf16.xpose.msra.mxu0 %v4272
      %4276 = vmatprep.subr.bf16.mxu0 0
      %4277 = vmatpush1.bf16.xpose.msra.mxu0 0
      %4278 = vmatprep.subr.bf16.mxu0 0
      %4279 = vmatpush1.bf16.xpose.msra.mxu0 0
      %4280 = vmatprep.subr.bf16.mxu0 0
      %4281 = vmatpush1.bf16.xpose.msra.mxu0 0
      %4282 = vmatprep.subr.bf16.mxu0 0
      %4283 = vmatpush1.bf16.xpose.msra.mxu0 0
      %4284 = vmatprep.subr.bf16.mxu0 0
      %4285 = vmatpush1.bf16.xpose.msra.mxu0 0
      %4286 = vmatprep.subr.bf16.mxu0 0
      %4287 = vmatpush1.bf16.xpose.msra.mxu0 0
      %4288 = vmatprep.subr.bf16.mxu0 0
      %4289 = vmatpush1.bf16.xpose.msra.mxu0 0
      %4290 = vmatprep.subr.bf16.mxu0 0
      %4291 = vmatpush1.bf16.xpose.msra.mxu0 0
      %4292 = vmatprep.subr.bf16.mxu0 0
      %4293 = vmatpush1.bf16.xpose.msra.mxu0 0
      %4294 = vmatprep.subr.bf16.mxu0 0
      %4295 = vmatpush1.bf16.xpose.msra.mxu0 0
      %4296 = vmatprep.subr.bf16.mxu0 0
      %4297 = vmatpush1.bf16.xpose.msra.mxu0 0
      %4298 = vmatprep.subr.bf16.mxu0 0
      %4299 = vmatpush1.bf16.xpose.msra.mxu0 0
      %4300 = vmatprep.subr.bf16.mxu0 0
      %4301 = vmatpush1.bf16.xpose.msra.mxu0 0
      %4302 = vmatprep.subr.bf16.mxu0 0
      %4303 = vmatpush1.bf16.xpose.msra.mxu0 0
      %4304 = vmatprep.subr.bf16.mxu0 0
      %4305 = vmatpush1.bf16.xpose.msra.mxu0 0
      %4306 = vmatprep.mubr.bf16.mxu0 0
      %4307 = vmatmul.mubr.bf16.gmra.mrb[0].mxu0 %v4269
      %v4308 = vpop.f32.mrb[0].mxu0
      %v4309 = vadd.f32 0.0, %v4308
      %v4310 = vpop.f32.mrb[0].mxu0
      %v4311 = vpop.f32.mrb[0].mxu0
      %v4312 = vpop.f32.mrb[0].mxu0
      %4313 = vdwg.mxu0
      %v4315 = vsel %vm707, %v4171, 0
      %v4318 = vsel %vm707, %v4175, 0
      %4320 = vmatprep.subr.bf16.mxu0 0
      %4321 = vmatpush1.bf16.xpose.msra.mxu0 %v4318
      %4322 = vmatprep.subr.bf16.mxu0 0
      %4323 = vmatpush1.bf16.xpose.msra.mxu0 0
      %4324 = vmatprep.subr.bf16.mxu0 0
      %4325 = vmatpush1.bf16.xpose.msra.mxu0 0
      %4326 = vmatprep.subr.bf16.mxu0 0
      %4327 = vmatpush1.bf16.xpose.msra.mxu0 0
      %4328 = vmatprep.subr.bf16.mxu0 0
      %4329 = vmatpush1.bf16.xpose.msra.mxu0 0
      %4330 = vmatprep.subr.bf16.mxu0 0
      %4331 = vmatpush1.bf16.xpose.msra.mxu0 0
      %4332 = vmatprep.subr.bf16.mxu0 0
      %4333 = vmatpush1.bf16.xpose.msra.mxu0 0
      %4334 = vmatprep.subr.bf16.mxu0 0
      %4335 = vmatpush1.bf16.xpose.msra.mxu0 0
      %4336 = vmatprep.subr.bf16.mxu0 0
      %4337 = vmatpush1.bf16.xpose.msra.mxu0 0
      %4338 = vmatprep.subr.bf16.mxu0 0
      %4339 = vmatpush1.bf16.xpose.msra.mxu0 0
      %4340 = vmatprep.subr.bf16.mxu0 0
      %4341 = vmatpush1.bf16.xpose.msra.mxu0 0
      %4342 = vmatprep.subr.bf16.mxu0 0
      %4343 = vmatpush1.bf16.xpose.msra.mxu0 0
      %4344 = vmatprep.subr.bf16.mxu0 0
      %4345 = vmatpush1.bf16.xpose.msra.mxu0 0
      %4346 = vmatprep.subr.bf16.mxu0 0
      %4347 = vmatpush1.bf16.xpose.msra.mxu0 0
      %4348 = vmatprep.subr.bf16.mxu0 0
      %4349 = vmatpush1.bf16.xpose.msra.mxu0 0
      %4350 = vmatprep.subr.bf16.mxu0 0
      %4351 = vmatpush1.bf16.xpose.msra.mxu0 0
      %4352 = vmatprep.mubr.bf16.mxu0 0
      %4353 = vmatmul.mubr.bf16.gmra.mrb[0].mxu0 %v4315
      %v4354 = vpop.f32.mrb[0].mxu0
      %v4355 = vadd.f32 0.0, %v4354
      %v4356 = vpop.f32.mrb[0].mxu0
      %v4357 = vpop.f32.mrb[0].mxu0
      %v4358 = vpop.f32.mrb[0].mxu0
      %4359 = vdwg.mxu0
      %v4360 = vmul.f32 %v4217, 0.35355338
      %v4361 = vmul.f32 %v4263, 0.35355338
      %v4362 = vmul.f32 %v4309, 0.35355338
      %v4363 = vmul.f32 %v4355, 0.35355338
      %v4364 = vsel %vm913, %v4360, -inf
      %4365 = vmax.xlane.f32.xlu0 %v4364
      %v4366 = vpop.xlane.xlu0 %4365
      %v4367 = vsel %vm913, %v4361, -inf
      %4368 = vmax.xlane.f32.xlu0 %v4367
      %v4369 = vpop.xlane.xlu0 %4368
      %v4370 = vsel %vm913, %v4362, -inf
      %4371 = vmax.xlane.f32.xlu0 %v4370
      %v4372 = vpop.xlane.xlu0 %4371
      %v4373 = vsel %vm913, %v4363, -inf
      %4374 = vmax.xlane.f32.xlu0 %v4373
      %v4375 = vpop.xlane.xlu0 %4374
      %v4376 = vsub.f32 %v4360, %v4366
      %v4377 = vsub.f32 %v4361, %v4369
      %v4378 = vsub.f32 %v4362, %v4372
      %v4379 = vsub.f32 %v4363, %v4375
      %v4380 = vmul.f32 %v4376, 1.442695
      %v4381 = vpow.pop %v4380
      %v4382 = vmul.f32 %v4377, 1.442695
      %v4383 = vpow.pop %v4382
      %v4384 = vmul.f32 %v4378, 1.442695
      %v4385 = vpow.pop %v4384
      %v4386 = vmul.f32 %v4379, 1.442695
      %v4387 = vpow.pop %v4386
      %v4388 = vsel %vm913, %v4381, 0.0
      %4389 = vadd.xlane.f32.xlu0 %v4388
      %v4390 = vpop.xlane.xlu0 %4389
      %v4391 = vsel %vm913, %v4383, 0.0
      %4392 = vadd.xlane.f32.xlu0 %v4391
      %v4393 = vpop.xlane.xlu0 %4392
      %v4394 = vsel %vm913, %v4385, 0.0
      %4395 = vadd.xlane.f32.xlu0 %v4394
      %v4396 = vpop.xlane.xlu0 %4395
      %v4397 = vsel %vm913, %v4387, 0.0
      %4398 = vadd.xlane.f32.xlu0 %v4397
      %v4399 = vpop.xlane.xlu0 %4398
      %v4400 = vrcp.pop %v4390
      %v4401 = vrcp.pop %v4393
      %v4402 = vrcp.pop %v4396
      %v4403 = vrcp.pop %v4399
      %v4404 = vmul.f32 %v4381, %v4400
      %v4405 = vmul.f32 %v4383, %v4401
      %v4406 = vmul.f32 %v4385, %v4402
      %v4407 = vmul.f32 %v4387, %v4403
      %v4408 = vpack.c.bf16 %v4404, %v4404
      %v4409 = vpack.c.bf16 %v4405, %v4405
      %v4410 = vpack.c.bf16 %v4406, %v4406
      %v4411 = vpack.c.bf16 %v4407, %v4407
      %4413 = vrot.lane.b32.xlu0 %v4172, 96
      %v4414 = vpop.permute.xlu0 %4413
      %v4417 = vsel %vm913, %v4408, 0
      %4419 = vmatprep.subr.bf16.mxu0 0
      %4420 = vmatpush1.bf16.msra.mxu0 %v4414
      %4421 = vmatprep.subr.bf16.mxu0 0
      %4422 = vmatpush1.bf16.msra.mxu0 0
      %4423 = vmatprep.subr.bf16.mxu0 0
      %4424 = vmatpush1.bf16.msra.mxu0 0
      %4425 = vmatprep.subr.bf16.mxu0 0
      %4426 = vmatpush1.bf16.msra.mxu0 0
      %4427 = vmatprep.subr.bf16.mxu0 0
      %4428 = vmatpush1.bf16.msra.mxu0 0
      %4429 = vmatprep.subr.bf16.mxu0 0
      %4430 = vmatpush1.bf16.msra.mxu0 0
      %4431 = vmatprep.subr.bf16.mxu0 0
      %4432 = vmatpush1.bf16.msra.mxu0 0
      %4433 = vmatprep.subr.bf16.mxu0 0
      %4434 = vmatpush1.bf16.msra.mxu0 0
      %4435 = vmatprep.subr.bf16.mxu0 0
      %4436 = vmatpush1.bf16.msra.mxu0 0
      %4437 = vmatprep.subr.bf16.mxu0 0
      %4438 = vmatpush1.bf16.msra.mxu0 0
      %4439 = vmatprep.subr.bf16.mxu0 0
      %4440 = vmatpush1.bf16.msra.mxu0 0
      %4441 = vmatprep.subr.bf16.mxu0 0
      %4442 = vmatpush1.bf16.msra.mxu0 0
      %4443 = vmatprep.subr.bf16.mxu0 0
      %4444 = vmatpush1.bf16.msra.mxu0 0
      %4445 = vmatprep.subr.bf16.mxu0 0
      %4446 = vmatpush1.bf16.msra.mxu0 0
      %4447 = vmatprep.subr.bf16.mxu0 0
      %4448 = vmatpush1.bf16.msra.mxu0 0
      %4449 = vmatprep.subr.bf16.mxu0 0
      %4450 = vmatpush1.bf16.msra.mxu0 0
      %4451 = vmatprep.mubr.bf16.mxu0 0
      %4452 = vmatmul.mubr.bf16.gmra.mrb[0].mxu0 %v4417
      %v4453 = vpop.f32.mrb[0].mxu0
      %v4454 = vadd.f32 0.0, %v4453
      %v4455 = vpop.f32.mrb[0].mxu0
      %v4456 = vpop.f32.mrb[0].mxu0
      %v4457 = vpop.f32.mrb[0].mxu0
      %4458 = vdwg.mxu0
      %4460 = vrot.lane.b32.xlu0 %v4173, 96
      %v4461 = vpop.permute.xlu0 %4460
      %v4464 = vsel %vm913, %v4409, 0
      %4466 = vmatprep.subr.bf16.mxu0 0
      %4467 = vmatpush1.bf16.msra.mxu0 %v4461
      %4468 = vmatprep.subr.bf16.mxu0 0
      %4469 = vmatpush1.bf16.msra.mxu0 0
      %4470 = vmatprep.subr.bf16.mxu0 0
      %4471 = vmatpush1.bf16.msra.mxu0 0
      %4472 = vmatprep.subr.bf16.mxu0 0
      %4473 = vmatpush1.bf16.msra.mxu0 0
      %4474 = vmatprep.subr.bf16.mxu0 0
      %4475 = vmatpush1.bf16.msra.mxu0 0
      %4476 = vmatprep.subr.bf16.mxu0 0
      %4477 = vmatpush1.bf16.msra.mxu0 0
      %4478 = vmatprep.subr.bf16.mxu0 0
      %4479 = vmatpush1.bf16.msra.mxu0 0
      %4480 = vmatprep.subr.bf16.mxu0 0
      %4481 = vmatpush1.bf16.msra.mxu0 0
      %4482 = vmatprep.subr.bf16.mxu0 0
      %4483 = vmatpush1.bf16.msra.mxu0 0
      %4484 = vmatprep.subr.bf16.mxu0 0
      %4485 = vmatpush1.bf16.msra.mxu0 0
      %4486 = vmatprep.subr.bf16.mxu0 0
      %4487 = vmatpush1.bf16.msra.mxu0 0
      %4488 = vmatprep.subr.bf16.mxu0 0
      %4489 = vmatpush1.bf16.msra.mxu0 0
      %4490 = vmatprep.subr.bf16.mxu0 0
      %4491 = vmatpush1.bf16.msra.mxu0 0
      %4492 = vmatprep.subr.bf16.mxu0 0
      %4493 = vmatpush1.bf16.msra.mxu0 0
      %4494 = vmatprep.subr.bf16.mxu0 0
      %4495 = vmatpush1.bf16.msra.mxu0 0
      %4496 = vmatprep.subr.bf16.mxu0 0
      %4497 = vmatpush1.bf16.msra.mxu0 0
      %4498 = vmatprep.mubr.bf16.mxu0 0
      %4499 = vmatmul.mubr.bf16.gmra.mrb[0].mxu0 %v4464
      %v4500 = vpop.f32.mrb[0].mxu0
      %v4501 = vadd.f32 0.0, %v4500
      %v4502 = vpop.f32.mrb[0].mxu0
      %v4503 = vpop.f32.mrb[0].mxu0
      %v4504 = vpop.f32.mrb[0].mxu0
      %4505 = vdwg.mxu0
      %4507 = vrot.lane.b32.xlu0 %v4174, 96
      %v4508 = vpop.permute.xlu0 %4507
      %v4511 = vsel %vm913, %v4410, 0
      %4513 = vmatprep.subr.bf16.mxu0 0
      %4514 = vmatpush1.bf16.msra.mxu0 %v4508
      %4515 = vmatprep.subr.bf16.mxu0 0
      %4516 = vmatpush1.bf16.msra.mxu0 0
      %4517 = vmatprep.subr.bf16.mxu0 0
      %4518 = vmatpush1.bf16.msra.mxu0 0
      %4519 = vmatprep.subr.bf16.mxu0 0
      %4520 = vmatpush1.bf16.msra.mxu0 0
      %4521 = vmatprep.subr.bf16.mxu0 0
      %4522 = vmatpush1.bf16.msra.mxu0 0
      %4523 = vmatprep.subr.bf16.mxu0 0
      %4524 = vmatpush1.bf16.msra.mxu0 0
      %4525 = vmatprep.subr.bf16.mxu0 0
      %4526 = vmatpush1.bf16.msra.mxu0 0
      %4527 = vmatprep.subr.bf16.mxu0 0
      %4528 = vmatpush1.bf16.msra.mxu0 0
      %4529 = vmatprep.subr.bf16.mxu0 0
      %4530 = vmatpush1.bf16.msra.mxu0 0
      %4531 = vmatprep.subr.bf16.mxu0 0
      %4532 = vmatpush1.bf16.msra.mxu0 0
      %4533 = vmatprep.subr.bf16.mxu0 0
      %4534 = vmatpush1.bf16.msra.mxu0 0
      %4535 = vmatprep.subr.bf16.mxu0 0
      %4536 = vmatpush1.bf16.msra.mxu0 0
      %4537 = vmatprep.subr.bf16.mxu0 0
      %4538 = vmatpush1.bf16.msra.mxu0 0
      %4539 = vmatprep.subr.bf16.mxu0 0
      %4540 = vmatpush1.bf16.msra.mxu0 0
      %4541 = vmatprep.subr.bf16.mxu0 0
      %4542 = vmatpush1.bf16.msra.mxu0 0
      %4543 = vmatprep.subr.bf16.mxu0 0
      %4544 = vmatpush1.bf16.msra.mxu0 0
      %4545 = vmatprep.mubr.bf16.mxu0 0
      %4546 = vmatmul.mubr.bf16.gmra.mrb[0].mxu0 %v4511
      %v4547 = vpop.f32.mrb[0].mxu0
      %v4548 = vadd.f32 0.0, %v4547
      %v4549 = vpop.f32.mrb[0].mxu0
      %v4550 = vpop.f32.mrb[0].mxu0
      %v4551 = vpop.f32.mrb[0].mxu0
      %4552 = vdwg.mxu0
      %4554 = vrot.lane.b32.xlu0 %v4175, 96
      %v4555 = vpop.permute.xlu0 %4554
      %v4558 = vsel %vm913, %v4411, 0
      %4560 = vmatprep.subr.bf16.mxu0 0
      %4561 = vmatpush1.bf16.msra.mxu0 %v4555
      %4562 = vmatprep.subr.bf16.mxu0 0
      %4563 = vmatpush1.bf16.msra.mxu0 0
      %4564 = vmatprep.subr.bf16.mxu0 0
      %4565 = vmatpush1.bf16.msra.mxu0 0
      %4566 = vmatprep.subr.bf16.mxu0 0
      %4567 = vmatpush1.bf16.msra.mxu0 0
      %4568 = vmatprep.subr.bf16.mxu0 0
      %4569 = vmatpush1.bf16.msra.mxu0 0
      %4570 = vmatprep.subr.bf16.mxu0 0
      %4571 = vmatpush1.bf16.msra.mxu0 0
      %4572 = vmatprep.subr.bf16.mxu0 0
      %4573 = vmatpush1.bf16.msra.mxu0 0
      %4574 = vmatprep.subr.bf16.mxu0 0
      %4575 = vmatpush1.bf16.msra.mxu0 0
      %4576 = vmatprep.subr.bf16.mxu0 0
      %4577 = vmatpush1.bf16.msra.mxu0 0
      %4578 = vmatprep.subr.bf16.mxu0 0
      %4579 = vmatpush1.bf16.msra.mxu0 0
      %4580 = vmatprep.subr.bf16.mxu0 0
      %4581 = vmatpush1.bf16.msra.mxu0 0
      %4582 = vmatprep.subr.bf16.mxu0 0
      %4583 = vmatpush1.bf16.msra.mxu0 0
      %4584 = vmatprep.subr.bf16.mxu0 0
      %4585 = vmatpush1.bf16.msra.mxu0 0
      %4586 = vmatprep.subr.bf16.mxu0 0
      %4587 = vmatpush1.bf16.msra.mxu0 0
      %4588 = vmatprep.subr.bf16.mxu0 0
      %4589 = vmatpush1.bf16.msra.mxu0 0
      %4590 = vmatprep.subr.bf16.mxu0 0
      %4591 = vmatpush1.bf16.msra.mxu0 0
      %4592 = vmatprep.mubr.bf16.mxu0 0
      %4593 = vmatmul.mubr.bf16.gmra.mrb[0].mxu0 %v4558
      %v4594 = vpop.f32.mrb[0].mxu0
      %v4595 = vadd.f32 0.0, %v4594
      %v4596 = vpop.f32.mrb[0].mxu0
      %v4597 = vpop.f32.mrb[0].mxu0
      %v4598 = vpop.f32.mrb[0].mxu0
      %4599 = vdwg.mxu0
      %4601 = vrot.lane.b32.xlu0 %v4168, 120
      %v4602 = vpop.permute.xlu0 %4601
      %4603 = vrot.lane.b32.xlu0 %v4172, 120
      %v4604 = vpop.permute.xlu0 %4603
      %v4606 = vsel %vm707, %v4602, 0
      %v4609 = vsel %vm707, %v4604, 0
      %4611 = vmatprep.subr.bf16.mxu0 0
      %4612 = vmatpush1.bf16.xpose.msra.mxu0 %v4609
      %4613 = vmatprep.subr.bf16.mxu0 0
      %4614 = vmatpush1.bf16.xpose.msra.mxu0 0
      %4615 = vmatprep.subr.bf16.mxu0 0
      %4616 = vmatpush1.bf16.xpose.msra.mxu0 0
      %4617 = vmatprep.subr.bf16.mxu0 0
      %4618 = vmatpush1.bf16.xpose.msra.mxu0 0
      %4619 = vmatprep.subr.bf16.mxu0 0
      %4620 = vmatpush1.bf16.xpose.msra.mxu0 0
      %4621 = vmatprep.subr.bf16.mxu0 0
      %4622 = vmatpush1.bf16.xpose.msra.mxu0 0
      %4623 = vmatprep.subr.bf16.mxu0 0
      %4624 = vmatpush1.bf16.xpose.msra.mxu0 0
      %4625 = vmatprep.subr.bf16.mxu0 0
      %4626 = vmatpush1.bf16.xpose.msra.mxu0 0
      %4627 = vmatprep.subr.bf16.mxu0 0
      %4628 = vmatpush1.bf16.xpose.msra.mxu0 0
      %4629 = vmatprep.subr.bf16.mxu0 0
      %4630 = vmatpush1.bf16.xpose.msra.mxu0 0
      %4631 = vmatprep.subr.bf16.mxu0 0
      %4632 = vmatpush1.bf16.xpose.msra.mxu0 0
      %4633 = vmatprep.subr.bf16.mxu0 0
      %4634 = vmatpush1.bf16.xpose.msra.mxu0 0
      %4635 = vmatprep.subr.bf16.mxu0 0
      %4636 = vmatpush1.bf16.xpose.msra.mxu0 0
      %4637 = vmatprep.subr.bf16.mxu0 0
      %4638 = vmatpush1.bf16.xpose.msra.mxu0 0
      %4639 = vmatprep.subr.bf16.mxu0 0
      %4640 = vmatpush1.bf16.xpose.msra.mxu0 0
      %4641 = vmatprep.subr.bf16.mxu0 0
      %4642 = vmatpush1.bf16.xpose.msra.mxu0 0
      %4643 = vmatprep.mubr.bf16.mxu0 0
      %4644 = vmatmul.mubr.bf16.gmra.mrb[0].mxu0 %v4606
      %v4645 = vpop.f32.mrb[0].mxu0
      %v4646 = vadd.f32 0.0, %v4645
      %v4647 = vpop.f32.mrb[0].mxu0
      %v4648 = vpop.f32.mrb[0].mxu0
      %v4649 = vpop.f32.mrb[0].mxu0
      %4650 = vdwg.mxu0
      %4652 = vrot.lane.b32.xlu0 %v4169, 120
      %v4653 = vpop.permute.xlu0 %4652
      %4654 = vrot.lane.b32.xlu0 %v4173, 120
      %v4655 = vpop.permute.xlu0 %4654
      %v4657 = vsel %vm707, %v4653, 0
      %v4660 = vsel %vm707, %v4655, 0
      %4662 = vmatprep.subr.bf16.mxu0 0
      %4663 = vmatpush1.bf16.xpose.msra.mxu0 %v4660
      %4664 = vmatprep.subr.bf16.mxu0 0
      %4665 = vmatpush1.bf16.xpose.msra.mxu0 0
      %4666 = vmatprep.subr.bf16.mxu0 0
      %4667 = vmatpush1.bf16.xpose.msra.mxu0 0
      %4668 = vmatprep.subr.bf16.mxu0 0
      %4669 = vmatpush1.bf16.xpose.msra.mxu0 0
      %4670 = vmatprep.subr.bf16.mxu0 0
      %4671 = vmatpush1.bf16.xpose.msra.mxu0 0
      %4672 = vmatprep.subr.bf16.mxu0 0
      %4673 = vmatpush1.bf16.xpose.msra.mxu0 0
      %4674 = vmatprep.subr.bf16.mxu0 0
      %4675 = vmatpush1.bf16.xpose.msra.mxu0 0
      %4676 = vmatprep.subr.bf16.mxu0 0
      %4677 = vmatpush1.bf16.xpose.msra.mxu0 0
      %4678 = vmatprep.subr.bf16.mxu0 0
      %4679 = vmatpush1.bf16.xpose.msra.mxu0 0
      %4680 = vmatprep.subr.bf16.mxu0 0
      %4681 = vmatpush1.bf16.xpose.msra.mxu0 0
      %4682 = vmatprep.subr.bf16.mxu0 0
      %4683 = vmatpush1.bf16.xpose.msra.mxu0 0
      %4684 = vmatprep.subr.bf16.mxu0 0
      %4685 = vmatpush1.bf16.xpose.msra.mxu0 0
      %4686 = vmatprep.subr.bf16.mxu0 0
      %4687 = vmatpush1.bf16.xpose.msra.mxu0 0
      %4688 = vmatprep.subr.bf16.mxu0 0
      %4689 = vmatpush1.bf16.xpose.msra.mxu0 0
      %4690 = vmatprep.subr.bf16.mxu0 0
      %4691 = vmatpush1.bf16.xpose.msra.mxu0 0
      %4692 = vmatprep.subr.bf16.mxu0 0
      %4693 = vmatpush1.bf16.xpose.msra.mxu0 0
      %4694 = vmatprep.mubr.bf16.mxu0 0
      %4695 = vmatmul.mubr.bf16.gmra.mrb[0].mxu0 %v4657
      %v4696 = vpop.f32.mrb[0].mxu0
      %v4697 = vadd.f32 0.0, %v4696
      %v4698 = vpop.f32.mrb[0].mxu0
      %v4699 = vpop.f32.mrb[0].mxu0
      %v4700 = vpop.f32.mrb[0].mxu0
      %4701 = vdwg.mxu0
      %4703 = vrot.lane.b32.xlu0 %v4170, 120
      %v4704 = vpop.permute.xlu0 %4703
      %4705 = vrot.lane.b32.xlu0 %v4174, 120
      %v4706 = vpop.permute.xlu0 %4705
      %v4708 = vsel %vm707, %v4704, 0
      %v4711 = vsel %vm707, %v4706, 0
      %4713 = vmatprep.subr.bf16.mxu0 0
      %4714 = vmatpush1.bf16.xpose.msra.mxu0 %v4711
      %4715 = vmatprep.subr.bf16.mxu0 0
      %4716 = vmatpush1.bf16.xpose.msra.mxu0 0
      %4717 = vmatprep.subr.bf16.mxu0 0
      %4718 = vmatpush1.bf16.xpose.msra.mxu0 0
      %4719 = vmatprep.subr.bf16.mxu0 0
      %4720 = vmatpush1.bf16.xpose.msra.mxu0 0
      %4721 = vmatprep.subr.bf16.mxu0 0
      %4722 = vmatpush1.bf16.xpose.msra.mxu0 0
      %4723 = vmatprep.subr.bf16.mxu0 0
      %4724 = vmatpush1.bf16.xpose.msra.mxu0 0
      %4725 = vmatprep.subr.bf16.mxu0 0
      %4726 = vmatpush1.bf16.xpose.msra.mxu0 0
      %4727 = vmatprep.subr.bf16.mxu0 0
      %4728 = vmatpush1.bf16.xpose.msra.mxu0 0
      %4729 = vmatprep.subr.bf16.mxu0 0
      %4730 = vmatpush1.bf16.xpose.msra.mxu0 0
      %4731 = vmatprep.subr.bf16.mxu0 0
      %4732 = vmatpush1.bf16.xpose.msra.mxu0 0
      %4733 = vmatprep.subr.bf16.mxu0 0
      %4734 = vmatpush1.bf16.xpose.msra.mxu0 0
      %4735 = vmatprep.subr.bf16.mxu0 0
      %4736 = vmatpush1.bf16.xpose.msra.mxu0 0
      %4737 = vmatprep.subr.bf16.mxu0 0
      %4738 = vmatpush1.bf16.xpose.msra.mxu0 0
      %4739 = vmatprep.subr.bf16.mxu0 0
      %4740 = vmatpush1.bf16.xpose.msra.mxu0 0
      %4741 = vmatprep.subr.bf16.mxu0 0
      %4742 = vmatpush1.bf16.xpose.msra.mxu0 0
      %4743 = vmatprep.subr.bf16.mxu0 0
      %4744 = vmatpush1.bf16.xpose.msra.mxu0 0
      %4745 = vmatprep.mubr.bf16.mxu0 0
      %4746 = vmatmul.mubr.bf16.gmra.mrb[0].mxu0 %v4708
      %v4747 = vpop.f32.mrb[0].mxu0
      %v4748 = vadd.f32 0.0, %v4747
      %v4749 = vpop.f32.mrb[0].mxu0
      %v4750 = vpop.f32.mrb[0].mxu0
      %v4751 = vpop.f32.mrb[0].mxu0
      %4752 = vdwg.mxu0
      %4754 = vrot.lane.b32.xlu0 %v4171, 120
      %v4755 = vpop.permute.xlu0 %4754
      %4756 = vrot.lane.b32.xlu0 %v4175, 120
      %v4757 = vpop.permute.xlu0 %4756
      %v4759 = vsel %vm707, %v4755, 0
      %v4762 = vsel %vm707, %v4757, 0
      %4764 = vmatprep.subr.bf16.mxu0 0
      %4765 = vmatpush1.bf16.xpose.msra.mxu0 %v4762
      %4766 = vmatprep.subr.bf16.mxu0 0
      %4767 = vmatpush1.bf16.xpose.msra.mxu0 0
      %4768 = vmatprep.subr.bf16.mxu0 0
      %4769 = vmatpush1.bf16.xpose.msra.mxu0 0
      %4770 = vmatprep.subr.bf16.mxu0 0
      %4771 = vmatpush1.bf16.xpose.msra.mxu0 0
      %4772 = vmatprep.subr.bf16.mxu0 0
      %4773 = vmatpush1.bf16.xpose.msra.mxu0 0
      %4774 = vmatprep.subr.bf16.mxu0 0
      %4775 = vmatpush1.bf16.xpose.msra.mxu0 0
      %4776 = vmatprep.subr.bf16.mxu0 0
      %4777 = vmatpush1.bf16.xpose.msra.mxu0 0
      %4778 = vmatprep.subr.bf16.mxu0 0
      %4779 = vmatpush1.bf16.xpose.msra.mxu0 0
      %4780 = vmatprep.subr.bf16.mxu0 0
      %4781 = vmatpush1.bf16.xpose.msra.mxu0 0
      %4782 = vmatprep.subr.bf16.mxu0 0
      %4783 = vmatpush1.bf16.xpose.msra.mxu0 0
      %4784 = vmatprep.subr.bf16.mxu0 0
      %4785 = vmatpush1.bf16.xpose.msra.mxu0 0
      %4786 = vmatprep.subr.bf16.mxu0 0
      %4787 = vmatpush1.bf16.xpose.msra.mxu0 0
      %4788 = vmatprep.subr.bf16.mxu0 0
      %4789 = vmatpush1.bf16.xpose.msra.mxu0 0
      %4790 = vmatprep.subr.bf16.mxu0 0
      %4791 = vmatpush1.bf16.xpose.msra.mxu0 0
      %4792 = vmatprep.subr.bf16.mxu0 0
      %4793 = vmatpush1.bf16.xpose.msra.mxu0 0
      %4794 = vmatprep.subr.bf16.mxu0 0
      %4795 = vmatpush1.bf16.xpose.msra.mxu0 0
      %4796 = vmatprep.mubr.bf16.mxu0 0
      %4797 = vmatmul.mubr.bf16.gmra.mrb[0].mxu0 %v4759
      %v4798 = vpop.f32.mrb[0].mxu0
      %v4799 = vadd.f32 0.0, %v4798
      %v4800 = vpop.f32.mrb[0].mxu0
      %v4801 = vpop.f32.mrb[0].mxu0
      %v4802 = vpop.f32.mrb[0].mxu0
      %4803 = vdwg.mxu0
      %v4804 = vmul.f32 %v4646, 0.35355338
      %v4805 = vmul.f32 %v4697, 0.35355338
      %v4806 = vmul.f32 %v4748, 0.35355338
      %v4807 = vmul.f32 %v4799, 0.35355338
      %v4808 = vsel %vm913, %v4804, -inf
      %4809 = vmax.xlane.f32.xlu0 %v4808
      %v4810 = vpop.xlane.xlu0 %4809
      %v4811 = vsel %vm913, %v4805, -inf
      %4812 = vmax.xlane.f32.xlu0 %v4811
      %v4813 = vpop.xlane.xlu0 %4812
      %v4814 = vsel %vm913, %v4806, -inf
      %4815 = vmax.xlane.f32.xlu0 %v4814
      %v4816 = vpop.xlane.xlu0 %4815
      %v4817 = vsel %vm913, %v4807, -inf
      %4818 = vmax.xlane.f32.xlu0 %v4817
      %v4819 = vpop.xlane.xlu0 %4818
      %v4820 = vsub.f32 %v4804, %v4810
      %v4821 = vsub.f32 %v4805, %v4813
      %v4822 = vsub.f32 %v4806, %v4816
      %v4823 = vsub.f32 %v4807, %v4819
      %v4824 = vmul.f32 %v4820, 1.442695
      %v4825 = vpow.pop %v4824
      %v4826 = vmul.f32 %v4821, 1.442695
      %v4827 = vpow.pop %v4826
      %v4828 = vmul.f32 %v4822, 1.442695
      %v4829 = vpow.pop %v4828
      %v4830 = vmul.f32 %v4823, 1.442695
      %v4831 = vpow.pop %v4830
      %v4832 = vsel %vm913, %v4825, 0.0
      %4833 = vadd.xlane.f32.xlu0 %v4832
      %v4834 = vpop.xlane.xlu0 %4833
      %v4835 = vsel %vm913, %v4827, 0.0
      %4836 = vadd.xlane.f32.xlu0 %v4835
      %v4837 = vpop.xlane.xlu0 %4836
      %v4838 = vsel %vm913, %v4829, 0.0
      %4839 = vadd.xlane.f32.xlu0 %v4838
      %v4840 = vpop.xlane.xlu0 %4839
      %v4841 = vsel %vm913, %v4831, 0.0
      %4842 = vadd.xlane.f32.xlu0 %v4841
      %v4843 = vpop.xlane.xlu0 %4842
      %v4844 = vrcp.pop %v4834
      %v4845 = vrcp.pop %v4837
      %v4846 = vrcp.pop %v4840
      %v4847 = vrcp.pop %v4843
      %v4848 = vmul.f32 %v4825, %v4844
      %v4849 = vmul.f32 %v4827, %v4845
      %v4850 = vmul.f32 %v4829, %v4846
      %v4851 = vmul.f32 %v4831, %v4847
      %v4852 = vpack.c.bf16 %v4848, %v4848
      %v4853 = vpack.c.bf16 %v4849, %v4849
      %v4854 = vpack.c.bf16 %v4850, %v4850
      %v4855 = vpack.c.bf16 %v4851, %v4851
      %4856 = vrot.lane.b32.xlu0 %v4172, 88
      %v4857 = vpop.permute.xlu0 %4856
      %v4860 = vsel %vm913, %v4852, 0
      %4862 = vmatprep.subr.bf16.mxu0 0
      %4863 = vmatpush1.bf16.msra.mxu0 %v4857
      %4864 = vmatprep.subr.bf16.mxu0 0
      %4865 = vmatpush1.bf16.msra.mxu0 0
      %4866 = vmatprep.subr.bf16.mxu0 0
      %4867 = vmatpush1.bf16.msra.mxu0 0
      %4868 = vmatprep.subr.bf16.mxu0 0
      %4869 = vmatpush1.bf16.msra.mxu0 0
      %4870 = vmatprep.subr.bf16.mxu0 0
      %4871 = vmatpush1.bf16.msra.mxu0 0
      %4872 = vmatprep.subr.bf16.mxu0 0
      %4873 = vmatpush1.bf16.msra.mxu0 0
      %4874 = vmatprep.subr.bf16.mxu0 0
      %4875 = vmatpush1.bf16.msra.mxu0 0
      %4876 = vmatprep.subr.bf16.mxu0 0
      %4877 = vmatpush1.bf16.msra.mxu0 0
      %4878 = vmatprep.subr.bf16.mxu0 0
      %4879 = vmatpush1.bf16.msra.mxu0 0
      %4880 = vmatprep.subr.bf16.mxu0 0
      %4881 = vmatpush1.bf16.msra.mxu0 0
      %4882 = vmatprep.subr.bf16.mxu0 0
      %4883 = vmatpush1.bf16.msra.mxu0 0
      %4884 = vmatprep.subr.bf16.mxu0 0
      %4885 = vmatpush1.bf16.msra.mxu0 0
      %4886 = vmatprep.subr.bf16.mxu0 0
      %4887 = vmatpush1.bf16.msra.mxu0 0
      %4888 = vmatprep.subr.bf16.mxu0 0
      %4889 = vmatpush1.bf16.msra.mxu0 0
      %4890 = vmatprep.subr.bf16.mxu0 0
      %4891 = vmatpush1.bf16.msra.mxu0 0
      %4892 = vmatprep.subr.bf16.mxu0 0
      %4893 = vmatpush1.bf16.msra.mxu0 0
      %4894 = vmatprep.mubr.bf16.mxu0 0
      %4895 = vmatmul.mubr.bf16.gmra.mrb[0].mxu0 %v4860
      %v4896 = vpop.f32.mrb[0].mxu0
      %v4897 = vadd.f32 0.0, %v4896
      %v4898 = vpop.f32.mrb[0].mxu0
      %v4899 = vpop.f32.mrb[0].mxu0
      %v4900 = vpop.f32.mrb[0].mxu0
      %4901 = vdwg.mxu0
      %4902 = vrot.lane.b32.xlu0 %v4173, 88
      %v4903 = vpop.permute.xlu0 %4902
      %v4906 = vsel %vm913, %v4853, 0
      %4908 = vmatprep.subr.bf16.mxu0 0
      %4909 = vmatpush1.bf16.msra.mxu0 %v4903
      %4910 = vmatprep.subr.bf16.mxu0 0
      %4911 = vmatpush1.bf16.msra.mxu0 0
      %4912 = vmatprep.subr.bf16.mxu0 0
      %4913 = vmatpush1.bf16.msra.mxu0 0
      %4914 = vmatprep.subr.bf16.mxu0 0
      %4915 = vmatpush1.bf16.msra.mxu0 0
      %4916 = vmatprep.subr.bf16.mxu0 0
      %4917 = vmatpush1.bf16.msra.mxu0 0
      %4918 = vmatprep.subr.bf16.mxu0 0
      %4919 = vmatpush1.bf16.msra.mxu0 0
      %4920 = vmatprep.subr.bf16.mxu0 0
      %4921 = vmatpush1.bf16.msra.mxu0 0
      %4922 = vmatprep.subr.bf16.mxu0 0
      %4923 = vmatpush1.bf16.msra.mxu0 0
      %4924 = vmatprep.subr.bf16.mxu0 0
      %4925 = vmatpush1.bf16.msra.mxu0 0
      %4926 = vmatprep.subr.bf16.mxu0 0
      %4927 = vmatpush1.bf16.msra.mxu0 0
      %4928 = vmatprep.subr.bf16.mxu0 0
      %4929 = vmatpush1.bf16.msra.mxu0 0
      %4930 = vmatprep.subr.bf16.mxu0 0
      %4931 = vmatpush1.bf16.msra.mxu0 0
      %4932 = vmatprep.subr.bf16.mxu0 0
      %4933 = vmatpush1.bf16.msra.mxu0 0
      %4934 = vmatprep.subr.bf16.mxu0 0
      %4935 = vmatpush1.bf16.msra.mxu0 0
      %4936 = vmatprep.subr.bf16.mxu0 0
      %4937 = vmatpush1.bf16.msra.mxu0 0
      %4938 = vmatprep.subr.bf16.mxu0 0
      %4939 = vmatpush1.bf16.msra.mxu0 0
      %4940 = vmatprep.mubr.bf16.mxu0 0
      %4941 = vmatmul.mubr.bf16.gmra.mrb[0].mxu0 %v4906
      %v4942 = vpop.f32.mrb[0].mxu0
      %v4943 = vadd.f32 0.0, %v4942
      %v4944 = vpop.f32.mrb[0].mxu0
      %v4945 = vpop.f32.mrb[0].mxu0
      %v4946 = vpop.f32.mrb[0].mxu0
      %4947 = vdwg.mxu0
      %4948 = vrot.lane.b32.xlu0 %v4174, 88
      %v4949 = vpop.permute.xlu0 %4948
      %v4952 = vsel %vm913, %v4854, 0
      %4954 = vmatprep.subr.bf16.mxu0 0
      %4955 = vmatpush1.bf16.msra.mxu0 %v4949
      %4956 = vmatprep.subr.bf16.mxu0 0
      %4957 = vmatpush1.bf16.msra.mxu0 0
      %4958 = vmatprep.subr.bf16.mxu0 0
      %4959 = vmatpush1.bf16.msra.mxu0 0
      %4960 = vmatprep.subr.bf16.mxu0 0
      %4961 = vmatpush1.bf16.msra.mxu0 0
      %4962 = vmatprep.subr.bf16.mxu0 0
      %4963 = vmatpush1.bf16.msra.mxu0 0
      %4964 = vmatprep.subr.bf16.mxu0 0
      %4965 = vmatpush1.bf16.msra.mxu0 0
      %4966 = vmatprep.subr.bf16.mxu0 0
      %4967 = vmatpush1.bf16.msra.mxu0 0
      %4968 = vmatprep.subr.bf16.mxu0 0
      %4969 = vmatpush1.bf16.msra.mxu0 0
      %4970 = vmatprep.subr.bf16.mxu0 0
      %4971 = vmatpush1.bf16.msra.mxu0 0
      %4972 = vmatprep.subr.bf16.mxu0 0
      %4973 = vmatpush1.bf16.msra.mxu0 0
      %4974 = vmatprep.subr.bf16.mxu0 0
      %4975 = vmatpush1.bf16.msra.mxu0 0
      %4976 = vmatprep.subr.bf16.mxu0 0
      %4977 = vmatpush1.bf16.msra.mxu0 0
      %4978 = vmatprep.subr.bf16.mxu0 0
      %4979 = vmatpush1.bf16.msra.mxu0 0
      %4980 = vmatprep.subr.bf16.mxu0 0
      %4981 = vmatpush1.bf16.msra.mxu0 0
      %4982 = vmatprep.subr.bf16.mxu0 0
      %4983 = vmatpush1.bf16.msra.mxu0 0
      %4984 = vmatprep.subr.bf16.mxu0 0
      %4985 = vmatpush1.bf16.msra.mxu0 0
      %4986 = vmatprep.mubr.bf16.mxu0 0
      %4987 = vmatmul.mubr.bf16.gmra.mrb[0].mxu0 %v4952
      %v4988 = vpop.f32.mrb[0].mxu0
      %v4989 = vadd.f32 0.0, %v4988
      %v4990 = vpop.f32.mrb[0].mxu0
      %v4991 = vpop.f32.mrb[0].mxu0
      %v4992 = vpop.f32.mrb[0].mxu0
      %4993 = vdwg.mxu0
      %4994 = vrot.lane.b32.xlu0 %v4175, 88
      %v4995 = vpop.permute.xlu0 %4994
      %v4998 = vsel %vm913, %v4855, 0
      %5000 = vmatprep.subr.bf16.mxu0 0
      %5001 = vmatpush1.bf16.msra.mxu0 %v4995
      %5002 = vmatprep.subr.bf16.mxu0 0
      %5003 = vmatpush1.bf16.msra.mxu0 0
      %5004 = vmatprep.subr.bf16.mxu0 0
      %5005 = vmatpush1.bf16.msra.mxu0 0
      %5006 = vmatprep.subr.bf16.mxu0 0
      %5007 = vmatpush1.bf16.msra.mxu0 0
      %5008 = vmatprep.subr.bf16.mxu0 0
      %5009 = vmatpush1.bf16.msra.mxu0 0
      %5010 = vmatprep.subr.bf16.mxu0 0
      %5011 = vmatpush1.bf16.msra.mxu0 0
      %5012 = vmatprep.subr.bf16.mxu0 0
      %5013 = vmatpush1.bf16.msra.mxu0 0
      %5014 = vmatprep.subr.bf16.mxu0 0
      %5015 = vmatpush1.bf16.msra.mxu0 0
      %5016 = vmatprep.subr.bf16.mxu0 0
      %5017 = vmatpush1.bf16.msra.mxu0 0
      %5018 = vmatprep.subr.bf16.mxu0 0
      %5019 = vmatpush1.bf16.msra.mxu0 0
      %5020 = vmatprep.subr.bf16.mxu0 0
      %5021 = vmatpush1.bf16.msra.mxu0 0
      %5022 = vmatprep.subr.bf16.mxu0 0
      %5023 = vmatpush1.bf16.msra.mxu0 0
      %5024 = vmatprep.subr.bf16.mxu0 0
      %5025 = vmatpush1.bf16.msra.mxu0 0
      %5026 = vmatprep.subr.bf16.mxu0 0
      %5027 = vmatpush1.bf16.msra.mxu0 0
      %5028 = vmatprep.subr.bf16.mxu0 0
      %5029 = vmatpush1.bf16.msra.mxu0 0
      %5030 = vmatprep.subr.bf16.mxu0 0
      %5031 = vmatpush1.bf16.msra.mxu0 0
      %5032 = vmatprep.mubr.bf16.mxu0 0
      %5033 = vmatmul.mubr.bf16.gmra.mrb[0].mxu0 %v4998
      %v5034 = vpop.f32.mrb[0].mxu0
      %v5035 = vadd.f32 0.0, %v5034
      %v5036 = vpop.f32.mrb[0].mxu0
      %v5037 = vpop.f32.mrb[0].mxu0
      %v5038 = vpop.f32.mrb[0].mxu0
      %5039 = vdwg.mxu0
      %5040 = vrot.lane.b32.xlu0 %v4168, 112
      %v5041 = vpop.permute.xlu0 %5040
      %5042 = vrot.lane.b32.xlu0 %v4172, 112
      %v5043 = vpop.permute.xlu0 %5042
      %v5045 = vsel %vm707, %v5041, 0
      %v5048 = vsel %vm707, %v5043, 0
      %5050 = vmatprep.subr.bf16.mxu0 0
      %5051 = vmatpush1.bf16.xpose.msra.mxu0 %v5048
      %5052 = vmatprep.subr.bf16.mxu0 0
      %5053 = vmatpush1.bf16.xpose.msra.mxu0 0
      %5054 = vmatprep.subr.bf16.mxu0 0
      %5055 = vmatpush1.bf16.xpose.msra.mxu0 0
      %5056 = vmatprep.subr.bf16.mxu0 0
      %5057 = vmatpush1.bf16.xpose.msra.mxu0 0
      %5058 = vmatprep.subr.bf16.mxu0 0
      %5059 = vmatpush1.bf16.xpose.msra.mxu0 0
      %5060 = vmatprep.subr.bf16.mxu0 0
      %5061 = vmatpush1.bf16.xpose.msra.mxu0 0
      %5062 = vmatprep.subr.bf16.mxu0 0
      %5063 = vmatpush1.bf16.xpose.msra.mxu0 0
      %5064 = vmatprep.subr.bf16.mxu0 0
      %5065 = vmatpush1.bf16.xpose.msra.mxu0 0
      %5066 = vmatprep.subr.bf16.mxu0 0
      %5067 = vmatpush1.bf16.xpose.msra.mxu0 0
      %5068 = vmatprep.subr.bf16.mxu0 0
      %5069 = vmatpush1.bf16.xpose.msra.mxu0 0
      %5070 = vmatprep.subr.bf16.mxu0 0
      %5071 = vmatpush1.bf16.xpose.msra.mxu0 0
      %5072 = vmatprep.subr.bf16.mxu0 0
      %5073 = vmatpush1.bf16.xpose.msra.mxu0 0
      %5074 = vmatprep.subr.bf16.mxu0 0
      %5075 = vmatpush1.bf16.xpose.msra.mxu0 0
      %5076 = vmatprep.subr.bf16.mxu0 0
      %5077 = vmatpush1.bf16.xpose.msra.mxu0 0
      %5078 = vmatprep.subr.bf16.mxu0 0
      %5079 = vmatpush1.bf16.xpose.msra.mxu0 0
      %5080 = vmatprep.subr.bf16.mxu0 0
      %5081 = vmatpush1.bf16.xpose.msra.mxu0 0
      %5082 = vmatprep.mubr.bf16.mxu0 0
      %5083 = vmatmul.mubr.bf16.gmra.mrb[0].mxu0 %v5045
      %v5084 = vpop.f32.mrb[0].mxu0
      %v5085 = vadd.f32 0.0, %v5084
      %v5086 = vpop.f32.mrb[0].mxu0
      %v5087 = vpop.f32.mrb[0].mxu0
      %v5088 = vpop.f32.mrb[0].mxu0
      %5089 = vdwg.mxu0
      %5090 = vrot.lane.b32.xlu0 %v4169, 112
      %v5091 = vpop.permute.xlu0 %5090
      %5092 = vrot.lane.b32.xlu0 %v4173, 112
      %v5093 = vpop.permute.xlu0 %5092
      %v5095 = vsel %vm707, %v5091, 0
      %v5098 = vsel %vm707, %v5093, 0
      %5100 = vmatprep.subr.bf16.mxu0 0
      %5101 = vmatpush1.bf16.xpose.msra.mxu0 %v5098
      %5102 = vmatprep.subr.bf16.mxu0 0
      %5103 = vmatpush1.bf16.xpose.msra.mxu0 0
      %5104 = vmatprep.subr.bf16.mxu0 0
      %5105 = vmatpush1.bf16.xpose.msra.mxu0 0
      %5106 = vmatprep.subr.bf16.mxu0 0
      %5107 = vmatpush1.bf16.xpose.msra.mxu0 0
      %5108 = vmatprep.subr.bf16.mxu0 0
      %5109 = vmatpush1.bf16.xpose.msra.mxu0 0
      %5110 = vmatprep.subr.bf16.mxu0 0
      %5111 = vmatpush1.bf16.xpose.msra.mxu0 0
      %5112 = vmatprep.subr.bf16.mxu0 0
      %5113 = vmatpush1.bf16.xpose.msra.mxu0 0
      %5114 = vmatprep.subr.bf16.mxu0 0
      %5115 = vmatpush1.bf16.xpose.msra.mxu0 0
      %5116 = vmatprep.subr.bf16.mxu0 0
      %5117 = vmatpush1.bf16.xpose.msra.mxu0 0
      %5118 = vmatprep.subr.bf16.mxu0 0
      %5119 = vmatpush1.bf16.xpose.msra.mxu0 0
      %5120 = vmatprep.subr.bf16.mxu0 0
      %5121 = vmatpush1.bf16.xpose.msra.mxu0 0
      %5122 = vmatprep.subr.bf16.mxu0 0
      %5123 = vmatpush1.bf16.xpose.msra.mxu0 0
      %5124 = vmatprep.subr.bf16.mxu0 0
      %5125 = vmatpush1.bf16.xpose.msra.mxu0 0
      %5126 = vmatprep.subr.bf16.mxu0 0
      %5127 = vmatpush1.bf16.xpose.msra.mxu0 0
      %5128 = vmatprep.subr.bf16.mxu0 0
      %5129 = vmatpush1.bf16.xpose.msra.mxu0 0
      %5130 = vmatprep.subr.bf16.mxu0 0
      %5131 = vmatpush1.bf16.xpose.msra.mxu0 0
      %5132 = vmatprep.mubr.bf16.mxu0 0
      %5133 = vmatmul.mubr.bf16.gmra.mrb[0].mxu0 %v5095
      %v5134 = vpop.f32.mrb[0].mxu0
      %v5135 = vadd.f32 0.0, %v5134
      %v5136 = vpop.f32.mrb[0].mxu0
      %v5137 = vpop.f32.mrb[0].mxu0
      %v5138 = vpop.f32.mrb[0].mxu0
      %5139 = vdwg.mxu0
      %5140 = vrot.lane.b32.xlu0 %v4170, 112
      %v5141 = vpop.permute.xlu0 %5140
      %5142 = vrot.lane.b32.xlu0 %v4174, 112
      %v5143 = vpop.permute.xlu0 %5142
      %v5145 = vsel %vm707, %v5141, 0
      %v5148 = vsel %vm707, %v5143, 0
      %5150 = vmatprep.subr.bf16.mxu0 0
      %5151 = vmatpush1.bf16.xpose.msra.mxu0 %v5148
      %5152 = vmatprep.subr.bf16.mxu0 0
      %5153 = vmatpush1.bf16.xpose.msra.mxu0 0
      %5154 = vmatprep.subr.bf16.mxu0 0
      %5155 = vmatpush1.bf16.xpose.msra.mxu0 0
      %5156 = vmatprep.subr.bf16.mxu0 0
      %5157 = vmatpush1.bf16.xpose.msra.mxu0 0
      %5158 = vmatprep.subr.bf16.mxu0 0
      %5159 = vmatpush1.bf16.xpose.msra.mxu0 0
      %5160 = vmatprep.subr.bf16.mxu0 0
      %5161 = vmatpush1.bf16.xpose.msra.mxu0 0
      %5162 = vmatprep.subr.bf16.mxu0 0
      %5163 = vmatpush1.bf16.xpose.msra.mxu0 0
      %5164 = vmatprep.subr.bf16.mxu0 0
      %5165 = vmatpush1.bf16.xpose.msra.mxu0 0
      %5166 = vmatprep.subr.bf16.mxu0 0
      %5167 = vmatpush1.bf16.xpose.msra.mxu0 0
      %5168 = vmatprep.subr.bf16.mxu0 0
      %5169 = vmatpush1.bf16.xpose.msra.mxu0 0
      %5170 = vmatprep.subr.bf16.mxu0 0
      %5171 = vmatpush1.bf16.xpose.msra.mxu0 0
      %5172 = vmatprep.subr.bf16.mxu0 0
      %5173 = vmatpush1.bf16.xpose.msra.mxu0 0
      %5174 = vmatprep.subr.bf16.mxu0 0
      %5175 = vmatpush1.bf16.xpose.msra.mxu0 0
      %5176 = vmatprep.subr.bf16.mxu0 0
      %5177 = vmatpush1.bf16.xpose.msra.mxu0 0
      %5178 = vmatprep.subr.bf16.mxu0 0
      %5179 = vmatpush1.bf16.xpose.msra.mxu0 0
      %5180 = vmatprep.subr.bf16.mxu0 0
      %5181 = vmatpush1.bf16.xpose.msra.mxu0 0
      %5182 = vmatprep.mubr.bf16.mxu0 0
      %5183 = vmatmul.mubr.bf16.gmra.mrb[0].mxu0 %v5145
      %v5184 = vpop.f32.mrb[0].mxu0
      %v5185 = vadd.f32 0.0, %v5184
      %v5186 = vpop.f32.mrb[0].mxu0
      %v5187 = vpop.f32.mrb[0].mxu0
      %v5188 = vpop.f32.mrb[0].mxu0
      %5189 = vdwg.mxu0
      %5190 = vrot.lane.b32.xlu0 %v4171, 112
      %v5191 = vpop.permute.xlu0 %5190
      %5192 = vrot.lane.b32.xlu0 %v4175, 112
      %v5193 = vpop.permute.xlu0 %5192
      %v5195 = vsel %vm707, %v5191, 0
      %v5198 = vsel %vm707, %v5193, 0
      %5200 = vmatprep.subr.bf16.mxu0 0
      %5201 = vmatpush1.bf16.xpose.msra.mxu0 %v5198
      %5202 = vmatprep.subr.bf16.mxu0 0
      %5203 = vmatpush1.bf16.xpose.msra.mxu0 0
      %5204 = vmatprep.subr.bf16.mxu0 0
      %5205 = vmatpush1.bf16.xpose.msra.mxu0 0
      %5206 = vmatprep.subr.bf16.mxu0 0
      %5207 = vmatpush1.bf16.xpose.msra.mxu0 0
      %5208 = vmatprep.subr.bf16.mxu0 0
      %5209 = vmatpush1.bf16.xpose.msra.mxu0 0
      %5210 = vmatprep.subr.bf16.mxu0 0
      %5211 = vmatpush1.bf16.xpose.msra.mxu0 0
      %5212 = vmatprep.subr.bf16.mxu0 0
      %5213 = vmatpush1.bf16.xpose.msra.mxu0 0
      %5214 = vmatprep.subr.bf16.mxu0 0
      %5215 = vmatpush1.bf16.xpose.msra.mxu0 0
      %5216 = vmatprep.subr.bf16.mxu0 0
      %5217 = vmatpush1.bf16.xpose.msra.mxu0 0
      %5218 = vmatprep.subr.bf16.mxu0 0
      %5219 = vmatpush1.bf16.xpose.msra.mxu0 0
      %5220 = vmatprep.subr.bf16.mxu0 0
      %5221 = vmatpush1.bf16.xpose.msra.mxu0 0
      %5222 = vmatprep.subr.bf16.mxu0 0
      %5223 = vmatpush1.bf16.xpose.msra.mxu0 0
      %5224 = vmatprep.subr.bf16.mxu0 0
      %5225 = vmatpush1.bf16.xpose.msra.mxu0 0
      %5226 = vmatprep.subr.bf16.mxu0 0
      %5227 = vmatpush1.bf16.xpose.msra.mxu0 0
      %5228 = vmatprep.subr.bf16.mxu0 0
      %5229 = vmatpush1.bf16.xpose.msra.mxu0 0
      %5230 = vmatprep.subr.bf16.mxu0 0
      %5231 = vmatpush1.bf16.xpose.msra.mxu0 0
      %5232 = vmatprep.mubr.bf16.mxu0 0
      %5233 = vmatmul.mubr.bf16.gmra.mrb[0].mxu0 %v5195
      %v5234 = vpop.f32.mrb[0].mxu0
      %v5235 = vadd.f32 0.0, %v5234
      %v5236 = vpop.f32.mrb[0].mxu0
      %v5237 = vpop.f32.mrb[0].mxu0
      %v5238 = vpop.f32.mrb[0].mxu0
      %5239 = vdwg.mxu0
      %v5240 = vmul.f32 %v5085, 0.35355338
      %v5241 = vmul.f32 %v5135, 0.35355338
      %v5242 = vmul.f32 %v5185, 0.35355338
      %v5243 = vmul.f32 %v5235, 0.35355338
      %v5244 = vsel %vm913, %v5240, -inf
      %5245 = vmax.xlane.f32.xlu0 %v5244
      %v5246 = vpop.xlane.xlu0 %5245
      %v5247 = vsel %vm913, %v5241, -inf
      %5248 = vmax.xlane.f32.xlu0 %v5247
      %v5249 = vpop.xlane.xlu0 %5248
      %v5250 = vsel %vm913, %v5242, -inf
      %5251 = vmax.xlane.f32.xlu0 %v5250
      %v5252 = vpop.xlane.xlu0 %5251
      %v5253 = vsel %vm913, %v5243, -inf
      %5254 = vmax.xlane.f32.xlu0 %v5253
      %v5255 = vpop.xlane.xlu0 %5254
      %v5256 = vsub.f32 %v5240, %v5246
      %v5257 = vsub.f32 %v5241, %v5249
      %v5258 = vsub.f32 %v5242, %v5252
      %v5259 = vsub.f32 %v5243, %v5255
      %v5260 = vmul.f32 %v5256, 1.442695
      %v5261 = vpow.pop %v5260
      %v5262 = vmul.f32 %v5257, 1.442695
      %v5263 = vpow.pop %v5262
      %v5264 = vmul.f32 %v5258, 1.442695
      %v5265 = vpow.pop %v5264
      %v5266 = vmul.f32 %v5259, 1.442695
      %v5267 = vpow.pop %v5266
      %v5268 = vsel %vm913, %v5261, 0.0
      %5269 = vadd.xlane.f32.xlu0 %v5268
      %v5270 = vpop.xlane.xlu0 %5269
      %v5271 = vsel %vm913, %v5263, 0.0
      %5272 = vadd.xlane.f32.xlu0 %v5271
      %v5273 = vpop.xlane.xlu0 %5272
      %v5274 = vsel %vm913, %v5265, 0.0
      %5275 = vadd.xlane.f32.xlu0 %v5274
      %v5276 = vpop.xlane.xlu0 %5275
      %v5277 = vsel %vm913, %v5267, 0.0
      %5278 = vadd.xlane.f32.xlu0 %v5277
      %v5279 = vpop.xlane.xlu0 %5278
      %v5280 = vrcp.pop %v5270
      %v5281 = vrcp.pop %v5273
      %v5282 = vrcp.pop %v5276
      %v5283 = vrcp.pop %v5279
      %v5284 = vmul.f32 %v5261, %v5280
      %v5285 = vmul.f32 %v5263, %v5281
      %v5286 = vmul.f32 %v5265, %v5282
      %v5287 = vmul.f32 %v5267, %v5283
      %v5288 = vpack.c.bf16 %v5284, %v5284
      %v5289 = vpack.c.bf16 %v5285, %v5285
      %v5290 = vpack.c.bf16 %v5286, %v5286
      %v5291 = vpack.c.bf16 %v5287, %v5287
      %5292 = vrot.lane.b32.xlu0 %v4172, 80
      %v5293 = vpop.permute.xlu0 %5292
      %v5296 = vsel %vm913, %v5288, 0
      %5298 = vmatprep.subr.bf16.mxu0 0
      %5299 = vmatpush1.bf16.msra.mxu0 %v5293
      %5300 = vmatprep.subr.bf16.mxu0 0
      %5301 = vmatpush1.bf16.msra.mxu0 0
      %5302 = vmatprep.subr.bf16.mxu0 0
      %5303 = vmatpush1.bf16.msra.mxu0 0
      %5304 = vmatprep.subr.bf16.mxu0 0
      %5305 = vmatpush1.bf16.msra.mxu0 0
      %5306 = vmatprep.subr.bf16.mxu0 0
      %5307 = vmatpush1.bf16.msra.mxu0 0
      %5308 = vmatprep.subr.bf16.mxu0 0
      %5309 = vmatpush1.bf16.msra.mxu0 0
      %5310 = vmatprep.subr.bf16.mxu0 0
      %5311 = vmatpush1.bf16.msra.mxu0 0
      %5312 = vmatprep.subr.bf16.mxu0 0
      %5313 = vmatpush1.bf16.msra.mxu0 0
      %5314 = vmatprep.subr.bf16.mxu0 0
      %5315 = vmatpush1.bf16.msra.mxu0 0
      %5316 = vmatprep.subr.bf16.mxu0 0
      %5317 = vmatpush1.bf16.msra.mxu0 0
      %5318 = vmatprep.subr.bf16.mxu0 0
      %5319 = vmatpush1.bf16.msra.mxu0 0
      %5320 = vmatprep.subr.bf16.mxu0 0
      %5321 = vmatpush1.bf16.msra.mxu0 0
      %5322 = vmatprep.subr.bf16.mxu0 0
      %5323 = vmatpush1.bf16.msra.mxu0 0
      %5324 = vmatprep.subr.bf16.mxu0 0
      %5325 = vmatpush1.bf16.msra.mxu0 0
      %5326 = vmatprep.subr.bf16.mxu0 0
      %5327 = vmatpush1.bf16.msra.mxu0 0
      %5328 = vmatprep.subr.bf16.mxu0 0
      %5329 = vmatpush1.bf16.msra.mxu0 0
      %5330 = vmatprep.mubr.bf16.mxu0 0
      %5331 = vmatmul.mubr.bf16.gmra.mrb[0].mxu0 %v5296
      %v5332 = vpop.f32.mrb[0].mxu0
      %v5333 = vadd.f32 0.0, %v5332
      %v5334 = vpop.f32.mrb[0].mxu0
      %v5335 = vpop.f32.mrb[0].mxu0
      %v5336 = vpop.f32.mrb[0].mxu0
      %5337 = vdwg.mxu0
      %5338 = vrot.lane.b32.xlu0 %v4173, 80
      %v5339 = vpop.permute.xlu0 %5338
      %v5342 = vsel %vm913, %v5289, 0
      %5344 = vmatprep.subr.bf16.mxu0 0
      %5345 = vmatpush1.bf16.msra.mxu0 %v5339
      %5346 = vmatprep.subr.bf16.mxu0 0
      %5347 = vmatpush1.bf16.msra.mxu0 0
      %5348 = vmatprep.subr.bf16.mxu0 0
      %5349 = vmatpush1.bf16.msra.mxu0 0
      %5350 = vmatprep.subr.bf16.mxu0 0
      %5351 = vmatpush1.bf16.msra.mxu0 0
      %5352 = vmatprep.subr.bf16.mxu0 0
      %5353 = vmatpush1.bf16.msra.mxu0 0
      %5354 = vmatprep.subr.bf16.mxu0 0
      %5355 = vmatpush1.bf16.msra.mxu0 0
      %5356 = vmatprep.subr.bf16.mxu0 0
      %5357 = vmatpush1.bf16.msra.mxu0 0
      %5358 = vmatprep.subr.bf16.mxu0 0
      %5359 = vmatpush1.bf16.msra.mxu0 0
      %5360 = vmatprep.subr.bf16.mxu0 0
      %5361 = vmatpush1.bf16.msra.mxu0 0
      %5362 = vmatprep.subr.bf16.mxu0 0
      %5363 = vmatpush1.bf16.msra.mxu0 0
      %5364 = vmatprep.subr.bf16.mxu0 0
      %5365 = vmatpush1.bf16.msra.mxu0 0
      %5366 = vmatprep.subr.bf16.mxu0 0
      %5367 = vmatpush1.bf16.msra.mxu0 0
      %5368 = vmatprep.subr.bf16.mxu0 0
      %5369 = vmatpush1.bf16.msra.mxu0 0
      %5370 = vmatprep.subr.bf16.mxu0 0
      %5371 = vmatpush1.bf16.msra.mxu0 0
      %5372 = vmatprep.subr.bf16.mxu0 0
      %5373 = vmatpush1.bf16.msra.mxu0 0
      %5374 = vmatprep.subr.bf16.mxu0 0
      %5375 = vmatpush1.bf16.msra.mxu0 0
      %5376 = vmatprep.mubr.bf16.mxu0 0
      %5377 = vmatmul.mubr.bf16.gmra.mrb[0].mxu0 %v5342
      %v5378 = vpop.f32.mrb[0].mxu0
      %v5379 = vadd.f32 0.0, %v5378
      %v5380 = vpop.f32.mrb[0].mxu0
      %v5381 = vpop.f32.mrb[0].mxu0
      %v5382 = vpop.f32.mrb[0].mxu0
      %5383 = vdwg.mxu0
      %5384 = vrot.lane.b32.xlu0 %v4174, 80
      %v5385 = vpop.permute.xlu0 %5384
      %v5388 = vsel %vm913, %v5290, 0
      %5390 = vmatprep.subr.bf16.mxu0 0
      %5391 = vmatpush1.bf16.msra.mxu0 %v5385
      %5392 = vmatprep.subr.bf16.mxu0 0
      %5393 = vmatpush1.bf16.msra.mxu0 0
      %5394 = vmatprep.subr.bf16.mxu0 0
      %5395 = vmatpush1.bf16.msra.mxu0 0
      %5396 = vmatprep.subr.bf16.mxu0 0
      %5397 = vmatpush1.bf16.msra.mxu0 0
      %5398 = vmatprep.subr.bf16.mxu0 0
      %5399 = vmatpush1.bf16.msra.mxu0 0
      %5400 = vmatprep.subr.bf16.mxu0 0
      %5401 = vmatpush1.bf16.msra.mxu0 0
      %5402 = vmatprep.subr.bf16.mxu0 0
      %5403 = vmatpush1.bf16.msra.mxu0 0
      %5404 = vmatprep.subr.bf16.mxu0 0
      %5405 = vmatpush1.bf16.msra.mxu0 0
      %5406 = vmatprep.subr.bf16.mxu0 0
      %5407 = vmatpush1.bf16.msra.mxu0 0
      %5408 = vmatprep.subr.bf16.mxu0 0
      %5409 = vmatpush1.bf16.msra.mxu0 0
      %5410 = vmatprep.subr.bf16.mxu0 0
      %5411 = vmatpush1.bf16.msra.mxu0 0
      %5412 = vmatprep.subr.bf16.mxu0 0
      %5413 = vmatpush1.bf16.msra.mxu0 0
      %5414 = vmatprep.subr.bf16.mxu0 0
      %5415 = vmatpush1.bf16.msra.mxu0 0
      %5416 = vmatprep.subr.bf16.mxu0 0
      %5417 = vmatpush1.bf16.msra.mxu0 0
      %5418 = vmatprep.subr.bf16.mxu0 0
      %5419 = vmatpush1.bf16.msra.mxu0 0
      %5420 = vmatprep.subr.bf16.mxu0 0
      %5421 = vmatpush1.bf16.msra.mxu0 0
      %5422 = vmatprep.mubr.bf16.mxu0 0
      %5423 = vmatmul.mubr.bf16.gmra.mrb[0].mxu0 %v5388
      %v5424 = vpop.f32.mrb[0].mxu0
      %v5425 = vadd.f32 0.0, %v5424
      %v5426 = vpop.f32.mrb[0].mxu0
      %v5427 = vpop.f32.mrb[0].mxu0
      %v5428 = vpop.f32.mrb[0].mxu0
      %5429 = vdwg.mxu0
      %5430 = vrot.lane.b32.xlu0 %v4175, 80
      %v5431 = vpop.permute.xlu0 %5430
      %v5434 = vsel %vm913, %v5291, 0
      %5436 = vmatprep.subr.bf16.mxu0 0
      %5437 = vmatpush1.bf16.msra.mxu0 %v5431
      %5438 = vmatprep.subr.bf16.mxu0 0
      %5439 = vmatpush1.bf16.msra.mxu0 0
      %5440 = vmatprep.subr.bf16.mxu0 0
      %5441 = vmatpush1.bf16.msra.mxu0 0
      %5442 = vmatprep.subr.bf16.mxu0 0
      %5443 = vmatpush1.bf16.msra.mxu0 0
      %5444 = vmatprep.subr.bf16.mxu0 0
      %5445 = vmatpush1.bf16.msra.mxu0 0
      %5446 = vmatprep.subr.bf16.mxu0 0
      %5447 = vmatpush1.bf16.msra.mxu0 0
      %5448 = vmatprep.subr.bf16.mxu0 0
      %5449 = vmatpush1.bf16.msra.mxu0 0
      %5450 = vmatprep.subr.bf16.mxu0 0
      %5451 = vmatpush1.bf16.msra.mxu0 0
      %5452 = vmatprep.subr.bf16.mxu0 0
      %5453 = vmatpush1.bf16.msra.mxu0 0
      %5454 = vmatprep.subr.bf16.mxu0 0
      %5455 = vmatpush1.bf16.msra.mxu0 0
      %5456 = vmatprep.subr.bf16.mxu0 0
      %5457 = vmatpush1.bf16.msra.mxu0 0
      %5458 = vmatprep.subr.bf16.mxu0 0
      %5459 = vmatpush1.bf16.msra.mxu0 0
      %5460 = vmatprep.subr.bf16.mxu0 0
      %5461 = vmatpush1.bf16.msra.mxu0 0
      %5462 = vmatprep.subr.bf16.mxu0 0
      %5463 = vmatpush1.bf16.msra.mxu0 0
      %5464 = vmatprep.subr.bf16.mxu0 0
      %5465 = vmatpush1.bf16.msra.mxu0 0
      %5466 = vmatprep.subr.bf16.mxu0 0
      %5467 = vmatpush1.bf16.msra.mxu0 0
      %5468 = vmatprep.mubr.bf16.mxu0 0
      %5469 = vmatmul.mubr.bf16.gmra.mrb[0].mxu0 %v5434
      %v5470 = vpop.f32.mrb[0].mxu0
      %v5471 = vadd.f32 0.0, %v5470
      %v5472 = vpop.f32.mrb[0].mxu0
      %v5473 = vpop.f32.mrb[0].mxu0
      %v5474 = vpop.f32.mrb[0].mxu0
      %5475 = vdwg.mxu0
      %5476 = vrot.lane.b32.xlu0 %v4168, 104
      %v5477 = vpop.permute.xlu0 %5476
      %5478 = vrot.lane.b32.xlu0 %v4172, 104
      %v5479 = vpop.permute.xlu0 %5478
      %v5481 = vsel %vm707, %v5477, 0
      %v5484 = vsel %vm707, %v5479, 0
      %5486 = vmatprep.subr.bf16.mxu0 0
      %5487 = vmatpush1.bf16.xpose.msra.mxu0 %v5484
      %5488 = vmatprep.subr.bf16.mxu0 0
      %5489 = vmatpush1.bf16.xpose.msra.mxu0 0
      %5490 = vmatprep.subr.bf16.mxu0 0
      %5491 = vmatpush1.bf16.xpose.msra.mxu0 0
      %5492 = vmatprep.subr.bf16.mxu0 0
      %5493 = vmatpush1.bf16.xpose.msra.mxu0 0
      %5494 = vmatprep.subr.bf16.mxu0 0
      %5495 = vmatpush1.bf16.xpose.msra.mxu0 0
      %5496 = vmatprep.subr.bf16.mxu0 0
      %5497 = vmatpush1.bf16.xpose.msra.mxu0 0
      %5498 = vmatprep.subr.bf16.mxu0 0
      %5499 = vmatpush1.bf16.xpose.msra.mxu0 0
      %5500 = vmatprep.subr.bf16.mxu0 0
      %5501 = vmatpush1.bf16.xpose.msra.mxu0 0
      %5502 = vmatprep.subr.bf16.mxu0 0
      %5503 = vmatpush1.bf16.xpose.msra.mxu0 0
      %5504 = vmatprep.subr.bf16.mxu0 0
      %5505 = vmatpush1.bf16.xpose.msra.mxu0 0
      %5506 = vmatprep.subr.bf16.mxu0 0
      %5507 = vmatpush1.bf16.xpose.msra.mxu0 0
      %5508 = vmatprep.subr.bf16.mxu0 0
      %5509 = vmatpush1.bf16.xpose.msra.mxu0 0
      %5510 = vmatprep.subr.bf16.mxu0 0
      %5511 = vmatpush1.bf16.xpose.msra.mxu0 0
      %5512 = vmatprep.subr.bf16.mxu0 0
      %5513 = vmatpush1.bf16.xpose.msra.mxu0 0
      %5514 = vmatprep.subr.bf16.mxu0 0
      %5515 = vmatpush1.bf16.xpose.msra.mxu0 0
      %5516 = vmatprep.subr.bf16.mxu0 0
      %5517 = vmatpush1.bf16.xpose.msra.mxu0 0
      %5518 = vmatprep.mubr.bf16.mxu0 0
      %5519 = vmatmul.mubr.bf16.gmra.mrb[0].mxu0 %v5481
      %v5520 = vpop.f32.mrb[0].mxu0
      %v5521 = vadd.f32 0.0, %v5520
      %v5522 = vpop.f32.mrb[0].mxu0
      %v5523 = vpop.f32.mrb[0].mxu0
      %v5524 = vpop.f32.mrb[0].mxu0
      %5525 = vdwg.mxu0
      %5526 = vrot.lane.b32.xlu0 %v4169, 104
      %v5527 = vpop.permute.xlu0 %5526
      %5528 = vrot.lane.b32.xlu0 %v4173, 104
      %v5529 = vpop.permute.xlu0 %5528
      %v5531 = vsel %vm707, %v5527, 0
      %v5534 = vsel %vm707, %v5529, 0
      %5536 = vmatprep.subr.bf16.mxu0 0
      %5537 = vmatpush1.bf16.xpose.msra.mxu0 %v5534
      %5538 = vmatprep.subr.bf16.mxu0 0
      %5539 = vmatpush1.bf16.xpose.msra.mxu0 0
      %5540 = vmatprep.subr.bf16.mxu0 0
      %5541 = vmatpush1.bf16.xpose.msra.mxu0 0
      %5542 = vmatprep.subr.bf16.mxu0 0
      %5543 = vmatpush1.bf16.xpose.msra.mxu0 0
      %5544 = vmatprep.subr.bf16.mxu0 0
      %5545 = vmatpush1.bf16.xpose.msra.mxu0 0
      %5546 = vmatprep.subr.bf16.mxu0 0
      %5547 = vmatpush1.bf16.xpose.msra.mxu0 0
      %5548 = vmatprep.subr.bf16.mxu0 0
      %5549 = vmatpush1.bf16.xpose.msra.mxu0 0
      %5550 = vmatprep.subr.bf16.mxu0 0
      %5551 = vmatpush1.bf16.xpose.msra.mxu0 0
      %5552 = vmatprep.subr.bf16.mxu0 0
      %5553 = vmatpush1.bf16.xpose.msra.mxu0 0
      %5554 = vmatprep.subr.bf16.mxu0 0
      %5555 = vmatpush1.bf16.xpose.msra.mxu0 0
      %5556 = vmatprep.subr.bf16.mxu0 0
      %5557 = vmatpush1.bf16.xpose.msra.mxu0 0
      %5558 = vmatprep.subr.bf16.mxu0 0
      %5559 = vmatpush1.bf16.xpose.msra.mxu0 0
      %5560 = vmatprep.subr.bf16.mxu0 0
      %5561 = vmatpush1.bf16.xpose.msra.mxu0 0
      %5562 = vmatprep.subr.bf16.mxu0 0
      %5563 = vmatpush1.bf16.xpose.msra.mxu0 0
      %5564 = vmatprep.subr.bf16.mxu0 0
      %5565 = vmatpush1.bf16.xpose.msra.mxu0 0
      %5566 = vmatprep.subr.bf16.mxu0 0
      %5567 = vmatpush1.bf16.xpose.msra.mxu0 0
      %5568 = vmatprep.mubr.bf16.mxu0 0
      %5569 = vmatmul.mubr.bf16.gmra.mrb[0].mxu0 %v5531
      %v5570 = vpop.f32.mrb[0].mxu0
      %v5571 = vadd.f32 0.0, %v5570
      %v5572 = vpop.f32.mrb[0].mxu0
      %v5573 = vpop.f32.mrb[0].mxu0
      %v5574 = vpop.f32.mrb[0].mxu0
      %5575 = vdwg.mxu0
      %5576 = vrot.lane.b32.xlu0 %v4170, 104
      %v5577 = vpop.permute.xlu0 %5576
      %5578 = vrot.lane.b32.xlu0 %v4174, 104
      %v5579 = vpop.permute.xlu0 %5578
      %v5581 = vsel %vm707, %v5577, 0
      %v5584 = vsel %vm707, %v5579, 0
      %5586 = vmatprep.subr.bf16.mxu0 0
      %5587 = vmatpush1.bf16.xpose.msra.mxu0 %v5584
      %5588 = vmatprep.subr.bf16.mxu0 0
      %5589 = vmatpush1.bf16.xpose.msra.mxu0 0
      %5590 = vmatprep.subr.bf16.mxu0 0
      %5591 = vmatpush1.bf16.xpose.msra.mxu0 0
      %5592 = vmatprep.subr.bf16.mxu0 0
      %5593 = vmatpush1.bf16.xpose.msra.mxu0 0
      %5594 = vmatprep.subr.bf16.mxu0 0
      %5595 = vmatpush1.bf16.xpose.msra.mxu0 0
      %5596 = vmatprep.subr.bf16.mxu0 0
      %5597 = vmatpush1.bf16.xpose.msra.mxu0 0
      %5598 = vmatprep.subr.bf16.mxu0 0
      %5599 = vmatpush1.bf16.xpose.msra.mxu0 0
      %5600 = vmatprep.subr.bf16.mxu0 0
      %5601 = vmatpush1.bf16.xpose.msra.mxu0 0
      %5602 = vmatprep.subr.bf16.mxu0 0
      %5603 = vmatpush1.bf16.xpose.msra.mxu0 0
      %5604 = vmatprep.subr.bf16.mxu0 0
      %5605 = vmatpush1.bf16.xpose.msra.mxu0 0
      %5606 = vmatprep.subr.bf16.mxu0 0
      %5607 = vmatpush1.bf16.xpose.msra.mxu0 0
      %5608 = vmatprep.subr.bf16.mxu0 0
      %5609 = vmatpush1.bf16.xpose.msra.mxu0 0
      %5610 = vmatprep.subr.bf16.mxu0 0
      %5611 = vmatpush1.bf16.xpose.msra.mxu0 0
      %5612 = vmatprep.subr.bf16.mxu0 0
      %5613 = vmatpush1.bf16.xpose.msra.mxu0 0
      %5614 = vmatprep.subr.bf16.mxu0 0
      %5615 = vmatpush1.bf16.xpose.msra.mxu0 0
      %5616 = vmatprep.subr.bf16.mxu0 0
      %5617 = vmatpush1.bf16.xpose.msra.mxu0 0
      %5618 = vmatprep.mubr.bf16.mxu0 0
      %5619 = vmatmul.mubr.bf16.gmra.mrb[0].mxu0 %v5581
      %v5620 = vpop.f32.mrb[0].mxu0
      %v5621 = vadd.f32 0.0, %v5620
      %v5622 = vpop.f32.mrb[0].mxu0
      %v5623 = vpop.f32.mrb[0].mxu0
      %v5624 = vpop.f32.mrb[0].mxu0
      %5625 = vdwg.mxu0
      %5626 = vrot.lane.b32.xlu0 %v4171, 104
      %v5627 = vpop.permute.xlu0 %5626
      %5628 = vrot.lane.b32.xlu0 %v4175, 104
      %v5629 = vpop.permute.xlu0 %5628
      %v5631 = vsel %vm707, %v5627, 0
      %v5634 = vsel %vm707, %v5629, 0
      %5636 = vmatprep.subr.bf16.mxu0 0
      %5637 = vmatpush1.bf16.xpose.msra.mxu0 %v5634
      %5638 = vmatprep.subr.bf16.mxu0 0
      %5639 = vmatpush1.bf16.xpose.msra.mxu0 0
      %5640 = vmatprep.subr.bf16.mxu0 0
      %5641 = vmatpush1.bf16.xpose.msra.mxu0 0
      %5642 = vmatprep.subr.bf16.mxu0 0
      %5643 = vmatpush1.bf16.xpose.msra.mxu0 0
      %5644 = vmatprep.subr.bf16.mxu0 0
      %5645 = vmatpush1.bf16.xpose.msra.mxu0 0
      %5646 = vmatprep.subr.bf16.mxu0 0
      %5647 = vmatpush1.bf16.xpose.msra.mxu0 0
      %5648 = vmatprep.subr.bf16.mxu0 0
      %5649 = vmatpush1.bf16.xpose.msra.mxu0 0
      %5650 = vmatprep.subr.bf16.mxu0 0
      %5651 = vmatpush1.bf16.xpose.msra.mxu0 0
      %5652 = vmatprep.subr.bf16.mxu0 0
      %5653 = vmatpush1.bf16.xpose.msra.mxu0 0
      %5654 = vmatprep.subr.bf16.mxu0 0
      %5655 = vmatpush1.bf16.xpose.msra.mxu0 0
      %5656 = vmatprep.subr.bf16.mxu0 0
      %5657 = vmatpush1.bf16.xpose.msra.mxu0 0
      %5658 = vmatprep.subr.bf16.mxu0 0
      %5659 = vmatpush1.bf16.xpose.msra.mxu0 0
      %5660 = vmatprep.subr.bf16.mxu0 0
      %5661 = vmatpush1.bf16.xpose.msra.mxu0 0
      %5662 = vmatprep.subr.bf16.mxu0 0
      %5663 = vmatpush1.bf16.xpose.msra.mxu0 0
      %5664 = vmatprep.subr.bf16.mxu0 0
      %5665 = vmatpush1.bf16.xpose.msra.mxu0 0
      %5666 = vmatprep.subr.bf16.mxu0 0
      %5667 = vmatpush1.bf16.xpose.msra.mxu0 0
      %5668 = vmatprep.mubr.bf16.mxu0 0
      %5669 = vmatmul.mubr.bf16.gmra.mrb[0].mxu0 %v5631
      %v5670 = vpop.f32.mrb[0].mxu0
      %v5671 = vadd.f32 0.0, %v5670
      %v5672 = vpop.f32.mrb[0].mxu0
      %v5673 = vpop.f32.mrb[0].mxu0
      %v5674 = vpop.f32.mrb[0].mxu0
      %5675 = vdwg.mxu0
      %v5676 = vmul.f32 %v5521, 0.35355338
      %v5677 = vmul.f32 %v5571, 0.35355338
      %v5678 = vmul.f32 %v5621, 0.35355338
      %v5679 = vmul.f32 %v5671, 0.35355338
      %v5680 = vsel %vm913, %v5676, -inf
      %5681 = vmax.xlane.f32.xlu0 %v5680
      %v5682 = vpop.xlane.xlu0 %5681
      %v5683 = vsel %vm913, %v5677, -inf
      %5684 = vmax.xlane.f32.xlu0 %v5683
      %v5685 = vpop.xlane.xlu0 %5684
      %v5686 = vsel %vm913, %v5678, -inf
      %5687 = vmax.xlane.f32.xlu0 %v5686
      %v5688 = vpop.xlane.xlu0 %5687
      %v5689 = vsel %vm913, %v5679, -inf
      %5690 = vmax.xlane.f32.xlu0 %v5689
      %v5691 = vpop.xlane.xlu0 %5690
      %v5692 = vsub.f32 %v5676, %v5682
      %v5693 = vsub.f32 %v5677, %v5685
      %v5694 = vsub.f32 %v5678, %v5688
      %v5695 = vsub.f32 %v5679, %v5691
      %v5696 = vmul.f32 %v5692, 1.442695
      %v5697 = vpow.pop %v5696
      %v5698 = vmul.f32 %v5693, 1.442695
      %v5699 = vpow.pop %v5698
      %v5700 = vmul.f32 %v5694, 1.442695
      %v5701 = vpow.pop %v5700
      %v5702 = vmul.f32 %v5695, 1.442695
      %v5703 = vpow.pop %v5702
      %v5704 = vsel %vm913, %v5697, 0.0
      %5705 = vadd.xlane.f32.xlu0 %v5704
      %v5706 = vpop.xlane.xlu0 %5705
      %v5707 = vsel %vm913, %v5699, 0.0
      %5708 = vadd.xlane.f32.xlu0 %v5707
      %v5709 = vpop.xlane.xlu0 %5708
      %v5710 = vsel %vm913, %v5701, 0.0
      %5711 = vadd.xlane.f32.xlu0 %v5710
      %v5712 = vpop.xlane.xlu0 %5711
      %v5713 = vsel %vm913, %v5703, 0.0
      %5714 = vadd.xlane.f32.xlu0 %v5713
      %v5715 = vpop.xlane.xlu0 %5714
      %v5716 = vrcp.pop %v5706
      %v5717 = vrcp.pop %v5709
      %v5718 = vrcp.pop %v5712
      %v5719 = vrcp.pop %v5715
      %v5720 = vmul.f32 %v5697, %v5716
      %v5721 = vmul.f32 %v5699, %v5717
      %v5722 = vmul.f32 %v5701, %v5718
      %v5723 = vmul.f32 %v5703, %v5719
      %v5724 = vpack.c.bf16 %v5720, %v5720
      %v5725 = vpack.c.bf16 %v5721, %v5721
      %v5726 = vpack.c.bf16 %v5722, %v5722
      %v5727 = vpack.c.bf16 %v5723, %v5723
      %5728 = vrot.lane.b32.xlu0 %v4172, 72
      %v5729 = vpop.permute.xlu0 %5728
      %v5732 = vsel %vm913, %v5724, 0
      %5734 = vmatprep.subr.bf16.mxu0 0
      %5735 = vmatpush1.bf16.msra.mxu0 %v5729
      %5736 = vmatprep.subr.bf16.mxu0 0
      %5737 = vmatpush1.bf16.msra.mxu0 0
      %5738 = vmatprep.subr.bf16.mxu0 0
      %5739 = vmatpush1.bf16.msra.mxu0 0
      %5740 = vmatprep.subr.bf16.mxu0 0
      %5741 = vmatpush1.bf16.msra.mxu0 0
      %5742 = vmatprep.subr.bf16.mxu0 0
      %5743 = vmatpush1.bf16.msra.mxu0 0
      %5744 = vmatprep.subr.bf16.mxu0 0
      %5745 = vmatpush1.bf16.msra.mxu0 0
      %5746 = vmatprep.subr.bf16.mxu0 0
      %5747 = vmatpush1.bf16.msra.mxu0 0
      %5748 = vmatprep.subr.bf16.mxu0 0
      %5749 = vmatpush1.bf16.msra.mxu0 0
      %5750 = vmatprep.subr.bf16.mxu0 0
      %5751 = vmatpush1.bf16.msra.mxu0 0
      %5752 = vmatprep.subr.bf16.mxu0 0
      %5753 = vmatpush1.bf16.msra.mxu0 0
      %5754 = vmatprep.subr.bf16.mxu0 0
      %5755 = vmatpush1.bf16.msra.mxu0 0
      %5756 = vmatprep.subr.bf16.mxu0 0
      %5757 = vmatpush1.bf16.msra.mxu0 0
      %5758 = vmatprep.subr.bf16.mxu0 0
      %5759 = vmatpush1.bf16.msra.mxu0 0
      %5760 = vmatprep.subr.bf16.mxu0 0
      %5761 = vmatpush1.bf16.msra.mxu0 0
      %5762 = vmatprep.subr.bf16.mxu0 0
      %5763 = vmatpush1.bf16.msra.mxu0 0
      %5764 = vmatprep.subr.bf16.mxu0 0
      %5765 = vmatpush1.bf16.msra.mxu0 0
      %5766 = vmatprep.mubr.bf16.mxu0 0
      %5767 = vmatmul.mubr.bf16.gmra.mrb[0].mxu0 %v5732
      %v5768 = vpop.f32.mrb[0].mxu0
      %v5769 = vadd.f32 0.0, %v5768
      %v5770 = vpop.f32.mrb[0].mxu0
      %v5771 = vpop.f32.mrb[0].mxu0
      %v5772 = vpop.f32.mrb[0].mxu0
      %5773 = vdwg.mxu0
      %5774 = vrot.lane.b32.xlu0 %v4173, 72
      %v5775 = vpop.permute.xlu0 %5774
      %v5778 = vsel %vm913, %v5725, 0
      %5780 = vmatprep.subr.bf16.mxu0 0
      %5781 = vmatpush1.bf16.msra.mxu0 %v5775
      %5782 = vmatprep.subr.bf16.mxu0 0
      %5783 = vmatpush1.bf16.msra.mxu0 0
      %5784 = vmatprep.subr.bf16.mxu0 0
      %5785 = vmatpush1.bf16.msra.mxu0 0
      %5786 = vmatprep.subr.bf16.mxu0 0
      %5787 = vmatpush1.bf16.msra.mxu0 0
      %5788 = vmatprep.subr.bf16.mxu0 0
      %5789 = vmatpush1.bf16.msra.mxu0 0
      %5790 = vmatprep.subr.bf16.mxu0 0
      %5791 = vmatpush1.bf16.msra.mxu0 0
      %5792 = vmatprep.subr.bf16.mxu0 0
      %5793 = vmatpush1.bf16.msra.mxu0 0
      %5794 = vmatprep.subr.bf16.mxu0 0
      %5795 = vmatpush1.bf16.msra.mxu0 0
      %5796 = vmatprep.subr.bf16.mxu0 0
      %5797 = vmatpush1.bf16.msra.mxu0 0
      %5798 = vmatprep.subr.bf16.mxu0 0
      %5799 = vmatpush1.bf16.msra.mxu0 0
      %5800 = vmatprep.subr.bf16.mxu0 0
      %5801 = vmatpush1.bf16.msra.mxu0 0
      %5802 = vmatprep.subr.bf16.mxu0 0
      %5803 = vmatpush1.bf16.msra.mxu0 0
      %5804 = vmatprep.subr.bf16.mxu0 0
      %5805 = vmatpush1.bf16.msra.mxu0 0
      %5806 = vmatprep.subr.bf16.mxu0 0
      %5807 = vmatpush1.bf16.msra.mxu0 0
      %5808 = vmatprep.subr.bf16.mxu0 0
      %5809 = vmatpush1.bf16.msra.mxu0 0
      %5810 = vmatprep.subr.bf16.mxu0 0
      %5811 = vmatpush1.bf16.msra.mxu0 0
      %5812 = vmatprep.mubr.bf16.mxu0 0
      %5813 = vmatmul.mubr.bf16.gmra.mrb[0].mxu0 %v5778
      %v5814 = vpop.f32.mrb[0].mxu0
      %v5815 = vadd.f32 0.0, %v5814
      %v5816 = vpop.f32.mrb[0].mxu0
      %v5817 = vpop.f32.mrb[0].mxu0
      %v5818 = vpop.f32.mrb[0].mxu0
      %5819 = vdwg.mxu0
      %5820 = vrot.lane.b32.xlu0 %v4174, 72
      %v5821 = vpop.permute.xlu0 %5820
      %v5824 = vsel %vm913, %v5726, 0
      %5826 = vmatprep.subr.bf16.mxu0 0
      %5827 = vmatpush1.bf16.msra.mxu0 %v5821
      %5828 = vmatprep.subr.bf16.mxu0 0
      %5829 = vmatpush1.bf16.msra.mxu0 0
      %5830 = vmatprep.subr.bf16.mxu0 0
      %5831 = vmatpush1.bf16.msra.mxu0 0
      %5832 = vmatprep.subr.bf16.mxu0 0
      %5833 = vmatpush1.bf16.msra.mxu0 0
      %5834 = vmatprep.subr.bf16.mxu0 0
      %5835 = vmatpush1.bf16.msra.mxu0 0
      %5836 = vmatprep.subr.bf16.mxu0 0
      %5837 = vmatpush1.bf16.msra.mxu0 0
      %5838 = vmatprep.subr.bf16.mxu0 0
      %5839 = vmatpush1.bf16.msra.mxu0 0
      %5840 = vmatprep.subr.bf16.mxu0 0
      %5841 = vmatpush1.bf16.msra.mxu0 0
      %5842 = vmatprep.subr.bf16.mxu0 0
      %5843 = vmatpush1.bf16.msra.mxu0 0
      %5844 = vmatprep.subr.bf16.mxu0 0
      %5845 = vmatpush1.bf16.msra.mxu0 0
      %5846 = vmatprep.subr.bf16.mxu0 0
      %5847 = vmatpush1.bf16.msra.mxu0 0
      %5848 = vmatprep.subr.bf16.mxu0 0
      %5849 = vmatpush1.bf16.msra.mxu0 0
      %5850 = vmatprep.subr.bf16.mxu0 0
      %5851 = vmatpush1.bf16.msra.mxu0 0
      %5852 = vmatprep.subr.bf16.mxu0 0
      %5853 = vmatpush1.bf16.msra.mxu0 0
      %5854 = vmatprep.subr.bf16.mxu0 0
      %5855 = vmatpush1.bf16.msra.mxu0 0
      %5856 = vmatprep.subr.bf16.mxu0 0
      %5857 = vmatpush1.bf16.msra.mxu0 0
      %5858 = vmatprep.mubr.bf16.mxu0 0
      %5859 = vmatmul.mubr.bf16.gmra.mrb[0].mxu0 %v5824
      %v5860 = vpop.f32.mrb[0].mxu0
      %v5861 = vadd.f32 0.0, %v5860
      %v5862 = vpop.f32.mrb[0].mxu0
      %v5863 = vpop.f32.mrb[0].mxu0
      %v5864 = vpop.f32.mrb[0].mxu0
      %5865 = vdwg.mxu0
      %5866 = vrot.lane.b32.xlu0 %v4175, 72
      %v5867 = vpop.permute.xlu0 %5866
      %v5870 = vsel %vm913, %v5727, 0
      %5872 = vmatprep.subr.bf16.mxu0 0
      %5873 = vmatpush1.bf16.msra.mxu0 %v5867
      %5874 = vmatprep.subr.bf16.mxu0 0
      %5875 = vmatpush1.bf16.msra.mxu0 0
      %5876 = vmatprep.subr.bf16.mxu0 0
      %5877 = vmatpush1.bf16.msra.mxu0 0
      %5878 = vmatprep.subr.bf16.mxu0 0
      %5879 = vmatpush1.bf16.msra.mxu0 0
      %5880 = vmatprep.subr.bf16.mxu0 0
      %5881 = vmatpush1.bf16.msra.mxu0 0
      %5882 = vmatprep.subr.bf16.mxu0 0
      %5883 = vmatpush1.bf16.msra.mxu0 0
      %5884 = vmatprep.subr.bf16.mxu0 0
      %5885 = vmatpush1.bf16.msra.mxu0 0
      %5886 = vmatprep.subr.bf16.mxu0 0
      %5887 = vmatpush1.bf16.msra.mxu0 0
      %5888 = vmatprep.subr.bf16.mxu0 0
      %5889 = vmatpush1.bf16.msra.mxu0 0
      %5890 = vmatprep.subr.bf16.mxu0 0
      %5891 = vmatpush1.bf16.msra.mxu0 0
      %5892 = vmatprep.subr.bf16.mxu0 0
      %5893 = vmatpush1.bf16.msra.mxu0 0
      %5894 = vmatprep.subr.bf16.mxu0 0
      %5895 = vmatpush1.bf16.msra.mxu0 0
      %5896 = vmatprep.subr.bf16.mxu0 0
      %5897 = vmatpush1.bf16.msra.mxu0 0
      %5898 = vmatprep.subr.bf16.mxu0 0
      %5899 = vmatpush1.bf16.msra.mxu0 0
      %5900 = vmatprep.subr.bf16.mxu0 0
      %5901 = vmatpush1.bf16.msra.mxu0 0
      %5902 = vmatprep.subr.bf16.mxu0 0
      %5903 = vmatpush1.bf16.msra.mxu0 0
      %5904 = vmatprep.mubr.bf16.mxu0 0
      %5905 = vmatmul.mubr.bf16.gmra.mrb[0].mxu0 %v5870
      %v5906 = vpop.f32.mrb[0].mxu0
      %v5907 = vadd.f32 0.0, %v5906
      %v5908 = vpop.f32.mrb[0].mxu0
      %v5909 = vpop.f32.mrb[0].mxu0
      %v5910 = vpop.f32.mrb[0].mxu0
      %5911 = vdwg.mxu0
      %5916 = vrot.lane.b32.xlu0 %v4897, 8
      %v5917 = vpop.permute.xlu0 %5916
      %5918 = vrot.lane.b32.xlu0 %v4943, 8
      %v5919 = vpop.permute.xlu0 %5918
      %5920 = vrot.lane.b32.xlu0 %v4989, 8
      %v5921 = vpop.permute.xlu0 %5920
      %5922 = vrot.lane.b32.xlu0 %v5035, 8
      %v5923 = vpop.permute.xlu0 %5922
      %5932 = vrot.lane.b32.xlu0 %v5333, 16
      %v5933 = vpop.permute.xlu0 %5932
      %5934 = vrot.lane.b32.xlu0 %v5379, 16
      %v5935 = vpop.permute.xlu0 %5934
      %5936 = vrot.lane.b32.xlu0 %v5425, 16
      %v5937 = vpop.permute.xlu0 %5936
      %5938 = vrot.lane.b32.xlu0 %v5471, 16
      %v5939 = vpop.permute.xlu0 %5938
      %5948 = vrot.lane.b32.xlu0 %v5769, 24
      %v5949 = vpop.permute.xlu0 %5948
      %5950 = vrot.lane.b32.xlu0 %v5815, 24
      %v5951 = vpop.permute.xlu0 %5950
      %5952 = vrot.lane.b32.xlu0 %v5861, 24
      %v5953 = vpop.permute.xlu0 %5952
      %5954 = vrot.lane.b32.xlu0 %v5907, 24
      %v5955 = vpop.permute.xlu0 %5954
      %v5960 = vsel %vm707, %v4454, %v5917
      %v5961 = vsel %vm707, %v4501, %v5919
      %v5962 = vsel %vm707, %v4548, %v5921
      %v5963 = vsel %vm707, %v4595, %v5923
      %v5964 = vsel %vm913, %v5960, %v5933
      %v5965 = vsel %vm913, %v5961, %v5935
      %v5966 = vsel %vm913, %v5962, %v5937
      %v5967 = vsel %vm913, %v5963, %v5939
      %v5968 = vsel %vm2782, %v5964, %v5949
      %v5969 = vsel %vm2782, %v5965, %v5951
      %v5970 = vsel %vm2782, %v5966, %v5953
      %v5971 = vsel %vm2782, %v5967, %v5955
      %v5972 = vld [vmem:[%s3 + $0x100] sm:$0xf]
      %v5973 = vld [vmem:[%s3 + $0x104] sm:$0xf]
      %v5974 = vld [vmem:[%s3 + $0x108] sm:$0xf]
      %v5975 = vld [vmem:[%s3 + $0x10c] sm:$0xf]
      %v5976 = vpack.c.bf16 %v5969, %v5968
      %v5977 = vpack.c.bf16 %v5971, %v5970
      %v5978 = vlaneseq
      %v5979 = vshrl.u32 %v5978, 7
      %v5980 = vsub.s32 7, %v5979
      %v5981 = vrot.slane %v233, %v5980
      %v5986 = vunpack.c.l.b16 %v5972
      %v5987 = vunpack.c.l.b16 %v5973
      %v5988 = vunpack.c.l.b16 %v5974
      %v5989 = vunpack.c.l.b16 %v5975
      %v5990 = vpack.c.b16 %v5987, %v5986
      %v5991 = vpack.c.b16 %v5989, %v5988
      %v5995 = vsel %vm622, %v5976, 0
      %v5998 = vsel %vm622, %v5977, 0
      %6000 = vmatprep.subr.bf16.mxu0 0
      %6001 = vmatpush1.bf16.msra.mxu0 %v5990
      %6002 = vmatprep.subr.bf16.mxu0 0
      %6003 = vmatpush1.bf16.msra.mxu0 %v5991
      %6004 = vmatprep.subr.bf16.mxu0 0
      %6005 = vmatpush1.bf16.msra.mxu0 0
      %6006 = vmatprep.subr.bf16.mxu0 0
      %6007 = vmatpush1.bf16.msra.mxu0 0
      %6008 = vmatprep.subr.bf16.mxu0 0
      %6009 = vmatpush1.bf16.msra.mxu0 0
      %6010 = vmatprep.subr.bf16.mxu0 0
      %6011 = vmatpush1.bf16.msra.mxu0 0
      %6012 = vmatprep.subr.bf16.mxu0 0
      %6013 = vmatpush1.bf16.msra.mxu0 0
      %6014 = vmatprep.subr.bf16.mxu0 0
      %6015 = vmatpush1.bf16.msra.mxu0 0
      %6016 = vmatprep.subr.bf16.mxu0 0
      %6017 = vmatpush1.bf16.msra.mxu0 0
      %6018 = vmatprep.subr.bf16.mxu0 0
      %6019 = vmatpush1.bf16.msra.mxu0 0
      %6020 = vmatprep.subr.bf16.mxu0 0
      %6021 = vmatpush1.bf16.msra.mxu0 0
      %6022 = vmatprep.subr.bf16.mxu0 0
      %6023 = vmatpush1.bf16.msra.mxu0 0
      %6024 = vmatprep.subr.bf16.mxu0 0
      %6025 = vmatpush1.bf16.msra.mxu0 0
      %6026 = vmatprep.subr.bf16.mxu0 0
      %6027 = vmatpush1.bf16.msra.mxu0 0
      %6028 = vmatprep.subr.bf16.mxu0 0
      %6029 = vmatpush1.bf16.msra.mxu0 0
      %6030 = vmatprep.subr.bf16.mxu0 0
      %6031 = vmatpush1.bf16.msra.mxu0 0
      %6032 = vmatprep.mubr.bf16.mxu0 0
      %6033 = vmatmul.mubr.bf16.gmra.mrb[0].mxu0 %v5995
      %v6034 = vpop.f32.mrb[0].mxu0
      %v6035 = vadd.f32 %v5981, %v6034
      %v6036 = vpop.f32.mrb[0].mxu0
      %v6037 = vpop.f32.mrb[0].mxu0
      %v6038 = vadd.f32 %v5981, %v6037
      %v6039 = vpop.f32.mrb[0].mxu0
      %6040 = vmatprep.mubr.bf16.mxu0 0
      %6041 = vmatmul.mubr.bf16.gmra.mrb[0].mxu0 %v5998
      %v6042 = vpop.f32.mrb[0].mxu0
      %v6043 = vadd.f32 %v5981, %v6042
      %v6044 = vpop.f32.mrb[0].mxu0
      %v6045 = vpop.f32.mrb[0].mxu0
      %v6046 = vadd.f32 %v5981, %v6045
      %v6047 = vpop.f32.mrb[0].mxu0
      %6048 = vdwg.mxu0
      %v6049 = vadd.f32 %v6035, %v4003
      %v6050 = vadd.f32 %v6038, %v4003
      %v6051 = vadd.f32 %v6043, %v4003
      %v6052 = vadd.f32 %v6046, %v4003
      %v6053 = vsel %vm622, %v6049, 0.0
      %6054 = vadd.xlane.f32.xlu0 %v6053
      %v6055 = vpop.xlane.xlu0 %6054
      %v6056 = vsel %vm622, %v6050, 0.0
      %6057 = vadd.xlane.f32.xlu0 %v6056
      %v6058 = vpop.xlane.xlu0 %6057
      %v6059 = vsel %vm622, %v6051, 0.0
      %6060 = vadd.xlane.f32.xlu0 %v6059
      %v6061 = vpop.xlane.xlu0 %6060
      %v6062 = vsel %vm622, %v6052, 0.0
      %6063 = vadd.xlane.f32.xlu0 %v6062
      %v6064 = vpop.xlane.xlu0 %6063
      %v6065 = vmul.f32 %v6055, %v2924
      %v6066 = vmul.f32 %v6058, %v2924
      %v6067 = vmul.f32 %v6061, %v2924
      %v6068 = vmul.f32 %v6064, %v2924
      %v6069 = vsub.f32 %v6049, %v6065
      %v6070 = vsub.f32 %v6050, %v6066
      %v6071 = vsub.f32 %v6051, %v6067
      %v6072 = vsub.f32 %v6052, %v6068
      %v6073 = vmul.f32 %v6069, %v6069
      %v6074 = vmul.f32 %v6070, %v6070
      %v6075 = vmul.f32 %v6071, %v6071
      %v6076 = vmul.f32 %v6072, %v6072
      %v6077 = vsel %vm622, %v6073, 0.0
      %6078 = vadd.xlane.f32.xlu0 %v6077
      %v6079 = vpop.xlane.xlu0 %6078
      %v6080 = vsel %vm622, %v6074, 0.0
      %6081 = vadd.xlane.f32.xlu0 %v6080
      %v6082 = vpop.xlane.xlu0 %6081
      %v6083 = vsel %vm622, %v6075, 0.0
      %6084 = vadd.xlane.f32.xlu0 %v6083
      %v6085 = vpop.xlane.xlu0 %6084
      %v6086 = vsel %vm622, %v6076, 0.0
      %6087 = vadd.xlane.f32.xlu0 %v6086
      %v6088 = vpop.xlane.xlu0 %6087
      %v6089 = vmul.f32 %v6079, %v2924
      %v6090 = vmul.f32 %v6082, %v2924
      %v6091 = vmul.f32 %v6085, %v2924
      %v6092 = vmul.f32 %v6088, %v2924
      %v6093 = vadd.f32 %v6089, 1e-05
      %v6094 = vadd.f32 %v6090, 1e-05
      %v6095 = vadd.f32 %v6091, 1e-05
      %v6096 = vadd.f32 %v6092, 1e-05
      %v6097 = vrsqrt.pop %v6093
      %v6098 = vrsqrt.pop %v6094
      %v6099 = vrsqrt.pop %v6095
      %v6100 = vrsqrt.pop %v6096
      %v6101 = vmul.f32 %v6069, %v6097
      %v6102 = vmul.f32 %v6070, %v6098
      %v6103 = vmul.f32 %v6071, %v6099
      %v6104 = vmul.f32 %v6072, %v6100
      %v6105 = vlaneseq
      %v6106 = vshrl.u32 %v6105, 7
      %v6107 = vsub.s32 0, %v6106
      %v6108 = vrot.slane %v234, %v6107
      %v6109 = vmul.f32 %v6101, %v6108
      %v6110 = vmul.f32 %v6102, %v6108
      %v6111 = vmul.f32 %v6103, %v6108
      %v6112 = vmul.f32 %v6104, %v6108
      %v6113 = vlaneseq
      %v6114 = vshrl.u32 %v6113, 7
      %v6115 = vsub.s32 1, %v6114
      %v6116 = vrot.slane %v234, %v6115
      %v6117 = vadd.f32 %v6109, %v6116
      %v6118 = vadd.f32 %v6110, %v6116
      %v6119 = vadd.f32 %v6111, %v6116
      %v6120 = vadd.f32 %v6112, %v6116
      %v6121 = vld [vmem:[%s3 + $0x110] sm:$0xf]
      %v6122 = vld [vmem:[%s3 + $0x114] sm:$0xf]
      %v6123 = vld [vmem:[%s3 + $0x118] sm:$0xf]
      %v6124 = vld [vmem:[%s3 + $0x11c] sm:$0xf]
      %v6125 = vpack.c.bf16 %v6118, %v6117
      %v6126 = vpack.c.bf16 %v6120, %v6119
      %v6127 = vlaneseq
      %v6128 = vshrl.u32 %v6127, 7
      %v6129 = vsub.s32 2, %v6128
      %v6130 = vrot.slane %v234, %v6129
      %v6135 = vunpack.c.l.b16 %v6121
      %v6136 = vunpack.c.l.b16 %v6122
      %v6137 = vunpack.c.l.b16 %v6123
      %v6138 = vunpack.c.l.b16 %v6124
      %v6139 = vpack.c.b16 %v6136, %v6135
      %v6140 = vpack.c.b16 %v6138, %v6137
      %v6144 = vsel %vm622, %v6125, 0
      %v6147 = vsel %vm622, %v6126, 0
      %6149 = vmatprep.subr.bf16.mxu0 0
      %6150 = vmatpush1.bf16.msra.mxu0 %v6139
      %6151 = vmatprep.subr.bf16.mxu0 0
      %6152 = vmatpush1.bf16.msra.mxu0 %v6140
      %6153 = vmatprep.subr.bf16.mxu0 0
      %6154 = vmatpush1.bf16.msra.mxu0 0
      %6155 = vmatprep.subr.bf16.mxu0 0
      %6156 = vmatpush1.bf16.msra.mxu0 0
      %6157 = vmatprep.subr.bf16.mxu0 0
      %6158 = vmatpush1.bf16.msra.mxu0 0
      %6159 = vmatprep.subr.bf16.mxu0 0
      %6160 = vmatpush1.bf16.msra.mxu0 0
      %6161 = vmatprep.subr.bf16.mxu0 0
      %6162 = vmatpush1.bf16.msra.mxu0 0
      %6163 = vmatprep.subr.bf16.mxu0 0
      %6164 = vmatpush1.bf16.msra.mxu0 0
      %6165 = vmatprep.subr.bf16.mxu0 0
      %6166 = vmatpush1.bf16.msra.mxu0 0
      %6167 = vmatprep.subr.bf16.mxu0 0
      %6168 = vmatpush1.bf16.msra.mxu0 0
      %6169 = vmatprep.subr.bf16.mxu0 0
      %6170 = vmatpush1.bf16.msra.mxu0 0
      %6171 = vmatprep.subr.bf16.mxu0 0
      %6172 = vmatpush1.bf16.msra.mxu0 0
      %6173 = vmatprep.subr.bf16.mxu0 0
      %6174 = vmatpush1.bf16.msra.mxu0 0
      %6175 = vmatprep.subr.bf16.mxu0 0
      %6176 = vmatpush1.bf16.msra.mxu0 0
      %6177 = vmatprep.subr.bf16.mxu0 0
      %6178 = vmatpush1.bf16.msra.mxu0 0
      %6179 = vmatprep.subr.bf16.mxu0 0
      %6180 = vmatpush1.bf16.msra.mxu0 0
      %6181 = vmatprep.mubr.bf16.mxu0 0
      %6182 = vmatmul.mubr.bf16.gmra.mrb[0].mxu0 %v6144
      %v6183 = vpop.f32.mrb[0].mxu0
      %v6184 = vadd.f32 %v6130, %v6183
      %v6185 = vpop.f32.mrb[0].mxu0
      %v6186 = vpop.f32.mrb[0].mxu0
      %v6187 = vadd.f32 %v6130, %v6186
      %v6188 = vpop.f32.mrb[0].mxu0
      %6189 = vmatprep.mubr.bf16.mxu0 0
      %6190 = vmatmul.mubr.bf16.gmra.mrb[0].mxu0 %v6147
      %v6191 = vpop.f32.mrb[0].mxu0
      %v6192 = vadd.f32 %v6130, %v6191
      %v6193 = vpop.f32.mrb[0].mxu0
      %v6194 = vpop.f32.mrb[0].mxu0
      %v6195 = vadd.f32 %v6130, %v6194
      %v6196 = vpop.f32.mrb[0].mxu0
      %6197 = vdwg.mxu0
      %v6198 = vmax.f32 %v6184, 0.0
      %v6199 = vmax.f32 %v6187, 0.0
      %v6200 = vmax.f32 %v6192, 0.0
      %v6201 = vmax.f32 %v6195, 0.0
      %v6202 = vld [vmem:[%s3 + $0x120] sm:$0xf]
      %v6203 = vld [vmem:[%s3 + $0x124] sm:$0xf]
      %v6204 = vld [vmem:[%s3 + $0x128] sm:$0xf]
      %v6205 = vld [vmem:[%s3 + $0x12c] sm:$0xf]
      %v6206 = vld [vmem:[%s3 + $0x130] sm:$0xf]
      %v6207 = vld [vmem:[%s3 + $0x134] sm:$0xf]
      %v6208 = vld [vmem:[%s3 + $0x138] sm:$0xf]
      %v6209 = vld [vmem:[%s3 + $0x13c] sm:$0xf]
      %v6210 = vpack.c.bf16 %v6199, %v6198
      %v6211 = vpack.c.bf16 %v6201, %v6200
      %v6212 = vlaneseq
      %v6213 = vshrl.u32 %v6212, 7
      %v6214 = vsub.s32 3, %v6213
      %v6215 = vrot.slane %v234, %v6214
      %v6224 = vunpack.c.l.b16 %v6202
      %v6225 = vunpack.c.l.b16 %v6203
      %v6226 = vunpack.c.l.b16 %v6204
      %v6227 = vunpack.c.l.b16 %v6205
      %v6228 = vunpack.c.l.b16 %v6206
      %v6229 = vunpack.c.l.b16 %v6207
      %v6230 = vunpack.c.l.b16 %v6208
      %v6231 = vunpack.c.l.b16 %v6209
      %v6232 = vpack.c.b16 %v6225, %v6224
      %v6233 = vpack.c.b16 %v6227, %v6226
      %v6234 = vpack.c.b16 %v6229, %v6228
      %v6235 = vpack.c.b16 %v6231, %v6230
      %v6241 = vsel %vm379, %v6210, 0
      %v6244 = vsel %vm379, %v6211, 0
      %6246 = vmatprep.subr.bf16.mxu0 0
      %6247 = vmatpush1.bf16.msra.mxu0 %v6232
      %6248 = vmatprep.subr.bf16.mxu0 0
      %6249 = vmatpush1.bf16.msra.mxu0 %v6233
      %6250 = vmatprep.subr.bf16.mxu0 0
      %6251 = vmatpush1.bf16.msra.mxu0 %v6234
      %6252 = vmatprep.subr.bf16.mxu0 0
      %6253 = vmatpush1.bf16.msra.mxu0 %v6235
      %6254 = vmatprep.subr.bf16.mxu0 0
      %6255 = vmatpush1.bf16.msra.mxu0 0
      %6256 = vmatprep.subr.bf16.mxu0 0
      %6257 = vmatpush1.bf16.msra.mxu0 0
      %6258 = vmatprep.subr.bf16.mxu0 0
      %6259 = vmatpush1.bf16.msra.mxu0 0
      %6260 = vmatprep.subr.bf16.mxu0 0
      %6261 = vmatpush1.bf16.msra.mxu0 0
      %6262 = vmatprep.subr.bf16.mxu0 0
      %6263 = vmatpush1.bf16.msra.mxu0 0
      %6264 = vmatprep.subr.bf16.mxu0 0
      %6265 = vmatpush1.bf16.msra.mxu0 0
      %6266 = vmatprep.subr.bf16.mxu0 0
      %6267 = vmatpush1.bf16.msra.mxu0 0
      %6268 = vmatprep.subr.bf16.mxu0 0
      %6269 = vmatpush1.bf16.msra.mxu0 0
      %6270 = vmatprep.subr.bf16.mxu0 0
      %6271 = vmatpush1.bf16.msra.mxu0 0
      %6272 = vmatprep.subr.bf16.mxu0 0
      %6273 = vmatpush1.bf16.msra.mxu0 0
      %6274 = vmatprep.subr.bf16.mxu0 0
      %6275 = vmatpush1.bf16.msra.mxu0 0
      %6276 = vmatprep.subr.bf16.mxu0 0
      %6277 = vmatpush1.bf16.msra.mxu0 0
      %6278 = vmatprep.mubr.bf16.mxu0 0
      %6279 = vmatmul.mubr.bf16.gmra.mrb[0].mxu0 %v6241
      %v6280 = vpop.f32.mrb[0].mxu0
      %v6281 = vadd.f32 %v6215, %v6280
      %v6282 = vpop.f32.mrb[0].mxu0
      %v6283 = vpop.f32.mrb[0].mxu0
      %v6284 = vadd.f32 %v6215, %v6283
      %v6285 = vpop.f32.mrb[0].mxu0
      %6286 = vmatprep.mubr.bf16.mxu0 0
      %6287 = vmatmul.mubr.bf16.gmra.mrb[0].mxu0 %v6244
      %v6288 = vpop.f32.mrb[0].mxu0
      %v6289 = vadd.f32 %v6215, %v6288
      %v6290 = vpop.f32.mrb[0].mxu0
      %v6291 = vpop.f32.mrb[0].mxu0
      %v6292 = vadd.f32 %v6215, %v6291
      %v6293 = vpop.f32.mrb[0].mxu0
      %6294 = vdwg.mxu0
      %v6295 = vadd.f32 %v6281, %v6117
      %v6296 = vadd.f32 %v6284, %v6118
      %v6297 = vadd.f32 %v6289, %v6119
      %v6298 = vadd.f32 %v6292, %v6120
      %v6299 = vsel %vm622, %v6295, 0.0
      %6300 = vadd.xlane.f32.xlu0 %v6299
      %v6301 = vpop.xlane.xlu0 %6300
      %v6302 = vsel %vm622, %v6296, 0.0
      %6303 = vadd.xlane.f32.xlu0 %v6302
      %v6304 = vpop.xlane.xlu0 %6303
      %v6305 = vsel %vm622, %v6297, 0.0
      %6306 = vadd.xlane.f32.xlu0 %v6305
      %v6307 = vpop.xlane.xlu0 %6306
      %v6308 = vsel %vm622, %v6298, 0.0
      %6309 = vadd.xlane.f32.xlu0 %v6308
      %v6310 = vpop.xlane.xlu0 %6309
      %v6311 = vmul.f32 %v6301, %v2924
      %v6312 = vmul.f32 %v6304, %v2924
      %v6313 = vmul.f32 %v6307, %v2924
      %v6314 = vmul.f32 %v6310, %v2924
      %v6315 = vsub.f32 %v6295, %v6311
      %v6316 = vsub.f32 %v6296, %v6312
      %v6317 = vsub.f32 %v6297, %v6313
      %v6318 = vsub.f32 %v6298, %v6314
      %v6319 = vmul.f32 %v6315, %v6315
      %v6320 = vmul.f32 %v6316, %v6316
      %v6321 = vmul.f32 %v6317, %v6317
      %v6322 = vmul.f32 %v6318, %v6318
      %v6323 = vsel %vm622, %v6319, 0.0
      %6324 = vadd.xlane.f32.xlu0 %v6323
      %v6325 = vpop.xlane.xlu0 %6324
      %v6326 = vsel %vm622, %v6320, 0.0
      %6327 = vadd.xlane.f32.xlu0 %v6326
      %v6328 = vpop.xlane.xlu0 %6327
      %v6329 = vsel %vm622, %v6321, 0.0
      %6330 = vadd.xlane.f32.xlu0 %v6329
      %v6331 = vpop.xlane.xlu0 %6330
      %v6332 = vsel %vm622, %v6322, 0.0
      %6333 = vadd.xlane.f32.xlu0 %v6332
      %v6334 = vpop.xlane.xlu0 %6333
      %v6335 = vmul.f32 %v6325, %v2924
      %v6336 = vmul.f32 %v6328, %v2924
      %v6337 = vmul.f32 %v6331, %v2924
      %v6338 = vmul.f32 %v6334, %v2924
      %v6339 = vadd.f32 %v6335, 1e-05
      %v6340 = vadd.f32 %v6336, 1e-05
      %v6341 = vadd.f32 %v6337, 1e-05
      %v6342 = vadd.f32 %v6338, 1e-05
      %v6343 = vrsqrt.pop %v6339
      %v6344 = vrsqrt.pop %v6340
      %v6345 = vrsqrt.pop %v6341
      %v6346 = vrsqrt.pop %v6342
      %v6347 = vmul.f32 %v6315, %v6343
      %v6348 = vmul.f32 %v6316, %v6344
      %v6349 = vmul.f32 %v6317, %v6345
      %v6350 = vmul.f32 %v6318, %v6346
      %v6351 = vlaneseq
      %v6352 = vshrl.u32 %v6351, 7
      %v6353 = vsub.s32 4, %v6352
      %v6354 = vrot.slane %v234, %v6353
      %v6355 = vmul.f32 %v6347, %v6354
      %v6356 = vmul.f32 %v6348, %v6354
      %v6357 = vmul.f32 %v6349, %v6354
      %v6358 = vmul.f32 %v6350, %v6354
      %v6359 = vlaneseq
      %v6360 = vshrl.u32 %v6359, 7
      %v6361 = vsub.s32 5, %v6360
      %v6362 = vrot.slane %v234, %v6361
      %v6363 = vadd.f32 %v6355, %v6362
      %v6364 = vadd.f32 %v6356, %v6362
      %v6365 = vadd.f32 %v6357, %v6362
      %v6366 = vadd.f32 %v6358, %v6362
      %v6367 = vld [vmem:[%s3 + $0x140] sm:$0xf]
      %v6368 = vld [vmem:[%s3 + $0x144] sm:$0xf]
      %v6369 = vld [vmem:[%s3 + $0x148] sm:$0xf]
      %v6370 = vld [vmem:[%s3 + $0x14c] sm:$0xf]
      %v6371 = vpack.c.bf16 %v6364, %v6363
      %v6372 = vpack.c.bf16 %v6366, %v6365
      %v6373 = vlaneseq
      %v6374 = vshrl.u32 %v6373, 7
      %v6375 = vsub.s32 6, %v6374
      %v6376 = vrot.slane %v234, %v6375
      %v6381 = vunpack.c.l.b16 %v6367
      %v6382 = vunpack.c.l.b16 %v6368
      %v6383 = vunpack.c.l.b16 %v6369
      %v6384 = vunpack.c.l.b16 %v6370
      %v6385 = vpack.c.b16 %v6382, %v6381
      %v6386 = vpack.c.b16 %v6384, %v6383
      %v6390 = vsel %vm622, %v6371, 0
      %v6393 = vsel %vm622, %v6372, 0
      %6395 = vmatprep.subr.bf16.mxu0 0
      %6396 = vmatpush1.bf16.msra.mxu0 %v6385
      %6397 = vmatprep.subr.bf16.mxu0 0
      %6398 = vmatpush1.bf16.msra.mxu0 %v6386
      %6399 = vmatprep.subr.bf16.mxu0 0
      %6400 = vmatpush1.bf16.msra.mxu0 0
      %6401 = vmatprep.subr.bf16.mxu0 0
      %6402 = vmatpush1.bf16.msra.mxu0 0
      %6403 = vmatprep.subr.bf16.mxu0 0
      %6404 = vmatpush1.bf16.msra.mxu0 0
      %6405 = vmatprep.subr.bf16.mxu0 0
      %6406 = vmatpush1.bf16.msra.mxu0 0
      %6407 = vmatprep.subr.bf16.mxu0 0
      %6408 = vmatpush1.bf16.msra.mxu0 0
      %6409 = vmatprep.subr.bf16.mxu0 0
      %6410 = vmatpush1.bf16.msra.mxu0 0
      %6411 = vmatprep.subr.bf16.mxu0 0
      %6412 = vmatpush1.bf16.msra.mxu0 0
      %6413 = vmatprep.subr.bf16.mxu0 0
      %6414 = vmatpush1.bf16.msra.mxu0 0
      %6415 = vmatprep.subr.bf16.mxu0 0
      %6416 = vmatpush1.bf16.msra.mxu0 0
      %6417 = vmatprep.subr.bf16.mxu0 0
      %6418 = vmatpush1.bf16.msra.mxu0 0
      %6419 = vmatprep.subr.bf16.mxu0 0
      %6420 = vmatpush1.bf16.msra.mxu0 0
      %6421 = vmatprep.subr.bf16.mxu0 0
      %6422 = vmatpush1.bf16.msra.mxu0 0
      %6423 = vmatprep.subr.bf16.mxu0 0
      %6424 = vmatpush1.bf16.msra.mxu0 0
      %6425 = vmatprep.subr.bf16.mxu0 0
      %6426 = vmatpush1.bf16.msra.mxu0 0
      %6427 = vmatprep.mubr.bf16.mxu0 0
      %6428 = vmatmul.mubr.bf16.gmra.mrb[0].mxu0 %v6390
      %v6429 = vpop.f32.mrb[0].mxu0
      %v6430 = vadd.f32 %v6376, %v6429
      %v6431 = vpop.f32.mrb[0].mxu0
      %v6432 = vpop.f32.mrb[0].mxu0
      %v6433 = vadd.f32 %v6376, %v6432
      %v6434 = vpop.f32.mrb[0].mxu0
      %6435 = vmatprep.mubr.bf16.mxu0 0
      %6436 = vmatmul.mubr.bf16.gmra.mrb[0].mxu0 %v6393
      %v6437 = vpop.f32.mrb[0].mxu0
      %v6438 = vadd.f32 %v6376, %v6437
      %v6439 = vpop.f32.mrb[0].mxu0
      %v6440 = vpop.f32.mrb[0].mxu0
      %v6441 = vadd.f32 %v6376, %v6440
      %v6442 = vpop.f32.mrb[0].mxu0
      %6443 = vdwg.mxu0
      %v6444 = vlaneseq
      %v6445 = vand.u32 %v6444, 127
      %vm6446 = vcmp.ge.s32.totalorder %v6445, 5
      %v6447 = vxor.u32 %v6430, 2147483648
      %v6448 = vxor.u32 %v6433, 2147483648
      %v6449 = vxor.u32 %v6438, 2147483648
      %v6450 = vxor.u32 %v6441, 2147483648
      %v6451 = vmul.f32 %v6447, 1.442695
      %v6452 = vpow.pop %v6451
      %v6453 = vmul.f32 %v6448, 1.442695
      %v6454 = vpow.pop %v6453
      %v6455 = vmul.f32 %v6449, 1.442695
      %v6456 = vpow.pop %v6455
      %v6457 = vmul.f32 %v6450, 1.442695
      %v6458 = vpow.pop %v6457
      %v6459 = vadd.f32 %v6452, 1.0
      %v6460 = vadd.f32 %v6454, 1.0
      %v6461 = vadd.f32 %v6456, 1.0
      %v6462 = vadd.f32 %v6458, 1.0
      %v6463 = vrcp.pop %v6459
      %v6464 = vmul.f32 1.0, %v6463
      %v6465 = vrcp.pop %v6460
      %v6466 = vmul.f32 1.0, %v6465
      %v6467 = vrcp.pop %v6461
      %v6468 = vmul.f32 1.0, %v6467
      %v6469 = vrcp.pop %v6462
      %v6470 = vmul.f32 1.0, %v6469
      %v6471 = vsel %vm6446, %v6464, %v6430
      %v6472 = vsel %vm6446, %v6466, %v6433
      %v6473 = vsel %vm6446, %v6468, %v6438
      %v6474 = vsel %vm6446, %v6470, %v6441
      %vm6475 = vcmask 72704
      %6476 = vst.msk [vmem:[%s229] sm:$0xff] %vm6475, %v6471
      %6477 = vst.msk [vmem:[%s229 + $0x8] sm:$0xff] %vm6475, %v6472
      %6478 = vst.msk [vmem:[%s229 + $0x10] sm:$0xff] %vm6475, %v6473
      %6479 = vst.msk [vmem:[%s229 + $0x18] sm:$0xff] %vm6475, %v6474
      %s6480 = smul.u32 4, %s16
      %p6481 = scmp.lt.s32.totalorder %s6480, 7
      %s6482 = scalar_select %p6481, %s6480, 7
      %s6483 = smul.addr %s6482, 8
      %s6484 = scalar_lea.vmem %s5, %s6483
      // Predicated region
      $region41: #{mini_detr_forward.1} parent=39 // pred_check
        %p6485 = pneg %p144
      $region42: #{mini_detr_forward.1} parent=39 // pred_check_branch
        %6487 = sbr.rel (%p6485) target = $region44
      $region43: #{mini_detr_forward.1} parent=39 // pred_region
        %s6488 = smul.u32 4, %s16
      $region44: #{mini_detr_forward.1} parent=39 // pred_fallthru
        _
    $region40: #{mini_detr_forward.1} parent=5 // pred_fallthru
      _
    %p6489 = scmp.le.s32.totalorder 2, %s11
    // Predicated region
    $region45: #{mini_detr_forward.1} parent=5 // pred_check
      %p6490 = pneg %p6489
    $region46: #{mini_detr_forward.1} parent=5 // pred_check_branch
      %6492 = sbr.rel (%p6490) target = $region48
    $region47: #{mini_detr_forward.1} parent=5 // pred_region
      %s6493 = ssub.s32 %s11, 2
      // Predicated region
      $region49: #{mini_detr_forward.1} parent=47 // pred_check
        %p6494 = pneg %p150
      $region50: #{mini_detr_forward.1} parent=47 // pred_check_branch
        %6496 = sbr.rel (%p6494) target = $region52
      $region51: #{mini_detr_forward.1} parent=47 // pred_region
        %s6497 = smul.u32 4, %s17
        %p6498 = scmp.lt.s32.totalorder %s6497, 7
        %s6499 = scalar_select %p6498, %s6497, 7
        %s6500 = smul.addr %s6499, 8
        %s6501 = scalar_lea.vmem %s5, %s6500
      $region52: #{mini_detr_forward.1} parent=47 // pred_fallthru
        _
    $region48: #{mini_detr_forward.1} parent=5 // pred_fallthru
      _
  $region6: #{mini_detr_forward.1} parent=0 // loop_footer
    %s15 = sadd.s32 1, %s11
  $region7: #{mini_detr_forward.1} parent=0 // loop_footer_branch
    %10 = sbr.rel target = $region3
  $region8: #{mini_detr_forward.1} parent=0 // loop_exit
    _

</llo_original>
